<compile_context>
chip_gen: v6e
topology: v6e:2x2x1
jax: 0.10.0
libtpu: 0.0.40
codegen_flags: <defaults>
</compile_context>

<pallas_src>
import functools

import jax
import jax.numpy as jnp
import numpy as np
from jax.experimental import pallas as pl
from jax.experimental.pallas import tpu as pltpu

LANES = 128


# --------------------------------------------------------------------------
# Pallas kernel: one batch-tile of b_tile graph pairs per grid step.
# Node-row layout inside a tile (TM = 2*N*b_tile rows):
#   rows [0, b_tile*N)            : graph-1 of pairs p = 0..b_tile-1
#   rows [b_tile*N, 2*b_tile*N)   : graph-2 of pairs p = 0..b_tile-1
# a_ref holds the G = 2*b_tile per-graph normalized adjacencies (G, N, N).
# --------------------------------------------------------------------------
def simgnn_kernel(a_ref, x_ref, wp_ref, bp_ref, seg_ref, segt_ref, out_ref,
                  *, wlay, blay, n_nodes, b_tile):
    f32 = jnp.float32
    bf16 = jnp.bfloat16
    g = 2 * b_tile
    tm = g * n_nodes

    def w(name):                       # bf16 weight block, full 128 lanes
        r0, nr = wlay[name]
        return wp_ref[r0:r0 + nr, :]

    def b(name):                       # f32 bias row, full 128 lanes
        r0, _ = blay[name]
        return bp_ref[r0:r0 + 1, :]

    def mm(x, y):                      # bf16 MXU matmul, f32 accumulate
        return jnp.dot(x.astype(bf16), y.astype(bf16),
                       preferred_element_type=f32)

    a = a_ref[...]                     # (G, N, N)  bf16 normalized adjacency
    seg = seg_ref[...]                 # (G, TM)    bf16 graph-membership selector
    segt = segt_ref[...]               # (TM, G)    bf16 its transpose

    def agg(h):                        # per-graph A_hat @ h, batched over G
        h3 = h.astype(bf16).reshape(g, n_nodes, LANES)
        y = jax.lax.dot_general(a, h3, (((2,), (1,)), ((0,), (0,))),
                                preferred_element_type=f32)
        return y.reshape(tm, LANES)

    # ---- 3-layer GCN, 128-lane-wide intermediates (zero padded) -------------
    h = jnp.maximum(agg(mm(x_ref[...], w("w1"))) + b("b1"), 0.0)
    h = jnp.maximum(agg(mm(h, w("w2"))) + b("b2"), 0.0)
    h = agg(mm(h, w("w3"))) + b("b3")                         # (TM, 128) f32

    # ---- attention pooling (per graph); reductions via selector matmuls ------
    hb = h.astype(bf16)
    means = mm(seg, hb) * (1.0 / n_nodes)                     # (G, 128)
    ctx = jnp.tanh(mm(means, w("att_w")))                     # (G, 128)
    ctx_node = mm(segt, ctx)                                  # (TM, 128)
    coefs = jax.nn.sigmoid(
        jnp.sum(h * ctx_node, axis=-1, keepdims=True))        # (TM, 1) f32 reduce
    pooled = mm(seg, coefs * h)                               # (G, 128)
    e1 = pooled[0:b_tile, :]                                  # (b_tile, 128)
    e2 = pooled[b_tile:g, :]                                  # (b_tile, 128)

    # ---- TensorNetworkModule, flattened & lane-dense --------------------------
    # t[b, k*F3+j]   = sum_i e1[b,i] * W[k,i,j]
    # e2r[b, k*F3+j] = e2[b, j]
    # scoring[b, k]  = sum_j (t * e2r)[b, k*F3+j]
    t = mm(e1, w("ntn_w"))                                    # (b_tile, K*F3)
    e2r = mm(e2, w("rep"))                                    # (b_tile, K*F3)
    scoring = mm(t * e2r, w("blk"))                           # (b_tile, 128)
    block = mm(e1, w("wb1")) + mm(e2, w("wb2"))               # (b_tile, 128)
    scores = jnp.maximum(scoring + block + b("ntn_b"), 0.0)

    # ---- bottleneck MLP + scoring ---------------------------------------------
    hfc = jnp.maximum(mm(scores, w("fc_w")) + b("fc_b"), 0.0)
    logits = (jnp.sum(hfc * b("sc_w_t"), axis=-1, keepdims=True)
              + b("sc_b")[:, :1])                             # (b_tile, 1) f32
    score_col = jax.nn.sigmoid(logits)

    # ---- lane-dense store: score of pair p goes to lane p of the tile --------
    rows = jax.lax.broadcasted_iota(jnp.int32, (b_tile, LANES), 0)
    cols = jax.lax.broadcasted_iota(jnp.int32, (b_tile, LANES), 1)
    sel = (rows == cols).astype(f32)
    row = jnp.sum(score_col * sel, axis=0, keepdims=True)     # (1, 128)
    out_ref[...] = jnp.broadcast_to(row, out_ref.shape).astype(out_ref.dtype)


# --------------------------------------------------------------------------
# Host-side helpers
# --------------------------------------------------------------------------
def _pack_rows(entries, dtype, lanes=LANES):
    """Pack small 2-D tensors row-wise into one zero-padded (rows, lanes) buffer.

    entries: list of (name, array, rows_kernel) -- rows_kernel is the row count
    the kernel will slice (multiple of 8, >= array rows); lanes are zero-padded.
    """
    layout, chunks, row = {}, [], 0
    for name, arr, rows_k in entries:
        arr = jnp.asarray(arr, dtype)
        nr, nc = arr.shape
        assert nr <= rows_k and nc <= lanes and rows_k % 8 == 0
        buf = jnp.zeros((rows_k, lanes), dtype).at[:nr, :nc].set(arr)
        chunks.append(buf)
        layout[name] = (row, rows_k)
        row += rows_k
    return jnp.concatenate(chunks, axis=0), layout


def normalized_adjacency(adj):
    """GCN convention: D^-1/2 (A + I) D^-1/2 (batched over leading dims)."""
    a = adj + jnp.eye(adj.shape[-1], dtype=adj.dtype)
    deg = jnp.sum(a, axis=-1)
    d_inv_sqrt = jnp.where(deg > 0, 1.0 / jnp.sqrt(deg), 0.0)
    return a * d_inv_sqrt[..., :, None] * d_inv_sqrt[..., None, :]


def _default_b_tile(batch):
    """One grid step on single-TC chips (v5e/v6e); two parallel tiles on v7x."""
    try:
        kind = jax.devices()[0].device_kind.lower()
    except Exception:
        kind = ""
    if "v7" in kind and batch % 2 == 0 and batch >= 2:
        return batch // 2
    return batch


def make_simgnn_forward(params, *, b_tile=None):
    """Packs parameters once and returns a jitted batched forward function."""
    K, F3, _ = params["ntn_w"].shape
    L, F1 = params["w1"].shape
    F2 = params["w2"].shape[1]
    BN = params["fc_w"].shape[1]
    assert max(F1, F2, F3, BN, K, K * F3) <= LANES
    Lp = -(-L // 8) * 8                                        # pad L to sublane mult

    # constant structural matrices for the flattened NTN
    rep_np = np.tile(np.eye(F3, dtype=np.float32), (1, K))      # (F3, K*F3)
    blk_np = np.repeat(np.eye(K, dtype=np.float32), F3, axis=0)  # (K*F3, K)
    ntn_flat = jnp.transpose(params["ntn_w"], (1, 0, 2)).reshape(F3, K * F3)

    # packed parameter buffers (bf16 weights, f32 biases), built once
    wpack, wlay = _pack_rows([
        ("w1", params["w1"], Lp),
        ("w2", params["w2"], LANES),
        ("w3", params["w3"], LANES),
        ("att_w", params["att_w"], LANES),
        ("ntn_w", ntn_flat, LANES),
        ("rep", rep_np, LANES),
        ("blk", blk_np, LANES),
        ("wb1", params["ntn_wb1"], LANES),
        ("wb2", params["ntn_wb2"], LANES),
        ("fc_w", params["fc_w"], LANES),
    ], jnp.bfloat16)
    bpack, blay = _pack_rows([
        ("b1", params["b1"], 8), ("b2", params["b2"], 8), ("b3", params["b3"], 8),
        ("ntn_b", params["ntn_b"], 8), ("fc_b", params["fc_b"], 8),
        ("sc_b", params["sc_b"], 8), ("sc_w_t", params["sc_w"].T, 8),
    ], jnp.float32)

    def forward(a1_hat, x1, a2_hat, x2):
        B, N, _ = a1_hat.shape
        assert x1.shape[-1] == L and N % 8 == 0
        bt = b_tile if b_tile is not None else _default_b_tile(B)
        assert B % bt == 0 and bt <= LANES
        num_tiles = B // bt
        G = 2 * bt
        TM = G * N

        # compact per-graph adjacency + stacked features (no Python loops)
        a_stack = jnp.concatenate(
            [a1_hat.reshape(num_tiles, bt, N, N),
             a2_hat.reshape(num_tiles, bt, N, N)], axis=1,
        ).reshape(num_tiles * G, N, N).astype(jnp.bfloat16)
        x_stack = jnp.concatenate(
            [x1.reshape(num_tiles, bt, N, L),
             x2.reshape(num_tiles, bt, N, L)], axis=1,
        ).reshape(num_tiles * TM, L)
        if Lp > L:
            x_stack = jnp.pad(x_stack, ((0, 0), (0, Lp - L)))
        x_stack = x_stack.astype(jnp.bfloat16)

        # constant graph-membership selector (embedded as a jit constant)
        seg_np = np.kron(np.eye(G, dtype=np.float32),
                         np.ones((1, N), dtype=np.float32))      # (G, TM)
        seg = jnp.asarray(seg_np, jnp.bfloat16)
        segt = jnp.asarray(seg_np.T, jnp.bfloat16)

        # advisory cost hint for the XLA scheduler
        W = LANES
        flops = int(2 * num_tiles * (
            TM * W * (Lp + 2 * W)              # node feature transforms
            + 3 * G * N * N * W                # per-graph aggregation
            + 3 * G * TM * W + G * W * W       # attention pooling matmuls
            + TM * W                           # attention logits reduce
            + 7 * bt * W * W + bt * W))        # NTN + MLP + scoring
        transcendentals = int(num_tiles * (G * W + TM + bt))
        nbytes = lambda t: t.size * t.dtype.itemsize
        bytes_accessed = int(nbytes(a_stack) + nbytes(x_stack) + nbytes(wpack)
                             + nbytes(bpack) + nbytes(seg) + nbytes(segt)
                             + num_tiles * 8 * W * 4)

        kernel = functools.partial(simgnn_kernel, wlay=wlay, blay=blay,
                                   n_nodes=N, b_tile=bt)
        out = pl.pallas_call(
            kernel,
            out_shape=jax.ShapeDtypeStruct((num_tiles * 8, LANES), jnp.float32),
            grid=(num_tiles,),
            in_specs=[
                pl.BlockSpec((G, N, N), lambda i: (i, 0, 0)),   # compact adjacency
                pl.BlockSpec((TM, Lp), lambda i: (i, 0)),       # node features
                pl.BlockSpec(wpack.shape, lambda i: (0, 0)),    # packed weights
                pl.BlockSpec(bpack.shape, lambda i: (0, 0)),    # packed biases
                pl.BlockSpec((G, TM), lambda i: (0, 0)),        # segment selector
                pl.BlockSpec((TM, G), lambda i: (0, 0)),        # its transpose
            ],
            out_specs=pl.BlockSpec((8, LANES), lambda i: (i, 0)),
            compiler_params=pltpu.CompilerParams(
                dimension_semantics=("parallel",)),
            cost_estimate=pl.CostEstimate(flops=flops,
                                          transcendentals=transcendentals,
                                          bytes_accessed=bytes_accessed),
        )(a_stack, x_stack, wpack, bpack, seg, segt)
        # lane p of tile t holds the score of pair t*bt + p
        return out.reshape(num_tiles, 8, LANES)[:, 0, :bt].reshape(-1)

    return jax.jit(forward)


# --------------------------------------------------------------------------
# Pure-JAX f32 reference (per-pair math identical to the PyTorch module).
# --------------------------------------------------------------------------
def simgnn_reference(params, a1_hat, x1, a2_hat, x2):
    def single(a1, f1, a2, f2):
        def gcn(a, x):
            h = jnp.maximum(a @ (x @ params["w1"]) + params["b1"], 0.0)
            h = jnp.maximum(a @ (h @ params["w2"]) + params["b2"], 0.0)
            return a @ (h @ params["w3"]) + params["b3"]

        def pool(h):
            mean = jnp.mean(h, axis=0, keepdims=True)
            ctx = jnp.tanh(mean @ params["att_w"])
            coefs = jax.nn.sigmoid(jnp.sum(h * ctx, axis=1, keepdims=True))
            return jnp.sum(coefs * h, axis=0, keepdims=True)

        e1 = pool(gcn(a1, f1))
        e2 = pool(gcn(a2, f2))
        scoring = jnp.einsum("bi,kij,bj->bk", e1, params["ntn_w"], e2)
        block = e1 @ params["ntn_wb1"] + e2 @ params["ntn_wb2"]
        sc = jnp.maximum(scoring + block + params["ntn_b"], 0.0)
        hfc = jnp.maximum(sc @ params["fc_w"] + params["fc_b"], 0.0)
        return jax.nn.sigmoid(hfc @ params["sc_w"] + params["sc_b"]).reshape(())

    return jax.vmap(single)(a1_hat, x1, a2_hat, x2)


if __name__ == "__main__":
    # Config (mirrors the PyTorch args object)
    N = 16                 # nodes per graph
    L = 16                 # number_of_labels
    F1, F2, F3 = 64, 32, 16
    K = 8                  # tensor_neurons
    BN = 16                # bottle_neck_neurons
    B = 16                 # graph pairs in the batch

    key = jax.random.PRNGKey(0)
    keys = jax.random.split(key, 16)

    # --- graph inputs ----------------------------------------------------------
    x1 = jax.random.normal(keys[0], (B, N, L), jnp.float32)
    x2 = jax.random.normal(keys[1], (B, N, L), jnp.float32)

    def rand_adj(k):
        a = (jax.random.uniform(k, (B, N, N)) < 0.3).astype(jnp.float32)
        a = jnp.maximum(a, jnp.swapaxes(a, -1, -2))          # symmetrize
        a = a * (1.0 - jnp.eye(N, dtype=jnp.float32))        # no self loops in A
        return a

    a1_hat = normalized_adjacency(rand_adj(keys[2]))
    a2_hat = normalized_adjacency(rand_adj(keys[3]))

    # --- deterministic parameter init ------------------------------------------
    s = 0.1
    params = {
        "w1": s * jax.random.normal(keys[4], (L, F1), jnp.float32),
        "b1": jnp.zeros((1, F1), jnp.float32),
        "w2": s * jax.random.normal(keys[5], (F1, F2), jnp.float32),
        "b2": jnp.zeros((1, F2), jnp.float32),
        "w3": s * jax.random.normal(keys[6], (F2, F3), jnp.float32),
        "b3": jnp.zeros((1, F3), jnp.float32),
        "att_w": s * jax.random.normal(keys[7], (F3, F3), jnp.float32),
        # NTN weight tensor stored as (K, F3, F3): W_k = ntn_w[k]
        "ntn_w": s * jax.random.normal(keys[8], (K, F3, F3), jnp.float32),
        "ntn_b": s * jax.random.normal(keys[9], (1, K), jnp.float32),
        # block weight (K, 2*F3) pre-split & transposed for right-multiply
        "ntn_wb1": s * jax.random.normal(keys[10], (F3, K), jnp.float32),
        "ntn_wb2": s * jax.random.normal(keys[11], (F3, K), jnp.float32),
        "fc_w": s * jax.random.normal(keys[12], (K, BN), jnp.float32),
        "fc_b": s * jax.random.normal(keys[13], (1, BN), jnp.float32),
        "sc_w": s * jax.random.normal(keys[14], (BN, 1), jnp.float32),
        "sc_b": s * jax.random.normal(keys[15], (1, 1), jnp.float32),
    }

    forward = make_simgnn_forward(params)          # packs params once
    score = jax.block_until_ready(forward(a1_hat, x1, a2_hat, x2))

    ref = simgnn_reference(params, a1_hat, x1, a2_hat, x2)
    # bf16 MXU operands vs. f32 reference -> loosened tolerance.
    np.testing.assert_allclose(np.asarray(score), np.asarray(ref),
                               rtol=5e-2, atol=3e-2)
    print("KERNEL_OK")
</pallas_src>

<mosaic_0001>
module attributes {stable_mosaic.version = 11 : i64} {
  func.func @simgnn_kernel(%arg0: i32, %arg1: memref<32x16x16xbf16, #tpu.memory_space<vmem>>, %arg2: memref<512x16xbf16, #tpu.memory_space<vmem>>, %arg3: memref<1168x128xbf16, #tpu.memory_space<vmem>>, %arg4: memref<56x128xf32, #tpu.memory_space<vmem>>, %arg5: memref<32x512xbf16, #tpu.memory_space<vmem>>, %arg6: memref<512x32xbf16, #tpu.memory_space<vmem>>, %arg7: memref<8x128xf32, #tpu.memory_space<vmem>>) attributes {dimension_semantics = [#tpu.dimension_semantics<parallel>], iteration_bounds = array<i64: 1>, scalar_prefetch = 0 : i64, scratch_operands = 0 : i64, tpu.core_type = #tpu.core_type<tc>, window_params = [{transform_indices = @transform_0, window_bounds = array<i64: 32, 16, 16>}, {transform_indices = @transform_1, window_bounds = array<i64: 512, 16>}, {pipeline_mode = #tpu.pipeline_mode<synchronous>, transform_indices = @transform_2, window_bounds = array<i64: 1168, 128>}, {pipeline_mode = #tpu.pipeline_mode<synchronous>, transform_indices = @transform_3, window_bounds = array<i64: 56, 128>}, {pipeline_mode = #tpu.pipeline_mode<synchronous>, transform_indices = @transform_4, window_bounds = array<i64: 32, 512>}, {pipeline_mode = #tpu.pipeline_mode<synchronous>, transform_indices = @transform_5, window_bounds = array<i64: 512, 32>}, {transform_indices = @transform_6, window_bounds = array<i64: 8, 128>}]} {
    %c0 = arith.constant 0 : index
    %c0_0 = arith.constant 0 : index
    %c0_1 = arith.constant 0 : index
    %0 = vector.load %arg1[%c0, %c0_0, %c0_1] : memref<32x16x16xbf16, #tpu.memory_space<vmem>>, vector<32x16x16xbf16>
    %c0_2 = arith.constant 0 : index
    %c0_3 = arith.constant 0 : index
    %1 = vector.load %arg5[%c0_2, %c0_3] : memref<32x512xbf16, #tpu.memory_space<vmem>>, vector<32x512xbf16>
    %c0_4 = arith.constant 0 : index
    %c0_5 = arith.constant 0 : index
    %2 = vector.load %arg6[%c0_4, %c0_5] : memref<512x32xbf16, #tpu.memory_space<vmem>>, vector<512x32xbf16>
    %c0_6 = arith.constant 0 : index
    %c0_7 = arith.constant 0 : index
    %3 = vector.load %arg2[%c0_6, %c0_7] : memref<512x16xbf16, #tpu.memory_space<vmem>>, vector<512x16xbf16>
    %c0_8 = arith.constant 0 : index
    %c0_9 = arith.constant 0 : index
    %4 = vector.load %arg3[%c0_8, %c0_9] : memref<1168x128xbf16, #tpu.memory_space<vmem>>, vector<16x128xbf16>
    %cst = arith.constant dense<0.000000e+00> : vector<512x128xf32>
    %5 = tpu.matmul %3, %4, %cst {dimension_numbers = #tpu.dot_dimension_numbers<[1], [0], [0], [1], [0, 0, 1, 1], [], []>} : vector<512x16xbf16>, vector<16x128xbf16>, vector<512x128xf32> -> vector<512x128xf32>
    %6 = arith.truncf %5 : vector<512x128xf32> to vector<512x128xbf16>
    %7 = vector.shape_cast %6 : vector<512x128xbf16> to vector<32x16x128xbf16>
    %cst_10 = arith.constant dense<0.000000e+00> : vector<32x16x128xf32>
    %8 = tpu.matmul %0, %7, %cst_10 {dimension_numbers = #tpu.dot_dimension_numbers<[2], [1], [1], [2], [0, 0, 0, 1, 1, 2], [0], [0]>} : vector<32x16x16xbf16>, vector<32x16x128xbf16>, vector<32x16x128xf32> -> vector<32x16x128xf32>
    %9 = vector.shape_cast %8 : vector<32x16x128xf32> to vector<512x128xf32>
    %c0_11 = arith.constant 0 : index
    %c0_12 = arith.constant 0 : index
    %10 = vector.load %arg4[%c0_11, %c0_12] : memref<56x128xf32, #tpu.memory_space<vmem>>, vector<1x128xf32>
    %11 = vector.broadcast %10 : vector<1x128xf32> to vector<512x128xf32>
    %12 = arith.addf %9, %11 : vector<512x128xf32>
    %cst_13 = arith.constant 0.000000e+00 : f32
    %13 = vector.broadcast %cst_13 : f32 to vector<512x128xf32>
    %14 = arith.maximumf %12, %13 : vector<512x128xf32>
    %c16 = arith.constant 16 : index
    %c0_14 = arith.constant 0 : index
    %15 = vector.load %arg3[%c16, %c0_14] : memref<1168x128xbf16, #tpu.memory_space<vmem>>, vector<128x128xbf16>
    %16 = arith.truncf %14 : vector<512x128xf32> to vector<512x128xbf16>
    %cst_15 = arith.constant dense<0.000000e+00> : vector<512x128xf32>
    %17 = tpu.matmul %16, %15, %cst_15 {dimension_numbers = #tpu.dot_dimension_numbers<[1], [0], [0], [1], [0, 0, 1, 1], [], []>} : vector<512x128xbf16>, vector<128x128xbf16>, vector<512x128xf32> -> vector<512x128xf32>
    %18 = arith.truncf %17 : vector<512x128xf32> to vector<512x128xbf16>
    %19 = vector.shape_cast %18 : vector<512x128xbf16> to vector<32x16x128xbf16>
    %cst_16 = arith.constant dense<0.000000e+00> : vector<32x16x128xf32>
    %20 = tpu.matmul %0, %19, %cst_16 {dimension_numbers = #tpu.dot_dimension_numbers<[2], [1], [1], [2], [0, 0, 0, 1, 1, 2], [0], [0]>} : vector<32x16x16xbf16>, vector<32x16x128xbf16>, vector<32x16x128xf32> -> vector<32x16x128xf32>
    %21 = vector.shape_cast %20 : vector<32x16x128xf32> to vector<512x128xf32>
    %c8 = arith.constant 8 : index
    %c0_17 = arith.constant 0 : index
    %22 = vector.load %arg4[%c8, %c0_17] : memref<56x128xf32, #tpu.memory_space<vmem>>, vector<1x128xf32>
    %23 = vector.broadcast %22 : vector<1x128xf32> to vector<512x128xf32>
    %24 = arith.addf %21, %23 : vector<512x128xf32>
    %cst_18 = arith.constant 0.000000e+00 : f32
    %25 = vector.broadcast %cst_18 : f32 to vector<512x128xf32>
    %26 = arith.maximumf %24, %25 : vector<512x128xf32>
    %c144 = arith.constant 144 : index
    %c0_19 = arith.constant 0 : index
    %27 = vector.load %arg3[%c144, %c0_19] : memref<1168x128xbf16, #tpu.memory_space<vmem>>, vector<128x128xbf16>
    %28 = arith.truncf %26 : vector<512x128xf32> to vector<512x128xbf16>
    %cst_20 = arith.constant dense<0.000000e+00> : vector<512x128xf32>
    %29 = tpu.matmul %28, %27, %cst_20 {dimension_numbers = #tpu.dot_dimension_numbers<[1], [0], [0], [1], [0, 0, 1, 1], [], []>} : vector<512x128xbf16>, vector<128x128xbf16>, vector<512x128xf32> -> vector<512x128xf32>
    %30 = arith.truncf %29 : vector<512x128xf32> to vector<512x128xbf16>
    %31 = vector.shape_cast %30 : vector<512x128xbf16> to vector<32x16x128xbf16>
    %cst_21 = arith.constant dense<0.000000e+00> : vector<32x16x128xf32>
    %32 = tpu.matmul %0, %31, %cst_21 {dimension_numbers = #tpu.dot_dimension_numbers<[2], [1], [1], [2], [0, 0, 0, 1, 1, 2], [0], [0]>} : vector<32x16x16xbf16>, vector<32x16x128xbf16>, vector<32x16x128xf32> -> vector<32x16x128xf32>
    %33 = vector.shape_cast %32 : vector<32x16x128xf32> to vector<512x128xf32>
    %c16_22 = arith.constant 16 : index
    %c0_23 = arith.constant 0 : index
    %34 = vector.load %arg4[%c16_22, %c0_23] : memref<56x128xf32, #tpu.memory_space<vmem>>, vector<1x128xf32>
    %35 = vector.broadcast %34 : vector<1x128xf32> to vector<512x128xf32>
    %36 = arith.addf %33, %35 : vector<512x128xf32>
    %37 = arith.truncf %36 : vector<512x128xf32> to vector<512x128xbf16>
    %cst_24 = arith.constant dense<0.000000e+00> : vector<32x128xf32>
    %38 = tpu.matmul %1, %37, %cst_24 {dimension_numbers = #tpu.dot_dimension_numbers<[1], [0], [0], [1], [0, 0, 1, 1], [], []>} : vector<32x512xbf16>, vector<512x128xbf16>, vector<32x128xf32> -> vector<32x128xf32>
    %cst_25 = arith.constant 6.250000e-02 : f32
    %39 = vector.broadcast %cst_25 : f32 to vector<32x128xf32>
    %40 = arith.mulf %38, %39 : vector<32x128xf32>
    %c272 = arith.constant 272 : index
    %c0_26 = arith.constant 0 : index
    %41 = vector.load %arg3[%c272, %c0_26] : memref<1168x128xbf16, #tpu.memory_space<vmem>>, vector<128x128xbf16>
    %42 = arith.truncf %40 : vector<32x128xf32> to vector<32x128xbf16>
    %cst_27 = arith.constant dense<0.000000e+00> : vector<32x128xf32>
    %43 = tpu.matmul %42, %41, %cst_27 {dimension_numbers = #tpu.dot_dimension_numbers<[1], [0], [0], [1], [0, 0, 1, 1], [], []>} : vector<32x128xbf16>, vector<128x128xbf16>, vector<32x128xf32> -> vector<32x128xf32>
    %44 = math.tanh %43 : vector<32x128xf32>
    %45 = arith.truncf %44 : vector<32x128xf32> to vector<32x128xbf16>
    %cst_28 = arith.constant dense<0.000000e+00> : vector<512x128xf32>
    %46 = tpu.matmul %2, %45, %cst_28 {dimension_numbers = #tpu.dot_dimension_numbers<[1], [0], [0], [1], [0, 0, 1, 1], [], []>} : vector<512x32xbf16>, vector<32x128xbf16>, vector<512x128xf32> -> vector<512x128xf32>
    %47 = arith.mulf %36, %46 : vector<512x128xf32>
    %cst_29 = arith.constant dense<0.000000e+00> : vector<512xf32>
    %48 = vector.multi_reduction <add>, %47, %cst_29 [1] : vector<512x128xf32> to vector<512xf32>
    %49 = vector.shape_cast %48 : vector<512xf32> to vector<512x1xf32>
    %50 = arith.negf %49 : vector<512x1xf32>
    %51 = math.exp %50 : vector<512x1xf32>
    %cst_30 = arith.constant 1.000000e+00 : f32
    %52 = vector.broadcast %cst_30 : f32 to vector<512x1xf32>
    %53 = arith.addf %52, %51 : vector<512x1xf32>
    %54 = arith.divf %52, %53 : vector<512x1xf32>
    %55 = vector.broadcast %54 : vector<512x1xf32> to vector<512x128xf32>
    %56 = arith.mulf %55, %36 : vector<512x128xf32>
    %57 = arith.truncf %56 : vector<512x128xf32> to vector<512x128xbf16>
    %cst_31 = arith.constant dense<0.000000e+00> : vector<32x128xf32>
    %58 = tpu.matmul %1, %57, %cst_31 {dimension_numbers = #tpu.dot_dimension_numbers<[1], [0], [0], [1], [0, 0, 1, 1], [], []>} : vector<32x512xbf16>, vector<512x128xbf16>, vector<32x128xf32> -> vector<32x128xf32>
    %59 = vector.extract_strided_slice %58 {offsets = [0, 0], sizes = [16, 128], strides = [1, 1]} : vector<32x128xf32> to vector<16x128xf32>
    %60 = vector.extract_strided_slice %58 {offsets = [16, 0], sizes = [16, 128], strides = [1, 1]} : vector<32x128xf32> to vector<16x128xf32>
    %c400 = arith.constant 400 : index
    %c0_32 = arith.constant 0 : index
    %61 = vector.load %arg3[%c400, %c0_32] : memref<1168x128xbf16, #tpu.memory_space<vmem>>, vector<128x128xbf16>
    %62 = arith.truncf %59 : vector<16x128xf32> to vector<16x128xbf16>
    %cst_33 = arith.constant dense<0.000000e+00> : vector<16x128xf32>
    %63 = tpu.matmul %62, %61, %cst_33 {dimension_numbers = #tpu.dot_dimension_numbers<[1], [0], [0], [1], [0, 0, 1, 1], [], []>} : vector<16x128xbf16>, vector<128x128xbf16>, vector<16x128xf32> -> vector<16x128xf32>
    %c528 = arith.constant 528 : index
    %c0_34 = arith.constant 0 : index
    %64 = vector.load %arg3[%c528, %c0_34] : memref<1168x128xbf16, #tpu.memory_space<vmem>>, vector<128x128xbf16>
    %65 = arith.truncf %60 : vector<16x128xf32> to vector<16x128xbf16>
    %cst_35 = arith.constant dense<0.000000e+00> : vector<16x128xf32>
    %66 = tpu.matmul %65, %64, %cst_35 {dimension_numbers = #tpu.dot_dimension_numbers<[1], [0], [0], [1], [0, 0, 1, 1], [], []>} : vector<16x128xbf16>, vector<128x128xbf16>, vector<16x128xf32> -> vector<16x128xf32>
    %67 = arith.mulf %63, %66 : vector<16x128xf32>
    %c656 = arith.constant 656 : index
    %c0_36 = arith.constant 0 : index
    %68 = vector.load %arg3[%c656, %c0_36] : memref<1168x128xbf16, #tpu.memory_space<vmem>>, vector<128x128xbf16>
    %69 = arith.truncf %67 : vector<16x128xf32> to vector<16x128xbf16>
    %cst_37 = arith.constant dense<0.000000e+00> : vector<16x128xf32>
    %70 = tpu.matmul %69, %68, %cst_37 {dimension_numbers = #tpu.dot_dimension_numbers<[1], [0], [0], [1], [0, 0, 1, 1], [], []>} : vector<16x128xbf16>, vector<128x128xbf16>, vector<16x128xf32> -> vector<16x128xf32>
    %c784 = arith.constant 784 : index
    %c0_38 = arith.constant 0 : index
    %71 = vector.load %arg3[%c784, %c0_38] : memref<1168x128xbf16, #tpu.memory_space<vmem>>, vector<128x128xbf16>
    %72 = arith.truncf %59 : vector<16x128xf32> to vector<16x128xbf16>
    %cst_39 = arith.constant dense<0.000000e+00> : vector<16x128xf32>
    %73 = tpu.matmul %72, %71, %cst_39 {dimension_numbers = #tpu.dot_dimension_numbers<[1], [0], [0], [1], [0, 0, 1, 1], [], []>} : vector<16x128xbf16>, vector<128x128xbf16>, vector<16x128xf32> -> vector<16x128xf32>
    %c912 = arith.constant 912 : index
    %c0_40 = arith.constant 0 : index
    %74 = vector.load %arg3[%c912, %c0_40] : memref<1168x128xbf16, #tpu.memory_space<vmem>>, vector<128x128xbf16>
    %75 = arith.truncf %60 : vector<16x128xf32> to vector<16x128xbf16>
    %cst_41 = arith.constant dense<0.000000e+00> : vector<16x128xf32>
    %76 = tpu.matmul %75, %74, %cst_41 {dimension_numbers = #tpu.dot_dimension_numbers<[1], [0], [0], [1], [0, 0, 1, 1], [], []>} : vector<16x128xbf16>, vector<128x128xbf16>, vector<16x128xf32> -> vector<16x128xf32>
    %77 = arith.addf %73, %76 : vector<16x128xf32>
    %78 = arith.addf %70, %77 : vector<16x128xf32>
    %c24 = arith.constant 24 : index
    %c0_42 = arith.constant 0 : index
    %79 = vector.load %arg4[%c24, %c0_42] : memref<56x128xf32, #tpu.memory_space<vmem>>, vector<1x128xf32>
    %80 = vector.broadcast %79 : vector<1x128xf32> to vector<16x128xf32>
    %81 = arith.addf %78, %80 : vector<16x128xf32>
    %cst_43 = arith.constant 0.000000e+00 : f32
    %82 = vector.broadcast %cst_43 : f32 to vector<16x128xf32>
    %83 = arith.maximumf %81, %82 : vector<16x128xf32>
    %c1040 = arith.constant 1040 : index
    %c0_44 = arith.constant 0 : index
    %84 = vector.load %arg3[%c1040, %c0_44] : memref<1168x128xbf16, #tpu.memory_space<vmem>>, vector<128x128xbf16>
    %85 = arith.truncf %83 : vector<16x128xf32> to vector<16x128xbf16>
    %cst_45 = arith.constant dense<0.000000e+00> : vector<16x128xf32>
    %86 = tpu.matmul %85, %84, %cst_45 {dimension_numbers = #tpu.dot_dimension_numbers<[1], [0], [0], [1], [0, 0, 1, 1], [], []>} : vector<16x128xbf16>, vector<128x128xbf16>, vector<16x128xf32> -> vector<16x128xf32>
    %c32 = arith.constant 32 : index
    %c0_46 = arith.constant 0 : index
    %87 = vector.load %arg4[%c32, %c0_46] : memref<56x128xf32, #tpu.memory_space<vmem>>, vector<1x128xf32>
    %88 = vector.broadcast %87 : vector<1x128xf32> to vector<16x128xf32>
    %89 = arith.addf %86, %88 : vector<16x128xf32>
    %cst_47 = arith.constant 0.000000e+00 : f32
    %90 = vector.broadcast %cst_47 : f32 to vector<16x128xf32>
    %91 = arith.maximumf %89, %90 : vector<16x128xf32>
    %c48 = arith.constant 48 : index
    %c0_48 = arith.constant 0 : index
    %92 = vector.load %arg4[%c48, %c0_48] : memref<56x128xf32, #tpu.memory_space<vmem>>, vector<1x128xf32>
    %93 = vector.broadcast %92 : vector<1x128xf32> to vector<16x128xf32>
    %94 = arith.mulf %91, %93 : vector<16x128xf32>
    %cst_49 = arith.constant dense<0.000000e+00> : vector<16xf32>
    %95 = vector.multi_reduction <add>, %94, %cst_49 [1] : vector<16x128xf32> to vector<16xf32>
    %96 = vector.shape_cast %95 : vector<16xf32> to vector<16x1xf32>
    %c40 = arith.constant 40 : index
    %c0_50 = arith.constant 0 : index
    %97 = vector.load %arg4[%c40, %c0_50] : memref<56x128xf32, #tpu.memory_space<vmem>>, vector<1x128xf32>
    %98 = vector.extract_strided_slice %97 {offsets = [0, 0], sizes = [1, 1], strides = [1, 1]} : vector<1x128xf32> to vector<1x1xf32>
    %99 = vector.broadcast %98 : vector<1x1xf32> to vector<16x1xf32>
    %100 = arith.addf %96, %99 : vector<16x1xf32>
    %101 = arith.negf %100 : vector<16x1xf32>
    %102 = math.exp %101 : vector<16x1xf32>
    %cst_51 = arith.constant 1.000000e+00 : f32
    %103 = vector.broadcast %cst_51 : f32 to vector<16x1xf32>
    %104 = arith.addf %103, %102 : vector<16x1xf32>
    %105 = arith.divf %103, %104 : vector<16x1xf32>
    %106 = tpu.iota {dimensions = array<i32: 0>} : vector<16x128xi32>
    %107 = tpu.iota {dimensions = array<i32: 1>} : vector<16x128xi32>
    %108 = arith.cmpi eq, %106, %107 : vector<16x128xi32>
    %109 = arith.extui %108 : vector<16x128xi1> to vector<16x128xi32>
    %110 = arith.sitofp %109 : vector<16x128xi32> to vector<16x128xf32>
    %111 = vector.broadcast %105 : vector<16x1xf32> to vector<16x128xf32>
    %112 = arith.mulf %111, %110 : vector<16x128xf32>
    %cst_52 = arith.constant dense<0.000000e+00> : vector<128xf32>
    %113 = vector.multi_reduction <add>, %112, %cst_52 [0] : vector<16x128xf32> to vector<128xf32>
    %114 = vector.shape_cast %113 : vector<128xf32> to vector<1x128xf32>
    %115 = vector.shape_cast %114 : vector<1x128xf32> to vector<1x128xf32>
    %116 = vector.broadcast %115 : vector<1x128xf32> to vector<8x128xf32>
    %c0_53 = arith.constant 0 : index
    %c0_54 = arith.constant 0 : index
    %117 = vector.load %arg7[%c0_53, %c0_54] : memref<8x128xf32, #tpu.memory_space<vmem>>, vector<8x128xf32>
    tpu.vector_store %arg7[%c0_53, %c0_54], %116 {strides = array<i32>} : memref<8x128xf32, #tpu.memory_space<vmem>>, vector<8x128xf32>,
    return
  }
  func.func @transform_0(%arg0: i32) -> (i32, i32, i32) {
    %c0_i32 = arith.constant 0 : i32
    %c0_i32_0 = arith.constant 0 : i32
    %c0_i32_1 = arith.constant 0 : i32
    return %arg0, %c0_i32, %c0_i32_0 : i32, i32, i32
  }
  func.func @transform_1(%arg0: i32) -> (i32, i32) {
    %c0_i32 = arith.constant 0 : i32
    %c0_i32_0 = arith.constant 0 : i32
    return %arg0, %c0_i32 : i32, i32
  }
  func.func @transform_2(%arg0: i32) -> (i32, i32) {
    %c0_i32 = arith.constant 0 : i32
    %c0_i32_0 = arith.constant 0 : i32
    %c0_i32_1 = arith.constant 0 : i32
    return %c0_i32, %c0_i32_0 : i32, i32
  }
  func.func @transform_3(%arg0: i32) -> (i32, i32) {
    %c0_i32 = arith.constant 0 : i32
    %c0_i32_0 = arith.constant 0 : i32
    %c0_i32_1 = arith.constant 0 : i32
    return %c0_i32, %c0_i32_0 : i32, i32
  }
  func.func @transform_4(%arg0: i32) -> (i32, i32) {
    %c0_i32 = arith.constant 0 : i32
    %c0_i32_0 = arith.constant 0 : i32
    %c0_i32_1 = arith.constant 0 : i32
    return %c0_i32, %c0_i32_0 : i32, i32
  }
  func.func @transform_5(%arg0: i32) -> (i32, i32) {
    %c0_i32 = arith.constant 0 : i32
    %c0_i32_0 = arith.constant 0 : i32
    %c0_i32_1 = arith.constant 0 : i32
    return %c0_i32, %c0_i32_0 : i32, i32
  }
  func.func @transform_6(%arg0: i32) -> (i32, i32) {
    %c0_i32 = arith.constant 0 : i32
    %c0_i32_0 = arith.constant 0 : i32
    return %arg0, %c0_i32 : i32, i32
  }
}

</mosaic_0001>

<llo_original>
// kernel: forward.1
$region0: #{forward.1}
  #allocation0 [shape = 'u32[]', space=smem, size = 0x4, offset = 0x4, fixed_abs, tag = 'smem constant byte address 0x4 - core index']
  #allocation1 [shape = 'u32[144,128]{1,0:T(1,128)}', space=vmem, size = 0x12000, scoped, tag = 'internal scratch']
  %s0 = inlined_call_operand.vmem [shape: bf16[32,16,16], index: 0, kind: input, shape index: {}]
  %s1 = inlined_call_operand.vmem [shape: bf16[512,16], index: 1, kind: input, shape index: {}]
  %s2 = inlined_call_operand.vmem [shape: bf16[1168,128], index: 2, kind: input, shape index: {}]
  %s3 = inlined_call_operand.vmem [shape: f32[56,128], index: 3, kind: input, shape index: {}]
  %s4 = inlined_call_operand.vmem [shape: bf16[32,512], index: 4, kind: input, shape index: {}]
  %s5 = inlined_call_operand.vmem [shape: bf16[512,32], index: 5, kind: input, shape index: {}]
  %s6 = inlined_call_operand.vmem [shape: f32[8,128], index: 6, kind: output, shape index: {}]
  %s7 = sld [smem:[#allocation0]]
  $region34: #{forward.1} parent=0
    _
  %s9 = ssub.s32 1, %s7
  %s10 = scalar_select 0, %s9, %s7
  // Predicated region
  $region2: #{forward.1} parent=0 // pred_check
    _
  $region3: #{forward.1} parent=0 // pred_check_branch
    %12 = sbr.rel (0) target = $region5
  $region4: #{forward.1} parent=0 // pred_region
    _
  $region5: #{forward.1} parent=0 // pred_fallthru
    _
  // Predicated region
  $region6: #{forward.1} parent=0 // pred_check
    _
  $region7: #{forward.1} parent=0 // pred_check_branch
    %14 = sbr.rel (0) target = $region9
  $region8: #{forward.1} parent=0 // pred_region
    _
  $region9: #{forward.1} parent=0 // pred_fallthru
    _
  // Predicated region
  $region10: #{forward.1} parent=0 // pred_check
    _
  $region11: #{forward.1} parent=0 // pred_check_branch
    %16 = sbr.rel (0) target = $region13
  $region12: #{forward.1} parent=0 // pred_region
    _
  $region13: #{forward.1} parent=0 // pred_fallthru
    _
  // Predicated region
  $region14: #{forward.1} parent=0 // pred_check
    _
  $region15: #{forward.1} parent=0 // pred_check_branch
    %18 = sbr.rel (0) target = $region17
  $region16: #{forward.1} parent=0 // pred_region
    _
  $region17: #{forward.1} parent=0 // pred_fallthru
    _
  // Predicated region
  $region18: #{forward.1} parent=0 // pred_check
    _
  $region19: #{forward.1} parent=0 // pred_check_branch
    %20 = sbr.rel (0) target = $region21
  $region20: #{forward.1} parent=0 // pred_region
    _
  $region21: #{forward.1} parent=0 // pred_fallthru
    _
  // Predicated region
  $region22: #{forward.1} parent=0 // pred_check
    _
  $region23: #{forward.1} parent=0 // pred_check_branch
    %22 = sbr.rel (0) target = $region25
  $region24: #{forward.1} parent=0 // pred_region
    _
  $region25: #{forward.1} parent=0 // pred_fallthru
    _
  %v24 = vld [vmem:[%s0] sm:$0xf]
  %v25 = vld [vmem:[%s0 + $0x4] sm:$0xf]
  %v26 = vld [vmem:[%s0 + $0x8] sm:$0xf]
  %v27 = vld [vmem:[%s0 + $0xc] sm:$0xf]
  %v28 = vld [vmem:[%s0 + $0x10] sm:$0xf]
  %v29 = vld [vmem:[%s0 + $0x14] sm:$0xf]
  %v30 = vld [vmem:[%s0 + $0x18] sm:$0xf]
  %v31 = vld [vmem:[%s0 + $0x1c] sm:$0xf]
  %v32 = vld [vmem:[%s0 + $0x20] sm:$0xf]
  %v33 = vld [vmem:[%s0 + $0x24] sm:$0xf]
  %v34 = vld [vmem:[%s0 + $0x28] sm:$0xf]
  %v35 = vld [vmem:[%s0 + $0x2c] sm:$0xf]
  %v36 = vld [vmem:[%s0 + $0x30] sm:$0xf]
  %v37 = vld [vmem:[%s0 + $0x34] sm:$0xf]
  %v38 = vld [vmem:[%s0 + $0x38] sm:$0xf]
  %v39 = vld [vmem:[%s0 + $0x3c] sm:$0xf]
  %v40 = vld [vmem:[%s0 + $0x40] sm:$0xf]
  %v41 = vld [vmem:[%s0 + $0x44] sm:$0xf]
  %v42 = vld [vmem:[%s0 + $0x48] sm:$0xf]
  %v43 = vld [vmem:[%s0 + $0x4c] sm:$0xf]
  %v44 = vld [vmem:[%s0 + $0x50] sm:$0xf]
  %v45 = vld [vmem:[%s0 + $0x54] sm:$0xf]
  %v46 = vld [vmem:[%s0 + $0x58] sm:$0xf]
  %v47 = vld [vmem:[%s0 + $0x5c] sm:$0xf]
  %v48 = vld [vmem:[%s0 + $0x60] sm:$0xf]
  %v49 = vld [vmem:[%s0 + $0x64] sm:$0xf]
  %v50 = vld [vmem:[%s0 + $0x68] sm:$0xf]
  %v51 = vld [vmem:[%s0 + $0x6c] sm:$0xf]
  %v52 = vld [vmem:[%s0 + $0x70] sm:$0xf]
  %v53 = vld [vmem:[%s0 + $0x74] sm:$0xf]
  %v54 = vld [vmem:[%s0 + $0x78] sm:$0xf]
  %v55 = vld [vmem:[%s0 + $0x7c] sm:$0xf]
  %v56 = vld [vmem:[%s0 + $0x80] sm:$0xf]
  %v57 = vld [vmem:[%s0 + $0x84] sm:$0xf]
  %v58 = vld [vmem:[%s0 + $0x88] sm:$0xf]
  %v59 = vld [vmem:[%s0 + $0x8c] sm:$0xf]
  %v60 = vld [vmem:[%s0 + $0x90] sm:$0xf]
  %v61 = vld [vmem:[%s0 + $0x94] sm:$0xf]
  %v62 = vld [vmem:[%s0 + $0x98] sm:$0xf]
  %v63 = vld [vmem:[%s0 + $0x9c] sm:$0xf]
  %v64 = vld [vmem:[%s0 + $0xa0] sm:$0xf]
  %v65 = vld [vmem:[%s0 + $0xa4] sm:$0xf]
  %v66 = vld [vmem:[%s0 + $0xa8] sm:$0xf]
  %v67 = vld [vmem:[%s0 + $0xac] sm:$0xf]
  %v68 = vld [vmem:[%s0 + $0xb0] sm:$0xf]
  %v69 = vld [vmem:[%s0 + $0xb4] sm:$0xf]
  %v70 = vld [vmem:[%s0 + $0xb8] sm:$0xf]
  %v71 = vld [vmem:[%s0 + $0xbc] sm:$0xf]
  %v72 = vld [vmem:[%s0 + $0xc0] sm:$0xf]
  %v73 = vld [vmem:[%s0 + $0xc4] sm:$0xf]
  %v74 = vld [vmem:[%s0 + $0xc8] sm:$0xf]
  %v75 = vld [vmem:[%s0 + $0xcc] sm:$0xf]
  %v76 = vld [vmem:[%s0 + $0xd0] sm:$0xf]
  %v77 = vld [vmem:[%s0 + $0xd4] sm:$0xf]
  %v78 = vld [vmem:[%s0 + $0xd8] sm:$0xf]
  %v79 = vld [vmem:[%s0 + $0xdc] sm:$0xf]
  %v80 = vld [vmem:[%s0 + $0xe0] sm:$0xf]
  %v81 = vld [vmem:[%s0 + $0xe4] sm:$0xf]
  %v82 = vld [vmem:[%s0 + $0xe8] sm:$0xf]
  %v83 = vld [vmem:[%s0 + $0xec] sm:$0xf]
  %v84 = vld [vmem:[%s0 + $0xf0] sm:$0xf]
  %v85 = vld [vmem:[%s0 + $0xf4] sm:$0xf]
  %v86 = vld [vmem:[%s0 + $0xf8] sm:$0xf]
  %v87 = vld [vmem:[%s0 + $0xfc] sm:$0xf]
  %v88 = vld [vmem:[%s4] sm:$0xff]
  %v89 = vld [vmem:[%s4 + $0x8] sm:$0xff]
  %v90 = vld [vmem:[%s4 + $0x10] sm:$0xff]
  %v91 = vld [vmem:[%s4 + $0x18] sm:$0xff]
  %v92 = vld [vmem:[%s4 + $0x20] sm:$0xff]
  %v93 = vld [vmem:[%s4 + $0x28] sm:$0xff]
  %v94 = vld [vmem:[%s4 + $0x30] sm:$0xff]
  %v95 = vld [vmem:[%s4 + $0x38] sm:$0xff]
  %v96 = vld [vmem:[%s5] sm:$0xf]
  %v97 = vld [vmem:[%s5 + $0x4] sm:$0xf]
  %v98 = vld [vmem:[%s5 + $0x8] sm:$0xf]
  %v99 = vld [vmem:[%s5 + $0xc] sm:$0xf]
  %v100 = vld [vmem:[%s5 + $0x10] sm:$0xf]
  %v101 = vld [vmem:[%s5 + $0x14] sm:$0xf]
  %v102 = vld [vmem:[%s5 + $0x18] sm:$0xf]
  %v103 = vld [vmem:[%s5 + $0x1c] sm:$0xf]
  %v104 = vld [vmem:[%s5 + $0x20] sm:$0xf]
  %v105 = vld [vmem:[%s5 + $0x24] sm:$0xf]
  %v106 = vld [vmem:[%s5 + $0x28] sm:$0xf]
  %v107 = vld [vmem:[%s5 + $0x2c] sm:$0xf]
  %v108 = vld [vmem:[%s5 + $0x30] sm:$0xf]
  %v109 = vld [vmem:[%s5 + $0x34] sm:$0xf]
  %v110 = vld [vmem:[%s5 + $0x38] sm:$0xf]
  %v111 = vld [vmem:[%s5 + $0x3c] sm:$0xf]
  %v112 = vld [vmem:[%s5 + $0x40] sm:$0xf]
  %v113 = vld [vmem:[%s5 + $0x44] sm:$0xf]
  %v114 = vld [vmem:[%s5 + $0x48] sm:$0xf]
  %v115 = vld [vmem:[%s5 + $0x4c] sm:$0xf]
  %v116 = vld [vmem:[%s5 + $0x50] sm:$0xf]
  %v117 = vld [vmem:[%s5 + $0x54] sm:$0xf]
  %v118 = vld [vmem:[%s5 + $0x58] sm:$0xf]
  %v119 = vld [vmem:[%s5 + $0x5c] sm:$0xf]
  %v120 = vld [vmem:[%s5 + $0x60] sm:$0xf]
  %v121 = vld [vmem:[%s5 + $0x64] sm:$0xf]
  %v122 = vld [vmem:[%s5 + $0x68] sm:$0xf]
  %v123 = vld [vmem:[%s5 + $0x6c] sm:$0xf]
  %v124 = vld [vmem:[%s5 + $0x70] sm:$0xf]
  %v125 = vld [vmem:[%s5 + $0x74] sm:$0xf]
  %v126 = vld [vmem:[%s5 + $0x78] sm:$0xf]
  %v127 = vld [vmem:[%s5 + $0x7c] sm:$0xf]
  %v128 = vld [vmem:[%s5 + $0x80] sm:$0xf]
  %v129 = vld [vmem:[%s5 + $0x84] sm:$0xf]
  %v130 = vld [vmem:[%s5 + $0x88] sm:$0xf]
  %v131 = vld [vmem:[%s5 + $0x8c] sm:$0xf]
  %v132 = vld [vmem:[%s5 + $0x90] sm:$0xf]
  %v133 = vld [vmem:[%s5 + $0x94] sm:$0xf]
  %v134 = vld [vmem:[%s5 + $0x98] sm:$0xf]
  %v135 = vld [vmem:[%s5 + $0x9c] sm:$0xf]
  %v136 = vld [vmem:[%s5 + $0xa0] sm:$0xf]
  %v137 = vld [vmem:[%s5 + $0xa4] sm:$0xf]
  %v138 = vld [vmem:[%s5 + $0xa8] sm:$0xf]
  %v139 = vld [vmem:[%s5 + $0xac] sm:$0xf]
  %v140 = vld [vmem:[%s5 + $0xb0] sm:$0xf]
  %v141 = vld [vmem:[%s5 + $0xb4] sm:$0xf]
  %v142 = vld [vmem:[%s5 + $0xb8] sm:$0xf]
  %v143 = vld [vmem:[%s5 + $0xbc] sm:$0xf]
  %v144 = vld [vmem:[%s5 + $0xc0] sm:$0xf]
  %v145 = vld [vmem:[%s5 + $0xc4] sm:$0xf]
  %v146 = vld [vmem:[%s5 + $0xc8] sm:$0xf]
  %v147 = vld [vmem:[%s5 + $0xcc] sm:$0xf]
  %v148 = vld [vmem:[%s5 + $0xd0] sm:$0xf]
  %v149 = vld [vmem:[%s5 + $0xd4] sm:$0xf]
  %v150 = vld [vmem:[%s5 + $0xd8] sm:$0xf]
  %v151 = vld [vmem:[%s5 + $0xdc] sm:$0xf]
  %v152 = vld [vmem:[%s5 + $0xe0] sm:$0xf]
  %v153 = vld [vmem:[%s5 + $0xe4] sm:$0xf]
  %v154 = vld [vmem:[%s5 + $0xe8] sm:$0xf]
  %v155 = vld [vmem:[%s5 + $0xec] sm:$0xf]
  %v156 = vld [vmem:[%s5 + $0xf0] sm:$0xf]
  %v157 = vld [vmem:[%s5 + $0xf4] sm:$0xf]
  %v158 = vld [vmem:[%s5 + $0xf8] sm:$0xf]
  %v159 = vld [vmem:[%s5 + $0xfc] sm:$0xf]
  %v160 = vld [vmem:[%s1] sm:$0xf]
  %v161 = vld [vmem:[%s1 + $0x4] sm:$0xf]
  %v162 = vld [vmem:[%s1 + $0x8] sm:$0xf]
  %v163 = vld [vmem:[%s1 + $0xc] sm:$0xf]
  %v164 = vld [vmem:[%s1 + $0x10] sm:$0xf]
  %v165 = vld [vmem:[%s1 + $0x14] sm:$0xf]
  %v166 = vld [vmem:[%s1 + $0x18] sm:$0xf]
  %v167 = vld [vmem:[%s1 + $0x1c] sm:$0xf]
  %v168 = vld [vmem:[%s1 + $0x20] sm:$0xf]
  %v169 = vld [vmem:[%s1 + $0x24] sm:$0xf]
  %v170 = vld [vmem:[%s1 + $0x28] sm:$0xf]
  %v171 = vld [vmem:[%s1 + $0x2c] sm:$0xf]
  %v172 = vld [vmem:[%s1 + $0x30] sm:$0xf]
  %v173 = vld [vmem:[%s1 + $0x34] sm:$0xf]
  %v174 = vld [vmem:[%s1 + $0x38] sm:$0xf]
  %v175 = vld [vmem:[%s1 + $0x3c] sm:$0xf]
  %v176 = vld [vmem:[%s1 + $0x40] sm:$0xf]
  %v177 = vld [vmem:[%s1 + $0x44] sm:$0xf]
  %v178 = vld [vmem:[%s1 + $0x48] sm:$0xf]
  %v179 = vld [vmem:[%s1 + $0x4c] sm:$0xf]
  %v180 = vld [vmem:[%s1 + $0x50] sm:$0xf]
  %v181 = vld [vmem:[%s1 + $0x54] sm:$0xf]
  %v182 = vld [vmem:[%s1 + $0x58] sm:$0xf]
  %v183 = vld [vmem:[%s1 + $0x5c] sm:$0xf]
  %v184 = vld [vmem:[%s1 + $0x60] sm:$0xf]
  %v185 = vld [vmem:[%s1 + $0x64] sm:$0xf]
  %v186 = vld [vmem:[%s1 + $0x68] sm:$0xf]
  %v187 = vld [vmem:[%s1 + $0x6c] sm:$0xf]
  %v188 = vld [vmem:[%s1 + $0x70] sm:$0xf]
  %v189 = vld [vmem:[%s1 + $0x74] sm:$0xf]
  %v190 = vld [vmem:[%s1 + $0x78] sm:$0xf]
  %v191 = vld [vmem:[%s1 + $0x7c] sm:$0xf]
  %v192 = vld [vmem:[%s1 + $0x80] sm:$0xf]
  %v193 = vld [vmem:[%s1 + $0x84] sm:$0xf]
  %v194 = vld [vmem:[%s1 + $0x88] sm:$0xf]
  %v195 = vld [vmem:[%s1 + $0x8c] sm:$0xf]
  %v196 = vld [vmem:[%s1 + $0x90] sm:$0xf]
  %v197 = vld [vmem:[%s1 + $0x94] sm:$0xf]
  %v198 = vld [vmem:[%s1 + $0x98] sm:$0xf]
  %v199 = vld [vmem:[%s1 + $0x9c] sm:$0xf]
  %v200 = vld [vmem:[%s1 + $0xa0] sm:$0xf]
  %v201 = vld [vmem:[%s1 + $0xa4] sm:$0xf]
  %v202 = vld [vmem:[%s1 + $0xa8] sm:$0xf]
  %v203 = vld [vmem:[%s1 + $0xac] sm:$0xf]
  %v204 = vld [vmem:[%s1 + $0xb0] sm:$0xf]
  %v205 = vld [vmem:[%s1 + $0xb4] sm:$0xf]
  %v206 = vld [vmem:[%s1 + $0xb8] sm:$0xf]
  %v207 = vld [vmem:[%s1 + $0xbc] sm:$0xf]
  %v208 = vld [vmem:[%s1 + $0xc0] sm:$0xf]
  %v209 = vld [vmem:[%s1 + $0xc4] sm:$0xf]
  %v210 = vld [vmem:[%s1 + $0xc8] sm:$0xf]
  %v211 = vld [vmem:[%s1 + $0xcc] sm:$0xf]
  %v212 = vld [vmem:[%s1 + $0xd0] sm:$0xf]
  %v213 = vld [vmem:[%s1 + $0xd4] sm:$0xf]
  %v214 = vld [vmem:[%s1 + $0xd8] sm:$0xf]
  %v215 = vld [vmem:[%s1 + $0xdc] sm:$0xf]
  %v216 = vld [vmem:[%s1 + $0xe0] sm:$0xf]
  %v217 = vld [vmem:[%s1 + $0xe4] sm:$0xf]
  %v218 = vld [vmem:[%s1 + $0xe8] sm:$0xf]
  %v219 = vld [vmem:[%s1 + $0xec] sm:$0xf]
  %v220 = vld [vmem:[%s1 + $0xf0] sm:$0xf]
  %v221 = vld [vmem:[%s1 + $0xf4] sm:$0xf]
  %v222 = vld [vmem:[%s1 + $0xf8] sm:$0xf]
  %v223 = vld [vmem:[%s1 + $0xfc] sm:$0xf]
  %v224 = vld [vmem:[%s2] sm:$0xf]
  %v225 = vld [vmem:[%s2 + $0x4] sm:$0xf]
  %v290 = vunpack.c.l.b16 %v160
  %v291 = vunpack.c.l.b16 %v161
  %v292 = vunpack.c.l.b16 %v162
  %v293 = vunpack.c.l.b16 %v163
  %v294 = vunpack.c.l.b16 %v164
  %v295 = vunpack.c.l.b16 %v165
  %v296 = vunpack.c.l.b16 %v166
  %v297 = vunpack.c.l.b16 %v167
  %v298 = vunpack.c.l.b16 %v168
  %v299 = vunpack.c.l.b16 %v169
  %v300 = vunpack.c.l.b16 %v170
  %v301 = vunpack.c.l.b16 %v171
  %v302 = vunpack.c.l.b16 %v172
  %v303 = vunpack.c.l.b16 %v173
  %v304 = vunpack.c.l.b16 %v174
  %v305 = vunpack.c.l.b16 %v175
  %v306 = vunpack.c.l.b16 %v176
  %v307 = vunpack.c.l.b16 %v177
  %v308 = vunpack.c.l.b16 %v178
  %v309 = vunpack.c.l.b16 %v179
  %v310 = vunpack.c.l.b16 %v180
  %v311 = vunpack.c.l.b16 %v181
  %v312 = vunpack.c.l.b16 %v182
  %v313 = vunpack.c.l.b16 %v183
  %v314 = vunpack.c.l.b16 %v184
  %v315 = vunpack.c.l.b16 %v185
  %v316 = vunpack.c.l.b16 %v186
  %v317 = vunpack.c.l.b16 %v187
  %v318 = vunpack.c.l.b16 %v188
  %v319 = vunpack.c.l.b16 %v189
  %v320 = vunpack.c.l.b16 %v190
  %v321 = vunpack.c.l.b16 %v191
  %v322 = vunpack.c.l.b16 %v192
  %v323 = vunpack.c.l.b16 %v193
  %v324 = vunpack.c.l.b16 %v194
  %v325 = vunpack.c.l.b16 %v195
  %v326 = vunpack.c.l.b16 %v196
  %v327 = vunpack.c.l.b16 %v197
  %v328 = vunpack.c.l.b16 %v198
  %v329 = vunpack.c.l.b16 %v199
  %v330 = vunpack.c.l.b16 %v200
  %v331 = vunpack.c.l.b16 %v201
  %v332 = vunpack.c.l.b16 %v202
  %v333 = vunpack.c.l.b16 %v203
  %v334 = vunpack.c.l.b16 %v204
  %v335 = vunpack.c.l.b16 %v205
  %v336 = vunpack.c.l.b16 %v206
  %v337 = vunpack.c.l.b16 %v207
  %v338 = vunpack.c.l.b16 %v208
  %v339 = vunpack.c.l.b16 %v209
  %v340 = vunpack.c.l.b16 %v210
  %v341 = vunpack.c.l.b16 %v211
  %v342 = vunpack.c.l.b16 %v212
  %v343 = vunpack.c.l.b16 %v213
  %v344 = vunpack.c.l.b16 %v214
  %v345 = vunpack.c.l.b16 %v215
  %v346 = vunpack.c.l.b16 %v216
  %v347 = vunpack.c.l.b16 %v217
  %v348 = vunpack.c.l.b16 %v218
  %v349 = vunpack.c.l.b16 %v219
  %v350 = vunpack.c.l.b16 %v220
  %v351 = vunpack.c.l.b16 %v221
  %v352 = vunpack.c.l.b16 %v222
  %v353 = vunpack.c.l.b16 %v223
  %v354 = vpack.c.b16 %v291, %v290
  %v355 = vpack.c.b16 %v293, %v292
  %v356 = vpack.c.b16 %v295, %v294
  %v357 = vpack.c.b16 %v297, %v296
  %v358 = vpack.c.b16 %v299, %v298
  %v359 = vpack.c.b16 %v301, %v300
  %v360 = vpack.c.b16 %v303, %v302
  %v361 = vpack.c.b16 %v305, %v304
  %v362 = vpack.c.b16 %v307, %v306
  %v363 = vpack.c.b16 %v309, %v308
  %v364 = vpack.c.b16 %v311, %v310
  %v365 = vpack.c.b16 %v313, %v312
  %v366 = vpack.c.b16 %v315, %v314
  %v367 = vpack.c.b16 %v317, %v316
  %v368 = vpack.c.b16 %v319, %v318
  %v369 = vpack.c.b16 %v321, %v320
  %v370 = vpack.c.b16 %v323, %v322
  %v371 = vpack.c.b16 %v325, %v324
  %v372 = vpack.c.b16 %v327, %v326
  %v373 = vpack.c.b16 %v329, %v328
  %v374 = vpack.c.b16 %v331, %v330
  %v375 = vpack.c.b16 %v333, %v332
  %v376 = vpack.c.b16 %v335, %v334
  %v377 = vpack.c.b16 %v337, %v336
  %v378 = vpack.c.b16 %v339, %v338
  %v379 = vpack.c.b16 %v341, %v340
  %v380 = vpack.c.b16 %v343, %v342
  %v381 = vpack.c.b16 %v345, %v344
  %v382 = vpack.c.b16 %v347, %v346
  %v383 = vpack.c.b16 %v349, %v348
  %v384 = vpack.c.b16 %v351, %v350
  %v385 = vpack.c.b16 %v353, %v352
  %v388 = vunpack.c.l.b16 %v224
  %v389 = vunpack.c.l.b16 %v225
  %v390 = vpack.c.b16 %v389, %v388
  %vm392 = vcmask 130048
  %v394 = vsel %vm392, %v354, 0
  %v397 = vsel %vm392, %v355, 0
  %v400 = vsel %vm392, %v356, 0
  %v403 = vsel %vm392, %v357, 0
  %v406 = vsel %vm392, %v358, 0
  %v409 = vsel %vm392, %v359, 0
  %v412 = vsel %vm392, %v360, 0
  %v415 = vsel %vm392, %v361, 0
  %v418 = vsel %vm392, %v362, 0
  %v421 = vsel %vm392, %v363, 0
  %v424 = vsel %vm392, %v364, 0
  %v427 = vsel %vm392, %v365, 0
  %v430 = vsel %vm392, %v366, 0
  %v433 = vsel %vm392, %v367, 0
  %v436 = vsel %vm392, %v368, 0
  %v439 = vsel %vm392, %v369, 0
  %v442 = vsel %vm392, %v370, 0
  %v445 = vsel %vm392, %v371, 0
  %v448 = vsel %vm392, %v372, 0
  %v451 = vsel %vm392, %v373, 0
  %v454 = vsel %vm392, %v374, 0
  %v457 = vsel %vm392, %v375, 0
  %v460 = vsel %vm392, %v376, 0
  %v463 = vsel %vm392, %v377, 0
  %v466 = vsel %vm392, %v378, 0
  %v469 = vsel %vm392, %v379, 0
  %v472 = vsel %vm392, %v380, 0
  %v475 = vsel %vm392, %v381, 0
  %v478 = vsel %vm392, %v382, 0
  %v481 = vsel %vm392, %v383, 0
  %v484 = vsel %vm392, %v384, 0
  %v487 = vsel %vm392, %v385, 0
  %489 = vmatprep.subr.bf16.mxu0 0
  %490 = vmatpush1.bf16.msra.mxu0 0
  %491 = vmatprep.subr.bf16.mxu0 0
  %492 = vmatpush1.bf16.msra.mxu0 0
  %493 = vmatprep.subr.bf16.mxu0 0
  %494 = vmatpush1.bf16.msra.mxu0 0
  %495 = vmatprep.subr.bf16.mxu0 0
  %496 = vmatpush1.bf16.msra.mxu0 0
  %497 = vmatprep.subr.bf16.mxu0 0
  %498 = vmatpush1.bf16.msra.mxu0 0
  %499 = vmatprep.subr.bf16.mxu0 0
  %500 = vmatpush1.bf16.msra.mxu0 0
  %501 = vmatprep.subr.bf16.mxu0 0
  %502 = vmatpush1.bf16.msra.mxu0 0
  %503 = vmatprep.subr.bf16.mxu0 0
  %504 = vmatpush1.bf16.msra.mxu0 %v390
  %505 = vmatprep.subr.bf16.mxu0 0
  %506 = vmatpush2.bf16.msra.mxu0 0
  %507 = vmatprep.subr.bf16.mxu0 0
  %508 = vmatpush2.bf16.msra.mxu0 0
  %509 = vmatprep.subr.bf16.mxu0 0
  %510 = vmatpush2.bf16.msra.mxu0 0
  %511 = vmatprep.subr.bf16.mxu0 0
  %512 = vmatpush2.bf16.msra.mxu0 0
  %513 = vmatprep.subr.bf16.mxu0 0
  %514 = vmatpush2.bf16.msra.mxu0 0
  %515 = vmatprep.subr.bf16.mxu0 0
  %516 = vmatpush2.bf16.msra.mxu0 0
  %517 = vmatprep.subr.bf16.mxu0 0
  %518 = vmatpush2.bf16.msra.mxu0 0
  %519 = vmatprep.subr.bf16.mxu0 0
  %520 = vmatpush2.bf16.msra.mxu0 0
  %521 = vmatprep.mubr.bf16.mxu0 0
  %522 = vmatmul.mubr.bf16.gmra.mxu0 %v394
  %v523 = vpop.f32.mrf.mxu0
  %v524 = vadd.f32 0.0, %v523
  %v525 = vpop.f32.mrf.mxu0
  %v526 = vpop.f32.mrf.mxu0
  %v527 = vadd.f32 0.0, %v526
  %v528 = vpop.f32.mrf.mxu0
  %529 = vmatprep.mubr.bf16.mxu0 0
  %530 = vmatmul.mubr.bf16.gmra.mxu0 %v397
  %v531 = vpop.f32.mrf.mxu0
  %v532 = vadd.f32 0.0, %v531
  %v533 = vpop.f32.mrf.mxu0
  %v534 = vpop.f32.mrf.mxu0
  %v535 = vadd.f32 0.0, %v534
  %v536 = vpop.f32.mrf.mxu0
  %537 = vmatprep.mubr.bf16.mxu0 0
  %538 = vmatmul.mubr.bf16.gmra.mxu0 %v400
  %v539 = vpop.f32.mrf.mxu0
  %v540 = vadd.f32 0.0, %v539
  %v541 = vpop.f32.mrf.mxu0
  %v542 = vpop.f32.mrf.mxu0
  %v543 = vadd.f32 0.0, %v542
  %v544 = vpop.f32.mrf.mxu0
  %545 = vmatprep.mubr.bf16.mxu0 0
  %546 = vmatmul.mubr.bf16.gmra.mxu0 %v403
  %v547 = vpop.f32.mrf.mxu0
  %v548 = vadd.f32 0.0, %v547
  %v549 = vpop.f32.mrf.mxu0
  %v550 = vpop.f32.mrf.mxu0
  %v551 = vadd.f32 0.0, %v550
  %v552 = vpop.f32.mrf.mxu0
  %553 = vmatprep.mubr.bf16.mxu0 0
  %554 = vmatmul.mubr.bf16.gmra.mxu0 %v406
  %v555 = vpop.f32.mrf.mxu0
  %v556 = vadd.f32 0.0, %v555
  %v557 = vpop.f32.mrf.mxu0
  %v558 = vpop.f32.mrf.mxu0
  %v559 = vadd.f32 0.0, %v558
  %v560 = vpop.f32.mrf.mxu0
  %561 = vmatprep.mubr.bf16.mxu0 0
  %562 = vmatmul.mubr.bf16.gmra.mxu0 %v409
  %v563 = vpop.f32.mrf.mxu0
  %v564 = vadd.f32 0.0, %v563
  %v565 = vpop.f32.mrf.mxu0
  %v566 = vpop.f32.mrf.mxu0
  %v567 = vadd.f32 0.0, %v566
  %v568 = vpop.f32.mrf.mxu0
  %569 = vmatprep.mubr.bf16.mxu0 0
  %570 = vmatmul.mubr.bf16.gmra.mxu0 %v412
  %v571 = vpop.f32.mrf.mxu0
  %v572 = vadd.f32 0.0, %v571
  %v573 = vpop.f32.mrf.mxu0
  %v574 = vpop.f32.mrf.mxu0
  %v575 = vadd.f32 0.0, %v574
  %v576 = vpop.f32.mrf.mxu0
  %577 = vmatprep.mubr.bf16.mxu0 0
  %578 = vmatmul.mubr.bf16.gmra.mxu0 %v415
  %v579 = vpop.f32.mrf.mxu0
  %v580 = vadd.f32 0.0, %v579
  %v581 = vpop.f32.mrf.mxu0
  %v582 = vpop.f32.mrf.mxu0
  %v583 = vadd.f32 0.0, %v582
  %v584 = vpop.f32.mrf.mxu0
  %585 = vmatprep.mubr.bf16.mxu0 0
  %586 = vmatmul.mubr.bf16.gmra.mxu0 %v418
  %v587 = vpop.f32.mrf.mxu0
  %v588 = vadd.f32 0.0, %v587
  %v589 = vpop.f32.mrf.mxu0
  %v590 = vpop.f32.mrf.mxu0
  %v591 = vadd.f32 0.0, %v590
  %v592 = vpop.f32.mrf.mxu0
  %593 = vmatprep.mubr.bf16.mxu0 0
  %594 = vmatmul.mubr.bf16.gmra.mxu0 %v421
  %v595 = vpop.f32.mrf.mxu0
  %v596 = vadd.f32 0.0, %v595
  %v597 = vpop.f32.mrf.mxu0
  %v598 = vpop.f32.mrf.mxu0
  %v599 = vadd.f32 0.0, %v598
  %v600 = vpop.f32.mrf.mxu0
  %601 = vmatprep.mubr.bf16.mxu0 0
  %602 = vmatmul.mubr.bf16.gmra.mxu0 %v424
  %v603 = vpop.f32.mrf.mxu0
  %v604 = vadd.f32 0.0, %v603
  %v605 = vpop.f32.mrf.mxu0
  %v606 = vpop.f32.mrf.mxu0
  %v607 = vadd.f32 0.0, %v606
  %v608 = vpop.f32.mrf.mxu0
  %609 = vmatprep.mubr.bf16.mxu0 0
  %610 = vmatmul.mubr.bf16.gmra.mxu0 %v427
  %v611 = vpop.f32.mrf.mxu0
  %v612 = vadd.f32 0.0, %v611
  %v613 = vpop.f32.mrf.mxu0
  %v614 = vpop.f32.mrf.mxu0
  %v615 = vadd.f32 0.0, %v614
  %v616 = vpop.f32.mrf.mxu0
  %617 = vmatprep.mubr.bf16.mxu0 0
  %618 = vmatmul.mubr.bf16.gmra.mxu0 %v430
  %v619 = vpop.f32.mrf.mxu0
  %v620 = vadd.f32 0.0, %v619
  %v621 = vpop.f32.mrf.mxu0
  %v622 = vpop.f32.mrf.mxu0
  %v623 = vadd.f32 0.0, %v622
  %v624 = vpop.f32.mrf.mxu0
  %625 = vmatprep.mubr.bf16.mxu0 0
  %626 = vmatmul.mubr.bf16.gmra.mxu0 %v433
  %v627 = vpop.f32.mrf.mxu0
  %v628 = vadd.f32 0.0, %v627
  %v629 = vpop.f32.mrf.mxu0
  %v630 = vpop.f32.mrf.mxu0
  %v631 = vadd.f32 0.0, %v630
  %v632 = vpop.f32.mrf.mxu0
  %633 = vmatprep.mubr.bf16.mxu0 0
  %634 = vmatmul.mubr.bf16.gmra.mxu0 %v436
  %v635 = vpop.f32.mrf.mxu0
  %v636 = vadd.f32 0.0, %v635
  %v637 = vpop.f32.mrf.mxu0
  %v638 = vpop.f32.mrf.mxu0
  %v639 = vadd.f32 0.0, %v638
  %v640 = vpop.f32.mrf.mxu0
  %641 = vmatprep.mubr.bf16.mxu0 0
  %642 = vmatmul.mubr.bf16.gmra.mxu0 %v439
  %v643 = vpop.f32.mrf.mxu0
  %v644 = vadd.f32 0.0, %v643
  %v645 = vpop.f32.mrf.mxu0
  %v646 = vpop.f32.mrf.mxu0
  %v647 = vadd.f32 0.0, %v646
  %v648 = vpop.f32.mrf.mxu0
  %649 = vmatprep.mubr.bf16.mxu0 0
  %650 = vmatmul.mubr.bf16.gmra.mxu0 %v442
  %v651 = vpop.f32.mrf.mxu0
  %v652 = vadd.f32 0.0, %v651
  %v653 = vpop.f32.mrf.mxu0
  %v654 = vpop.f32.mrf.mxu0
  %v655 = vadd.f32 0.0, %v654
  %v656 = vpop.f32.mrf.mxu0
  %657 = vmatprep.mubr.bf16.mxu0 0
  %658 = vmatmul.mubr.bf16.gmra.mxu0 %v445
  %v659 = vpop.f32.mrf.mxu0
  %v660 = vadd.f32 0.0, %v659
  %v661 = vpop.f32.mrf.mxu0
  %v662 = vpop.f32.mrf.mxu0
  %v663 = vadd.f32 0.0, %v662
  %v664 = vpop.f32.mrf.mxu0
  %665 = vmatprep.mubr.bf16.mxu0 0
  %666 = vmatmul.mubr.bf16.gmra.mxu0 %v448
  %v667 = vpop.f32.mrf.mxu0
  %v668 = vadd.f32 0.0, %v667
  %v669 = vpop.f32.mrf.mxu0
  %v670 = vpop.f32.mrf.mxu0
  %v671 = vadd.f32 0.0, %v670
  %v672 = vpop.f32.mrf.mxu0
  %673 = vmatprep.mubr.bf16.mxu0 0
  %674 = vmatmul.mubr.bf16.gmra.mxu0 %v451
  %v675 = vpop.f32.mrf.mxu0
  %v676 = vadd.f32 0.0, %v675
  %v677 = vpop.f32.mrf.mxu0
  %v678 = vpop.f32.mrf.mxu0
  %v679 = vadd.f32 0.0, %v678
  %v680 = vpop.f32.mrf.mxu0
  %681 = vmatprep.mubr.bf16.mxu0 0
  %682 = vmatmul.mubr.bf16.gmra.mxu0 %v454
  %v683 = vpop.f32.mrf.mxu0
  %v684 = vadd.f32 0.0, %v683
  %v685 = vpop.f32.mrf.mxu0
  %v686 = vpop.f32.mrf.mxu0
  %v687 = vadd.f32 0.0, %v686
  %v688 = vpop.f32.mrf.mxu0
  %689 = vmatprep.mubr.bf16.mxu0 0
  %690 = vmatmul.mubr.bf16.gmra.mxu0 %v457
  %v691 = vpop.f32.mrf.mxu0
  %v692 = vadd.f32 0.0, %v691
  %v693 = vpop.f32.mrf.mxu0
  %v694 = vpop.f32.mrf.mxu0
  %v695 = vadd.f32 0.0, %v694
  %v696 = vpop.f32.mrf.mxu0
  %697 = vmatprep.mubr.bf16.mxu0 0
  %698 = vmatmul.mubr.bf16.gmra.mxu0 %v460
  %v699 = vpop.f32.mrf.mxu0
  %v700 = vadd.f32 0.0, %v699
  %v701 = vpop.f32.mrf.mxu0
  %v702 = vpop.f32.mrf.mxu0
  %v703 = vadd.f32 0.0, %v702
  %v704 = vpop.f32.mrf.mxu0
  %705 = vmatprep.mubr.bf16.mxu0 0
  %706 = vmatmul.mubr.bf16.gmra.mxu0 %v463
  %v707 = vpop.f32.mrf.mxu0
  %v708 = vadd.f32 0.0, %v707
  %v709 = vpop.f32.mrf.mxu0
  %v710 = vpop.f32.mrf.mxu0
  %v711 = vadd.f32 0.0, %v710
  %v712 = vpop.f32.mrf.mxu0
  %713 = vmatprep.mubr.bf16.mxu0 0
  %714 = vmatmul.mubr.bf16.gmra.mxu0 %v466
  %v715 = vpop.f32.mrf.mxu0
  %v716 = vadd.f32 0.0, %v715
  %v717 = vpop.f32.mrf.mxu0
  %v718 = vpop.f32.mrf.mxu0
  %v719 = vadd.f32 0.0, %v718
  %v720 = vpop.f32.mrf.mxu0
  %721 = vmatprep.mubr.bf16.mxu0 0
  %722 = vmatmul.mubr.bf16.gmra.mxu0 %v469
  %v723 = vpop.f32.mrf.mxu0
  %v724 = vadd.f32 0.0, %v723
  %v725 = vpop.f32.mrf.mxu0
  %v726 = vpop.f32.mrf.mxu0
  %v727 = vadd.f32 0.0, %v726
  %v728 = vpop.f32.mrf.mxu0
  %729 = vmatprep.mubr.bf16.mxu0 0
  %730 = vmatmul.mubr.bf16.gmra.mxu0 %v472
  %v731 = vpop.f32.mrf.mxu0
  %v732 = vadd.f32 0.0, %v731
  %v733 = vpop.f32.mrf.mxu0
  %v734 = vpop.f32.mrf.mxu0
  %v735 = vadd.f32 0.0, %v734
  %v736 = vpop.f32.mrf.mxu0
  %737 = vmatprep.mubr.bf16.mxu0 0
  %738 = vmatmul.mubr.bf16.gmra.mxu0 %v475
  %v739 = vpop.f32.mrf.mxu0
  %v740 = vadd.f32 0.0, %v739
  %v741 = vpop.f32.mrf.mxu0
  %v742 = vpop.f32.mrf.mxu0
  %v743 = vadd.f32 0.0, %v742
  %v744 = vpop.f32.mrf.mxu0
  %745 = vmatprep.mubr.bf16.mxu0 0
  %746 = vmatmul.mubr.bf16.gmra.mxu0 %v478
  %v747 = vpop.f32.mrf.mxu0
  %v748 = vadd.f32 0.0, %v747
  %v749 = vpop.f32.mrf.mxu0
  %v750 = vpop.f32.mrf.mxu0
  %v751 = vadd.f32 0.0, %v750
  %v752 = vpop.f32.mrf.mxu0
  %753 = vmatprep.mubr.bf16.mxu0 0
  %754 = vmatmul.mubr.bf16.gmra.mxu0 %v481
  %v755 = vpop.f32.mrf.mxu0
  %v756 = vadd.f32 0.0, %v755
  %v757 = vpop.f32.mrf.mxu0
  %v758 = vpop.f32.mrf.mxu0
  %v759 = vadd.f32 0.0, %v758
  %v760 = vpop.f32.mrf.mxu0
  %761 = vmatprep.mubr.bf16.mxu0 0
  %762 = vmatmul.mubr.bf16.gmra.mxu0 %v484
  %v763 = vpop.f32.mrf.mxu0
  %v764 = vadd.f32 0.0, %v763
  %v765 = vpop.f32.mrf.mxu0
  %v766 = vpop.f32.mrf.mxu0
  %v767 = vadd.f32 0.0, %v766
  %v768 = vpop.f32.mrf.mxu0
  %769 = vmatprep.mubr.bf16.mxu0 0
  %770 = vmatmul.mubr.bf16.gmra.mxu0 %v487
  %v771 = vpop.f32.mrf.mxu0
  %v772 = vadd.f32 0.0, %v771
  %v773 = vpop.f32.mrf.mxu0
  %v774 = vpop.f32.mrf.mxu0
  %v775 = vadd.f32 0.0, %v774
  %v776 = vpop.f32.mrf.mxu0
  %777 = vdwg.mxu0
  %v778 = vpack.c.bf16 %v527, %v524
  %v779 = vpack.c.bf16 %v535, %v532
  %v780 = vpack.c.bf16 %v543, %v540
  %v781 = vpack.c.bf16 %v551, %v548
  %v782 = vpack.c.bf16 %v559, %v556
  %v783 = vpack.c.bf16 %v567, %v564
  %v784 = vpack.c.bf16 %v575, %v572
  %v785 = vpack.c.bf16 %v583, %v580
  %v786 = vpack.c.bf16 %v591, %v588
  %v787 = vpack.c.bf16 %v599, %v596
  %v788 = vpack.c.bf16 %v607, %v604
  %v789 = vpack.c.bf16 %v615, %v612
  %v790 = vpack.c.bf16 %v623, %v620
  %v791 = vpack.c.bf16 %v631, %v628
  %v792 = vpack.c.bf16 %v639, %v636
  %v793 = vpack.c.bf16 %v647, %v644
  %v794 = vpack.c.bf16 %v655, %v652
  %v795 = vpack.c.bf16 %v663, %v660
  %v796 = vpack.c.bf16 %v671, %v668
  %v797 = vpack.c.bf16 %v679, %v676
  %v798 = vpack.c.bf16 %v687, %v684
  %v799 = vpack.c.bf16 %v695, %v692
  %v800 = vpack.c.bf16 %v703, %v700
  %v801 = vpack.c.bf16 %v711, %v708
  %v802 = vpack.c.bf16 %v719, %v716
  %v803 = vpack.c.bf16 %v727, %v724
  %v804 = vpack.c.bf16 %v735, %v732
  %v805 = vpack.c.bf16 %v743, %v740
  %v806 = vpack.c.bf16 %v751, %v748
  %v807 = vpack.c.bf16 %v759, %v756
  %v808 = vpack.c.bf16 %v767, %v764
  %v809 = vpack.c.bf16 %v775, %v772
  %v812 = vunpack.c.l.b16 %v24
  %v813 = vunpack.c.l.b16 %v25
  %v814 = vpack.c.b16 %v813, %v812
  %v816 = vsel %vm392, %v814, 0
  %818 = vmatprep.subr.bf16.mxu0 0
  %819 = vmatpush1.bf16.msra.mxu0 0
  %820 = vmatprep.subr.bf16.mxu0 0
  %821 = vmatpush1.bf16.msra.mxu0 0
  %822 = vmatprep.subr.bf16.mxu0 0
  %823 = vmatpush1.bf16.msra.mxu0 0
  %824 = vmatprep.subr.bf16.mxu0 0
  %825 = vmatpush1.bf16.msra.mxu0 0
  %826 = vmatprep.subr.bf16.mxu0 0
  %827 = vmatpush1.bf16.msra.mxu0 0
  %828 = vmatprep.subr.bf16.mxu0 0
  %829 = vmatpush1.bf16.msra.mxu0 0
  %830 = vmatprep.subr.bf16.mxu0 0
  %831 = vmatpush1.bf16.msra.mxu0 0
  %832 = vmatprep.subr.bf16.mxu0 0
  %833 = vmatpush1.bf16.msra.mxu0 %v778
  %834 = vmatprep.subr.bf16.mxu0 0
  %835 = vmatpush2.bf16.msra.mxu0 0
  %836 = vmatprep.subr.bf16.mxu0 0
  %837 = vmatpush2.bf16.msra.mxu0 0
  %838 = vmatprep.subr.bf16.mxu0 0
  %839 = vmatpush2.bf16.msra.mxu0 0
  %840 = vmatprep.subr.bf16.mxu0 0
  %841 = vmatpush2.bf16.msra.mxu0 0
  %842 = vmatprep.subr.bf16.mxu0 0
  %843 = vmatpush2.bf16.msra.mxu0 0
  %844 = vmatprep.subr.bf16.mxu0 0
  %845 = vmatpush2.bf16.msra.mxu0 0
  %846 = vmatprep.subr.bf16.mxu0 0
  %847 = vmatpush2.bf16.msra.mxu0 0
  %848 = vmatprep.subr.bf16.mxu0 0
  %849 = vmatpush2.bf16.msra.mxu0 0
  %850 = vmatprep.mubr.bf16.mxu0 0
  %851 = vmatmul.mubr.bf16.gmra.mxu0 %v816
  %v852 = vpop.f32.mrf.mxu0
  %v853 = vadd.f32 0.0, %v852
  %v854 = vpop.f32.mrf.mxu0
  %v855 = vpop.f32.mrf.mxu0
  %v856 = vadd.f32 0.0, %v855
  %v857 = vpop.f32.mrf.mxu0
  %858 = vdwg.mxu0
  %v861 = vunpack.c.l.b16 %v26
  %v862 = vunpack.c.l.b16 %v27
  %v863 = vpack.c.b16 %v862, %v861
  %v865 = vsel %vm392, %v863, 0
  %867 = vmatprep.subr.bf16.mxu0 0
  %868 = vmatpush1.bf16.msra.mxu0 0
  %869 = vmatprep.subr.bf16.mxu0 0
  %870 = vmatpush1.bf16.msra.mxu0 0
  %871 = vmatprep.subr.bf16.mxu0 0
  %872 = vmatpush1.bf16.msra.mxu0 0
  %873 = vmatprep.subr.bf16.mxu0 0
  %874 = vmatpush1.bf16.msra.mxu0 0
  %875 = vmatprep.subr.bf16.mxu0 0
  %876 = vmatpush1.bf16.msra.mxu0 0
  %877 = vmatprep.subr.bf16.mxu0 0
  %878 = vmatpush1.bf16.msra.mxu0 0
  %879 = vmatprep.subr.bf16.mxu0 0
  %880 = vmatpush1.bf16.msra.mxu0 0
  %881 = vmatprep.subr.bf16.mxu0 0
  %882 = vmatpush1.bf16.msra.mxu0 %v779
  %883 = vmatprep.subr.bf16.mxu0 0
  %884 = vmatpush2.bf16.msra.mxu0 0
  %885 = vmatprep.subr.bf16.mxu0 0
  %886 = vmatpush2.bf16.msra.mxu0 0
  %887 = vmatprep.subr.bf16.mxu0 0
  %888 = vmatpush2.bf16.msra.mxu0 0
  %889 = vmatprep.subr.bf16.mxu0 0
  %890 = vmatpush2.bf16.msra.mxu0 0
  %891 = vmatprep.subr.bf16.mxu0 0
  %892 = vmatpush2.bf16.msra.mxu0 0
  %893 = vmatprep.subr.bf16.mxu0 0
  %894 = vmatpush2.bf16.msra.mxu0 0
  %895 = vmatprep.subr.bf16.mxu0 0
  %896 = vmatpush2.bf16.msra.mxu0 0
  %897 = vmatprep.subr.bf16.mxu0 0
  %898 = vmatpush2.bf16.msra.mxu0 0
  %899 = vmatprep.mubr.bf16.mxu0 0
  %900 = vmatmul.mubr.bf16.gmra.mxu0 %v865
  %v901 = vpop.f32.mrf.mxu0
  %v902 = vadd.f32 0.0, %v901
  %v903 = vpop.f32.mrf.mxu0
  %v904 = vpop.f32.mrf.mxu0
  %v905 = vadd.f32 0.0, %v904
  %v906 = vpop.f32.mrf.mxu0
  %907 = vdwg.mxu0
  %v910 = vunpack.c.l.b16 %v28
  %v911 = vunpack.c.l.b16 %v29
  %v912 = vpack.c.b16 %v911, %v910
  %v914 = vsel %vm392, %v912, 0
  %916 = vmatprep.subr.bf16.mxu0 0
  %917 = vmatpush1.bf16.msra.mxu0 0
  %918 = vmatprep.subr.bf16.mxu0 0
  %919 = vmatpush1.bf16.msra.mxu0 0
  %920 = vmatprep.subr.bf16.mxu0 0
  %921 = vmatpush1.bf16.msra.mxu0 0
  %922 = vmatprep.subr.bf16.mxu0 0
  %923 = vmatpush1.bf16.msra.mxu0 0
  %924 = vmatprep.subr.bf16.mxu0 0
  %925 = vmatpush1.bf16.msra.mxu0 0
  %926 = vmatprep.subr.bf16.mxu0 0
  %927 = vmatpush1.bf16.msra.mxu0 0
  %928 = vmatprep.subr.bf16.mxu0 0
  %929 = vmatpush1.bf16.msra.mxu0 0
  %930 = vmatprep.subr.bf16.mxu0 0
  %931 = vmatpush1.bf16.msra.mxu0 %v780
  %932 = vmatprep.subr.bf16.mxu0 0
  %933 = vmatpush2.bf16.msra.mxu0 0
  %934 = vmatprep.subr.bf16.mxu0 0
  %935 = vmatpush2.bf16.msra.mxu0 0
  %936 = vmatprep.subr.bf16.mxu0 0
  %937 = vmatpush2.bf16.msra.mxu0 0
  %938 = vmatprep.subr.bf16.mxu0 0
  %939 = vmatpush2.bf16.msra.mxu0 0
  %940 = vmatprep.subr.bf16.mxu0 0
  %941 = vmatpush2.bf16.msra.mxu0 0
  %942 = vmatprep.subr.bf16.mxu0 0
  %943 = vmatpush2.bf16.msra.mxu0 0
  %944 = vmatprep.subr.bf16.mxu0 0
  %945 = vmatpush2.bf16.msra.mxu0 0
  %946 = vmatprep.subr.bf16.mxu0 0
  %947 = vmatpush2.bf16.msra.mxu0 0
  %948 = vmatprep.mubr.bf16.mxu0 0
  %949 = vmatmul.mubr.bf16.gmra.mxu0 %v914
  %v950 = vpop.f32.mrf.mxu0
  %v951 = vadd.f32 0.0, %v950
  %v952 = vpop.f32.mrf.mxu0
  %v953 = vpop.f32.mrf.mxu0
  %v954 = vadd.f32 0.0, %v953
  %v955 = vpop.f32.mrf.mxu0
  %956 = vdwg.mxu0
  %v959 = vunpack.c.l.b16 %v30
  %v960 = vunpack.c.l.b16 %v31
  %v961 = vpack.c.b16 %v960, %v959
  %v963 = vsel %vm392, %v961, 0
  %965 = vmatprep.subr.bf16.mxu0 0
  %966 = vmatpush1.bf16.msra.mxu0 0
  %967 = vmatprep.subr.bf16.mxu0 0
  %968 = vmatpush1.bf16.msra.mxu0 0
  %969 = vmatprep.subr.bf16.mxu0 0
  %970 = vmatpush1.bf16.msra.mxu0 0
  %971 = vmatprep.subr.bf16.mxu0 0
  %972 = vmatpush1.bf16.msra.mxu0 0
  %973 = vmatprep.subr.bf16.mxu0 0
  %974 = vmatpush1.bf16.msra.mxu0 0
  %975 = vmatprep.subr.bf16.mxu0 0
  %976 = vmatpush1.bf16.msra.mxu0 0
  %977 = vmatprep.subr.bf16.mxu0 0
  %978 = vmatpush1.bf16.msra.mxu0 0
  %979 = vmatprep.subr.bf16.mxu0 0
  %980 = vmatpush1.bf16.msra.mxu0 %v781
  %981 = vmatprep.subr.bf16.mxu0 0
  %982 = vmatpush2.bf16.msra.mxu0 0
  %983 = vmatprep.subr.bf16.mxu0 0
  %984 = vmatpush2.bf16.msra.mxu0 0
  %985 = vmatprep.subr.bf16.mxu0 0
  %986 = vmatpush2.bf16.msra.mxu0 0
  %987 = vmatprep.subr.bf16.mxu0 0
  %988 = vmatpush2.bf16.msra.mxu0 0
  %989 = vmatprep.subr.bf16.mxu0 0
  %990 = vmatpush2.bf16.msra.mxu0 0
  %991 = vmatprep.subr.bf16.mxu0 0
  %992 = vmatpush2.bf16.msra.mxu0 0
  %993 = vmatprep.subr.bf16.mxu0 0
  %994 = vmatpush2.bf16.msra.mxu0 0
  %995 = vmatprep.subr.bf16.mxu0 0
  %996 = vmatpush2.bf16.msra.mxu0 0
  %997 = vmatprep.mubr.bf16.mxu0 0
  %998 = vmatmul.mubr.bf16.gmra.mxu0 %v963
  %v999 = vpop.f32.mrf.mxu0
  %v1000 = vadd.f32 0.0, %v999
  %v1001 = vpop.f32.mrf.mxu0
  %v1002 = vpop.f32.mrf.mxu0
  %v1003 = vadd.f32 0.0, %v1002
  %v1004 = vpop.f32.mrf.mxu0
  %1005 = vdwg.mxu0
  %v1008 = vunpack.c.l.b16 %v32
  %v1009 = vunpack.c.l.b16 %v33
  %v1010 = vpack.c.b16 %v1009, %v1008
  %v1012 = vsel %vm392, %v1010, 0
  %1014 = vmatprep.subr.bf16.mxu0 0
  %1015 = vmatpush1.bf16.msra.mxu0 0
  %1016 = vmatprep.subr.bf16.mxu0 0
  %1017 = vmatpush1.bf16.msra.mxu0 0
  %1018 = vmatprep.subr.bf16.mxu0 0
  %1019 = vmatpush1.bf16.msra.mxu0 0
  %1020 = vmatprep.subr.bf16.mxu0 0
  %1021 = vmatpush1.bf16.msra.mxu0 0
  %1022 = vmatprep.subr.bf16.mxu0 0
  %1023 = vmatpush1.bf16.msra.mxu0 0
  %1024 = vmatprep.subr.bf16.mxu0 0
  %1025 = vmatpush1.bf16.msra.mxu0 0
  %1026 = vmatprep.subr.bf16.mxu0 0
  %1027 = vmatpush1.bf16.msra.mxu0 0
  %1028 = vmatprep.subr.bf16.mxu0 0
  %1029 = vmatpush1.bf16.msra.mxu0 %v782
  %1030 = vmatprep.subr.bf16.mxu0 0
  %1031 = vmatpush2.bf16.msra.mxu0 0
  %1032 = vmatprep.subr.bf16.mxu0 0
  %1033 = vmatpush2.bf16.msra.mxu0 0
  %1034 = vmatprep.subr.bf16.mxu0 0
  %1035 = vmatpush2.bf16.msra.mxu0 0
  %1036 = vmatprep.subr.bf16.mxu0 0
  %1037 = vmatpush2.bf16.msra.mxu0 0
  %1038 = vmatprep.subr.bf16.mxu0 0
  %1039 = vmatpush2.bf16.msra.mxu0 0
  %1040 = vmatprep.subr.bf16.mxu0 0
  %1041 = vmatpush2.bf16.msra.mxu0 0
  %1042 = vmatprep.subr.bf16.mxu0 0
  %1043 = vmatpush2.bf16.msra.mxu0 0
  %1044 = vmatprep.subr.bf16.mxu0 0
  %1045 = vmatpush2.bf16.msra.mxu0 0
  %1046 = vmatprep.mubr.bf16.mxu0 0
  %1047 = vmatmul.mubr.bf16.gmra.mxu0 %v1012
  %v1048 = vpop.f32.mrf.mxu0
  %v1049 = vadd.f32 0.0, %v1048
  %v1050 = vpop.f32.mrf.mxu0
  %v1051 = vpop.f32.mrf.mxu0
  %v1052 = vadd.f32 0.0, %v1051
  %v1053 = vpop.f32.mrf.mxu0
  %1054 = vdwg.mxu0
  %v1057 = vunpack.c.l.b16 %v34
  %v1058 = vunpack.c.l.b16 %v35
  %v1059 = vpack.c.b16 %v1058, %v1057
  %v1061 = vsel %vm392, %v1059, 0
  %1063 = vmatprep.subr.bf16.mxu0 0
  %1064 = vmatpush1.bf16.msra.mxu0 0
  %1065 = vmatprep.subr.bf16.mxu0 0
  %1066 = vmatpush1.bf16.msra.mxu0 0
  %1067 = vmatprep.subr.bf16.mxu0 0
  %1068 = vmatpush1.bf16.msra.mxu0 0
  %1069 = vmatprep.subr.bf16.mxu0 0
  %1070 = vmatpush1.bf16.msra.mxu0 0
  %1071 = vmatprep.subr.bf16.mxu0 0
  %1072 = vmatpush1.bf16.msra.mxu0 0
  %1073 = vmatprep.subr.bf16.mxu0 0
  %1074 = vmatpush1.bf16.msra.mxu0 0
  %1075 = vmatprep.subr.bf16.mxu0 0
  %1076 = vmatpush1.bf16.msra.mxu0 0
  %1077 = vmatprep.subr.bf16.mxu0 0
  %1078 = vmatpush1.bf16.msra.mxu0 %v783
  %1079 = vmatprep.subr.bf16.mxu0 0
  %1080 = vmatpush2.bf16.msra.mxu0 0
  %1081 = vmatprep.subr.bf16.mxu0 0
  %1082 = vmatpush2.bf16.msra.mxu0 0
  %1083 = vmatprep.subr.bf16.mxu0 0
  %1084 = vmatpush2.bf16.msra.mxu0 0
  %1085 = vmatprep.subr.bf16.mxu0 0
  %1086 = vmatpush2.bf16.msra.mxu0 0
  %1087 = vmatprep.subr.bf16.mxu0 0
  %1088 = vmatpush2.bf16.msra.mxu0 0
  %1089 = vmatprep.subr.bf16.mxu0 0
  %1090 = vmatpush2.bf16.msra.mxu0 0
  %1091 = vmatprep.subr.bf16.mxu0 0
  %1092 = vmatpush2.bf16.msra.mxu0 0
  %1093 = vmatprep.subr.bf16.mxu0 0
  %1094 = vmatpush2.bf16.msra.mxu0 0
  %1095 = vmatprep.mubr.bf16.mxu0 0
  %1096 = vmatmul.mubr.bf16.gmra.mxu0 %v1061
  %v1097 = vpop.f32.mrf.mxu0
  %v1098 = vadd.f32 0.0, %v1097
  %v1099 = vpop.f32.mrf.mxu0
  %v1100 = vpop.f32.mrf.mxu0
  %v1101 = vadd.f32 0.0, %v1100
  %v1102 = vpop.f32.mrf.mxu0
  %1103 = vdwg.mxu0
  %v1106 = vunpack.c.l.b16 %v36
  %v1107 = vunpack.c.l.b16 %v37
  %v1108 = vpack.c.b16 %v1107, %v1106
  %v1110 = vsel %vm392, %v1108, 0
  %1112 = vmatprep.subr.bf16.mxu0 0
  %1113 = vmatpush1.bf16.msra.mxu0 0
  %1114 = vmatprep.subr.bf16.mxu0 0
  %1115 = vmatpush1.bf16.msra.mxu0 0
  %1116 = vmatprep.subr.bf16.mxu0 0
  %1117 = vmatpush1.bf16.msra.mxu0 0
  %1118 = vmatprep.subr.bf16.mxu0 0
  %1119 = vmatpush1.bf16.msra.mxu0 0
  %1120 = vmatprep.subr.bf16.mxu0 0
  %1121 = vmatpush1.bf16.msra.mxu0 0
  %1122 = vmatprep.subr.bf16.mxu0 0
  %1123 = vmatpush1.bf16.msra.mxu0 0
  %1124 = vmatprep.subr.bf16.mxu0 0
  %1125 = vmatpush1.bf16.msra.mxu0 0
  %1126 = vmatprep.subr.bf16.mxu0 0
  %1127 = vmatpush1.bf16.msra.mxu0 %v784
  %1128 = vmatprep.subr.bf16.mxu0 0
  %1129 = vmatpush2.bf16.msra.mxu0 0
  %1130 = vmatprep.subr.bf16.mxu0 0
  %1131 = vmatpush2.bf16.msra.mxu0 0
  %1132 = vmatprep.subr.bf16.mxu0 0
  %1133 = vmatpush2.bf16.msra.mxu0 0
  %1134 = vmatprep.subr.bf16.mxu0 0
  %1135 = vmatpush2.bf16.msra.mxu0 0
  %1136 = vmatprep.subr.bf16.mxu0 0
  %1137 = vmatpush2.bf16.msra.mxu0 0
  %1138 = vmatprep.subr.bf16.mxu0 0
  %1139 = vmatpush2.bf16.msra.mxu0 0
  %1140 = vmatprep.subr.bf16.mxu0 0
  %1141 = vmatpush2.bf16.msra.mxu0 0
  %1142 = vmatprep.subr.bf16.mxu0 0
  %1143 = vmatpush2.bf16.msra.mxu0 0
  %1144 = vmatprep.mubr.bf16.mxu0 0
  %1145 = vmatmul.mubr.bf16.gmra.mxu0 %v1110
  %v1146 = vpop.f32.mrf.mxu0
  %v1147 = vadd.f32 0.0, %v1146
  %v1148 = vpop.f32.mrf.mxu0
  %v1149 = vpop.f32.mrf.mxu0
  %v1150 = vadd.f32 0.0, %v1149
  %v1151 = vpop.f32.mrf.mxu0
  %1152 = vdwg.mxu0
  %v1155 = vunpack.c.l.b16 %v38
  %v1156 = vunpack.c.l.b16 %v39
  %v1157 = vpack.c.b16 %v1156, %v1155
  %v1159 = vsel %vm392, %v1157, 0
  %1161 = vmatprep.subr.bf16.mxu0 0
  %1162 = vmatpush1.bf16.msra.mxu0 0
  %1163 = vmatprep.subr.bf16.mxu0 0
  %1164 = vmatpush1.bf16.msra.mxu0 0
  %1165 = vmatprep.subr.bf16.mxu0 0
  %1166 = vmatpush1.bf16.msra.mxu0 0
  %1167 = vmatprep.subr.bf16.mxu0 0
  %1168 = vmatpush1.bf16.msra.mxu0 0
  %1169 = vmatprep.subr.bf16.mxu0 0
  %1170 = vmatpush1.bf16.msra.mxu0 0
  %1171 = vmatprep.subr.bf16.mxu0 0
  %1172 = vmatpush1.bf16.msra.mxu0 0
  %1173 = vmatprep.subr.bf16.mxu0 0
  %1174 = vmatpush1.bf16.msra.mxu0 0
  %1175 = vmatprep.subr.bf16.mxu0 0
  %1176 = vmatpush1.bf16.msra.mxu0 %v785
  %1177 = vmatprep.subr.bf16.mxu0 0
  %1178 = vmatpush2.bf16.msra.mxu0 0
  %1179 = vmatprep.subr.bf16.mxu0 0
  %1180 = vmatpush2.bf16.msra.mxu0 0
  %1181 = vmatprep.subr.bf16.mxu0 0
  %1182 = vmatpush2.bf16.msra.mxu0 0
  %1183 = vmatprep.subr.bf16.mxu0 0
  %1184 = vmatpush2.bf16.msra.mxu0 0
  %1185 = vmatprep.subr.bf16.mxu0 0
  %1186 = vmatpush2.bf16.msra.mxu0 0
  %1187 = vmatprep.subr.bf16.mxu0 0
  %1188 = vmatpush2.bf16.msra.mxu0 0
  %1189 = vmatprep.subr.bf16.mxu0 0
  %1190 = vmatpush2.bf16.msra.mxu0 0
  %1191 = vmatprep.subr.bf16.mxu0 0
  %1192 = vmatpush2.bf16.msra.mxu0 0
  %1193 = vmatprep.mubr.bf16.mxu0 0
  %1194 = vmatmul.mubr.bf16.gmra.mxu0 %v1159
  %v1195 = vpop.f32.mrf.mxu0
  %v1196 = vadd.f32 0.0, %v1195
  %v1197 = vpop.f32.mrf.mxu0
  %v1198 = vpop.f32.mrf.mxu0
  %v1199 = vadd.f32 0.0, %v1198
  %v1200 = vpop.f32.mrf.mxu0
  %1201 = vdwg.mxu0
  %v1204 = vunpack.c.l.b16 %v40
  %v1205 = vunpack.c.l.b16 %v41
  %v1206 = vpack.c.b16 %v1205, %v1204
  %v1208 = vsel %vm392, %v1206, 0
  %1210 = vmatprep.subr.bf16.mxu0 0
  %1211 = vmatpush1.bf16.msra.mxu0 0
  %1212 = vmatprep.subr.bf16.mxu0 0
  %1213 = vmatpush1.bf16.msra.mxu0 0
  %1214 = vmatprep.subr.bf16.mxu0 0
  %1215 = vmatpush1.bf16.msra.mxu0 0
  %1216 = vmatprep.subr.bf16.mxu0 0
  %1217 = vmatpush1.bf16.msra.mxu0 0
  %1218 = vmatprep.subr.bf16.mxu0 0
  %1219 = vmatpush1.bf16.msra.mxu0 0
  %1220 = vmatprep.subr.bf16.mxu0 0
  %1221 = vmatpush1.bf16.msra.mxu0 0
  %1222 = vmatprep.subr.bf16.mxu0 0
  %1223 = vmatpush1.bf16.msra.mxu0 0
  %1224 = vmatprep.subr.bf16.mxu0 0
  %1225 = vmatpush1.bf16.msra.mxu0 %v786
  %1226 = vmatprep.subr.bf16.mxu0 0
  %1227 = vmatpush2.bf16.msra.mxu0 0
  %1228 = vmatprep.subr.bf16.mxu0 0
  %1229 = vmatpush2.bf16.msra.mxu0 0
  %1230 = vmatprep.subr.bf16.mxu0 0
  %1231 = vmatpush2.bf16.msra.mxu0 0
  %1232 = vmatprep.subr.bf16.mxu0 0
  %1233 = vmatpush2.bf16.msra.mxu0 0
  %1234 = vmatprep.subr.bf16.mxu0 0
  %1235 = vmatpush2.bf16.msra.mxu0 0
  %1236 = vmatprep.subr.bf16.mxu0 0
  %1237 = vmatpush2.bf16.msra.mxu0 0
  %1238 = vmatprep.subr.bf16.mxu0 0
  %1239 = vmatpush2.bf16.msra.mxu0 0
  %1240 = vmatprep.subr.bf16.mxu0 0
  %1241 = vmatpush2.bf16.msra.mxu0 0
  %1242 = vmatprep.mubr.bf16.mxu0 0
  %1243 = vmatmul.mubr.bf16.gmra.mxu0 %v1208
  %v1244 = vpop.f32.mrf.mxu0
  %v1245 = vadd.f32 0.0, %v1244
  %v1246 = vpop.f32.mrf.mxu0
  %v1247 = vpop.f32.mrf.mxu0
  %v1248 = vadd.f32 0.0, %v1247
  %v1249 = vpop.f32.mrf.mxu0
  %1250 = vdwg.mxu0
  %v1253 = vunpack.c.l.b16 %v42
  %v1254 = vunpack.c.l.b16 %v43
  %v1255 = vpack.c.b16 %v1254, %v1253
  %v1257 = vsel %vm392, %v1255, 0
  %1259 = vmatprep.subr.bf16.mxu0 0
  %1260 = vmatpush1.bf16.msra.mxu0 0
  %1261 = vmatprep.subr.bf16.mxu0 0
  %1262 = vmatpush1.bf16.msra.mxu0 0
  %1263 = vmatprep.subr.bf16.mxu0 0
  %1264 = vmatpush1.bf16.msra.mxu0 0
  %1265 = vmatprep.subr.bf16.mxu0 0
  %1266 = vmatpush1.bf16.msra.mxu0 0
  %1267 = vmatprep.subr.bf16.mxu0 0
  %1268 = vmatpush1.bf16.msra.mxu0 0
  %1269 = vmatprep.subr.bf16.mxu0 0
  %1270 = vmatpush1.bf16.msra.mxu0 0
  %1271 = vmatprep.subr.bf16.mxu0 0
  %1272 = vmatpush1.bf16.msra.mxu0 0
  %1273 = vmatprep.subr.bf16.mxu0 0
  %1274 = vmatpush1.bf16.msra.mxu0 %v787
  %1275 = vmatprep.subr.bf16.mxu0 0
  %1276 = vmatpush2.bf16.msra.mxu0 0
  %1277 = vmatprep.subr.bf16.mxu0 0
  %1278 = vmatpush2.bf16.msra.mxu0 0
  %1279 = vmatprep.subr.bf16.mxu0 0
  %1280 = vmatpush2.bf16.msra.mxu0 0
  %1281 = vmatprep.subr.bf16.mxu0 0
  %1282 = vmatpush2.bf16.msra.mxu0 0
  %1283 = vmatprep.subr.bf16.mxu0 0
  %1284 = vmatpush2.bf16.msra.mxu0 0
  %1285 = vmatprep.subr.bf16.mxu0 0
  %1286 = vmatpush2.bf16.msra.mxu0 0
  %1287 = vmatprep.subr.bf16.mxu0 0
  %1288 = vmatpush2.bf16.msra.mxu0 0
  %1289 = vmatprep.subr.bf16.mxu0 0
  %1290 = vmatpush2.bf16.msra.mxu0 0
  %1291 = vmatprep.mubr.bf16.mxu0 0
  %1292 = vmatmul.mubr.bf16.gmra.mxu0 %v1257
  %v1293 = vpop.f32.mrf.mxu0
  %v1294 = vadd.f32 0.0, %v1293
  %v1295 = vpop.f32.mrf.mxu0
  %v1296 = vpop.f32.mrf.mxu0
  %v1297 = vadd.f32 0.0, %v1296
  %v1298 = vpop.f32.mrf.mxu0
  %1299 = vdwg.mxu0
  %v1302 = vunpack.c.l.b16 %v44
  %v1303 = vunpack.c.l.b16 %v45
  %v1304 = vpack.c.b16 %v1303, %v1302
  %v1306 = vsel %vm392, %v1304, 0
  %1308 = vmatprep.subr.bf16.mxu0 0
  %1309 = vmatpush1.bf16.msra.mxu0 0
  %1310 = vmatprep.subr.bf16.mxu0 0
  %1311 = vmatpush1.bf16.msra.mxu0 0
  %1312 = vmatprep.subr.bf16.mxu0 0
  %1313 = vmatpush1.bf16.msra.mxu0 0
  %1314 = vmatprep.subr.bf16.mxu0 0
  %1315 = vmatpush1.bf16.msra.mxu0 0
  %1316 = vmatprep.subr.bf16.mxu0 0
  %1317 = vmatpush1.bf16.msra.mxu0 0
  %1318 = vmatprep.subr.bf16.mxu0 0
  %1319 = vmatpush1.bf16.msra.mxu0 0
  %1320 = vmatprep.subr.bf16.mxu0 0
  %1321 = vmatpush1.bf16.msra.mxu0 0
  %1322 = vmatprep.subr.bf16.mxu0 0
  %1323 = vmatpush1.bf16.msra.mxu0 %v788
  %1324 = vmatprep.subr.bf16.mxu0 0
  %1325 = vmatpush2.bf16.msra.mxu0 0
  %1326 = vmatprep.subr.bf16.mxu0 0
  %1327 = vmatpush2.bf16.msra.mxu0 0
  %1328 = vmatprep.subr.bf16.mxu0 0
  %1329 = vmatpush2.bf16.msra.mxu0 0
  %1330 = vmatprep.subr.bf16.mxu0 0
  %1331 = vmatpush2.bf16.msra.mxu0 0
  %1332 = vmatprep.subr.bf16.mxu0 0
  %1333 = vmatpush2.bf16.msra.mxu0 0
  %1334 = vmatprep.subr.bf16.mxu0 0
  %1335 = vmatpush2.bf16.msra.mxu0 0
  %1336 = vmatprep.subr.bf16.mxu0 0
  %1337 = vmatpush2.bf16.msra.mxu0 0
  %1338 = vmatprep.subr.bf16.mxu0 0
  %1339 = vmatpush2.bf16.msra.mxu0 0
  %1340 = vmatprep.mubr.bf16.mxu0 0
  %1341 = vmatmul.mubr.bf16.gmra.mxu0 %v1306
  %v1342 = vpop.f32.mrf.mxu0
  %v1343 = vadd.f32 0.0, %v1342
  %v1344 = vpop.f32.mrf.mxu0
  %v1345 = vpop.f32.mrf.mxu0
  %v1346 = vadd.f32 0.0, %v1345
  %v1347 = vpop.f32.mrf.mxu0
  %1348 = vdwg.mxu0
  %v1351 = vunpack.c.l.b16 %v46
  %v1352 = vunpack.c.l.b16 %v47
  %v1353 = vpack.c.b16 %v1352, %v1351
  %v1355 = vsel %vm392, %v1353, 0
  %1357 = vmatprep.subr.bf16.mxu0 0
  %1358 = vmatpush1.bf16.msra.mxu0 0
  %1359 = vmatprep.subr.bf16.mxu0 0
  %1360 = vmatpush1.bf16.msra.mxu0 0
  %1361 = vmatprep.subr.bf16.mxu0 0
  %1362 = vmatpush1.bf16.msra.mxu0 0
  %1363 = vmatprep.subr.bf16.mxu0 0
  %1364 = vmatpush1.bf16.msra.mxu0 0
  %1365 = vmatprep.subr.bf16.mxu0 0
  %1366 = vmatpush1.bf16.msra.mxu0 0
  %1367 = vmatprep.subr.bf16.mxu0 0
  %1368 = vmatpush1.bf16.msra.mxu0 0
  %1369 = vmatprep.subr.bf16.mxu0 0
  %1370 = vmatpush1.bf16.msra.mxu0 0
  %1371 = vmatprep.subr.bf16.mxu0 0
  %1372 = vmatpush1.bf16.msra.mxu0 %v789
  %1373 = vmatprep.subr.bf16.mxu0 0
  %1374 = vmatpush2.bf16.msra.mxu0 0
  %1375 = vmatprep.subr.bf16.mxu0 0
  %1376 = vmatpush2.bf16.msra.mxu0 0
  %1377 = vmatprep.subr.bf16.mxu0 0
  %1378 = vmatpush2.bf16.msra.mxu0 0
  %1379 = vmatprep.subr.bf16.mxu0 0
  %1380 = vmatpush2.bf16.msra.mxu0 0
  %1381 = vmatprep.subr.bf16.mxu0 0
  %1382 = vmatpush2.bf16.msra.mxu0 0
  %1383 = vmatprep.subr.bf16.mxu0 0
  %1384 = vmatpush2.bf16.msra.mxu0 0
  %1385 = vmatprep.subr.bf16.mxu0 0
  %1386 = vmatpush2.bf16.msra.mxu0 0
  %1387 = vmatprep.subr.bf16.mxu0 0
  %1388 = vmatpush2.bf16.msra.mxu0 0
  %1389 = vmatprep.mubr.bf16.mxu0 0
  %1390 = vmatmul.mubr.bf16.gmra.mxu0 %v1355
  %v1391 = vpop.f32.mrf.mxu0
  %v1392 = vadd.f32 0.0, %v1391
  %v1393 = vpop.f32.mrf.mxu0
  %v1394 = vpop.f32.mrf.mxu0
  %v1395 = vadd.f32 0.0, %v1394
  %v1396 = vpop.f32.mrf.mxu0
  %1397 = vdwg.mxu0
  %v1400 = vunpack.c.l.b16 %v48
  %v1401 = vunpack.c.l.b16 %v49
  %v1402 = vpack.c.b16 %v1401, %v1400
  %v1404 = vsel %vm392, %v1402, 0
  %1406 = vmatprep.subr.bf16.mxu0 0
  %1407 = vmatpush1.bf16.msra.mxu0 0
  %1408 = vmatprep.subr.bf16.mxu0 0
  %1409 = vmatpush1.bf16.msra.mxu0 0
  %1410 = vmatprep.subr.bf16.mxu0 0
  %1411 = vmatpush1.bf16.msra.mxu0 0
  %1412 = vmatprep.subr.bf16.mxu0 0
  %1413 = vmatpush1.bf16.msra.mxu0 0
  %1414 = vmatprep.subr.bf16.mxu0 0
  %1415 = vmatpush1.bf16.msra.mxu0 0
  %1416 = vmatprep.subr.bf16.mxu0 0
  %1417 = vmatpush1.bf16.msra.mxu0 0
  %1418 = vmatprep.subr.bf16.mxu0 0
  %1419 = vmatpush1.bf16.msra.mxu0 0
  %1420 = vmatprep.subr.bf16.mxu0 0
  %1421 = vmatpush1.bf16.msra.mxu0 %v790
  %1422 = vmatprep.subr.bf16.mxu0 0
  %1423 = vmatpush2.bf16.msra.mxu0 0
  %1424 = vmatprep.subr.bf16.mxu0 0
  %1425 = vmatpush2.bf16.msra.mxu0 0
  %1426 = vmatprep.subr.bf16.mxu0 0
  %1427 = vmatpush2.bf16.msra.mxu0 0
  %1428 = vmatprep.subr.bf16.mxu0 0
  %1429 = vmatpush2.bf16.msra.mxu0 0
  %1430 = vmatprep.subr.bf16.mxu0 0
  %1431 = vmatpush2.bf16.msra.mxu0 0
  %1432 = vmatprep.subr.bf16.mxu0 0
  %1433 = vmatpush2.bf16.msra.mxu0 0
  %1434 = vmatprep.subr.bf16.mxu0 0
  %1435 = vmatpush2.bf16.msra.mxu0 0
  %1436 = vmatprep.subr.bf16.mxu0 0
  %1437 = vmatpush2.bf16.msra.mxu0 0
  %1438 = vmatprep.mubr.bf16.mxu0 0
  %1439 = vmatmul.mubr.bf16.gmra.mxu0 %v1404
  %v1440 = vpop.f32.mrf.mxu0
  %v1441 = vadd.f32 0.0, %v1440
  %v1442 = vpop.f32.mrf.mxu0
  %v1443 = vpop.f32.mrf.mxu0
  %v1444 = vadd.f32 0.0, %v1443
  %v1445 = vpop.f32.mrf.mxu0
  %1446 = vdwg.mxu0
  %v1449 = vunpack.c.l.b16 %v50
  %v1450 = vunpack.c.l.b16 %v51
  %v1451 = vpack.c.b16 %v1450, %v1449
  %v1453 = vsel %vm392, %v1451, 0
  %1455 = vmatprep.subr.bf16.mxu0 0
  %1456 = vmatpush1.bf16.msra.mxu0 0
  %1457 = vmatprep.subr.bf16.mxu0 0
  %1458 = vmatpush1.bf16.msra.mxu0 0
  %1459 = vmatprep.subr.bf16.mxu0 0
  %1460 = vmatpush1.bf16.msra.mxu0 0
  %1461 = vmatprep.subr.bf16.mxu0 0
  %1462 = vmatpush1.bf16.msra.mxu0 0
  %1463 = vmatprep.subr.bf16.mxu0 0
  %1464 = vmatpush1.bf16.msra.mxu0 0
  %1465 = vmatprep.subr.bf16.mxu0 0
  %1466 = vmatpush1.bf16.msra.mxu0 0
  %1467 = vmatprep.subr.bf16.mxu0 0
  %1468 = vmatpush1.bf16.msra.mxu0 0
  %1469 = vmatprep.subr.bf16.mxu0 0
  %1470 = vmatpush1.bf16.msra.mxu0 %v791
  %1471 = vmatprep.subr.bf16.mxu0 0
  %1472 = vmatpush2.bf16.msra.mxu0 0
  %1473 = vmatprep.subr.bf16.mxu0 0
  %1474 = vmatpush2.bf16.msra.mxu0 0
  %1475 = vmatprep.subr.bf16.mxu0 0
  %1476 = vmatpush2.bf16.msra.mxu0 0
  %1477 = vmatprep.subr.bf16.mxu0 0
  %1478 = vmatpush2.bf16.msra.mxu0 0
  %1479 = vmatprep.subr.bf16.mxu0 0
  %1480 = vmatpush2.bf16.msra.mxu0 0
  %1481 = vmatprep.subr.bf16.mxu0 0
  %1482 = vmatpush2.bf16.msra.mxu0 0
  %1483 = vmatprep.subr.bf16.mxu0 0
  %1484 = vmatpush2.bf16.msra.mxu0 0
  %1485 = vmatprep.subr.bf16.mxu0 0
  %1486 = vmatpush2.bf16.msra.mxu0 0
  %1487 = vmatprep.mubr.bf16.mxu0 0
  %1488 = vmatmul.mubr.bf16.gmra.mxu0 %v1453
  %v1489 = vpop.f32.mrf.mxu0
  %v1490 = vadd.f32 0.0, %v1489
  %v1491 = vpop.f32.mrf.mxu0
  %v1492 = vpop.f32.mrf.mxu0
  %v1493 = vadd.f32 0.0, %v1492
  %v1494 = vpop.f32.mrf.mxu0
  %1495 = vdwg.mxu0
  %v1498 = vunpack.c.l.b16 %v52
  %v1499 = vunpack.c.l.b16 %v53
  %v1500 = vpack.c.b16 %v1499, %v1498
  %v1502 = vsel %vm392, %v1500, 0
  %1504 = vmatprep.subr.bf16.mxu0 0
  %1505 = vmatpush1.bf16.msra.mxu0 0
  %1506 = vmatprep.subr.bf16.mxu0 0
  %1507 = vmatpush1.bf16.msra.mxu0 0
  %1508 = vmatprep.subr.bf16.mxu0 0
  %1509 = vmatpush1.bf16.msra.mxu0 0
  %1510 = vmatprep.subr.bf16.mxu0 0
  %1511 = vmatpush1.bf16.msra.mxu0 0
  %1512 = vmatprep.subr.bf16.mxu0 0
  %1513 = vmatpush1.bf16.msra.mxu0 0
  %1514 = vmatprep.subr.bf16.mxu0 0
  %1515 = vmatpush1.bf16.msra.mxu0 0
  %1516 = vmatprep.subr.bf16.mxu0 0
  %1517 = vmatpush1.bf16.msra.mxu0 0
  %1518 = vmatprep.subr.bf16.mxu0 0
  %1519 = vmatpush1.bf16.msra.mxu0 %v792
  %1520 = vmatprep.subr.bf16.mxu0 0
  %1521 = vmatpush2.bf16.msra.mxu0 0
  %1522 = vmatprep.subr.bf16.mxu0 0
  %1523 = vmatpush2.bf16.msra.mxu0 0
  %1524 = vmatprep.subr.bf16.mxu0 0
  %1525 = vmatpush2.bf16.msra.mxu0 0
  %1526 = vmatprep.subr.bf16.mxu0 0
  %1527 = vmatpush2.bf16.msra.mxu0 0
  %1528 = vmatprep.subr.bf16.mxu0 0
  %1529 = vmatpush2.bf16.msra.mxu0 0
  %1530 = vmatprep.subr.bf16.mxu0 0
  %1531 = vmatpush2.bf16.msra.mxu0 0
  %1532 = vmatprep.subr.bf16.mxu0 0
  %1533 = vmatpush2.bf16.msra.mxu0 0
  %1534 = vmatprep.subr.bf16.mxu0 0
  %1535 = vmatpush2.bf16.msra.mxu0 0
  %1536 = vmatprep.mubr.bf16.mxu0 0
  %1537 = vmatmul.mubr.bf16.gmra.mxu0 %v1502
  %v1538 = vpop.f32.mrf.mxu0
  %v1539 = vadd.f32 0.0, %v1538
  %v1540 = vpop.f32.mrf.mxu0
  %v1541 = vpop.f32.mrf.mxu0
  %v1542 = vadd.f32 0.0, %v1541
  %v1543 = vpop.f32.mrf.mxu0
  %1544 = vdwg.mxu0
  %v1547 = vunpack.c.l.b16 %v54
  %v1548 = vunpack.c.l.b16 %v55
  %v1549 = vpack.c.b16 %v1548, %v1547
  %v1551 = vsel %vm392, %v1549, 0
  %1553 = vmatprep.subr.bf16.mxu0 0
  %1554 = vmatpush1.bf16.msra.mxu0 0
  %1555 = vmatprep.subr.bf16.mxu0 0
  %1556 = vmatpush1.bf16.msra.mxu0 0
  %1557 = vmatprep.subr.bf16.mxu0 0
  %1558 = vmatpush1.bf16.msra.mxu0 0
  %1559 = vmatprep.subr.bf16.mxu0 0
  %1560 = vmatpush1.bf16.msra.mxu0 0
  %1561 = vmatprep.subr.bf16.mxu0 0
  %1562 = vmatpush1.bf16.msra.mxu0 0
  %1563 = vmatprep.subr.bf16.mxu0 0
  %1564 = vmatpush1.bf16.msra.mxu0 0
  %1565 = vmatprep.subr.bf16.mxu0 0
  %1566 = vmatpush1.bf16.msra.mxu0 0
  %1567 = vmatprep.subr.bf16.mxu0 0
  %1568 = vmatpush1.bf16.msra.mxu0 %v793
  %1569 = vmatprep.subr.bf16.mxu0 0
  %1570 = vmatpush2.bf16.msra.mxu0 0
  %1571 = vmatprep.subr.bf16.mxu0 0
  %1572 = vmatpush2.bf16.msra.mxu0 0
  %1573 = vmatprep.subr.bf16.mxu0 0
  %1574 = vmatpush2.bf16.msra.mxu0 0
  %1575 = vmatprep.subr.bf16.mxu0 0
  %1576 = vmatpush2.bf16.msra.mxu0 0
  %1577 = vmatprep.subr.bf16.mxu0 0
  %1578 = vmatpush2.bf16.msra.mxu0 0
  %1579 = vmatprep.subr.bf16.mxu0 0
  %1580 = vmatpush2.bf16.msra.mxu0 0
  %1581 = vmatprep.subr.bf16.mxu0 0
  %1582 = vmatpush2.bf16.msra.mxu0 0
  %1583 = vmatprep.subr.bf16.mxu0 0
  %1584 = vmatpush2.bf16.msra.mxu0 0
  %1585 = vmatprep.mubr.bf16.mxu0 0
  %1586 = vmatmul.mubr.bf16.gmra.mxu0 %v1551
  %v1587 = vpop.f32.mrf.mxu0
  %v1588 = vadd.f32 0.0, %v1587
  %v1589 = vpop.f32.mrf.mxu0
  %v1590 = vpop.f32.mrf.mxu0
  %v1591 = vadd.f32 0.0, %v1590
  %v1592 = vpop.f32.mrf.mxu0
  %1593 = vdwg.mxu0
  %v1596 = vunpack.c.l.b16 %v56
  %v1597 = vunpack.c.l.b16 %v57
  %v1598 = vpack.c.b16 %v1597, %v1596
  %v1600 = vsel %vm392, %v1598, 0
  %1602 = vmatprep.subr.bf16.mxu0 0
  %1603 = vmatpush1.bf16.msra.mxu0 0
  %1604 = vmatprep.subr.bf16.mxu0 0
  %1605 = vmatpush1.bf16.msra.mxu0 0
  %1606 = vmatprep.subr.bf16.mxu0 0
  %1607 = vmatpush1.bf16.msra.mxu0 0
  %1608 = vmatprep.subr.bf16.mxu0 0
  %1609 = vmatpush1.bf16.msra.mxu0 0
  %1610 = vmatprep.subr.bf16.mxu0 0
  %1611 = vmatpush1.bf16.msra.mxu0 0
  %1612 = vmatprep.subr.bf16.mxu0 0
  %1613 = vmatpush1.bf16.msra.mxu0 0
  %1614 = vmatprep.subr.bf16.mxu0 0
  %1615 = vmatpush1.bf16.msra.mxu0 0
  %1616 = vmatprep.subr.bf16.mxu0 0
  %1617 = vmatpush1.bf16.msra.mxu0 %v794
  %1618 = vmatprep.subr.bf16.mxu0 0
  %1619 = vmatpush2.bf16.msra.mxu0 0
  %1620 = vmatprep.subr.bf16.mxu0 0
  %1621 = vmatpush2.bf16.msra.mxu0 0
  %1622 = vmatprep.subr.bf16.mxu0 0
  %1623 = vmatpush2.bf16.msra.mxu0 0
  %1624 = vmatprep.subr.bf16.mxu0 0
  %1625 = vmatpush2.bf16.msra.mxu0 0
  %1626 = vmatprep.subr.bf16.mxu0 0
  %1627 = vmatpush2.bf16.msra.mxu0 0
  %1628 = vmatprep.subr.bf16.mxu0 0
  %1629 = vmatpush2.bf16.msra.mxu0 0
  %1630 = vmatprep.subr.bf16.mxu0 0
  %1631 = vmatpush2.bf16.msra.mxu0 0
  %1632 = vmatprep.subr.bf16.mxu0 0
  %1633 = vmatpush2.bf16.msra.mxu0 0
  %1634 = vmatprep.mubr.bf16.mxu0 0
  %1635 = vmatmul.mubr.bf16.gmra.mxu0 %v1600
  %v1636 = vpop.f32.mrf.mxu0
  %v1637 = vadd.f32 0.0, %v1636
  %v1638 = vpop.f32.mrf.mxu0
  %v1639 = vpop.f32.mrf.mxu0
  %v1640 = vadd.f32 0.0, %v1639
  %v1641 = vpop.f32.mrf.mxu0
  %1642 = vdwg.mxu0
  %v1645 = vunpack.c.l.b16 %v58
  %v1646 = vunpack.c.l.b16 %v59
  %v1647 = vpack.c.b16 %v1646, %v1645
  %v1649 = vsel %vm392, %v1647, 0
  %1651 = vmatprep.subr.bf16.mxu0 0
  %1652 = vmatpush1.bf16.msra.mxu0 0
  %1653 = vmatprep.subr.bf16.mxu0 0
  %1654 = vmatpush1.bf16.msra.mxu0 0
  %1655 = vmatprep.subr.bf16.mxu0 0
  %1656 = vmatpush1.bf16.msra.mxu0 0
  %1657 = vmatprep.subr.bf16.mxu0 0
  %1658 = vmatpush1.bf16.msra.mxu0 0
  %1659 = vmatprep.subr.bf16.mxu0 0
  %1660 = vmatpush1.bf16.msra.mxu0 0
  %1661 = vmatprep.subr.bf16.mxu0 0
  %1662 = vmatpush1.bf16.msra.mxu0 0
  %1663 = vmatprep.subr.bf16.mxu0 0
  %1664 = vmatpush1.bf16.msra.mxu0 0
  %1665 = vmatprep.subr.bf16.mxu0 0
  %1666 = vmatpush1.bf16.msra.mxu0 %v795
  %1667 = vmatprep.subr.bf16.mxu0 0
  %1668 = vmatpush2.bf16.msra.mxu0 0
  %1669 = vmatprep.subr.bf16.mxu0 0
  %1670 = vmatpush2.bf16.msra.mxu0 0
  %1671 = vmatprep.subr.bf16.mxu0 0
  %1672 = vmatpush2.bf16.msra.mxu0 0
  %1673 = vmatprep.subr.bf16.mxu0 0
  %1674 = vmatpush2.bf16.msra.mxu0 0
  %1675 = vmatprep.subr.bf16.mxu0 0
  %1676 = vmatpush2.bf16.msra.mxu0 0
  %1677 = vmatprep.subr.bf16.mxu0 0
  %1678 = vmatpush2.bf16.msra.mxu0 0
  %1679 = vmatprep.subr.bf16.mxu0 0
  %1680 = vmatpush2.bf16.msra.mxu0 0
  %1681 = vmatprep.subr.bf16.mxu0 0
  %1682 = vmatpush2.bf16.msra.mxu0 0
  %1683 = vmatprep.mubr.bf16.mxu0 0
  %1684 = vmatmul.mubr.bf16.gmra.mxu0 %v1649
  %v1685 = vpop.f32.mrf.mxu0
  %v1686 = vadd.f32 0.0, %v1685
  %v1687 = vpop.f32.mrf.mxu0
  %v1688 = vpop.f32.mrf.mxu0
  %v1689 = vadd.f32 0.0, %v1688
  %v1690 = vpop.f32.mrf.mxu0
  %1691 = vdwg.mxu0
  %v1694 = vunpack.c.l.b16 %v60
  %v1695 = vunpack.c.l.b16 %v61
  %v1696 = vpack.c.b16 %v1695, %v1694
  %v1698 = vsel %vm392, %v1696, 0
  %1700 = vmatprep.subr.bf16.mxu0 0
  %1701 = vmatpush1.bf16.msra.mxu0 0
  %1702 = vmatprep.subr.bf16.mxu0 0
  %1703 = vmatpush1.bf16.msra.mxu0 0
  %1704 = vmatprep.subr.bf16.mxu0 0
  %1705 = vmatpush1.bf16.msra.mxu0 0
  %1706 = vmatprep.subr.bf16.mxu0 0
  %1707 = vmatpush1.bf16.msra.mxu0 0
  %1708 = vmatprep.subr.bf16.mxu0 0
  %1709 = vmatpush1.bf16.msra.mxu0 0
  %1710 = vmatprep.subr.bf16.mxu0 0
  %1711 = vmatpush1.bf16.msra.mxu0 0
  %1712 = vmatprep.subr.bf16.mxu0 0
  %1713 = vmatpush1.bf16.msra.mxu0 0
  %1714 = vmatprep.subr.bf16.mxu0 0
  %1715 = vmatpush1.bf16.msra.mxu0 %v796
  %1716 = vmatprep.subr.bf16.mxu0 0
  %1717 = vmatpush2.bf16.msra.mxu0 0
  %1718 = vmatprep.subr.bf16.mxu0 0
  %1719 = vmatpush2.bf16.msra.mxu0 0
  %1720 = vmatprep.subr.bf16.mxu0 0
  %1721 = vmatpush2.bf16.msra.mxu0 0
  %1722 = vmatprep.subr.bf16.mxu0 0
  %1723 = vmatpush2.bf16.msra.mxu0 0
  %1724 = vmatprep.subr.bf16.mxu0 0
  %1725 = vmatpush2.bf16.msra.mxu0 0
  %1726 = vmatprep.subr.bf16.mxu0 0
  %1727 = vmatpush2.bf16.msra.mxu0 0
  %1728 = vmatprep.subr.bf16.mxu0 0
  %1729 = vmatpush2.bf16.msra.mxu0 0
  %1730 = vmatprep.subr.bf16.mxu0 0
  %1731 = vmatpush2.bf16.msra.mxu0 0
  %1732 = vmatprep.mubr.bf16.mxu0 0
  %1733 = vmatmul.mubr.bf16.gmra.mxu0 %v1698
  %v1734 = vpop.f32.mrf.mxu0
  %v1735 = vadd.f32 0.0, %v1734
  %v1736 = vpop.f32.mrf.mxu0
  %v1737 = vpop.f32.mrf.mxu0
  %v1738 = vadd.f32 0.0, %v1737
  %v1739 = vpop.f32.mrf.mxu0
  %1740 = vdwg.mxu0
  %v1743 = vunpack.c.l.b16 %v62
  %v1744 = vunpack.c.l.b16 %v63
  %v1745 = vpack.c.b16 %v1744, %v1743
  %v1747 = vsel %vm392, %v1745, 0
  %1749 = vmatprep.subr.bf16.mxu0 0
  %1750 = vmatpush1.bf16.msra.mxu0 0
  %1751 = vmatprep.subr.bf16.mxu0 0
  %1752 = vmatpush1.bf16.msra.mxu0 0
  %1753 = vmatprep.subr.bf16.mxu0 0
  %1754 = vmatpush1.bf16.msra.mxu0 0
  %1755 = vmatprep.subr.bf16.mxu0 0
  %1756 = vmatpush1.bf16.msra.mxu0 0
  %1757 = vmatprep.subr.bf16.mxu0 0
  %1758 = vmatpush1.bf16.msra.mxu0 0
  %1759 = vmatprep.subr.bf16.mxu0 0
  %1760 = vmatpush1.bf16.msra.mxu0 0
  %1761 = vmatprep.subr.bf16.mxu0 0
  %1762 = vmatpush1.bf16.msra.mxu0 0
  %1763 = vmatprep.subr.bf16.mxu0 0
  %1764 = vmatpush1.bf16.msra.mxu0 %v797
  %1765 = vmatprep.subr.bf16.mxu0 0
  %1766 = vmatpush2.bf16.msra.mxu0 0
  %1767 = vmatprep.subr.bf16.mxu0 0
  %1768 = vmatpush2.bf16.msra.mxu0 0
  %1769 = vmatprep.subr.bf16.mxu0 0
  %1770 = vmatpush2.bf16.msra.mxu0 0
  %1771 = vmatprep.subr.bf16.mxu0 0
  %1772 = vmatpush2.bf16.msra.mxu0 0
  %1773 = vmatprep.subr.bf16.mxu0 0
  %1774 = vmatpush2.bf16.msra.mxu0 0
  %1775 = vmatprep.subr.bf16.mxu0 0
  %1776 = vmatpush2.bf16.msra.mxu0 0
  %1777 = vmatprep.subr.bf16.mxu0 0
  %1778 = vmatpush2.bf16.msra.mxu0 0
  %1779 = vmatprep.subr.bf16.mxu0 0
  %1780 = vmatpush2.bf16.msra.mxu0 0
  %1781 = vmatprep.mubr.bf16.mxu0 0
  %1782 = vmatmul.mubr.bf16.gmra.mxu0 %v1747
  %v1783 = vpop.f32.mrf.mxu0
  %v1784 = vadd.f32 0.0, %v1783
  %v1785 = vpop.f32.mrf.mxu0
  %v1786 = vpop.f32.mrf.mxu0
  %v1787 = vadd.f32 0.0, %v1786
  %v1788 = vpop.f32.mrf.mxu0
  %1789 = vdwg.mxu0
  %v1792 = vunpack.c.l.b16 %v64
  %v1793 = vunpack.c.l.b16 %v65
  %v1794 = vpack.c.b16 %v1793, %v1792
  %v1796 = vsel %vm392, %v1794, 0
  %1798 = vmatprep.subr.bf16.mxu0 0
  %1799 = vmatpush1.bf16.msra.mxu0 0
  %1800 = vmatprep.subr.bf16.mxu0 0
  %1801 = vmatpush1.bf16.msra.mxu0 0
  %1802 = vmatprep.subr.bf16.mxu0 0
  %1803 = vmatpush1.bf16.msra.mxu0 0
  %1804 = vmatprep.subr.bf16.mxu0 0
  %1805 = vmatpush1.bf16.msra.mxu0 0
  %1806 = vmatprep.subr.bf16.mxu0 0
  %1807 = vmatpush1.bf16.msra.mxu0 0
  %1808 = vmatprep.subr.bf16.mxu0 0
  %1809 = vmatpush1.bf16.msra.mxu0 0
  %1810 = vmatprep.subr.bf16.mxu0 0
  %1811 = vmatpush1.bf16.msra.mxu0 0
  %1812 = vmatprep.subr.bf16.mxu0 0
  %1813 = vmatpush1.bf16.msra.mxu0 %v798
  %1814 = vmatprep.subr.bf16.mxu0 0
  %1815 = vmatpush2.bf16.msra.mxu0 0
  %1816 = vmatprep.subr.bf16.mxu0 0
  %1817 = vmatpush2.bf16.msra.mxu0 0
  %1818 = vmatprep.subr.bf16.mxu0 0
  %1819 = vmatpush2.bf16.msra.mxu0 0
  %1820 = vmatprep.subr.bf16.mxu0 0
  %1821 = vmatpush2.bf16.msra.mxu0 0
  %1822 = vmatprep.subr.bf16.mxu0 0
  %1823 = vmatpush2.bf16.msra.mxu0 0
  %1824 = vmatprep.subr.bf16.mxu0 0
  %1825 = vmatpush2.bf16.msra.mxu0 0
  %1826 = vmatprep.subr.bf16.mxu0 0
  %1827 = vmatpush2.bf16.msra.mxu0 0
  %1828 = vmatprep.subr.bf16.mxu0 0
  %1829 = vmatpush2.bf16.msra.mxu0 0
  %1830 = vmatprep.mubr.bf16.mxu0 0
  %1831 = vmatmul.mubr.bf16.gmra.mxu0 %v1796
  %v1832 = vpop.f32.mrf.mxu0
  %v1833 = vadd.f32 0.0, %v1832
  %v1834 = vpop.f32.mrf.mxu0
  %v1835 = vpop.f32.mrf.mxu0
  %v1836 = vadd.f32 0.0, %v1835
  %v1837 = vpop.f32.mrf.mxu0
  %1838 = vdwg.mxu0
  %v1841 = vunpack.c.l.b16 %v66
  %v1842 = vunpack.c.l.b16 %v67
  %v1843 = vpack.c.b16 %v1842, %v1841
  %v1845 = vsel %vm392, %v1843, 0
  %1847 = vmatprep.subr.bf16.mxu0 0
  %1848 = vmatpush1.bf16.msra.mxu0 0
  %1849 = vmatprep.subr.bf16.mxu0 0
  %1850 = vmatpush1.bf16.msra.mxu0 0
  %1851 = vmatprep.subr.bf16.mxu0 0
  %1852 = vmatpush1.bf16.msra.mxu0 0
  %1853 = vmatprep.subr.bf16.mxu0 0
  %1854 = vmatpush1.bf16.msra.mxu0 0
  %1855 = vmatprep.subr.bf16.mxu0 0
  %1856 = vmatpush1.bf16.msra.mxu0 0
  %1857 = vmatprep.subr.bf16.mxu0 0
  %1858 = vmatpush1.bf16.msra.mxu0 0
  %1859 = vmatprep.subr.bf16.mxu0 0
  %1860 = vmatpush1.bf16.msra.mxu0 0
  %1861 = vmatprep.subr.bf16.mxu0 0
  %1862 = vmatpush1.bf16.msra.mxu0 %v799
  %1863 = vmatprep.subr.bf16.mxu0 0
  %1864 = vmatpush2.bf16.msra.mxu0 0
  %1865 = vmatprep.subr.bf16.mxu0 0
  %1866 = vmatpush2.bf16.msra.mxu0 0
  %1867 = vmatprep.subr.bf16.mxu0 0
  %1868 = vmatpush2.bf16.msra.mxu0 0
  %1869 = vmatprep.subr.bf16.mxu0 0
  %1870 = vmatpush2.bf16.msra.mxu0 0
  %1871 = vmatprep.subr.bf16.mxu0 0
  %1872 = vmatpush2.bf16.msra.mxu0 0
  %1873 = vmatprep.subr.bf16.mxu0 0
  %1874 = vmatpush2.bf16.msra.mxu0 0
  %1875 = vmatprep.subr.bf16.mxu0 0
  %1876 = vmatpush2.bf16.msra.mxu0 0
  %1877 = vmatprep.subr.bf16.mxu0 0
  %1878 = vmatpush2.bf16.msra.mxu0 0
  %1879 = vmatprep.mubr.bf16.mxu0 0
  %1880 = vmatmul.mubr.bf16.gmra.mxu0 %v1845
  %v1881 = vpop.f32.mrf.mxu0
  %v1882 = vadd.f32 0.0, %v1881
  %v1883 = vpop.f32.mrf.mxu0
  %v1884 = vpop.f32.mrf.mxu0
  %v1885 = vadd.f32 0.0, %v1884
  %v1886 = vpop.f32.mrf.mxu0
  %1887 = vdwg.mxu0
  %v1890 = vunpack.c.l.b16 %v68
  %v1891 = vunpack.c.l.b16 %v69
  %v1892 = vpack.c.b16 %v1891, %v1890
  %v1894 = vsel %vm392, %v1892, 0
  %1896 = vmatprep.subr.bf16.mxu0 0
  %1897 = vmatpush1.bf16.msra.mxu0 0
  %1898 = vmatprep.subr.bf16.mxu0 0
  %1899 = vmatpush1.bf16.msra.mxu0 0
  %1900 = vmatprep.subr.bf16.mxu0 0
  %1901 = vmatpush1.bf16.msra.mxu0 0
  %1902 = vmatprep.subr.bf16.mxu0 0
  %1903 = vmatpush1.bf16.msra.mxu0 0
  %1904 = vmatprep.subr.bf16.mxu0 0
  %1905 = vmatpush1.bf16.msra.mxu0 0
  %1906 = vmatprep.subr.bf16.mxu0 0
  %1907 = vmatpush1.bf16.msra.mxu0 0
  %1908 = vmatprep.subr.bf16.mxu0 0
  %1909 = vmatpush1.bf16.msra.mxu0 0
  %1910 = vmatprep.subr.bf16.mxu0 0
  %1911 = vmatpush1.bf16.msra.mxu0 %v800
  %1912 = vmatprep.subr.bf16.mxu0 0
  %1913 = vmatpush2.bf16.msra.mxu0 0
  %1914 = vmatprep.subr.bf16.mxu0 0
  %1915 = vmatpush2.bf16.msra.mxu0 0
  %1916 = vmatprep.subr.bf16.mxu0 0
  %1917 = vmatpush2.bf16.msra.mxu0 0
  %1918 = vmatprep.subr.bf16.mxu0 0
  %1919 = vmatpush2.bf16.msra.mxu0 0
  %1920 = vmatprep.subr.bf16.mxu0 0
  %1921 = vmatpush2.bf16.msra.mxu0 0
  %1922 = vmatprep.subr.bf16.mxu0 0
  %1923 = vmatpush2.bf16.msra.mxu0 0
  %1924 = vmatprep.subr.bf16.mxu0 0
  %1925 = vmatpush2.bf16.msra.mxu0 0
  %1926 = vmatprep.subr.bf16.mxu0 0
  %1927 = vmatpush2.bf16.msra.mxu0 0
  %1928 = vmatprep.mubr.bf16.mxu0 0
  %1929 = vmatmul.mubr.bf16.gmra.mxu0 %v1894
  %v1930 = vpop.f32.mrf.mxu0
  %v1931 = vadd.f32 0.0, %v1930
  %v1932 = vpop.f32.mrf.mxu0
  %v1933 = vpop.f32.mrf.mxu0
  %v1934 = vadd.f32 0.0, %v1933
  %v1935 = vpop.f32.mrf.mxu0
  %1936 = vdwg.mxu0
  %v1939 = vunpack.c.l.b16 %v70
  %v1940 = vunpack.c.l.b16 %v71
  %v1941 = vpack.c.b16 %v1940, %v1939
  %v1943 = vsel %vm392, %v1941, 0
  %1945 = vmatprep.subr.bf16.mxu0 0
  %1946 = vmatpush1.bf16.msra.mxu0 0
  %1947 = vmatprep.subr.bf16.mxu0 0
  %1948 = vmatpush1.bf16.msra.mxu0 0
  %1949 = vmatprep.subr.bf16.mxu0 0
  %1950 = vmatpush1.bf16.msra.mxu0 0
  %1951 = vmatprep.subr.bf16.mxu0 0
  %1952 = vmatpush1.bf16.msra.mxu0 0
  %1953 = vmatprep.subr.bf16.mxu0 0
  %1954 = vmatpush1.bf16.msra.mxu0 0
  %1955 = vmatprep.subr.bf16.mxu0 0
  %1956 = vmatpush1.bf16.msra.mxu0 0
  %1957 = vmatprep.subr.bf16.mxu0 0
  %1958 = vmatpush1.bf16.msra.mxu0 0
  %1959 = vmatprep.subr.bf16.mxu0 0
  %1960 = vmatpush1.bf16.msra.mxu0 %v801
  %1961 = vmatprep.subr.bf16.mxu0 0
  %1962 = vmatpush2.bf16.msra.mxu0 0
  %1963 = vmatprep.subr.bf16.mxu0 0
  %1964 = vmatpush2.bf16.msra.mxu0 0
  %1965 = vmatprep.subr.bf16.mxu0 0
  %1966 = vmatpush2.bf16.msra.mxu0 0
  %1967 = vmatprep.subr.bf16.mxu0 0
  %1968 = vmatpush2.bf16.msra.mxu0 0
  %1969 = vmatprep.subr.bf16.mxu0 0
  %1970 = vmatpush2.bf16.msra.mxu0 0
  %1971 = vmatprep.subr.bf16.mxu0 0
  %1972 = vmatpush2.bf16.msra.mxu0 0
  %1973 = vmatprep.subr.bf16.mxu0 0
  %1974 = vmatpush2.bf16.msra.mxu0 0
  %1975 = vmatprep.subr.bf16.mxu0 0
  %1976 = vmatpush2.bf16.msra.mxu0 0
  %1977 = vmatprep.mubr.bf16.mxu0 0
  %1978 = vmatmul.mubr.bf16.gmra.mxu0 %v1943
  %v1979 = vpop.f32.mrf.mxu0
  %v1980 = vadd.f32 0.0, %v1979
  %v1981 = vpop.f32.mrf.mxu0
  %v1982 = vpop.f32.mrf.mxu0
  %v1983 = vadd.f32 0.0, %v1982
  %v1984 = vpop.f32.mrf.mxu0
  %1985 = vdwg.mxu0
  %v1988 = vunpack.c.l.b16 %v72
  %v1989 = vunpack.c.l.b16 %v73
  %v1990 = vpack.c.b16 %v1989, %v1988
  %v1992 = vsel %vm392, %v1990, 0
  %1994 = vmatprep.subr.bf16.mxu0 0
  %1995 = vmatpush1.bf16.msra.mxu0 0
  %1996 = vmatprep.subr.bf16.mxu0 0
  %1997 = vmatpush1.bf16.msra.mxu0 0
  %1998 = vmatprep.subr.bf16.mxu0 0
  %1999 = vmatpush1.bf16.msra.mxu0 0
  %2000 = vmatprep.subr.bf16.mxu0 0
  %2001 = vmatpush1.bf16.msra.mxu0 0
  %2002 = vmatprep.subr.bf16.mxu0 0
  %2003 = vmatpush1.bf16.msra.mxu0 0
  %2004 = vmatprep.subr.bf16.mxu0 0
  %2005 = vmatpush1.bf16.msra.mxu0 0
  %2006 = vmatprep.subr.bf16.mxu0 0
  %2007 = vmatpush1.bf16.msra.mxu0 0
  %2008 = vmatprep.subr.bf16.mxu0 0
  %2009 = vmatpush1.bf16.msra.mxu0 %v802
  %2010 = vmatprep.subr.bf16.mxu0 0
  %2011 = vmatpush2.bf16.msra.mxu0 0
  %2012 = vmatprep.subr.bf16.mxu0 0
  %2013 = vmatpush2.bf16.msra.mxu0 0
  %2014 = vmatprep.subr.bf16.mxu0 0
  %2015 = vmatpush2.bf16.msra.mxu0 0
  %2016 = vmatprep.subr.bf16.mxu0 0
  %2017 = vmatpush2.bf16.msra.mxu0 0
  %2018 = vmatprep.subr.bf16.mxu0 0
  %2019 = vmatpush2.bf16.msra.mxu0 0
  %2020 = vmatprep.subr.bf16.mxu0 0
  %2021 = vmatpush2.bf16.msra.mxu0 0
  %2022 = vmatprep.subr.bf16.mxu0 0
  %2023 = vmatpush2.bf16.msra.mxu0 0
  %2024 = vmatprep.subr.bf16.mxu0 0
  %2025 = vmatpush2.bf16.msra.mxu0 0
  %2026 = vmatprep.mubr.bf16.mxu0 0
  %2027 = vmatmul.mubr.bf16.gmra.mxu0 %v1992
  %v2028 = vpop.f32.mrf.mxu0
  %v2029 = vadd.f32 0.0, %v2028
  %v2030 = vpop.f32.mrf.mxu0
  %v2031 = vpop.f32.mrf.mxu0
  %v2032 = vadd.f32 0.0, %v2031
  %v2033 = vpop.f32.mrf.mxu0
  %2034 = vdwg.mxu0
  %v2037 = vunpack.c.l.b16 %v74
  %v2038 = vunpack.c.l.b16 %v75
  %v2039 = vpack.c.b16 %v2038, %v2037
  %v2041 = vsel %vm392, %v2039, 0
  %2043 = vmatprep.subr.bf16.mxu0 0
  %2044 = vmatpush1.bf16.msra.mxu0 0
  %2045 = vmatprep.subr.bf16.mxu0 0
  %2046 = vmatpush1.bf16.msra.mxu0 0
  %2047 = vmatprep.subr.bf16.mxu0 0
  %2048 = vmatpush1.bf16.msra.mxu0 0
  %2049 = vmatprep.subr.bf16.mxu0 0
  %2050 = vmatpush1.bf16.msra.mxu0 0
  %2051 = vmatprep.subr.bf16.mxu0 0
  %2052 = vmatpush1.bf16.msra.mxu0 0
  %2053 = vmatprep.subr.bf16.mxu0 0
  %2054 = vmatpush1.bf16.msra.mxu0 0
  %2055 = vmatprep.subr.bf16.mxu0 0
  %2056 = vmatpush1.bf16.msra.mxu0 0
  %2057 = vmatprep.subr.bf16.mxu0 0
  %2058 = vmatpush1.bf16.msra.mxu0 %v803
  %2059 = vmatprep.subr.bf16.mxu0 0
  %2060 = vmatpush2.bf16.msra.mxu0 0
  %2061 = vmatprep.subr.bf16.mxu0 0
  %2062 = vmatpush2.bf16.msra.mxu0 0
  %2063 = vmatprep.subr.bf16.mxu0 0
  %2064 = vmatpush2.bf16.msra.mxu0 0
  %2065 = vmatprep.subr.bf16.mxu0 0
  %2066 = vmatpush2.bf16.msra.mxu0 0
  %2067 = vmatprep.subr.bf16.mxu0 0
  %2068 = vmatpush2.bf16.msra.mxu0 0
  %2069 = vmatprep.subr.bf16.mxu0 0
  %2070 = vmatpush2.bf16.msra.mxu0 0
  %2071 = vmatprep.subr.bf16.mxu0 0
  %2072 = vmatpush2.bf16.msra.mxu0 0
  %2073 = vmatprep.subr.bf16.mxu0 0
  %2074 = vmatpush2.bf16.msra.mxu0 0
  %2075 = vmatprep.mubr.bf16.mxu0 0
  %2076 = vmatmul.mubr.bf16.gmra.mxu0 %v2041
  %v2077 = vpop.f32.mrf.mxu0
  %v2078 = vadd.f32 0.0, %v2077
  %v2079 = vpop.f32.mrf.mxu0
  %v2080 = vpop.f32.mrf.mxu0
  %v2081 = vadd.f32 0.0, %v2080
  %v2082 = vpop.f32.mrf.mxu0
  %2083 = vdwg.mxu0
  %v2086 = vunpack.c.l.b16 %v76
  %v2087 = vunpack.c.l.b16 %v77
  %v2088 = vpack.c.b16 %v2087, %v2086
  %v2090 = vsel %vm392, %v2088, 0
  %2092 = vmatprep.subr.bf16.mxu0 0
  %2093 = vmatpush1.bf16.msra.mxu0 0
  %2094 = vmatprep.subr.bf16.mxu0 0
  %2095 = vmatpush1.bf16.msra.mxu0 0
  %2096 = vmatprep.subr.bf16.mxu0 0
  %2097 = vmatpush1.bf16.msra.mxu0 0
  %2098 = vmatprep.subr.bf16.mxu0 0
  %2099 = vmatpush1.bf16.msra.mxu0 0
  %2100 = vmatprep.subr.bf16.mxu0 0
  %2101 = vmatpush1.bf16.msra.mxu0 0
  %2102 = vmatprep.subr.bf16.mxu0 0
  %2103 = vmatpush1.bf16.msra.mxu0 0
  %2104 = vmatprep.subr.bf16.mxu0 0
  %2105 = vmatpush1.bf16.msra.mxu0 0
  %2106 = vmatprep.subr.bf16.mxu0 0
  %2107 = vmatpush1.bf16.msra.mxu0 %v804
  %2108 = vmatprep.subr.bf16.mxu0 0
  %2109 = vmatpush2.bf16.msra.mxu0 0
  %2110 = vmatprep.subr.bf16.mxu0 0
  %2111 = vmatpush2.bf16.msra.mxu0 0
  %2112 = vmatprep.subr.bf16.mxu0 0
  %2113 = vmatpush2.bf16.msra.mxu0 0
  %2114 = vmatprep.subr.bf16.mxu0 0
  %2115 = vmatpush2.bf16.msra.mxu0 0
  %2116 = vmatprep.subr.bf16.mxu0 0
  %2117 = vmatpush2.bf16.msra.mxu0 0
  %2118 = vmatprep.subr.bf16.mxu0 0
  %2119 = vmatpush2.bf16.msra.mxu0 0
  %2120 = vmatprep.subr.bf16.mxu0 0
  %2121 = vmatpush2.bf16.msra.mxu0 0
  %2122 = vmatprep.subr.bf16.mxu0 0
  %2123 = vmatpush2.bf16.msra.mxu0 0
  %2124 = vmatprep.mubr.bf16.mxu0 0
  %2125 = vmatmul.mubr.bf16.gmra.mxu0 %v2090
  %v2126 = vpop.f32.mrf.mxu0
  %v2127 = vadd.f32 0.0, %v2126
  %v2128 = vpop.f32.mrf.mxu0
  %v2129 = vpop.f32.mrf.mxu0
  %v2130 = vadd.f32 0.0, %v2129
  %v2131 = vpop.f32.mrf.mxu0
  %2132 = vdwg.mxu0
  %v2135 = vunpack.c.l.b16 %v78
  %v2136 = vunpack.c.l.b16 %v79
  %v2137 = vpack.c.b16 %v2136, %v2135
  %v2139 = vsel %vm392, %v2137, 0
  %2141 = vmatprep.subr.bf16.mxu0 0
  %2142 = vmatpush1.bf16.msra.mxu0 0
  %2143 = vmatprep.subr.bf16.mxu0 0
  %2144 = vmatpush1.bf16.msra.mxu0 0
  %2145 = vmatprep.subr.bf16.mxu0 0
  %2146 = vmatpush1.bf16.msra.mxu0 0
  %2147 = vmatprep.subr.bf16.mxu0 0
  %2148 = vmatpush1.bf16.msra.mxu0 0
  %2149 = vmatprep.subr.bf16.mxu0 0
  %2150 = vmatpush1.bf16.msra.mxu0 0
  %2151 = vmatprep.subr.bf16.mxu0 0
  %2152 = vmatpush1.bf16.msra.mxu0 0
  %2153 = vmatprep.subr.bf16.mxu0 0
  %2154 = vmatpush1.bf16.msra.mxu0 0
  %2155 = vmatprep.subr.bf16.mxu0 0
  %2156 = vmatpush1.bf16.msra.mxu0 %v805
  %2157 = vmatprep.subr.bf16.mxu0 0
  %2158 = vmatpush2.bf16.msra.mxu0 0
  %2159 = vmatprep.subr.bf16.mxu0 0
  %2160 = vmatpush2.bf16.msra.mxu0 0
  %2161 = vmatprep.subr.bf16.mxu0 0
  %2162 = vmatpush2.bf16.msra.mxu0 0
  %2163 = vmatprep.subr.bf16.mxu0 0
  %2164 = vmatpush2.bf16.msra.mxu0 0
  %2165 = vmatprep.subr.bf16.mxu0 0
  %2166 = vmatpush2.bf16.msra.mxu0 0
  %2167 = vmatprep.subr.bf16.mxu0 0
  %2168 = vmatpush2.bf16.msra.mxu0 0
  %2169 = vmatprep.subr.bf16.mxu0 0
  %2170 = vmatpush2.bf16.msra.mxu0 0
  %2171 = vmatprep.subr.bf16.mxu0 0
  %2172 = vmatpush2.bf16.msra.mxu0 0
  %2173 = vmatprep.mubr.bf16.mxu0 0
  %2174 = vmatmul.mubr.bf16.gmra.mxu0 %v2139
  %v2175 = vpop.f32.mrf.mxu0
  %v2176 = vadd.f32 0.0, %v2175
  %v2177 = vpop.f32.mrf.mxu0
  %v2178 = vpop.f32.mrf.mxu0
  %v2179 = vadd.f32 0.0, %v2178
  %v2180 = vpop.f32.mrf.mxu0
  %2181 = vdwg.mxu0
  %v2184 = vunpack.c.l.b16 %v80
  %v2185 = vunpack.c.l.b16 %v81
  %v2186 = vpack.c.b16 %v2185, %v2184
  %v2188 = vsel %vm392, %v2186, 0
  %2190 = vmatprep.subr.bf16.mxu0 0
  %2191 = vmatpush1.bf16.msra.mxu0 0
  %2192 = vmatprep.subr.bf16.mxu0 0
  %2193 = vmatpush1.bf16.msra.mxu0 0
  %2194 = vmatprep.subr.bf16.mxu0 0
  %2195 = vmatpush1.bf16.msra.mxu0 0
  %2196 = vmatprep.subr.bf16.mxu0 0
  %2197 = vmatpush1.bf16.msra.mxu0 0
  %2198 = vmatprep.subr.bf16.mxu0 0
  %2199 = vmatpush1.bf16.msra.mxu0 0
  %2200 = vmatprep.subr.bf16.mxu0 0
  %2201 = vmatpush1.bf16.msra.mxu0 0
  %2202 = vmatprep.subr.bf16.mxu0 0
  %2203 = vmatpush1.bf16.msra.mxu0 0
  %2204 = vmatprep.subr.bf16.mxu0 0
  %2205 = vmatpush1.bf16.msra.mxu0 %v806
  %2206 = vmatprep.subr.bf16.mxu0 0
  %2207 = vmatpush2.bf16.msra.mxu0 0
  %2208 = vmatprep.subr.bf16.mxu0 0
  %2209 = vmatpush2.bf16.msra.mxu0 0
  %2210 = vmatprep.subr.bf16.mxu0 0
  %2211 = vmatpush2.bf16.msra.mxu0 0
  %2212 = vmatprep.subr.bf16.mxu0 0
  %2213 = vmatpush2.bf16.msra.mxu0 0
  %2214 = vmatprep.subr.bf16.mxu0 0
  %2215 = vmatpush2.bf16.msra.mxu0 0
  %2216 = vmatprep.subr.bf16.mxu0 0
  %2217 = vmatpush2.bf16.msra.mxu0 0
  %2218 = vmatprep.subr.bf16.mxu0 0
  %2219 = vmatpush2.bf16.msra.mxu0 0
  %2220 = vmatprep.subr.bf16.mxu0 0
  %2221 = vmatpush2.bf16.msra.mxu0 0
  %2222 = vmatprep.mubr.bf16.mxu0 0
  %2223 = vmatmul.mubr.bf16.gmra.mxu0 %v2188
  %v2224 = vpop.f32.mrf.mxu0
  %v2225 = vadd.f32 0.0, %v2224
  %v2226 = vpop.f32.mrf.mxu0
  %v2227 = vpop.f32.mrf.mxu0
  %v2228 = vadd.f32 0.0, %v2227
  %v2229 = vpop.f32.mrf.mxu0
  %2230 = vdwg.mxu0
  %v2233 = vunpack.c.l.b16 %v82
  %v2234 = vunpack.c.l.b16 %v83
  %v2235 = vpack.c.b16 %v2234, %v2233
  %v2237 = vsel %vm392, %v2235, 0
  %2239 = vmatprep.subr.bf16.mxu0 0
  %2240 = vmatpush1.bf16.msra.mxu0 0
  %2241 = vmatprep.subr.bf16.mxu0 0
  %2242 = vmatpush1.bf16.msra.mxu0 0
  %2243 = vmatprep.subr.bf16.mxu0 0
  %2244 = vmatpush1.bf16.msra.mxu0 0
  %2245 = vmatprep.subr.bf16.mxu0 0
  %2246 = vmatpush1.bf16.msra.mxu0 0
  %2247 = vmatprep.subr.bf16.mxu0 0
  %2248 = vmatpush1.bf16.msra.mxu0 0
  %2249 = vmatprep.subr.bf16.mxu0 0
  %2250 = vmatpush1.bf16.msra.mxu0 0
  %2251 = vmatprep.subr.bf16.mxu0 0
  %2252 = vmatpush1.bf16.msra.mxu0 0
  %2253 = vmatprep.subr.bf16.mxu0 0
  %2254 = vmatpush1.bf16.msra.mxu0 %v807
  %2255 = vmatprep.subr.bf16.mxu0 0
  %2256 = vmatpush2.bf16.msra.mxu0 0
  %2257 = vmatprep.subr.bf16.mxu0 0
  %2258 = vmatpush2.bf16.msra.mxu0 0
  %2259 = vmatprep.subr.bf16.mxu0 0
  %2260 = vmatpush2.bf16.msra.mxu0 0
  %2261 = vmatprep.subr.bf16.mxu0 0
  %2262 = vmatpush2.bf16.msra.mxu0 0
  %2263 = vmatprep.subr.bf16.mxu0 0
  %2264 = vmatpush2.bf16.msra.mxu0 0
  %2265 = vmatprep.subr.bf16.mxu0 0
  %2266 = vmatpush2.bf16.msra.mxu0 0
  %2267 = vmatprep.subr.bf16.mxu0 0
  %2268 = vmatpush2.bf16.msra.mxu0 0
  %2269 = vmatprep.subr.bf16.mxu0 0
  %2270 = vmatpush2.bf16.msra.mxu0 0
  %2271 = vmatprep.mubr.bf16.mxu0 0
  %2272 = vmatmul.mubr.bf16.gmra.mxu0 %v2237
  %v2273 = vpop.f32.mrf.mxu0
  %v2274 = vadd.f32 0.0, %v2273
  %v2275 = vpop.f32.mrf.mxu0
  %v2276 = vpop.f32.mrf.mxu0
  %v2277 = vadd.f32 0.0, %v2276
  %v2278 = vpop.f32.mrf.mxu0
  %2279 = vdwg.mxu0
  %v2282 = vunpack.c.l.b16 %v84
  %v2283 = vunpack.c.l.b16 %v85
  %v2284 = vpack.c.b16 %v2283, %v2282
  %v2286 = vsel %vm392, %v2284, 0
  %2288 = vmatprep.subr.bf16.mxu0 0
  %2289 = vmatpush1.bf16.msra.mxu0 0
  %2290 = vmatprep.subr.bf16.mxu0 0
  %2291 = vmatpush1.bf16.msra.mxu0 0
  %2292 = vmatprep.subr.bf16.mxu0 0
  %2293 = vmatpush1.bf16.msra.mxu0 0
  %2294 = vmatprep.subr.bf16.mxu0 0
  %2295 = vmatpush1.bf16.msra.mxu0 0
  %2296 = vmatprep.subr.bf16.mxu0 0
  %2297 = vmatpush1.bf16.msra.mxu0 0
  %2298 = vmatprep.subr.bf16.mxu0 0
  %2299 = vmatpush1.bf16.msra.mxu0 0
  %2300 = vmatprep.subr.bf16.mxu0 0
  %2301 = vmatpush1.bf16.msra.mxu0 0
  %2302 = vmatprep.subr.bf16.mxu0 0
  %2303 = vmatpush1.bf16.msra.mxu0 %v808
  %2304 = vmatprep.subr.bf16.mxu0 0
  %2305 = vmatpush2.bf16.msra.mxu0 0
  %2306 = vmatprep.subr.bf16.mxu0 0
  %2307 = vmatpush2.bf16.msra.mxu0 0
  %2308 = vmatprep.subr.bf16.mxu0 0
  %2309 = vmatpush2.bf16.msra.mxu0 0
  %2310 = vmatprep.subr.bf16.mxu0 0
  %2311 = vmatpush2.bf16.msra.mxu0 0
  %2312 = vmatprep.subr.bf16.mxu0 0
  %2313 = vmatpush2.bf16.msra.mxu0 0
  %2314 = vmatprep.subr.bf16.mxu0 0
  %2315 = vmatpush2.bf16.msra.mxu0 0
  %2316 = vmatprep.subr.bf16.mxu0 0
  %2317 = vmatpush2.bf16.msra.mxu0 0
  %2318 = vmatprep.subr.bf16.mxu0 0
  %2319 = vmatpush2.bf16.msra.mxu0 0
  %2320 = vmatprep.mubr.bf16.mxu0 0
  %2321 = vmatmul.mubr.bf16.gmra.mxu0 %v2286
  %v2322 = vpop.f32.mrf.mxu0
  %v2323 = vadd.f32 0.0, %v2322
  %v2324 = vpop.f32.mrf.mxu0
  %v2325 = vpop.f32.mrf.mxu0
  %v2326 = vadd.f32 0.0, %v2325
  %v2327 = vpop.f32.mrf.mxu0
  %2328 = vdwg.mxu0
  %v2331 = vunpack.c.l.b16 %v86
  %v2332 = vunpack.c.l.b16 %v87
  %v2333 = vpack.c.b16 %v2332, %v2331
  %v2335 = vsel %vm392, %v2333, 0
  %2337 = vmatprep.subr.bf16.mxu0 0
  %2338 = vmatpush1.bf16.msra.mxu0 0
  %2339 = vmatprep.subr.bf16.mxu0 0
  %2340 = vmatpush1.bf16.msra.mxu0 0
  %2341 = vmatprep.subr.bf16.mxu0 0
  %2342 = vmatpush1.bf16.msra.mxu0 0
  %2343 = vmatprep.subr.bf16.mxu0 0
  %2344 = vmatpush1.bf16.msra.mxu0 0
  %2345 = vmatprep.subr.bf16.mxu0 0
  %2346 = vmatpush1.bf16.msra.mxu0 0
  %2347 = vmatprep.subr.bf16.mxu0 0
  %2348 = vmatpush1.bf16.msra.mxu0 0
  %2349 = vmatprep.subr.bf16.mxu0 0
  %2350 = vmatpush1.bf16.msra.mxu0 0
  %2351 = vmatprep.subr.bf16.mxu0 0
  %2352 = vmatpush1.bf16.msra.mxu0 %v809
  %2353 = vmatprep.subr.bf16.mxu0 0
  %2354 = vmatpush2.bf16.msra.mxu0 0
  %2355 = vmatprep.subr.bf16.mxu0 0
  %2356 = vmatpush2.bf16.msra.mxu0 0
  %2357 = vmatprep.subr.bf16.mxu0 0
  %2358 = vmatpush2.bf16.msra.mxu0 0
  %2359 = vmatprep.subr.bf16.mxu0 0
  %2360 = vmatpush2.bf16.msra.mxu0 0
  %2361 = vmatprep.subr.bf16.mxu0 0
  %2362 = vmatpush2.bf16.msra.mxu0 0
  %2363 = vmatprep.subr.bf16.mxu0 0
  %2364 = vmatpush2.bf16.msra.mxu0 0
  %2365 = vmatprep.subr.bf16.mxu0 0
  %2366 = vmatpush2.bf16.msra.mxu0 0
  %2367 = vmatprep.subr.bf16.mxu0 0
  %2368 = vmatpush2.bf16.msra.mxu0 0
  %2369 = vmatprep.mubr.bf16.mxu0 0
  %2370 = vmatmul.mubr.bf16.gmra.mxu0 %v2335
  %v2371 = vpop.f32.mrf.mxu0
  %v2372 = vadd.f32 0.0, %v2371
  %v2373 = vpop.f32.mrf.mxu0
  %v2374 = vpop.f32.mrf.mxu0
  %v2375 = vadd.f32 0.0, %v2374
  %v2376 = vpop.f32.mrf.mxu0
  %2377 = vdwg.mxu0
  %v2378 = vld [vmem:[%s3] sm:$0x1]
  %v2379 = vlaneseq
  %v2380 = vshrl.u32 %v2379, 7
  %v2381 = vsub.s32 0, %v2380
  %v2382 = vrot.slane %v2378, %v2381
  %v2383 = vadd.f32 %v853, %v2382
  %v2384 = vadd.f32 %v856, %v2382
  %v2385 = vadd.f32 %v902, %v2382
  %v2386 = vadd.f32 %v905, %v2382
  %v2387 = vadd.f32 %v951, %v2382
  %v2388 = vadd.f32 %v954, %v2382
  %v2389 = vadd.f32 %v1000, %v2382
  %v2390 = vadd.f32 %v1003, %v2382
  %v2391 = vadd.f32 %v1049, %v2382
  %v2392 = vadd.f32 %v1052, %v2382
  %v2393 = vadd.f32 %v1098, %v2382
  %v2394 = vadd.f32 %v1101, %v2382
  %v2395 = vadd.f32 %v1147, %v2382
  %v2396 = vadd.f32 %v1150, %v2382
  %v2397 = vadd.f32 %v1196, %v2382
  %v2398 = vadd.f32 %v1199, %v2382
  %v2399 = vadd.f32 %v1245, %v2382
  %v2400 = vadd.f32 %v1248, %v2382
  %v2401 = vadd.f32 %v1294, %v2382
  %v2402 = vadd.f32 %v1297, %v2382
  %v2403 = vadd.f32 %v1343, %v2382
  %v2404 = vadd.f32 %v1346, %v2382
  %v2405 = vadd.f32 %v1392, %v2382
  %v2406 = vadd.f32 %v1395, %v2382
  %v2407 = vadd.f32 %v1441, %v2382
  %v2408 = vadd.f32 %v1444, %v2382
  %v2409 = vadd.f32 %v1490, %v2382
  %v2410 = vadd.f32 %v1493, %v2382
  %v2411 = vadd.f32 %v1539, %v2382
  %v2412 = vadd.f32 %v1542, %v2382
  %v2413 = vadd.f32 %v1588, %v2382
  %v2414 = vadd.f32 %v1591, %v2382
  %v2415 = vadd.f32 %v1637, %v2382
  %v2416 = vadd.f32 %v1640, %v2382
  %v2417 = vadd.f32 %v1686, %v2382
  %v2418 = vadd.f32 %v1689, %v2382
  %v2419 = vadd.f32 %v1735, %v2382
  %v2420 = vadd.f32 %v1738, %v2382
  %v2421 = vadd.f32 %v1784, %v2382
  %v2422 = vadd.f32 %v1787, %v2382
  %v2423 = vadd.f32 %v1833, %v2382
  %v2424 = vadd.f32 %v1836, %v2382
  %v2425 = vadd.f32 %v1882, %v2382
  %v2426 = vadd.f32 %v1885, %v2382
  %v2427 = vadd.f32 %v1931, %v2382
  %v2428 = vadd.f32 %v1934, %v2382
  %v2429 = vadd.f32 %v1980, %v2382
  %v2430 = vadd.f32 %v1983, %v2382
  %v2431 = vadd.f32 %v2029, %v2382
  %v2432 = vadd.f32 %v2032, %v2382
  %v2433 = vadd.f32 %v2078, %v2382
  %v2434 = vadd.f32 %v2081, %v2382
  %v2435 = vadd.f32 %v2127, %v2382
  %v2436 = vadd.f32 %v2130, %v2382
  %v2437 = vadd.f32 %v2176, %v2382
  %v2438 = vadd.f32 %v2179, %v2382
  %v2439 = vadd.f32 %v2225, %v2382
  %v2440 = vadd.f32 %v2228, %v2382
  %v2441 = vadd.f32 %v2274, %v2382
  %v2442 = vadd.f32 %v2277, %v2382
  %v2443 = vadd.f32 %v2323, %v2382
  %v2444 = vadd.f32 %v2326, %v2382
  %v2445 = vadd.f32 %v2372, %v2382
  %v2446 = vadd.f32 %v2375, %v2382
  %v2447 = vmax.f32 %v2383, 0.0
  %v2448 = vmax.f32 %v2384, 0.0
  %v2449 = vmax.f32 %v2385, 0.0
  %v2450 = vmax.f32 %v2386, 0.0
  %v2451 = vmax.f32 %v2387, 0.0
  %v2452 = vmax.f32 %v2388, 0.0
  %v2453 = vmax.f32 %v2389, 0.0
  %v2454 = vmax.f32 %v2390, 0.0
  %v2455 = vmax.f32 %v2391, 0.0
  %v2456 = vmax.f32 %v2392, 0.0
  %v2457 = vmax.f32 %v2393, 0.0
  %v2458 = vmax.f32 %v2394, 0.0
  %v2459 = vmax.f32 %v2395, 0.0
  %v2460 = vmax.f32 %v2396, 0.0
  %v2461 = vmax.f32 %v2397, 0.0
  %v2462 = vmax.f32 %v2398, 0.0
  %v2463 = vmax.f32 %v2399, 0.0
  %v2464 = vmax.f32 %v2400, 0.0
  %v2465 = vmax.f32 %v2401, 0.0
  %v2466 = vmax.f32 %v2402, 0.0
  %v2467 = vmax.f32 %v2403, 0.0
  %v2468 = vmax.f32 %v2404, 0.0
  %v2469 = vmax.f32 %v2405, 0.0
  %v2470 = vmax.f32 %v2406, 0.0
  %v2471 = vmax.f32 %v2407, 0.0
  %v2472 = vmax.f32 %v2408, 0.0
  %v2473 = vmax.f32 %v2409, 0.0
  %v2474 = vmax.f32 %v2410, 0.0
  %v2475 = vmax.f32 %v2411, 0.0
  %v2476 = vmax.f32 %v2412, 0.0
  %v2477 = vmax.f32 %v2413, 0.0
  %v2478 = vmax.f32 %v2414, 0.0
  %v2479 = vmax.f32 %v2415, 0.0
  %v2480 = vmax.f32 %v2416, 0.0
  %v2481 = vmax.f32 %v2417, 0.0
  %v2482 = vmax.f32 %v2418, 0.0
  %v2483 = vmax.f32 %v2419, 0.0
  %v2484 = vmax.f32 %v2420, 0.0
  %v2485 = vmax.f32 %v2421, 0.0
  %v2486 = vmax.f32 %v2422, 0.0
  %v2487 = vmax.f32 %v2423, 0.0
  %v2488 = vmax.f32 %v2424, 0.0
  %v2489 = vmax.f32 %v2425, 0.0
  %v2490 = vmax.f32 %v2426, 0.0
  %v2491 = vmax.f32 %v2427, 0.0
  %v2492 = vmax.f32 %v2428, 0.0
  %v2493 = vmax.f32 %v2429, 0.0
  %v2494 = vmax.f32 %v2430, 0.0
  %v2495 = vmax.f32 %v2431, 0.0
  %v2496 = vmax.f32 %v2432, 0.0
  %v2497 = vmax.f32 %v2433, 0.0
  %v2498 = vmax.f32 %v2434, 0.0
  %v2499 = vmax.f32 %v2435, 0.0
  %v2500 = vmax.f32 %v2436, 0.0
  %v2501 = vmax.f32 %v2437, 0.0
  %v2502 = vmax.f32 %v2438, 0.0
  %v2503 = vmax.f32 %v2439, 0.0
  %v2504 = vmax.f32 %v2440, 0.0
  %v2505 = vmax.f32 %v2441, 0.0
  %v2506 = vmax.f32 %v2442, 0.0
  %v2507 = vmax.f32 %v2443, 0.0
  %v2508 = vmax.f32 %v2444, 0.0
  %v2509 = vmax.f32 %v2445, 0.0
  %v2510 = vmax.f32 %v2446, 0.0
  %v2511 = vld [vmem:[%s2 + $0x8] sm:$0xf]
  %v2512 = vld [vmem:[%s2 + $0xc] sm:$0xf]
  %v2513 = vld [vmem:[%s2 + $0x10] sm:$0xf]
  %v2514 = vld [vmem:[%s2 + $0x14] sm:$0xf]
  %v2515 = vld [vmem:[%s2 + $0x18] sm:$0xf]
  %v2516 = vld [vmem:[%s2 + $0x1c] sm:$0xf]
  %v2517 = vld [vmem:[%s2 + $0x20] sm:$0xf]
  %v2518 = vld [vmem:[%s2 + $0x24] sm:$0xf]
  %v2519 = vld [vmem:[%s2 + $0x28] sm:$0xf]
  %v2520 = vld [vmem:[%s2 + $0x2c] sm:$0xf]
  %v2521 = vld [vmem:[%s2 + $0x30] sm:$0xf]
  %v2522 = vld [vmem:[%s2 + $0x34] sm:$0xf]
  %v2523 = vld [vmem:[%s2 + $0x38] sm:$0xf]
  %v2524 = vld [vmem:[%s2 + $0x3c] sm:$0xf]
  %v2525 = vld [vmem:[%s2 + $0x40] sm:$0xf]
  %v2526 = vld [vmem:[%s2 + $0x44] sm:$0xf]
  %v2527 = vpack.c.bf16 %v2448, %v2447
  %v2528 = vpack.c.bf16 %v2450, %v2449
  %v2529 = vpack.c.bf16 %v2452, %v2451
  %v2530 = vpack.c.bf16 %v2454, %v2453
  %v2531 = vpack.c.bf16 %v2456, %v2455
  %v2532 = vpack.c.bf16 %v2458, %v2457
  %v2533 = vpack.c.bf16 %v2460, %v2459
  %v2534 = vpack.c.bf16 %v2462, %v2461
  %v2535 = vpack.c.bf16 %v2464, %v2463
  %v2536 = vpack.c.bf16 %v2466, %v2465
  %v2537 = vpack.c.bf16 %v2468, %v2467
  %v2538 = vpack.c.bf16 %v2470, %v2469
  %v2539 = vpack.c.bf16 %v2472, %v2471
  %v2540 = vpack.c.bf16 %v2474, %v2473
  %v2541 = vpack.c.bf16 %v2476, %v2475
  %v2542 = vpack.c.bf16 %v2478, %v2477
  %v2543 = vpack.c.bf16 %v2480, %v2479
  %v2544 = vpack.c.bf16 %v2482, %v2481
  %v2545 = vpack.c.bf16 %v2484, %v2483
  %v2546 = vpack.c.bf16 %v2486, %v2485
  %v2547 = vpack.c.bf16 %v2488, %v2487
  %v2548 = vpack.c.bf16 %v2490, %v2489
  %v2549 = vpack.c.bf16 %v2492, %v2491
  %v2550 = vpack.c.bf16 %v2494, %v2493
  %v2551 = vpack.c.bf16 %v2496, %v2495
  %v2552 = vpack.c.bf16 %v2498, %v2497
  %v2553 = vpack.c.bf16 %v2500, %v2499
  %v2554 = vpack.c.bf16 %v2502, %v2501
  %v2555 = vpack.c.bf16 %v2504, %v2503
  %v2556 = vpack.c.bf16 %v2506, %v2505
  %v2557 = vpack.c.bf16 %v2508, %v2507
  %v2558 = vpack.c.bf16 %v2510, %v2509
  %v2575 = vunpack.c.l.b16 %v2511
  %v2576 = vunpack.c.l.b16 %v2512
  %v2577 = vunpack.c.l.b16 %v2513
  %v2578 = vunpack.c.l.b16 %v2514
  %v2579 = vunpack.c.l.b16 %v2515
  %v2580 = vunpack.c.l.b16 %v2516
  %v2581 = vunpack.c.l.b16 %v2517
  %v2582 = vunpack.c.l.b16 %v2518
  %v2583 = vunpack.c.l.b16 %v2519
  %v2584 = vunpack.c.l.b16 %v2520
  %v2585 = vunpack.c.l.b16 %v2521
  %v2586 = vunpack.c.l.b16 %v2522
  %v2587 = vunpack.c.l.b16 %v2523
  %v2588 = vunpack.c.l.b16 %v2524
  %v2589 = vunpack.c.l.b16 %v2525
  %v2590 = vunpack.c.l.b16 %v2526
  %v2591 = vpack.c.b16 %v2576, %v2575
  %v2592 = vpack.c.b16 %v2578, %v2577
  %v2593 = vpack.c.b16 %v2580, %v2579
  %v2594 = vpack.c.b16 %v2582, %v2581
  %v2595 = vpack.c.b16 %v2584, %v2583
  %v2596 = vpack.c.b16 %v2586, %v2585
  %v2597 = vpack.c.b16 %v2588, %v2587
  %v2598 = vpack.c.b16 %v2590, %v2589
  %2607 = vmatprep.subr.bf16.mxu0 0
  %2608 = vmatpush1.bf16.msra.mxu0 %v2598
  %2609 = vmatprep.subr.bf16.mxu0 0
  %2610 = vmatpush1.bf16.msra.mxu0 %v2597
  %2611 = vmatprep.subr.bf16.mxu0 0
  %2612 = vmatpush1.bf16.msra.mxu0 %v2596
  %2613 = vmatprep.subr.bf16.mxu0 0
  %2614 = vmatpush1.bf16.msra.mxu0 %v2595
  %2615 = vmatprep.subr.bf16.mxu0 0
  %2616 = vmatpush1.bf16.msra.mxu0 %v2594
  %2617 = vmatprep.subr.bf16.mxu0 0
  %2618 = vmatpush1.bf16.msra.mxu0 %v2593
  %2619 = vmatprep.subr.bf16.mxu0 0
  %2620 = vmatpush1.bf16.msra.mxu0 %v2592
  %2621 = vmatprep.subr.bf16.mxu0 0
  %2622 = vmatpush1.bf16.msra.mxu0 %v2591
  %2623 = vmatprep.subr.bf16.mxu0 0
  %2624 = vmatpush2.bf16.msra.mxu0 0
  %2625 = vmatprep.subr.bf16.mxu0 0
  %2626 = vmatpush2.bf16.msra.mxu0 0
  %2627 = vmatprep.subr.bf16.mxu0 0
  %2628 = vmatpush2.bf16.msra.mxu0 0
  %2629 = vmatprep.subr.bf16.mxu0 0
  %2630 = vmatpush2.bf16.msra.mxu0 0
  %2631 = vmatprep.subr.bf16.mxu0 0
  %2632 = vmatpush2.bf16.msra.mxu0 0
  %2633 = vmatprep.subr.bf16.mxu0 0
  %2634 = vmatpush2.bf16.msra.mxu0 0
  %2635 = vmatprep.subr.bf16.mxu0 0
  %2636 = vmatpush2.bf16.msra.mxu0 0
  %2637 = vmatprep.subr.bf16.mxu0 0
  %2638 = vmatpush2.bf16.msra.mxu0 0
  %2639 = vmatprep.mubr.bf16.mxu0 0
  %2640 = vmatmul.mubr.bf16.gmra.mxu0 %v2527
  %v2641 = vpop.f32.mrf.mxu0
  %v2642 = vadd.f32 0.0, %v2641
  %v2643 = vpop.f32.mrf.mxu0
  %v2644 = vpop.f32.mrf.mxu0
  %v2645 = vadd.f32 0.0, %v2644
  %v2646 = vpop.f32.mrf.mxu0
  %2647 = vmatprep.mubr.bf16.mxu0 0
  %2648 = vmatmul.mubr.bf16.gmra.mxu0 %v2528
  %v2649 = vpop.f32.mrf.mxu0
  %v2650 = vadd.f32 0.0, %v2649
  %v2651 = vpop.f32.mrf.mxu0
  %v2652 = vpop.f32.mrf.mxu0
  %v2653 = vadd.f32 0.0, %v2652
  %v2654 = vpop.f32.mrf.mxu0
  %2655 = vmatprep.mubr.bf16.mxu0 0
  %2656 = vmatmul.mubr.bf16.gmra.mxu0 %v2529
  %v2657 = vpop.f32.mrf.mxu0
  %v2658 = vadd.f32 0.0, %v2657
  %v2659 = vpop.f32.mrf.mxu0
  %v2660 = vpop.f32.mrf.mxu0
  %v2661 = vadd.f32 0.0, %v2660
  %v2662 = vpop.f32.mrf.mxu0
  %2663 = vmatprep.mubr.bf16.mxu0 0
  %2664 = vmatmul.mubr.bf16.gmra.mxu0 %v2530
  %v2665 = vpop.f32.mrf.mxu0
  %v2666 = vadd.f32 0.0, %v2665
  %v2667 = vpop.f32.mrf.mxu0
  %v2668 = vpop.f32.mrf.mxu0
  %v2669 = vadd.f32 0.0, %v2668
  %v2670 = vpop.f32.mrf.mxu0
  %2671 = vmatprep.mubr.bf16.mxu0 0
  %2672 = vmatmul.mubr.bf16.gmra.mxu0 %v2531
  %v2673 = vpop.f32.mrf.mxu0
  %v2674 = vadd.f32 0.0, %v2673
  %v2675 = vpop.f32.mrf.mxu0
  %v2676 = vpop.f32.mrf.mxu0
  %v2677 = vadd.f32 0.0, %v2676
  %v2678 = vpop.f32.mrf.mxu0
  %2679 = vmatprep.mubr.bf16.mxu0 0
  %2680 = vmatmul.mubr.bf16.gmra.mxu0 %v2532
  %v2681 = vpop.f32.mrf.mxu0
  %v2682 = vadd.f32 0.0, %v2681
  %v2683 = vpop.f32.mrf.mxu0
  %v2684 = vpop.f32.mrf.mxu0
  %v2685 = vadd.f32 0.0, %v2684
  %v2686 = vpop.f32.mrf.mxu0
  %2687 = vmatprep.mubr.bf16.mxu0 0
  %2688 = vmatmul.mubr.bf16.gmra.mxu0 %v2533
  %v2689 = vpop.f32.mrf.mxu0
  %v2690 = vadd.f32 0.0, %v2689
  %v2691 = vpop.f32.mrf.mxu0
  %v2692 = vpop.f32.mrf.mxu0
  %v2693 = vadd.f32 0.0, %v2692
  %v2694 = vpop.f32.mrf.mxu0
  %2695 = vmatprep.mubr.bf16.mxu0 0
  %2696 = vmatmul.mubr.bf16.gmra.mxu0 %v2534
  %v2697 = vpop.f32.mrf.mxu0
  %v2698 = vadd.f32 0.0, %v2697
  %v2699 = vpop.f32.mrf.mxu0
  %v2700 = vpop.f32.mrf.mxu0
  %v2701 = vadd.f32 0.0, %v2700
  %v2702 = vpop.f32.mrf.mxu0
  %2703 = vmatprep.mubr.bf16.mxu0 0
  %2704 = vmatmul.mubr.bf16.gmra.mxu0 %v2535
  %v2705 = vpop.f32.mrf.mxu0
  %v2706 = vadd.f32 0.0, %v2705
  %v2707 = vpop.f32.mrf.mxu0
  %v2708 = vpop.f32.mrf.mxu0
  %v2709 = vadd.f32 0.0, %v2708
  %v2710 = vpop.f32.mrf.mxu0
  %2711 = vmatprep.mubr.bf16.mxu0 0
  %2712 = vmatmul.mubr.bf16.gmra.mxu0 %v2536
  %v2713 = vpop.f32.mrf.mxu0
  %v2714 = vadd.f32 0.0, %v2713
  %v2715 = vpop.f32.mrf.mxu0
  %v2716 = vpop.f32.mrf.mxu0
  %v2717 = vadd.f32 0.0, %v2716
  %v2718 = vpop.f32.mrf.mxu0
  %2719 = vmatprep.mubr.bf16.mxu0 0
  %2720 = vmatmul.mubr.bf16.gmra.mxu0 %v2537
  %v2721 = vpop.f32.mrf.mxu0
  %v2722 = vadd.f32 0.0, %v2721
  %v2723 = vpop.f32.mrf.mxu0
  %v2724 = vpop.f32.mrf.mxu0
  %v2725 = vadd.f32 0.0, %v2724
  %v2726 = vpop.f32.mrf.mxu0
  %2727 = vmatprep.mubr.bf16.mxu0 0
  %2728 = vmatmul.mubr.bf16.gmra.mxu0 %v2538
  %v2729 = vpop.f32.mrf.mxu0
  %v2730 = vadd.f32 0.0, %v2729
  %v2731 = vpop.f32.mrf.mxu0
  %v2732 = vpop.f32.mrf.mxu0
  %v2733 = vadd.f32 0.0, %v2732
  %v2734 = vpop.f32.mrf.mxu0
  %2735 = vmatprep.mubr.bf16.mxu0 0
  %2736 = vmatmul.mubr.bf16.gmra.mxu0 %v2539
  %v2737 = vpop.f32.mrf.mxu0
  %v2738 = vadd.f32 0.0, %v2737
  %v2739 = vpop.f32.mrf.mxu0
  %v2740 = vpop.f32.mrf.mxu0
  %v2741 = vadd.f32 0.0, %v2740
  %v2742 = vpop.f32.mrf.mxu0
  %2743 = vmatprep.mubr.bf16.mxu0 0
  %2744 = vmatmul.mubr.bf16.gmra.mxu0 %v2540
  %v2745 = vpop.f32.mrf.mxu0
  %v2746 = vadd.f32 0.0, %v2745
  %v2747 = vpop.f32.mrf.mxu0
  %v2748 = vpop.f32.mrf.mxu0
  %v2749 = vadd.f32 0.0, %v2748
  %v2750 = vpop.f32.mrf.mxu0
  %2751 = vmatprep.mubr.bf16.mxu0 0
  %2752 = vmatmul.mubr.bf16.gmra.mxu0 %v2541
  %v2753 = vpop.f32.mrf.mxu0
  %v2754 = vadd.f32 0.0, %v2753
  %v2755 = vpop.f32.mrf.mxu0
  %v2756 = vpop.f32.mrf.mxu0
  %v2757 = vadd.f32 0.0, %v2756
  %v2758 = vpop.f32.mrf.mxu0
  %2759 = vmatprep.mubr.bf16.mxu0 0
  %2760 = vmatmul.mubr.bf16.gmra.mxu0 %v2542
  %v2761 = vpop.f32.mrf.mxu0
  %v2762 = vadd.f32 0.0, %v2761
  %v2763 = vpop.f32.mrf.mxu0
  %v2764 = vpop.f32.mrf.mxu0
  %v2765 = vadd.f32 0.0, %v2764
  %v2766 = vpop.f32.mrf.mxu0
  %2767 = vmatprep.mubr.bf16.mxu0 0
  %2768 = vmatmul.mubr.bf16.gmra.mxu0 %v2543
  %v2769 = vpop.f32.mrf.mxu0
  %v2770 = vadd.f32 0.0, %v2769
  %v2771 = vpop.f32.mrf.mxu0
  %v2772 = vpop.f32.mrf.mxu0
  %v2773 = vadd.f32 0.0, %v2772
  %v2774 = vpop.f32.mrf.mxu0
  %2775 = vmatprep.mubr.bf16.mxu0 0
  %2776 = vmatmul.mubr.bf16.gmra.mxu0 %v2544
  %v2777 = vpop.f32.mrf.mxu0
  %v2778 = vadd.f32 0.0, %v2777
  %v2779 = vpop.f32.mrf.mxu0
  %v2780 = vpop.f32.mrf.mxu0
  %v2781 = vadd.f32 0.0, %v2780
  %v2782 = vpop.f32.mrf.mxu0
  %2783 = vmatprep.mubr.bf16.mxu0 0
  %2784 = vmatmul.mubr.bf16.gmra.mxu0 %v2545
  %v2785 = vpop.f32.mrf.mxu0
  %v2786 = vadd.f32 0.0, %v2785
  %v2787 = vpop.f32.mrf.mxu0
  %v2788 = vpop.f32.mrf.mxu0
  %v2789 = vadd.f32 0.0, %v2788
  %v2790 = vpop.f32.mrf.mxu0
  %2791 = vmatprep.mubr.bf16.mxu0 0
  %2792 = vmatmul.mubr.bf16.gmra.mxu0 %v2546
  %v2793 = vpop.f32.mrf.mxu0
  %v2794 = vadd.f32 0.0, %v2793
  %v2795 = vpop.f32.mrf.mxu0
  %v2796 = vpop.f32.mrf.mxu0
  %v2797 = vadd.f32 0.0, %v2796
  %v2798 = vpop.f32.mrf.mxu0
  %2799 = vmatprep.mubr.bf16.mxu0 0
  %2800 = vmatmul.mubr.bf16.gmra.mxu0 %v2547
  %v2801 = vpop.f32.mrf.mxu0
  %v2802 = vadd.f32 0.0, %v2801
  %v2803 = vpop.f32.mrf.mxu0
  %v2804 = vpop.f32.mrf.mxu0
  %v2805 = vadd.f32 0.0, %v2804
  %v2806 = vpop.f32.mrf.mxu0
  %2807 = vmatprep.mubr.bf16.mxu0 0
  %2808 = vmatmul.mubr.bf16.gmra.mxu0 %v2548
  %v2809 = vpop.f32.mrf.mxu0
  %v2810 = vadd.f32 0.0, %v2809
  %v2811 = vpop.f32.mrf.mxu0
  %v2812 = vpop.f32.mrf.mxu0
  %v2813 = vadd.f32 0.0, %v2812
  %v2814 = vpop.f32.mrf.mxu0
  %2815 = vmatprep.mubr.bf16.mxu0 0
  %2816 = vmatmul.mubr.bf16.gmra.mxu0 %v2549
  %v2817 = vpop.f32.mrf.mxu0
  %v2818 = vadd.f32 0.0, %v2817
  %v2819 = vpop.f32.mrf.mxu0
  %v2820 = vpop.f32.mrf.mxu0
  %v2821 = vadd.f32 0.0, %v2820
  %v2822 = vpop.f32.mrf.mxu0
  %2823 = vmatprep.mubr.bf16.mxu0 0
  %2824 = vmatmul.mubr.bf16.gmra.mxu0 %v2550
  %v2825 = vpop.f32.mrf.mxu0
  %v2826 = vadd.f32 0.0, %v2825
  %v2827 = vpop.f32.mrf.mxu0
  %v2828 = vpop.f32.mrf.mxu0
  %v2829 = vadd.f32 0.0, %v2828
  %v2830 = vpop.f32.mrf.mxu0
  %2831 = vmatprep.mubr.bf16.mxu0 0
  %2832 = vmatmul.mubr.bf16.gmra.mxu0 %v2551
  %v2833 = vpop.f32.mrf.mxu0
  %v2834 = vadd.f32 0.0, %v2833
  %v2835 = vpop.f32.mrf.mxu0
  %v2836 = vpop.f32.mrf.mxu0
  %v2837 = vadd.f32 0.0, %v2836
  %v2838 = vpop.f32.mrf.mxu0
  %2839 = vmatprep.mubr.bf16.mxu0 0
  %2840 = vmatmul.mubr.bf16.gmra.mxu0 %v2552
  %v2841 = vpop.f32.mrf.mxu0
  %v2842 = vadd.f32 0.0, %v2841
  %v2843 = vpop.f32.mrf.mxu0
  %v2844 = vpop.f32.mrf.mxu0
  %v2845 = vadd.f32 0.0, %v2844
  %v2846 = vpop.f32.mrf.mxu0
  %2847 = vmatprep.mubr.bf16.mxu0 0
  %2848 = vmatmul.mubr.bf16.gmra.mxu0 %v2553
  %v2849 = vpop.f32.mrf.mxu0
  %v2850 = vadd.f32 0.0, %v2849
  %v2851 = vpop.f32.mrf.mxu0
  %v2852 = vpop.f32.mrf.mxu0
  %v2853 = vadd.f32 0.0, %v2852
  %v2854 = vpop.f32.mrf.mxu0
  %2855 = vmatprep.mubr.bf16.mxu0 0
  %2856 = vmatmul.mubr.bf16.gmra.mxu0 %v2554
  %v2857 = vpop.f32.mrf.mxu0
  %v2858 = vadd.f32 0.0, %v2857
  %v2859 = vpop.f32.mrf.mxu0
  %v2860 = vpop.f32.mrf.mxu0
  %v2861 = vadd.f32 0.0, %v2860
  %v2862 = vpop.f32.mrf.mxu0
  %2863 = vmatprep.mubr.bf16.mxu0 0
  %2864 = vmatmul.mubr.bf16.gmra.mxu0 %v2555
  %v2865 = vpop.f32.mrf.mxu0
  %v2866 = vadd.f32 0.0, %v2865
  %v2867 = vpop.f32.mrf.mxu0
  %v2868 = vpop.f32.mrf.mxu0
  %v2869 = vadd.f32 0.0, %v2868
  %v2870 = vpop.f32.mrf.mxu0
  %2871 = vmatprep.mubr.bf16.mxu0 0
  %2872 = vmatmul.mubr.bf16.gmra.mxu0 %v2556
  %v2873 = vpop.f32.mrf.mxu0
  %v2874 = vadd.f32 0.0, %v2873
  %v2875 = vpop.f32.mrf.mxu0
  %v2876 = vpop.f32.mrf.mxu0
  %v2877 = vadd.f32 0.0, %v2876
  %v2878 = vpop.f32.mrf.mxu0
  %2879 = vmatprep.mubr.bf16.mxu0 0
  %2880 = vmatmul.mubr.bf16.gmra.mxu0 %v2557
  %v2881 = vpop.f32.mrf.mxu0
  %v2882 = vadd.f32 0.0, %v2881
  %v2883 = vpop.f32.mrf.mxu0
  %v2884 = vpop.f32.mrf.mxu0
  %v2885 = vadd.f32 0.0, %v2884
  %v2886 = vpop.f32.mrf.mxu0
  %2887 = vmatprep.mubr.bf16.mxu0 0
  %2888 = vmatmul.mubr.bf16.gmra.mxu0 %v2558
  %v2889 = vpop.f32.mrf.mxu0
  %v2890 = vadd.f32 0.0, %v2889
  %v2891 = vpop.f32.mrf.mxu0
  %v2892 = vpop.f32.mrf.mxu0
  %v2893 = vadd.f32 0.0, %v2892
  %v2894 = vpop.f32.mrf.mxu0
  %2895 = vdwg.mxu0
  %v2896 = vpack.c.bf16 %v2645, %v2642
  %v2897 = vpack.c.bf16 %v2653, %v2650
  %v2898 = vpack.c.bf16 %v2661, %v2658
  %v2899 = vpack.c.bf16 %v2669, %v2666
  %v2900 = vpack.c.bf16 %v2677, %v2674
  %v2901 = vpack.c.bf16 %v2685, %v2682
  %v2902 = vpack.c.bf16 %v2693, %v2690
  %v2903 = vpack.c.bf16 %v2701, %v2698
  %v2904 = vpack.c.bf16 %v2709, %v2706
  %v2905 = vpack.c.bf16 %v2717, %v2714
  %v2906 = vpack.c.bf16 %v2725, %v2722
  %v2907 = vpack.c.bf16 %v2733, %v2730
  %v2908 = vpack.c.bf16 %v2741, %v2738
  %v2909 = vpack.c.bf16 %v2749, %v2746
  %v2910 = vpack.c.bf16 %v2757, %v2754
  %v2911 = vpack.c.bf16 %v2765, %v2762
  %v2912 = vpack.c.bf16 %v2773, %v2770
  %v2913 = vpack.c.bf16 %v2781, %v2778
  %v2914 = vpack.c.bf16 %v2789, %v2786
  %v2915 = vpack.c.bf16 %v2797, %v2794
  %v2916 = vpack.c.bf16 %v2805, %v2802
  %v2917 = vpack.c.bf16 %v2813, %v2810
  %v2918 = vpack.c.bf16 %v2821, %v2818
  %v2919 = vpack.c.bf16 %v2829, %v2826
  %v2920 = vpack.c.bf16 %v2837, %v2834
  %v2921 = vpack.c.bf16 %v2845, %v2842
  %v2922 = vpack.c.bf16 %v2853, %v2850
  %v2923 = vpack.c.bf16 %v2861, %v2858
  %v2924 = vpack.c.bf16 %v2869, %v2866
  %v2925 = vpack.c.bf16 %v2877, %v2874
  %v2926 = vpack.c.bf16 %v2885, %v2882
  %v2927 = vpack.c.bf16 %v2893, %v2890
  %2928 = vmatprep.subr.bf16.mxu0 0
  %2929 = vmatpush1.bf16.msra.mxu0 0
  %2930 = vmatprep.subr.bf16.mxu0 0
  %2931 = vmatpush1.bf16.msra.mxu0 0
  %2932 = vmatprep.subr.bf16.mxu0 0
  %2933 = vmatpush1.bf16.msra.mxu0 0
  %2934 = vmatprep.subr.bf16.mxu0 0
  %2935 = vmatpush1.bf16.msra.mxu0 0
  %2936 = vmatprep.subr.bf16.mxu0 0
  %2937 = vmatpush1.bf16.msra.mxu0 0
  %2938 = vmatprep.subr.bf16.mxu0 0
  %2939 = vmatpush1.bf16.msra.mxu0 0
  %2940 = vmatprep.subr.bf16.mxu0 0
  %2941 = vmatpush1.bf16.msra.mxu0 0
  %2942 = vmatprep.subr.bf16.mxu0 0
  %2943 = vmatpush1.bf16.msra.mxu0 %v2896
  %2944 = vmatprep.subr.bf16.mxu0 0
  %2945 = vmatpush2.bf16.msra.mxu0 0
  %2946 = vmatprep.subr.bf16.mxu0 0
  %2947 = vmatpush2.bf16.msra.mxu0 0
  %2948 = vmatprep.subr.bf16.mxu0 0
  %2949 = vmatpush2.bf16.msra.mxu0 0
  %2950 = vmatprep.subr.bf16.mxu0 0
  %2951 = vmatpush2.bf16.msra.mxu0 0
  %2952 = vmatprep.subr.bf16.mxu0 0
  %2953 = vmatpush2.bf16.msra.mxu0 0
  %2954 = vmatprep.subr.bf16.mxu0 0
  %2955 = vmatpush2.bf16.msra.mxu0 0
  %2956 = vmatprep.subr.bf16.mxu0 0
  %2957 = vmatpush2.bf16.msra.mxu0 0
  %2958 = vmatprep.subr.bf16.mxu0 0
  %2959 = vmatpush2.bf16.msra.mxu0 0
  %2960 = vmatprep.mubr.bf16.mxu0 0
  %2961 = vmatmul.mubr.bf16.gmra.mxu0 %v816
  %v2962 = vpop.f32.mrf.mxu0
  %v2963 = vadd.f32 0.0, %v2962
  %v2964 = vpop.f32.mrf.mxu0
  %v2965 = vpop.f32.mrf.mxu0
  %v2966 = vadd.f32 0.0, %v2965
  %v2967 = vpop.f32.mrf.mxu0
  %2968 = vdwg.mxu0
  %2969 = vmatprep.subr.bf16.mxu0 0
  %2970 = vmatpush1.bf16.msra.mxu0 0
  %2971 = vmatprep.subr.bf16.mxu0 0
  %2972 = vmatpush1.bf16.msra.mxu0 0
  %2973 = vmatprep.subr.bf16.mxu0 0
  %2974 = vmatpush1.bf16.msra.mxu0 0
  %2975 = vmatprep.subr.bf16.mxu0 0
  %2976 = vmatpush1.bf16.msra.mxu0 0
  %2977 = vmatprep.subr.bf16.mxu0 0
  %2978 = vmatpush1.bf16.msra.mxu0 0
  %2979 = vmatprep.subr.bf16.mxu0 0
  %2980 = vmatpush1.bf16.msra.mxu0 0
  %2981 = vmatprep.subr.bf16.mxu0 0
  %2982 = vmatpush1.bf16.msra.mxu0 0
  %2983 = vmatprep.subr.bf16.mxu0 0
  %2984 = vmatpush1.bf16.msra.mxu0 %v2897
  %2985 = vmatprep.subr.bf16.mxu0 0
  %2986 = vmatpush2.bf16.msra.mxu0 0
  %2987 = vmatprep.subr.bf16.mxu0 0
  %2988 = vmatpush2.bf16.msra.mxu0 0
  %2989 = vmatprep.subr.bf16.mxu0 0
  %2990 = vmatpush2.bf16.msra.mxu0 0
  %2991 = vmatprep.subr.bf16.mxu0 0
  %2992 = vmatpush2.bf16.msra.mxu0 0
  %2993 = vmatprep.subr.bf16.mxu0 0
  %2994 = vmatpush2.bf16.msra.mxu0 0
  %2995 = vmatprep.subr.bf16.mxu0 0
  %2996 = vmatpush2.bf16.msra.mxu0 0
  %2997 = vmatprep.subr.bf16.mxu0 0
  %2998 = vmatpush2.bf16.msra.mxu0 0
  %2999 = vmatprep.subr.bf16.mxu0 0
  %3000 = vmatpush2.bf16.msra.mxu0 0
  %3001 = vmatprep.mubr.bf16.mxu0 0
  %3002 = vmatmul.mubr.bf16.gmra.mxu0 %v865
  %v3003 = vpop.f32.mrf.mxu0
  %v3004 = vadd.f32 0.0, %v3003
  %v3005 = vpop.f32.mrf.mxu0
  %v3006 = vpop.f32.mrf.mxu0
  %v3007 = vadd.f32 0.0, %v3006
  %v3008 = vpop.f32.mrf.mxu0
  %3009 = vdwg.mxu0
  %3010 = vmatprep.subr.bf16.mxu0 0
  %3011 = vmatpush1.bf16.msra.mxu0 0
  %3012 = vmatprep.subr.bf16.mxu0 0
  %3013 = vmatpush1.bf16.msra.mxu0 0
  %3014 = vmatprep.subr.bf16.mxu0 0
  %3015 = vmatpush1.bf16.msra.mxu0 0
  %3016 = vmatprep.subr.bf16.mxu0 0
  %3017 = vmatpush1.bf16.msra.mxu0 0
  %3018 = vmatprep.subr.bf16.mxu0 0
  %3019 = vmatpush1.bf16.msra.mxu0 0
  %3020 = vmatprep.subr.bf16.mxu0 0
  %3021 = vmatpush1.bf16.msra.mxu0 0
  %3022 = vmatprep.subr.bf16.mxu0 0
  %3023 = vmatpush1.bf16.msra.mxu0 0
  %3024 = vmatprep.subr.bf16.mxu0 0
  %3025 = vmatpush1.bf16.msra.mxu0 %v2898
  %3026 = vmatprep.subr.bf16.mxu0 0
  %3027 = vmatpush2.bf16.msra.mxu0 0
  %3028 = vmatprep.subr.bf16.mxu0 0
  %3029 = vmatpush2.bf16.msra.mxu0 0
  %3030 = vmatprep.subr.bf16.mxu0 0
  %3031 = vmatpush2.bf16.msra.mxu0 0
  %3032 = vmatprep.subr.bf16.mxu0 0
  %3033 = vmatpush2.bf16.msra.mxu0 0
  %3034 = vmatprep.subr.bf16.mxu0 0
  %3035 = vmatpush2.bf16.msra.mxu0 0
  %3036 = vmatprep.subr.bf16.mxu0 0
  %3037 = vmatpush2.bf16.msra.mxu0 0
  %3038 = vmatprep.subr.bf16.mxu0 0
  %3039 = vmatpush2.bf16.msra.mxu0 0
  %3040 = vmatprep.subr.bf16.mxu0 0
  %3041 = vmatpush2.bf16.msra.mxu0 0
  %3042 = vmatprep.mubr.bf16.mxu0 0
  %3043 = vmatmul.mubr.bf16.gmra.mxu0 %v914
  %v3044 = vpop.f32.mrf.mxu0
  %v3045 = vadd.f32 0.0, %v3044
  %v3046 = vpop.f32.mrf.mxu0
  %v3047 = vpop.f32.mrf.mxu0
  %v3048 = vadd.f32 0.0, %v3047
  %v3049 = vpop.f32.mrf.mxu0
  %3050 = vdwg.mxu0
  %3051 = vmatprep.subr.bf16.mxu0 0
  %3052 = vmatpush1.bf16.msra.mxu0 0
  %3053 = vmatprep.subr.bf16.mxu0 0
  %3054 = vmatpush1.bf16.msra.mxu0 0
  %3055 = vmatprep.subr.bf16.mxu0 0
  %3056 = vmatpush1.bf16.msra.mxu0 0
  %3057 = vmatprep.subr.bf16.mxu0 0
  %3058 = vmatpush1.bf16.msra.mxu0 0
  %3059 = vmatprep.subr.bf16.mxu0 0
  %3060 = vmatpush1.bf16.msra.mxu0 0
  %3061 = vmatprep.subr.bf16.mxu0 0
  %3062 = vmatpush1.bf16.msra.mxu0 0
  %3063 = vmatprep.subr.bf16.mxu0 0
  %3064 = vmatpush1.bf16.msra.mxu0 0
  %3065 = vmatprep.subr.bf16.mxu0 0
  %3066 = vmatpush1.bf16.msra.mxu0 %v2899
  %3067 = vmatprep.subr.bf16.mxu0 0
  %3068 = vmatpush2.bf16.msra.mxu0 0
  %3069 = vmatprep.subr.bf16.mxu0 0
  %3070 = vmatpush2.bf16.msra.mxu0 0
  %3071 = vmatprep.subr.bf16.mxu0 0
  %3072 = vmatpush2.bf16.msra.mxu0 0
  %3073 = vmatprep.subr.bf16.mxu0 0
  %3074 = vmatpush2.bf16.msra.mxu0 0
  %3075 = vmatprep.subr.bf16.mxu0 0
  %3076 = vmatpush2.bf16.msra.mxu0 0
  %3077 = vmatprep.subr.bf16.mxu0 0
  %3078 = vmatpush2.bf16.msra.mxu0 0
  %3079 = vmatprep.subr.bf16.mxu0 0
  %3080 = vmatpush2.bf16.msra.mxu0 0
  %3081 = vmatprep.subr.bf16.mxu0 0
  %3082 = vmatpush2.bf16.msra.mxu0 0
  %3083 = vmatprep.mubr.bf16.mxu0 0
  %3084 = vmatmul.mubr.bf16.gmra.mxu0 %v963
  %v3085 = vpop.f32.mrf.mxu0
  %v3086 = vadd.f32 0.0, %v3085
  %v3087 = vpop.f32.mrf.mxu0
  %v3088 = vpop.f32.mrf.mxu0
  %v3089 = vadd.f32 0.0, %v3088
  %v3090 = vpop.f32.mrf.mxu0
  %3091 = vdwg.mxu0
  %3092 = vmatprep.subr.bf16.mxu0 0
  %3093 = vmatpush1.bf16.msra.mxu0 0
  %3094 = vmatprep.subr.bf16.mxu0 0
  %3095 = vmatpush1.bf16.msra.mxu0 0
  %3096 = vmatprep.subr.bf16.mxu0 0
  %3097 = vmatpush1.bf16.msra.mxu0 0
  %3098 = vmatprep.subr.bf16.mxu0 0
  %3099 = vmatpush1.bf16.msra.mxu0 0
  %3100 = vmatprep.subr.bf16.mxu0 0
  %3101 = vmatpush1.bf16.msra.mxu0 0
  %3102 = vmatprep.subr.bf16.mxu0 0
  %3103 = vmatpush1.bf16.msra.mxu0 0
  %3104 = vmatprep.subr.bf16.mxu0 0
  %3105 = vmatpush1.bf16.msra.mxu0 0
  %3106 = vmatprep.subr.bf16.mxu0 0
  %3107 = vmatpush1.bf16.msra.mxu0 %v2900
  %3108 = vmatprep.subr.bf16.mxu0 0
  %3109 = vmatpush2.bf16.msra.mxu0 0
  %3110 = vmatprep.subr.bf16.mxu0 0
  %3111 = vmatpush2.bf16.msra.mxu0 0
  %3112 = vmatprep.subr.bf16.mxu0 0
  %3113 = vmatpush2.bf16.msra.mxu0 0
  %3114 = vmatprep.subr.bf16.mxu0 0
  %3115 = vmatpush2.bf16.msra.mxu0 0
  %3116 = vmatprep.subr.bf16.mxu0 0
  %3117 = vmatpush2.bf16.msra.mxu0 0
  %3118 = vmatprep.subr.bf16.mxu0 0
  %3119 = vmatpush2.bf16.msra.mxu0 0
  %3120 = vmatprep.subr.bf16.mxu0 0
  %3121 = vmatpush2.bf16.msra.mxu0 0
  %3122 = vmatprep.subr.bf16.mxu0 0
  %3123 = vmatpush2.bf16.msra.mxu0 0
  %3124 = vmatprep.mubr.bf16.mxu0 0
  %3125 = vmatmul.mubr.bf16.gmra.mxu0 %v1012
  %v3126 = vpop.f32.mrf.mxu0
  %v3127 = vadd.f32 0.0, %v3126
  %v3128 = vpop.f32.mrf.mxu0
  %v3129 = vpop.f32.mrf.mxu0
  %v3130 = vadd.f32 0.0, %v3129
  %v3131 = vpop.f32.mrf.mxu0
  %3132 = vdwg.mxu0
  %3133 = vmatprep.subr.bf16.mxu0 0
  %3134 = vmatpush1.bf16.msra.mxu0 0
  %3135 = vmatprep.subr.bf16.mxu0 0
  %3136 = vmatpush1.bf16.msra.mxu0 0
  %3137 = vmatprep.subr.bf16.mxu0 0
  %3138 = vmatpush1.bf16.msra.mxu0 0
  %3139 = vmatprep.subr.bf16.mxu0 0
  %3140 = vmatpush1.bf16.msra.mxu0 0
  %3141 = vmatprep.subr.bf16.mxu0 0
  %3142 = vmatpush1.bf16.msra.mxu0 0
  %3143 = vmatprep.subr.bf16.mxu0 0
  %3144 = vmatpush1.bf16.msra.mxu0 0
  %3145 = vmatprep.subr.bf16.mxu0 0
  %3146 = vmatpush1.bf16.msra.mxu0 0
  %3147 = vmatprep.subr.bf16.mxu0 0
  %3148 = vmatpush1.bf16.msra.mxu0 %v2901
  %3149 = vmatprep.subr.bf16.mxu0 0
  %3150 = vmatpush2.bf16.msra.mxu0 0
  %3151 = vmatprep.subr.bf16.mxu0 0
  %3152 = vmatpush2.bf16.msra.mxu0 0
  %3153 = vmatprep.subr.bf16.mxu0 0
  %3154 = vmatpush2.bf16.msra.mxu0 0
  %3155 = vmatprep.subr.bf16.mxu0 0
  %3156 = vmatpush2.bf16.msra.mxu0 0
  %3157 = vmatprep.subr.bf16.mxu0 0
  %3158 = vmatpush2.bf16.msra.mxu0 0
  %3159 = vmatprep.subr.bf16.mxu0 0
  %3160 = vmatpush2.bf16.msra.mxu0 0
  %3161 = vmatprep.subr.bf16.mxu0 0
  %3162 = vmatpush2.bf16.msra.mxu0 0
  %3163 = vmatprep.subr.bf16.mxu0 0
  %3164 = vmatpush2.bf16.msra.mxu0 0
  %3165 = vmatprep.mubr.bf16.mxu0 0
  %3166 = vmatmul.mubr.bf16.gmra.mxu0 %v1061
  %v3167 = vpop.f32.mrf.mxu0
  %v3168 = vadd.f32 0.0, %v3167
  %v3169 = vpop.f32.mrf.mxu0
  %v3170 = vpop.f32.mrf.mxu0
  %v3171 = vadd.f32 0.0, %v3170
  %v3172 = vpop.f32.mrf.mxu0
  %3173 = vdwg.mxu0
  %3174 = vmatprep.subr.bf16.mxu0 0
  %3175 = vmatpush1.bf16.msra.mxu0 0
  %3176 = vmatprep.subr.bf16.mxu0 0
  %3177 = vmatpush1.bf16.msra.mxu0 0
  %3178 = vmatprep.subr.bf16.mxu0 0
  %3179 = vmatpush1.bf16.msra.mxu0 0
  %3180 = vmatprep.subr.bf16.mxu0 0
  %3181 = vmatpush1.bf16.msra.mxu0 0
  %3182 = vmatprep.subr.bf16.mxu0 0
  %3183 = vmatpush1.bf16.msra.mxu0 0
  %3184 = vmatprep.subr.bf16.mxu0 0
  %3185 = vmatpush1.bf16.msra.mxu0 0
  %3186 = vmatprep.subr.bf16.mxu0 0
  %3187 = vmatpush1.bf16.msra.mxu0 0
  %3188 = vmatprep.subr.bf16.mxu0 0
  %3189 = vmatpush1.bf16.msra.mxu0 %v2902
  %3190 = vmatprep.subr.bf16.mxu0 0
  %3191 = vmatpush2.bf16.msra.mxu0 0
  %3192 = vmatprep.subr.bf16.mxu0 0
  %3193 = vmatpush2.bf16.msra.mxu0 0
  %3194 = vmatprep.subr.bf16.mxu0 0
  %3195 = vmatpush2.bf16.msra.mxu0 0
  %3196 = vmatprep.subr.bf16.mxu0 0
  %3197 = vmatpush2.bf16.msra.mxu0 0
  %3198 = vmatprep.subr.bf16.mxu0 0
  %3199 = vmatpush2.bf16.msra.mxu0 0
  %3200 = vmatprep.subr.bf16.mxu0 0
  %3201 = vmatpush2.bf16.msra.mxu0 0
  %3202 = vmatprep.subr.bf16.mxu0 0
  %3203 = vmatpush2.bf16.msra.mxu0 0
  %3204 = vmatprep.subr.bf16.mxu0 0
  %3205 = vmatpush2.bf16.msra.mxu0 0
  %3206 = vmatprep.mubr.bf16.mxu0 0
  %3207 = vmatmul.mubr.bf16.gmra.mxu0 %v1110
  %v3208 = vpop.f32.mrf.mxu0
  %v3209 = vadd.f32 0.0, %v3208
  %v3210 = vpop.f32.mrf.mxu0
  %v3211 = vpop.f32.mrf.mxu0
  %v3212 = vadd.f32 0.0, %v3211
  %v3213 = vpop.f32.mrf.mxu0
  %3214 = vdwg.mxu0
  %3215 = vmatprep.subr.bf16.mxu0 0
  %3216 = vmatpush1.bf16.msra.mxu0 0
  %3217 = vmatprep.subr.bf16.mxu0 0
  %3218 = vmatpush1.bf16.msra.mxu0 0
  %3219 = vmatprep.subr.bf16.mxu0 0
  %3220 = vmatpush1.bf16.msra.mxu0 0
  %3221 = vmatprep.subr.bf16.mxu0 0
  %3222 = vmatpush1.bf16.msra.mxu0 0
  %3223 = vmatprep.subr.bf16.mxu0 0
  %3224 = vmatpush1.bf16.msra.mxu0 0
  %3225 = vmatprep.subr.bf16.mxu0 0
  %3226 = vmatpush1.bf16.msra.mxu0 0
  %3227 = vmatprep.subr.bf16.mxu0 0
  %3228 = vmatpush1.bf16.msra.mxu0 0
  %3229 = vmatprep.subr.bf16.mxu0 0
  %3230 = vmatpush1.bf16.msra.mxu0 %v2903
  %3231 = vmatprep.subr.bf16.mxu0 0
  %3232 = vmatpush2.bf16.msra.mxu0 0
  %3233 = vmatprep.subr.bf16.mxu0 0
  %3234 = vmatpush2.bf16.msra.mxu0 0
  %3235 = vmatprep.subr.bf16.mxu0 0
  %3236 = vmatpush2.bf16.msra.mxu0 0
  %3237 = vmatprep.subr.bf16.mxu0 0
  %3238 = vmatpush2.bf16.msra.mxu0 0
  %3239 = vmatprep.subr.bf16.mxu0 0
  %3240 = vmatpush2.bf16.msra.mxu0 0
  %3241 = vmatprep.subr.bf16.mxu0 0
  %3242 = vmatpush2.bf16.msra.mxu0 0
  %3243 = vmatprep.subr.bf16.mxu0 0
  %3244 = vmatpush2.bf16.msra.mxu0 0
  %3245 = vmatprep.subr.bf16.mxu0 0
  %3246 = vmatpush2.bf16.msra.mxu0 0
  %3247 = vmatprep.mubr.bf16.mxu0 0
  %3248 = vmatmul.mubr.bf16.gmra.mxu0 %v1159
  %v3249 = vpop.f32.mrf.mxu0
  %v3250 = vadd.f32 0.0, %v3249
  %v3251 = vpop.f32.mrf.mxu0
  %v3252 = vpop.f32.mrf.mxu0
  %v3253 = vadd.f32 0.0, %v3252
  %v3254 = vpop.f32.mrf.mxu0
  %3255 = vdwg.mxu0
  %3256 = vmatprep.subr.bf16.mxu0 0
  %3257 = vmatpush1.bf16.msra.mxu0 0
  %3258 = vmatprep.subr.bf16.mxu0 0
  %3259 = vmatpush1.bf16.msra.mxu0 0
  %3260 = vmatprep.subr.bf16.mxu0 0
  %3261 = vmatpush1.bf16.msra.mxu0 0
  %3262 = vmatprep.subr.bf16.mxu0 0
  %3263 = vmatpush1.bf16.msra.mxu0 0
  %3264 = vmatprep.subr.bf16.mxu0 0
  %3265 = vmatpush1.bf16.msra.mxu0 0
  %3266 = vmatprep.subr.bf16.mxu0 0
  %3267 = vmatpush1.bf16.msra.mxu0 0
  %3268 = vmatprep.subr.bf16.mxu0 0
  %3269 = vmatpush1.bf16.msra.mxu0 0
  %3270 = vmatprep.subr.bf16.mxu0 0
  %3271 = vmatpush1.bf16.msra.mxu0 %v2904
  %3272 = vmatprep.subr.bf16.mxu0 0
  %3273 = vmatpush2.bf16.msra.mxu0 0
  %3274 = vmatprep.subr.bf16.mxu0 0
  %3275 = vmatpush2.bf16.msra.mxu0 0
  %3276 = vmatprep.subr.bf16.mxu0 0
  %3277 = vmatpush2.bf16.msra.mxu0 0
  %3278 = vmatprep.subr.bf16.mxu0 0
  %3279 = vmatpush2.bf16.msra.mxu0 0
  %3280 = vmatprep.subr.bf16.mxu0 0
  %3281 = vmatpush2.bf16.msra.mxu0 0
  %3282 = vmatprep.subr.bf16.mxu0 0
  %3283 = vmatpush2.bf16.msra.mxu0 0
  %3284 = vmatprep.subr.bf16.mxu0 0
  %3285 = vmatpush2.bf16.msra.mxu0 0
  %3286 = vmatprep.subr.bf16.mxu0 0
  %3287 = vmatpush2.bf16.msra.mxu0 0
  %3288 = vmatprep.mubr.bf16.mxu0 0
  %3289 = vmatmul.mubr.bf16.gmra.mxu0 %v1208
  %v3290 = vpop.f32.mrf.mxu0
  %v3291 = vadd.f32 0.0, %v3290
  %v3292 = vpop.f32.mrf.mxu0
  %v3293 = vpop.f32.mrf.mxu0
  %v3294 = vadd.f32 0.0, %v3293
  %v3295 = vpop.f32.mrf.mxu0
  %3296 = vdwg.mxu0
  %3297 = vmatprep.subr.bf16.mxu0 0
  %3298 = vmatpush1.bf16.msra.mxu0 0
  %3299 = vmatprep.subr.bf16.mxu0 0
  %3300 = vmatpush1.bf16.msra.mxu0 0
  %3301 = vmatprep.subr.bf16.mxu0 0
  %3302 = vmatpush1.bf16.msra.mxu0 0
  %3303 = vmatprep.subr.bf16.mxu0 0
  %3304 = vmatpush1.bf16.msra.mxu0 0
  %3305 = vmatprep.subr.bf16.mxu0 0
  %3306 = vmatpush1.bf16.msra.mxu0 0
  %3307 = vmatprep.subr.bf16.mxu0 0
  %3308 = vmatpush1.bf16.msra.mxu0 0
  %3309 = vmatprep.subr.bf16.mxu0 0
  %3310 = vmatpush1.bf16.msra.mxu0 0
  %3311 = vmatprep.subr.bf16.mxu0 0
  %3312 = vmatpush1.bf16.msra.mxu0 %v2905
  %3313 = vmatprep.subr.bf16.mxu0 0
  %3314 = vmatpush2.bf16.msra.mxu0 0
  %3315 = vmatprep.subr.bf16.mxu0 0
  %3316 = vmatpush2.bf16.msra.mxu0 0
  %3317 = vmatprep.subr.bf16.mxu0 0
  %3318 = vmatpush2.bf16.msra.mxu0 0
  %3319 = vmatprep.subr.bf16.mxu0 0
  %3320 = vmatpush2.bf16.msra.mxu0 0
  %3321 = vmatprep.subr.bf16.mxu0 0
  %3322 = vmatpush2.bf16.msra.mxu0 0
  %3323 = vmatprep.subr.bf16.mxu0 0
  %3324 = vmatpush2.bf16.msra.mxu0 0
  %3325 = vmatprep.subr.bf16.mxu0 0
  %3326 = vmatpush2.bf16.msra.mxu0 0
  %3327 = vmatprep.subr.bf16.mxu0 0
  %3328 = vmatpush2.bf16.msra.mxu0 0
  %3329 = vmatprep.mubr.bf16.mxu0 0
  %3330 = vmatmul.mubr.bf16.gmra.mxu0 %v1257
  %v3331 = vpop.f32.mrf.mxu0
  %v3332 = vadd.f32 0.0, %v3331
  %v3333 = vpop.f32.mrf.mxu0
  %v3334 = vpop.f32.mrf.mxu0
  %v3335 = vadd.f32 0.0, %v3334
  %v3336 = vpop.f32.mrf.mxu0
  %3337 = vdwg.mxu0
  %3338 = vmatprep.subr.bf16.mxu0 0
  %3339 = vmatpush1.bf16.msra.mxu0 0
  %3340 = vmatprep.subr.bf16.mxu0 0
  %3341 = vmatpush1.bf16.msra.mxu0 0
  %3342 = vmatprep.subr.bf16.mxu0 0
  %3343 = vmatpush1.bf16.msra.mxu0 0
  %3344 = vmatprep.subr.bf16.mxu0 0
  %3345 = vmatpush1.bf16.msra.mxu0 0
  %3346 = vmatprep.subr.bf16.mxu0 0
  %3347 = vmatpush1.bf16.msra.mxu0 0
  %3348 = vmatprep.subr.bf16.mxu0 0
  %3349 = vmatpush1.bf16.msra.mxu0 0
  %3350 = vmatprep.subr.bf16.mxu0 0
  %3351 = vmatpush1.bf16.msra.mxu0 0
  %3352 = vmatprep.subr.bf16.mxu0 0
  %3353 = vmatpush1.bf16.msra.mxu0 %v2906
  %3354 = vmatprep.subr.bf16.mxu0 0
  %3355 = vmatpush2.bf16.msra.mxu0 0
  %3356 = vmatprep.subr.bf16.mxu0 0
  %3357 = vmatpush2.bf16.msra.mxu0 0
  %3358 = vmatprep.subr.bf16.mxu0 0
  %3359 = vmatpush2.bf16.msra.mxu0 0
  %3360 = vmatprep.subr.bf16.mxu0 0
  %3361 = vmatpush2.bf16.msra.mxu0 0
  %3362 = vmatprep.subr.bf16.mxu0 0
  %3363 = vmatpush2.bf16.msra.mxu0 0
  %3364 = vmatprep.subr.bf16.mxu0 0
  %3365 = vmatpush2.bf16.msra.mxu0 0
  %3366 = vmatprep.subr.bf16.mxu0 0
  %3367 = vmatpush2.bf16.msra.mxu0 0
  %3368 = vmatprep.subr.bf16.mxu0 0
  %3369 = vmatpush2.bf16.msra.mxu0 0
  %3370 = vmatprep.mubr.bf16.mxu0 0
  %3371 = vmatmul.mubr.bf16.gmra.mxu0 %v1306
  %v3372 = vpop.f32.mrf.mxu0
  %v3373 = vadd.f32 0.0, %v3372
  %v3374 = vpop.f32.mrf.mxu0
  %v3375 = vpop.f32.mrf.mxu0
  %v3376 = vadd.f32 0.0, %v3375
  %v3377 = vpop.f32.mrf.mxu0
  %3378 = vdwg.mxu0
  %3379 = vmatprep.subr.bf16.mxu0 0
  %3380 = vmatpush1.bf16.msra.mxu0 0
  %3381 = vmatprep.subr.bf16.mxu0 0
  %3382 = vmatpush1.bf16.msra.mxu0 0
  %3383 = vmatprep.subr.bf16.mxu0 0
  %3384 = vmatpush1.bf16.msra.mxu0 0
  %3385 = vmatprep.subr.bf16.mxu0 0
  %3386 = vmatpush1.bf16.msra.mxu0 0
  %3387 = vmatprep.subr.bf16.mxu0 0
  %3388 = vmatpush1.bf16.msra.mxu0 0
  %3389 = vmatprep.subr.bf16.mxu0 0
  %3390 = vmatpush1.bf16.msra.mxu0 0
  %3391 = vmatprep.subr.bf16.mxu0 0
  %3392 = vmatpush1.bf16.msra.mxu0 0
  %3393 = vmatprep.subr.bf16.mxu0 0
  %3394 = vmatpush1.bf16.msra.mxu0 %v2907
  %3395 = vmatprep.subr.bf16.mxu0 0
  %3396 = vmatpush2.bf16.msra.mxu0 0
  %3397 = vmatprep.subr.bf16.mxu0 0
  %3398 = vmatpush2.bf16.msra.mxu0 0
  %3399 = vmatprep.subr.bf16.mxu0 0
  %3400 = vmatpush2.bf16.msra.mxu0 0
  %3401 = vmatprep.subr.bf16.mxu0 0
  %3402 = vmatpush2.bf16.msra.mxu0 0
  %3403 = vmatprep.subr.bf16.mxu0 0
  %3404 = vmatpush2.bf16.msra.mxu0 0
  %3405 = vmatprep.subr.bf16.mxu0 0
  %3406 = vmatpush2.bf16.msra.mxu0 0
  %3407 = vmatprep.subr.bf16.mxu0 0
  %3408 = vmatpush2.bf16.msra.mxu0 0
  %3409 = vmatprep.subr.bf16.mxu0 0
  %3410 = vmatpush2.bf16.msra.mxu0 0
  %3411 = vmatprep.mubr.bf16.mxu0 0
  %3412 = vmatmul.mubr.bf16.gmra.mxu0 %v1355
  %v3413 = vpop.f32.mrf.mxu0
  %v3414 = vadd.f32 0.0, %v3413
  %v3415 = vpop.f32.mrf.mxu0
  %v3416 = vpop.f32.mrf.mxu0
  %v3417 = vadd.f32 0.0, %v3416
  %v3418 = vpop.f32.mrf.mxu0
  %3419 = vdwg.mxu0
  %3420 = vmatprep.subr.bf16.mxu0 0
  %3421 = vmatpush1.bf16.msra.mxu0 0
  %3422 = vmatprep.subr.bf16.mxu0 0
  %3423 = vmatpush1.bf16.msra.mxu0 0
  %3424 = vmatprep.subr.bf16.mxu0 0
  %3425 = vmatpush1.bf16.msra.mxu0 0
  %3426 = vmatprep.subr.bf16.mxu0 0
  %3427 = vmatpush1.bf16.msra.mxu0 0
  %3428 = vmatprep.subr.bf16.mxu0 0
  %3429 = vmatpush1.bf16.msra.mxu0 0
  %3430 = vmatprep.subr.bf16.mxu0 0
  %3431 = vmatpush1.bf16.msra.mxu0 0
  %3432 = vmatprep.subr.bf16.mxu0 0
  %3433 = vmatpush1.bf16.msra.mxu0 0
  %3434 = vmatprep.subr.bf16.mxu0 0
  %3435 = vmatpush1.bf16.msra.mxu0 %v2908
  %3436 = vmatprep.subr.bf16.mxu0 0
  %3437 = vmatpush2.bf16.msra.mxu0 0
  %3438 = vmatprep.subr.bf16.mxu0 0
  %3439 = vmatpush2.bf16.msra.mxu0 0
  %3440 = vmatprep.subr.bf16.mxu0 0
  %3441 = vmatpush2.bf16.msra.mxu0 0
  %3442 = vmatprep.subr.bf16.mxu0 0
  %3443 = vmatpush2.bf16.msra.mxu0 0
  %3444 = vmatprep.subr.bf16.mxu0 0
  %3445 = vmatpush2.bf16.msra.mxu0 0
  %3446 = vmatprep.subr.bf16.mxu0 0
  %3447 = vmatpush2.bf16.msra.mxu0 0
  %3448 = vmatprep.subr.bf16.mxu0 0
  %3449 = vmatpush2.bf16.msra.mxu0 0
  %3450 = vmatprep.subr.bf16.mxu0 0
  %3451 = vmatpush2.bf16.msra.mxu0 0
  %3452 = vmatprep.mubr.bf16.mxu0 0
  %3453 = vmatmul.mubr.bf16.gmra.mxu0 %v1404
  %v3454 = vpop.f32.mrf.mxu0
  %v3455 = vadd.f32 0.0, %v3454
  %v3456 = vpop.f32.mrf.mxu0
  %v3457 = vpop.f32.mrf.mxu0
  %v3458 = vadd.f32 0.0, %v3457
  %v3459 = vpop.f32.mrf.mxu0
  %3460 = vdwg.mxu0
  %3461 = vmatprep.subr.bf16.mxu0 0
  %3462 = vmatpush1.bf16.msra.mxu0 0
  %3463 = vmatprep.subr.bf16.mxu0 0
  %3464 = vmatpush1.bf16.msra.mxu0 0
  %3465 = vmatprep.subr.bf16.mxu0 0
  %3466 = vmatpush1.bf16.msra.mxu0 0
  %3467 = vmatprep.subr.bf16.mxu0 0
  %3468 = vmatpush1.bf16.msra.mxu0 0
  %3469 = vmatprep.subr.bf16.mxu0 0
  %3470 = vmatpush1.bf16.msra.mxu0 0
  %3471 = vmatprep.subr.bf16.mxu0 0
  %3472 = vmatpush1.bf16.msra.mxu0 0
  %3473 = vmatprep.subr.bf16.mxu0 0
  %3474 = vmatpush1.bf16.msra.mxu0 0
  %3475 = vmatprep.subr.bf16.mxu0 0
  %3476 = vmatpush1.bf16.msra.mxu0 %v2909
  %3477 = vmatprep.subr.bf16.mxu0 0
  %3478 = vmatpush2.bf16.msra.mxu0 0
  %3479 = vmatprep.subr.bf16.mxu0 0
  %3480 = vmatpush2.bf16.msra.mxu0 0
  %3481 = vmatprep.subr.bf16.mxu0 0
  %3482 = vmatpush2.bf16.msra.mxu0 0
  %3483 = vmatprep.subr.bf16.mxu0 0
  %3484 = vmatpush2.bf16.msra.mxu0 0
  %3485 = vmatprep.subr.bf16.mxu0 0
  %3486 = vmatpush2.bf16.msra.mxu0 0
  %3487 = vmatprep.subr.bf16.mxu0 0
  %3488 = vmatpush2.bf16.msra.mxu0 0
  %3489 = vmatprep.subr.bf16.mxu0 0
  %3490 = vmatpush2.bf16.msra.mxu0 0
  %3491 = vmatprep.subr.bf16.mxu0 0
  %3492 = vmatpush2.bf16.msra.mxu0 0
  %3493 = vmatprep.mubr.bf16.mxu0 0
  %3494 = vmatmul.mubr.bf16.gmra.mxu0 %v1453
  %v3495 = vpop.f32.mrf.mxu0
  %v3496 = vadd.f32 0.0, %v3495
  %v3497 = vpop.f32.mrf.mxu0
  %v3498 = vpop.f32.mrf.mxu0
  %v3499 = vadd.f32 0.0, %v3498
  %v3500 = vpop.f32.mrf.mxu0
  %3501 = vdwg.mxu0
  %3502 = vmatprep.subr.bf16.mxu0 0
  %3503 = vmatpush1.bf16.msra.mxu0 0
  %3504 = vmatprep.subr.bf16.mxu0 0
  %3505 = vmatpush1.bf16.msra.mxu0 0
  %3506 = vmatprep.subr.bf16.mxu0 0
  %3507 = vmatpush1.bf16.msra.mxu0 0
  %3508 = vmatprep.subr.bf16.mxu0 0
  %3509 = vmatpush1.bf16.msra.mxu0 0
  %3510 = vmatprep.subr.bf16.mxu0 0
  %3511 = vmatpush1.bf16.msra.mxu0 0
  %3512 = vmatprep.subr.bf16.mxu0 0
  %3513 = vmatpush1.bf16.msra.mxu0 0
  %3514 = vmatprep.subr.bf16.mxu0 0
  %3515 = vmatpush1.bf16.msra.mxu0 0
  %3516 = vmatprep.subr.bf16.mxu0 0
  %3517 = vmatpush1.bf16.msra.mxu0 %v2910
  %3518 = vmatprep.subr.bf16.mxu0 0
  %3519 = vmatpush2.bf16.msra.mxu0 0
  %3520 = vmatprep.subr.bf16.mxu0 0
  %3521 = vmatpush2.bf16.msra.mxu0 0
  %3522 = vmatprep.subr.bf16.mxu0 0
  %3523 = vmatpush2.bf16.msra.mxu0 0
  %3524 = vmatprep.subr.bf16.mxu0 0
  %3525 = vmatpush2.bf16.msra.mxu0 0
  %3526 = vmatprep.subr.bf16.mxu0 0
  %3527 = vmatpush2.bf16.msra.mxu0 0
  %3528 = vmatprep.subr.bf16.mxu0 0
  %3529 = vmatpush2.bf16.msra.mxu0 0
  %3530 = vmatprep.subr.bf16.mxu0 0
  %3531 = vmatpush2.bf16.msra.mxu0 0
  %3532 = vmatprep.subr.bf16.mxu0 0
  %3533 = vmatpush2.bf16.msra.mxu0 0
  %3534 = vmatprep.mubr.bf16.mxu0 0
  %3535 = vmatmul.mubr.bf16.gmra.mxu0 %v1502
  %v3536 = vpop.f32.mrf.mxu0
  %v3537 = vadd.f32 0.0, %v3536
  %v3538 = vpop.f32.mrf.mxu0
  %v3539 = vpop.f32.mrf.mxu0
  %v3540 = vadd.f32 0.0, %v3539
  %v3541 = vpop.f32.mrf.mxu0
  %3542 = vdwg.mxu0
  %3543 = vmatprep.subr.bf16.mxu0 0
  %3544 = vmatpush1.bf16.msra.mxu0 0
  %3545 = vmatprep.subr.bf16.mxu0 0
  %3546 = vmatpush1.bf16.msra.mxu0 0
  %3547 = vmatprep.subr.bf16.mxu0 0
  %3548 = vmatpush1.bf16.msra.mxu0 0
  %3549 = vmatprep.subr.bf16.mxu0 0
  %3550 = vmatpush1.bf16.msra.mxu0 0
  %3551 = vmatprep.subr.bf16.mxu0 0
  %3552 = vmatpush1.bf16.msra.mxu0 0
  %3553 = vmatprep.subr.bf16.mxu0 0
  %3554 = vmatpush1.bf16.msra.mxu0 0
  %3555 = vmatprep.subr.bf16.mxu0 0
  %3556 = vmatpush1.bf16.msra.mxu0 0
  %3557 = vmatprep.subr.bf16.mxu0 0
  %3558 = vmatpush1.bf16.msra.mxu0 %v2911
  %3559 = vmatprep.subr.bf16.mxu0 0
  %3560 = vmatpush2.bf16.msra.mxu0 0
  %3561 = vmatprep.subr.bf16.mxu0 0
  %3562 = vmatpush2.bf16.msra.mxu0 0
  %3563 = vmatprep.subr.bf16.mxu0 0
  %3564 = vmatpush2.bf16.msra.mxu0 0
  %3565 = vmatprep.subr.bf16.mxu0 0
  %3566 = vmatpush2.bf16.msra.mxu0 0
  %3567 = vmatprep.subr.bf16.mxu0 0
  %3568 = vmatpush2.bf16.msra.mxu0 0
  %3569 = vmatprep.subr.bf16.mxu0 0
  %3570 = vmatpush2.bf16.msra.mxu0 0
  %3571 = vmatprep.subr.bf16.mxu0 0
  %3572 = vmatpush2.bf16.msra.mxu0 0
  %3573 = vmatprep.subr.bf16.mxu0 0
  %3574 = vmatpush2.bf16.msra.mxu0 0
  %3575 = vmatprep.mubr.bf16.mxu0 0
  %3576 = vmatmul.mubr.bf16.gmra.mxu0 %v1551
  %v3577 = vpop.f32.mrf.mxu0
  %v3578 = vadd.f32 0.0, %v3577
  %v3579 = vpop.f32.mrf.mxu0
  %v3580 = vpop.f32.mrf.mxu0
  %v3581 = vadd.f32 0.0, %v3580
  %v3582 = vpop.f32.mrf.mxu0
  %3583 = vdwg.mxu0
  %3584 = vmatprep.subr.bf16.mxu0 0
  %3585 = vmatpush1.bf16.msra.mxu0 0
  %3586 = vmatprep.subr.bf16.mxu0 0
  %3587 = vmatpush1.bf16.msra.mxu0 0
  %3588 = vmatprep.subr.bf16.mxu0 0
  %3589 = vmatpush1.bf16.msra.mxu0 0
  %3590 = vmatprep.subr.bf16.mxu0 0
  %3591 = vmatpush1.bf16.msra.mxu0 0
  %3592 = vmatprep.subr.bf16.mxu0 0
  %3593 = vmatpush1.bf16.msra.mxu0 0
  %3594 = vmatprep.subr.bf16.mxu0 0
  %3595 = vmatpush1.bf16.msra.mxu0 0
  %3596 = vmatprep.subr.bf16.mxu0 0
  %3597 = vmatpush1.bf16.msra.mxu0 0
  %3598 = vmatprep.subr.bf16.mxu0 0
  %3599 = vmatpush1.bf16.msra.mxu0 %v2912
  %3600 = vmatprep.subr.bf16.mxu0 0
  %3601 = vmatpush2.bf16.msra.mxu0 0
  %3602 = vmatprep.subr.bf16.mxu0 0
  %3603 = vmatpush2.bf16.msra.mxu0 0
  %3604 = vmatprep.subr.bf16.mxu0 0
  %3605 = vmatpush2.bf16.msra.mxu0 0
  %3606 = vmatprep.subr.bf16.mxu0 0
  %3607 = vmatpush2.bf16.msra.mxu0 0
  %3608 = vmatprep.subr.bf16.mxu0 0
  %3609 = vmatpush2.bf16.msra.mxu0 0
  %3610 = vmatprep.subr.bf16.mxu0 0
  %3611 = vmatpush2.bf16.msra.mxu0 0
  %3612 = vmatprep.subr.bf16.mxu0 0
  %3613 = vmatpush2.bf16.msra.mxu0 0
  %3614 = vmatprep.subr.bf16.mxu0 0
  %3615 = vmatpush2.bf16.msra.mxu0 0
  %3616 = vmatprep.mubr.bf16.mxu0 0
  %3617 = vmatmul.mubr.bf16.gmra.mxu0 %v1600
  %v3618 = vpop.f32.mrf.mxu0
  %v3619 = vadd.f32 0.0, %v3618
  %v3620 = vpop.f32.mrf.mxu0
  %v3621 = vpop.f32.mrf.mxu0
  %v3622 = vadd.f32 0.0, %v3621
  %v3623 = vpop.f32.mrf.mxu0
  %3624 = vdwg.mxu0
  %3625 = vmatprep.subr.bf16.mxu0 0
  %3626 = vmatpush1.bf16.msra.mxu0 0
  %3627 = vmatprep.subr.bf16.mxu0 0
  %3628 = vmatpush1.bf16.msra.mxu0 0
  %3629 = vmatprep.subr.bf16.mxu0 0
  %3630 = vmatpush1.bf16.msra.mxu0 0
  %3631 = vmatprep.subr.bf16.mxu0 0
  %3632 = vmatpush1.bf16.msra.mxu0 0
  %3633 = vmatprep.subr.bf16.mxu0 0
  %3634 = vmatpush1.bf16.msra.mxu0 0
  %3635 = vmatprep.subr.bf16.mxu0 0
  %3636 = vmatpush1.bf16.msra.mxu0 0
  %3637 = vmatprep.subr.bf16.mxu0 0
  %3638 = vmatpush1.bf16.msra.mxu0 0
  %3639 = vmatprep.subr.bf16.mxu0 0
  %3640 = vmatpush1.bf16.msra.mxu0 %v2913
  %3641 = vmatprep.subr.bf16.mxu0 0
  %3642 = vmatpush2.bf16.msra.mxu0 0
  %3643 = vmatprep.subr.bf16.mxu0 0
  %3644 = vmatpush2.bf16.msra.mxu0 0
  %3645 = vmatprep.subr.bf16.mxu0 0
  %3646 = vmatpush2.bf16.msra.mxu0 0
  %3647 = vmatprep.subr.bf16.mxu0 0
  %3648 = vmatpush2.bf16.msra.mxu0 0
  %3649 = vmatprep.subr.bf16.mxu0 0
  %3650 = vmatpush2.bf16.msra.mxu0 0
  %3651 = vmatprep.subr.bf16.mxu0 0
  %3652 = vmatpush2.bf16.msra.mxu0 0
  %3653 = vmatprep.subr.bf16.mxu0 0
  %3654 = vmatpush2.bf16.msra.mxu0 0
  %3655 = vmatprep.subr.bf16.mxu0 0
  %3656 = vmatpush2.bf16.msra.mxu0 0
  %3657 = vmatprep.mubr.bf16.mxu0 0
  %3658 = vmatmul.mubr.bf16.gmra.mxu0 %v1649
  %v3659 = vpop.f32.mrf.mxu0
  %v3660 = vadd.f32 0.0, %v3659
  %v3661 = vpop.f32.mrf.mxu0
  %v3662 = vpop.f32.mrf.mxu0
  %v3663 = vadd.f32 0.0, %v3662
  %v3664 = vpop.f32.mrf.mxu0
  %3665 = vdwg.mxu0
  %3666 = vmatprep.subr.bf16.mxu0 0
  %3667 = vmatpush1.bf16.msra.mxu0 0
  %3668 = vmatprep.subr.bf16.mxu0 0
  %3669 = vmatpush1.bf16.msra.mxu0 0
  %3670 = vmatprep.subr.bf16.mxu0 0
  %3671 = vmatpush1.bf16.msra.mxu0 0
  %3672 = vmatprep.subr.bf16.mxu0 0
  %3673 = vmatpush1.bf16.msra.mxu0 0
  %3674 = vmatprep.subr.bf16.mxu0 0
  %3675 = vmatpush1.bf16.msra.mxu0 0
  %3676 = vmatprep.subr.bf16.mxu0 0
  %3677 = vmatpush1.bf16.msra.mxu0 0
  %3678 = vmatprep.subr.bf16.mxu0 0
  %3679 = vmatpush1.bf16.msra.mxu0 0
  %3680 = vmatprep.subr.bf16.mxu0 0
  %3681 = vmatpush1.bf16.msra.mxu0 %v2914
  %3682 = vmatprep.subr.bf16.mxu0 0
  %3683 = vmatpush2.bf16.msra.mxu0 0
  %3684 = vmatprep.subr.bf16.mxu0 0
  %3685 = vmatpush2.bf16.msra.mxu0 0
  %3686 = vmatprep.subr.bf16.mxu0 0
  %3687 = vmatpush2.bf16.msra.mxu0 0
  %3688 = vmatprep.subr.bf16.mxu0 0
  %3689 = vmatpush2.bf16.msra.mxu0 0
  %3690 = vmatprep.subr.bf16.mxu0 0
  %3691 = vmatpush2.bf16.msra.mxu0 0
  %3692 = vmatprep.subr.bf16.mxu0 0
  %3693 = vmatpush2.bf16.msra.mxu0 0
  %3694 = vmatprep.subr.bf16.mxu0 0
  %3695 = vmatpush2.bf16.msra.mxu0 0
  %3696 = vmatprep.subr.bf16.mxu0 0
  %3697 = vmatpush2.bf16.msra.mxu0 0
  %3698 = vmatprep.mubr.bf16.mxu0 0
  %3699 = vmatmul.mubr.bf16.gmra.mxu0 %v1698
  %v3700 = vpop.f32.mrf.mxu0
  %v3701 = vadd.f32 0.0, %v3700
  %v3702 = vpop.f32.mrf.mxu0
  %v3703 = vpop.f32.mrf.mxu0
  %v3704 = vadd.f32 0.0, %v3703
  %v3705 = vpop.f32.mrf.mxu0
  %3706 = vdwg.mxu0
  %3707 = vmatprep.subr.bf16.mxu0 0
  %3708 = vmatpush1.bf16.msra.mxu0 0
  %3709 = vmatprep.subr.bf16.mxu0 0
  %3710 = vmatpush1.bf16.msra.mxu0 0
  %3711 = vmatprep.subr.bf16.mxu0 0
  %3712 = vmatpush1.bf16.msra.mxu0 0
  %3713 = vmatprep.subr.bf16.mxu0 0
  %3714 = vmatpush1.bf16.msra.mxu0 0
  %3715 = vmatprep.subr.bf16.mxu0 0
  %3716 = vmatpush1.bf16.msra.mxu0 0
  %3717 = vmatprep.subr.bf16.mxu0 0
  %3718 = vmatpush1.bf16.msra.mxu0 0
  %3719 = vmatprep.subr.bf16.mxu0 0
  %3720 = vmatpush1.bf16.msra.mxu0 0
  %3721 = vmatprep.subr.bf16.mxu0 0
  %3722 = vmatpush1.bf16.msra.mxu0 %v2915
  %3723 = vmatprep.subr.bf16.mxu0 0
  %3724 = vmatpush2.bf16.msra.mxu0 0
  %3725 = vmatprep.subr.bf16.mxu0 0
  %3726 = vmatpush2.bf16.msra.mxu0 0
  %3727 = vmatprep.subr.bf16.mxu0 0
  %3728 = vmatpush2.bf16.msra.mxu0 0
  %3729 = vmatprep.subr.bf16.mxu0 0
  %3730 = vmatpush2.bf16.msra.mxu0 0
  %3731 = vmatprep.subr.bf16.mxu0 0
  %3732 = vmatpush2.bf16.msra.mxu0 0
  %3733 = vmatprep.subr.bf16.mxu0 0
  %3734 = vmatpush2.bf16.msra.mxu0 0
  %3735 = vmatprep.subr.bf16.mxu0 0
  %3736 = vmatpush2.bf16.msra.mxu0 0
  %3737 = vmatprep.subr.bf16.mxu0 0
  %3738 = vmatpush2.bf16.msra.mxu0 0
  %3739 = vmatprep.mubr.bf16.mxu0 0
  %3740 = vmatmul.mubr.bf16.gmra.mxu0 %v1747
  %v3741 = vpop.f32.mrf.mxu0
  %v3742 = vadd.f32 0.0, %v3741
  %v3743 = vpop.f32.mrf.mxu0
  %v3744 = vpop.f32.mrf.mxu0
  %v3745 = vadd.f32 0.0, %v3744
  %v3746 = vpop.f32.mrf.mxu0
  %3747 = vdwg.mxu0
  %3748 = vmatprep.subr.bf16.mxu0 0
  %3749 = vmatpush1.bf16.msra.mxu0 0
  %3750 = vmatprep.subr.bf16.mxu0 0
  %3751 = vmatpush1.bf16.msra.mxu0 0
  %3752 = vmatprep.subr.bf16.mxu0 0
  %3753 = vmatpush1.bf16.msra.mxu0 0
  %3754 = vmatprep.subr.bf16.mxu0 0
  %3755 = vmatpush1.bf16.msra.mxu0 0
  %3756 = vmatprep.subr.bf16.mxu0 0
  %3757 = vmatpush1.bf16.msra.mxu0 0
  %3758 = vmatprep.subr.bf16.mxu0 0
  %3759 = vmatpush1.bf16.msra.mxu0 0
  %3760 = vmatprep.subr.bf16.mxu0 0
  %3761 = vmatpush1.bf16.msra.mxu0 0
  %3762 = vmatprep.subr.bf16.mxu0 0
  %3763 = vmatpush1.bf16.msra.mxu0 %v2916
  %3764 = vmatprep.subr.bf16.mxu0 0
  %3765 = vmatpush2.bf16.msra.mxu0 0
  %3766 = vmatprep.subr.bf16.mxu0 0
  %3767 = vmatpush2.bf16.msra.mxu0 0
  %3768 = vmatprep.subr.bf16.mxu0 0
  %3769 = vmatpush2.bf16.msra.mxu0 0
  %3770 = vmatprep.subr.bf16.mxu0 0
  %3771 = vmatpush2.bf16.msra.mxu0 0
  %3772 = vmatprep.subr.bf16.mxu0 0
  %3773 = vmatpush2.bf16.msra.mxu0 0
  %3774 = vmatprep.subr.bf16.mxu0 0
  %3775 = vmatpush2.bf16.msra.mxu0 0
  %3776 = vmatprep.subr.bf16.mxu0 0
  %3777 = vmatpush2.bf16.msra.mxu0 0
  %3778 = vmatprep.subr.bf16.mxu0 0
  %3779 = vmatpush2.bf16.msra.mxu0 0
  %3780 = vmatprep.mubr.bf16.mxu0 0
  %3781 = vmatmul.mubr.bf16.gmra.mxu0 %v1796
  %v3782 = vpop.f32.mrf.mxu0
  %v3783 = vadd.f32 0.0, %v3782
  %v3784 = vpop.f32.mrf.mxu0
  %v3785 = vpop.f32.mrf.mxu0
  %v3786 = vadd.f32 0.0, %v3785
  %v3787 = vpop.f32.mrf.mxu0
  %3788 = vdwg.mxu0
  %3789 = vmatprep.subr.bf16.mxu0 0
  %3790 = vmatpush1.bf16.msra.mxu0 0
  %3791 = vmatprep.subr.bf16.mxu0 0
  %3792 = vmatpush1.bf16.msra.mxu0 0
  %3793 = vmatprep.subr.bf16.mxu0 0
  %3794 = vmatpush1.bf16.msra.mxu0 0
  %3795 = vmatprep.subr.bf16.mxu0 0
  %3796 = vmatpush1.bf16.msra.mxu0 0
  %3797 = vmatprep.subr.bf16.mxu0 0
  %3798 = vmatpush1.bf16.msra.mxu0 0
  %3799 = vmatprep.subr.bf16.mxu0 0
  %3800 = vmatpush1.bf16.msra.mxu0 0
  %3801 = vmatprep.subr.bf16.mxu0 0
  %3802 = vmatpush1.bf16.msra.mxu0 0
  %3803 = vmatprep.subr.bf16.mxu0 0
  %3804 = vmatpush1.bf16.msra.mxu0 %v2917
  %3805 = vmatprep.subr.bf16.mxu0 0
  %3806 = vmatpush2.bf16.msra.mxu0 0
  %3807 = vmatprep.subr.bf16.mxu0 0
  %3808 = vmatpush2.bf16.msra.mxu0 0
  %3809 = vmatprep.subr.bf16.mxu0 0
  %3810 = vmatpush2.bf16.msra.mxu0 0
  %3811 = vmatprep.subr.bf16.mxu0 0
  %3812 = vmatpush2.bf16.msra.mxu0 0
  %3813 = vmatprep.subr.bf16.mxu0 0
  %3814 = vmatpush2.bf16.msra.mxu0 0
  %3815 = vmatprep.subr.bf16.mxu0 0
  %3816 = vmatpush2.bf16.msra.mxu0 0
  %3817 = vmatprep.subr.bf16.mxu0 0
  %3818 = vmatpush2.bf16.msra.mxu0 0
  %3819 = vmatprep.subr.bf16.mxu0 0
  %3820 = vmatpush2.bf16.msra.mxu0 0
  %3821 = vmatprep.mubr.bf16.mxu0 0
  %3822 = vmatmul.mubr.bf16.gmra.mxu0 %v1845
  %v3823 = vpop.f32.mrf.mxu0
  %v3824 = vadd.f32 0.0, %v3823
  %v3825 = vpop.f32.mrf.mxu0
  %v3826 = vpop.f32.mrf.mxu0
  %v3827 = vadd.f32 0.0, %v3826
  %v3828 = vpop.f32.mrf.mxu0
  %3829 = vdwg.mxu0
  %3830 = vmatprep.subr.bf16.mxu0 0
  %3831 = vmatpush1.bf16.msra.mxu0 0
  %3832 = vmatprep.subr.bf16.mxu0 0
  %3833 = vmatpush1.bf16.msra.mxu0 0
  %3834 = vmatprep.subr.bf16.mxu0 0
  %3835 = vmatpush1.bf16.msra.mxu0 0
  %3836 = vmatprep.subr.bf16.mxu0 0
  %3837 = vmatpush1.bf16.msra.mxu0 0
  %3838 = vmatprep.subr.bf16.mxu0 0
  %3839 = vmatpush1.bf16.msra.mxu0 0
  %3840 = vmatprep.subr.bf16.mxu0 0
  %3841 = vmatpush1.bf16.msra.mxu0 0
  %3842 = vmatprep.subr.bf16.mxu0 0
  %3843 = vmatpush1.bf16.msra.mxu0 0
  %3844 = vmatprep.subr.bf16.mxu0 0
  %3845 = vmatpush1.bf16.msra.mxu0 %v2918
  %3846 = vmatprep.subr.bf16.mxu0 0
  %3847 = vmatpush2.bf16.msra.mxu0 0
  %3848 = vmatprep.subr.bf16.mxu0 0
  %3849 = vmatpush2.bf16.msra.mxu0 0
  %3850 = vmatprep.subr.bf16.mxu0 0
  %3851 = vmatpush2.bf16.msra.mxu0 0
  %3852 = vmatprep.subr.bf16.mxu0 0
  %3853 = vmatpush2.bf16.msra.mxu0 0
  %3854 = vmatprep.subr.bf16.mxu0 0
  %3855 = vmatpush2.bf16.msra.mxu0 0
  %3856 = vmatprep.subr.bf16.mxu0 0
  %3857 = vmatpush2.bf16.msra.mxu0 0
  %3858 = vmatprep.subr.bf16.mxu0 0
  %3859 = vmatpush2.bf16.msra.mxu0 0
  %3860 = vmatprep.subr.bf16.mxu0 0
  %3861 = vmatpush2.bf16.msra.mxu0 0
  %3862 = vmatprep.mubr.bf16.mxu0 0
  %3863 = vmatmul.mubr.bf16.gmra.mxu0 %v1894
  %v3864 = vpop.f32.mrf.mxu0
  %v3865 = vadd.f32 0.0, %v3864
  %v3866 = vpop.f32.mrf.mxu0
  %v3867 = vpop.f32.mrf.mxu0
  %v3868 = vadd.f32 0.0, %v3867
  %v3869 = vpop.f32.mrf.mxu0
  %3870 = vdwg.mxu0
  %3871 = vmatprep.subr.bf16.mxu0 0
  %3872 = vmatpush1.bf16.msra.mxu0 0
  %3873 = vmatprep.subr.bf16.mxu0 0
  %3874 = vmatpush1.bf16.msra.mxu0 0
  %3875 = vmatprep.subr.bf16.mxu0 0
  %3876 = vmatpush1.bf16.msra.mxu0 0
  %3877 = vmatprep.subr.bf16.mxu0 0
  %3878 = vmatpush1.bf16.msra.mxu0 0
  %3879 = vmatprep.subr.bf16.mxu0 0
  %3880 = vmatpush1.bf16.msra.mxu0 0
  %3881 = vmatprep.subr.bf16.mxu0 0
  %3882 = vmatpush1.bf16.msra.mxu0 0
  %3883 = vmatprep.subr.bf16.mxu0 0
  %3884 = vmatpush1.bf16.msra.mxu0 0
  %3885 = vmatprep.subr.bf16.mxu0 0
  %3886 = vmatpush1.bf16.msra.mxu0 %v2919
  %3887 = vmatprep.subr.bf16.mxu0 0
  %3888 = vmatpush2.bf16.msra.mxu0 0
  %3889 = vmatprep.subr.bf16.mxu0 0
  %3890 = vmatpush2.bf16.msra.mxu0 0
  %3891 = vmatprep.subr.bf16.mxu0 0
  %3892 = vmatpush2.bf16.msra.mxu0 0
  %3893 = vmatprep.subr.bf16.mxu0 0
  %3894 = vmatpush2.bf16.msra.mxu0 0
  %3895 = vmatprep.subr.bf16.mxu0 0
  %3896 = vmatpush2.bf16.msra.mxu0 0
  %3897 = vmatprep.subr.bf16.mxu0 0
  %3898 = vmatpush2.bf16.msra.mxu0 0
  %3899 = vmatprep.subr.bf16.mxu0 0
  %3900 = vmatpush2.bf16.msra.mxu0 0
  %3901 = vmatprep.subr.bf16.mxu0 0
  %3902 = vmatpush2.bf16.msra.mxu0 0
  %3903 = vmatprep.mubr.bf16.mxu0 0
  %3904 = vmatmul.mubr.bf16.gmra.mxu0 %v1943
  %v3905 = vpop.f32.mrf.mxu0
  %v3906 = vadd.f32 0.0, %v3905
  %v3907 = vpop.f32.mrf.mxu0
  %v3908 = vpop.f32.mrf.mxu0
  %v3909 = vadd.f32 0.0, %v3908
  %v3910 = vpop.f32.mrf.mxu0
  %3911 = vdwg.mxu0
  %3912 = vmatprep.subr.bf16.mxu0 0
  %3913 = vmatpush1.bf16.msra.mxu0 0
  %3914 = vmatprep.subr.bf16.mxu0 0
  %3915 = vmatpush1.bf16.msra.mxu0 0
  %3916 = vmatprep.subr.bf16.mxu0 0
  %3917 = vmatpush1.bf16.msra.mxu0 0
  %3918 = vmatprep.subr.bf16.mxu0 0
  %3919 = vmatpush1.bf16.msra.mxu0 0
  %3920 = vmatprep.subr.bf16.mxu0 0
  %3921 = vmatpush1.bf16.msra.mxu0 0
  %3922 = vmatprep.subr.bf16.mxu0 0
  %3923 = vmatpush1.bf16.msra.mxu0 0
  %3924 = vmatprep.subr.bf16.mxu0 0
  %3925 = vmatpush1.bf16.msra.mxu0 0
  %3926 = vmatprep.subr.bf16.mxu0 0
  %3927 = vmatpush1.bf16.msra.mxu0 %v2920
  %3928 = vmatprep.subr.bf16.mxu0 0
  %3929 = vmatpush2.bf16.msra.mxu0 0
  %3930 = vmatprep.subr.bf16.mxu0 0
  %3931 = vmatpush2.bf16.msra.mxu0 0
  %3932 = vmatprep.subr.bf16.mxu0 0
  %3933 = vmatpush2.bf16.msra.mxu0 0
  %3934 = vmatprep.subr.bf16.mxu0 0
  %3935 = vmatpush2.bf16.msra.mxu0 0
  %3936 = vmatprep.subr.bf16.mxu0 0
  %3937 = vmatpush2.bf16.msra.mxu0 0
  %3938 = vmatprep.subr.bf16.mxu0 0
  %3939 = vmatpush2.bf16.msra.mxu0 0
  %3940 = vmatprep.subr.bf16.mxu0 0
  %3941 = vmatpush2.bf16.msra.mxu0 0
  %3942 = vmatprep.subr.bf16.mxu0 0
  %3943 = vmatpush2.bf16.msra.mxu0 0
  %3944 = vmatprep.mubr.bf16.mxu0 0
  %3945 = vmatmul.mubr.bf16.gmra.mxu0 %v1992
  %v3946 = vpop.f32.mrf.mxu0
  %v3947 = vadd.f32 0.0, %v3946
  %v3948 = vpop.f32.mrf.mxu0
  %v3949 = vpop.f32.mrf.mxu0
  %v3950 = vadd.f32 0.0, %v3949
  %v3951 = vpop.f32.mrf.mxu0
  %3952 = vdwg.mxu0
  %3953 = vmatprep.subr.bf16.mxu0 0
  %3954 = vmatpush1.bf16.msra.mxu0 0
  %3955 = vmatprep.subr.bf16.mxu0 0
  %3956 = vmatpush1.bf16.msra.mxu0 0
  %3957 = vmatprep.subr.bf16.mxu0 0
  %3958 = vmatpush1.bf16.msra.mxu0 0
  %3959 = vmatprep.subr.bf16.mxu0 0
  %3960 = vmatpush1.bf16.msra.mxu0 0
  %3961 = vmatprep.subr.bf16.mxu0 0
  %3962 = vmatpush1.bf16.msra.mxu0 0
  %3963 = vmatprep.subr.bf16.mxu0 0
  %3964 = vmatpush1.bf16.msra.mxu0 0
  %3965 = vmatprep.subr.bf16.mxu0 0
  %3966 = vmatpush1.bf16.msra.mxu0 0
  %3967 = vmatprep.subr.bf16.mxu0 0
  %3968 = vmatpush1.bf16.msra.mxu0 %v2921
  %3969 = vmatprep.subr.bf16.mxu0 0
  %3970 = vmatpush2.bf16.msra.mxu0 0
  %3971 = vmatprep.subr.bf16.mxu0 0
  %3972 = vmatpush2.bf16.msra.mxu0 0
  %3973 = vmatprep.subr.bf16.mxu0 0
  %3974 = vmatpush2.bf16.msra.mxu0 0
  %3975 = vmatprep.subr.bf16.mxu0 0
  %3976 = vmatpush2.bf16.msra.mxu0 0
  %3977 = vmatprep.subr.bf16.mxu0 0
  %3978 = vmatpush2.bf16.msra.mxu0 0
  %3979 = vmatprep.subr.bf16.mxu0 0
  %3980 = vmatpush2.bf16.msra.mxu0 0
  %3981 = vmatprep.subr.bf16.mxu0 0
  %3982 = vmatpush2.bf16.msra.mxu0 0
  %3983 = vmatprep.subr.bf16.mxu0 0
  %3984 = vmatpush2.bf16.msra.mxu0 0
  %3985 = vmatprep.mubr.bf16.mxu0 0
  %3986 = vmatmul.mubr.bf16.gmra.mxu0 %v2041
  %v3987 = vpop.f32.mrf.mxu0
  %v3988 = vadd.f32 0.0, %v3987
  %v3989 = vpop.f32.mrf.mxu0
  %v3990 = vpop.f32.mrf.mxu0
  %v3991 = vadd.f32 0.0, %v3990
  %v3992 = vpop.f32.mrf.mxu0
  %3993 = vdwg.mxu0
  %3994 = vmatprep.subr.bf16.mxu0 0
  %3995 = vmatpush1.bf16.msra.mxu0 0
  %3996 = vmatprep.subr.bf16.mxu0 0
  %3997 = vmatpush1.bf16.msra.mxu0 0
  %3998 = vmatprep.subr.bf16.mxu0 0
  %3999 = vmatpush1.bf16.msra.mxu0 0
  %4000 = vmatprep.subr.bf16.mxu0 0
  %4001 = vmatpush1.bf16.msra.mxu0 0
  %4002 = vmatprep.subr.bf16.mxu0 0
  %4003 = vmatpush1.bf16.msra.mxu0 0
  %4004 = vmatprep.subr.bf16.mxu0 0
  %4005 = vmatpush1.bf16.msra.mxu0 0
  %4006 = vmatprep.subr.bf16.mxu0 0
  %4007 = vmatpush1.bf16.msra.mxu0 0
  %4008 = vmatprep.subr.bf16.mxu0 0
  %4009 = vmatpush1.bf16.msra.mxu0 %v2922
  %4010 = vmatprep.subr.bf16.mxu0 0
  %4011 = vmatpush2.bf16.msra.mxu0 0
  %4012 = vmatprep.subr.bf16.mxu0 0
  %4013 = vmatpush2.bf16.msra.mxu0 0
  %4014 = vmatprep.subr.bf16.mxu0 0
  %4015 = vmatpush2.bf16.msra.mxu0 0
  %4016 = vmatprep.subr.bf16.mxu0 0
  %4017 = vmatpush2.bf16.msra.mxu0 0
  %4018 = vmatprep.subr.bf16.mxu0 0
  %4019 = vmatpush2.bf16.msra.mxu0 0
  %4020 = vmatprep.subr.bf16.mxu0 0
  %4021 = vmatpush2.bf16.msra.mxu0 0
  %4022 = vmatprep.subr.bf16.mxu0 0
  %4023 = vmatpush2.bf16.msra.mxu0 0
  %4024 = vmatprep.subr.bf16.mxu0 0
  %4025 = vmatpush2.bf16.msra.mxu0 0
  %4026 = vmatprep.mubr.bf16.mxu0 0
  %4027 = vmatmul.mubr.bf16.gmra.mxu0 %v2090
  %v4028 = vpop.f32.mrf.mxu0
  %v4029 = vadd.f32 0.0, %v4028
  %v4030 = vpop.f32.mrf.mxu0
  %v4031 = vpop.f32.mrf.mxu0
  %v4032 = vadd.f32 0.0, %v4031
  %v4033 = vpop.f32.mrf.mxu0
  %4034 = vdwg.mxu0
  %4035 = vmatprep.subr.bf16.mxu0 0
  %4036 = vmatpush1.bf16.msra.mxu0 0
  %4037 = vmatprep.subr.bf16.mxu0 0
  %4038 = vmatpush1.bf16.msra.mxu0 0
  %4039 = vmatprep.subr.bf16.mxu0 0
  %4040 = vmatpush1.bf16.msra.mxu0 0
  %4041 = vmatprep.subr.bf16.mxu0 0
  %4042 = vmatpush1.bf16.msra.mxu0 0
  %4043 = vmatprep.subr.bf16.mxu0 0
  %4044 = vmatpush1.bf16.msra.mxu0 0
  %4045 = vmatprep.subr.bf16.mxu0 0
  %4046 = vmatpush1.bf16.msra.mxu0 0
  %4047 = vmatprep.subr.bf16.mxu0 0
  %4048 = vmatpush1.bf16.msra.mxu0 0
  %4049 = vmatprep.subr.bf16.mxu0 0
  %4050 = vmatpush1.bf16.msra.mxu0 %v2923
  %4051 = vmatprep.subr.bf16.mxu0 0
  %4052 = vmatpush2.bf16.msra.mxu0 0
  %4053 = vmatprep.subr.bf16.mxu0 0
  %4054 = vmatpush2.bf16.msra.mxu0 0
  %4055 = vmatprep.subr.bf16.mxu0 0
  %4056 = vmatpush2.bf16.msra.mxu0 0
  %4057 = vmatprep.subr.bf16.mxu0 0
  %4058 = vmatpush2.bf16.msra.mxu0 0
  %4059 = vmatprep.subr.bf16.mxu0 0
  %4060 = vmatpush2.bf16.msra.mxu0 0
  %4061 = vmatprep.subr.bf16.mxu0 0
  %4062 = vmatpush2.bf16.msra.mxu0 0
  %4063 = vmatprep.subr.bf16.mxu0 0
  %4064 = vmatpush2.bf16.msra.mxu0 0
  %4065 = vmatprep.subr.bf16.mxu0 0
  %4066 = vmatpush2.bf16.msra.mxu0 0
  %4067 = vmatprep.mubr.bf16.mxu0 0
  %4068 = vmatmul.mubr.bf16.gmra.mxu0 %v2139
  %v4069 = vpop.f32.mrf.mxu0
  %v4070 = vadd.f32 0.0, %v4069
  %v4071 = vpop.f32.mrf.mxu0
  %v4072 = vpop.f32.mrf.mxu0
  %v4073 = vadd.f32 0.0, %v4072
  %v4074 = vpop.f32.mrf.mxu0
  %4075 = vdwg.mxu0
  %4076 = vmatprep.subr.bf16.mxu0 0
  %4077 = vmatpush1.bf16.msra.mxu0 0
  %4078 = vmatprep.subr.bf16.mxu0 0
  %4079 = vmatpush1.bf16.msra.mxu0 0
  %4080 = vmatprep.subr.bf16.mxu0 0
  %4081 = vmatpush1.bf16.msra.mxu0 0
  %4082 = vmatprep.subr.bf16.mxu0 0
  %4083 = vmatpush1.bf16.msra.mxu0 0
  %4084 = vmatprep.subr.bf16.mxu0 0
  %4085 = vmatpush1.bf16.msra.mxu0 0
  %4086 = vmatprep.subr.bf16.mxu0 0
  %4087 = vmatpush1.bf16.msra.mxu0 0
  %4088 = vmatprep.subr.bf16.mxu0 0
  %4089 = vmatpush1.bf16.msra.mxu0 0
  %4090 = vmatprep.subr.bf16.mxu0 0
  %4091 = vmatpush1.bf16.msra.mxu0 %v2924
  %4092 = vmatprep.subr.bf16.mxu0 0
  %4093 = vmatpush2.bf16.msra.mxu0 0
  %4094 = vmatprep.subr.bf16.mxu0 0
  %4095 = vmatpush2.bf16.msra.mxu0 0
  %4096 = vmatprep.subr.bf16.mxu0 0
  %4097 = vmatpush2.bf16.msra.mxu0 0
  %4098 = vmatprep.subr.bf16.mxu0 0
  %4099 = vmatpush2.bf16.msra.mxu0 0
  %4100 = vmatprep.subr.bf16.mxu0 0
  %4101 = vmatpush2.bf16.msra.mxu0 0
  %4102 = vmatprep.subr.bf16.mxu0 0
  %4103 = vmatpush2.bf16.msra.mxu0 0
  %4104 = vmatprep.subr.bf16.mxu0 0
  %4105 = vmatpush2.bf16.msra.mxu0 0
  %4106 = vmatprep.subr.bf16.mxu0 0
  %4107 = vmatpush2.bf16.msra.mxu0 0
  %4108 = vmatprep.mubr.bf16.mxu0 0
  %4109 = vmatmul.mubr.bf16.gmra.mxu0 %v2188
  %v4110 = vpop.f32.mrf.mxu0
  %v4111 = vadd.f32 0.0, %v4110
  %v4112 = vpop.f32.mrf.mxu0
  %v4113 = vpop.f32.mrf.mxu0
  %v4114 = vadd.f32 0.0, %v4113
  %v4115 = vpop.f32.mrf.mxu0
  %4116 = vdwg.mxu0
  %4117 = vmatprep.subr.bf16.mxu0 0
  %4118 = vmatpush1.bf16.msra.mxu0 0
  %4119 = vmatprep.subr.bf16.mxu0 0
  %4120 = vmatpush1.bf16.msra.mxu0 0
  %4121 = vmatprep.subr.bf16.mxu0 0
  %4122 = vmatpush1.bf16.msra.mxu0 0
  %4123 = vmatprep.subr.bf16.mxu0 0
  %4124 = vmatpush1.bf16.msra.mxu0 0
  %4125 = vmatprep.subr.bf16.mxu0 0
  %4126 = vmatpush1.bf16.msra.mxu0 0
  %4127 = vmatprep.subr.bf16.mxu0 0
  %4128 = vmatpush1.bf16.msra.mxu0 0
  %4129 = vmatprep.subr.bf16.mxu0 0
  %4130 = vmatpush1.bf16.msra.mxu0 0
  %4131 = vmatprep.subr.bf16.mxu0 0
  %4132 = vmatpush1.bf16.msra.mxu0 %v2925
  %4133 = vmatprep.subr.bf16.mxu0 0
  %4134 = vmatpush2.bf16.msra.mxu0 0
  %4135 = vmatprep.subr.bf16.mxu0 0
  %4136 = vmatpush2.bf16.msra.mxu0 0
  %4137 = vmatprep.subr.bf16.mxu0 0
  %4138 = vmatpush2.bf16.msra.mxu0 0
  %4139 = vmatprep.subr.bf16.mxu0 0
  %4140 = vmatpush2.bf16.msra.mxu0 0
  %4141 = vmatprep.subr.bf16.mxu0 0
  %4142 = vmatpush2.bf16.msra.mxu0 0
  %4143 = vmatprep.subr.bf16.mxu0 0
  %4144 = vmatpush2.bf16.msra.mxu0 0
  %4145 = vmatprep.subr.bf16.mxu0 0
  %4146 = vmatpush2.bf16.msra.mxu0 0
  %4147 = vmatprep.subr.bf16.mxu0 0
  %4148 = vmatpush2.bf16.msra.mxu0 0
  %4149 = vmatprep.mubr.bf16.mxu0 0
  %4150 = vmatmul.mubr.bf16.gmra.mxu0 %v2237
  %v4151 = vpop.f32.mrf.mxu0
  %v4152 = vadd.f32 0.0, %v4151
  %v4153 = vpop.f32.mrf.mxu0
  %v4154 = vpop.f32.mrf.mxu0
  %v4155 = vadd.f32 0.0, %v4154
  %v4156 = vpop.f32.mrf.mxu0
  %4157 = vdwg.mxu0
  %4158 = vmatprep.subr.bf16.mxu0 0
  %4159 = vmatpush1.bf16.msra.mxu0 0
  %4160 = vmatprep.subr.bf16.mxu0 0
  %4161 = vmatpush1.bf16.msra.mxu0 0
  %4162 = vmatprep.subr.bf16.mxu0 0
  %4163 = vmatpush1.bf16.msra.mxu0 0
  %4164 = vmatprep.subr.bf16.mxu0 0
  %4165 = vmatpush1.bf16.msra.mxu0 0
  %4166 = vmatprep.subr.bf16.mxu0 0
  %4167 = vmatpush1.bf16.msra.mxu0 0
  %4168 = vmatprep.subr.bf16.mxu0 0
  %4169 = vmatpush1.bf16.msra.mxu0 0
  %4170 = vmatprep.subr.bf16.mxu0 0
  %4171 = vmatpush1.bf16.msra.mxu0 0
  %4172 = vmatprep.subr.bf16.mxu0 0
  %4173 = vmatpush1.bf16.msra.mxu0 %v2926
  %4174 = vmatprep.subr.bf16.mxu0 0
  %4175 = vmatpush2.bf16.msra.mxu0 0
  %4176 = vmatprep.subr.bf16.mxu0 0
  %4177 = vmatpush2.bf16.msra.mxu0 0
  %4178 = vmatprep.subr.bf16.mxu0 0
  %4179 = vmatpush2.bf16.msra.mxu0 0
  %4180 = vmatprep.subr.bf16.mxu0 0
  %4181 = vmatpush2.bf16.msra.mxu0 0
  %4182 = vmatprep.subr.bf16.mxu0 0
  %4183 = vmatpush2.bf16.msra.mxu0 0
  %4184 = vmatprep.subr.bf16.mxu0 0
  %4185 = vmatpush2.bf16.msra.mxu0 0
  %4186 = vmatprep.subr.bf16.mxu0 0
  %4187 = vmatpush2.bf16.msra.mxu0 0
  %4188 = vmatprep.subr.bf16.mxu0 0
  %4189 = vmatpush2.bf16.msra.mxu0 0
  %4190 = vmatprep.mubr.bf16.mxu0 0
  %4191 = vmatmul.mubr.bf16.gmra.mxu0 %v2286
  %v4192 = vpop.f32.mrf.mxu0
  %v4193 = vadd.f32 0.0, %v4192
  %v4194 = vpop.f32.mrf.mxu0
  %v4195 = vpop.f32.mrf.mxu0
  %v4196 = vadd.f32 0.0, %v4195
  %v4197 = vpop.f32.mrf.mxu0
  %4198 = vdwg.mxu0
  %4199 = vmatprep.subr.bf16.mxu0 0
  %4200 = vmatpush1.bf16.msra.mxu0 0
  %4201 = vmatprep.subr.bf16.mxu0 0
  %4202 = vmatpush1.bf16.msra.mxu0 0
  %4203 = vmatprep.subr.bf16.mxu0 0
  %4204 = vmatpush1.bf16.msra.mxu0 0
  %4205 = vmatprep.subr.bf16.mxu0 0
  %4206 = vmatpush1.bf16.msra.mxu0 0
  %4207 = vmatprep.subr.bf16.mxu0 0
  %4208 = vmatpush1.bf16.msra.mxu0 0
  %4209 = vmatprep.subr.bf16.mxu0 0
  %4210 = vmatpush1.bf16.msra.mxu0 0
  %4211 = vmatprep.subr.bf16.mxu0 0
  %4212 = vmatpush1.bf16.msra.mxu0 0
  %4213 = vmatprep.subr.bf16.mxu0 0
  %4214 = vmatpush1.bf16.msra.mxu0 %v2927
  %4215 = vmatprep.subr.bf16.mxu0 0
  %4216 = vmatpush2.bf16.msra.mxu0 0
  %4217 = vmatprep.subr.bf16.mxu0 0
  %4218 = vmatpush2.bf16.msra.mxu0 0
  %4219 = vmatprep.subr.bf16.mxu0 0
  %4220 = vmatpush2.bf16.msra.mxu0 0
  %4221 = vmatprep.subr.bf16.mxu0 0
  %4222 = vmatpush2.bf16.msra.mxu0 0
  %4223 = vmatprep.subr.bf16.mxu0 0
  %4224 = vmatpush2.bf16.msra.mxu0 0
  %4225 = vmatprep.subr.bf16.mxu0 0
  %4226 = vmatpush2.bf16.msra.mxu0 0
  %4227 = vmatprep.subr.bf16.mxu0 0
  %4228 = vmatpush2.bf16.msra.mxu0 0
  %4229 = vmatprep.subr.bf16.mxu0 0
  %4230 = vmatpush2.bf16.msra.mxu0 0
  %4231 = vmatprep.mubr.bf16.mxu0 0
  %4232 = vmatmul.mubr.bf16.gmra.mxu0 %v2335
  %v4233 = vpop.f32.mrf.mxu0
  %v4234 = vadd.f32 0.0, %v4233
  %v4235 = vpop.f32.mrf.mxu0
  %v4236 = vpop.f32.mrf.mxu0
  %v4237 = vadd.f32 0.0, %v4236
  %v4238 = vpop.f32.mrf.mxu0
  %4239 = vdwg.mxu0
  %v4240 = vld [vmem:[%s3 + $0x8] sm:$0x1]
  %v4241 = vlaneseq
  %v4242 = vshrl.u32 %v4241, 7
  %v4243 = vsub.s32 0, %v4242
  %v4244 = vrot.slane %v4240, %v4243
  %v4245 = vadd.f32 %v2963, %v4244
  %v4246 = vadd.f32 %v2966, %v4244
  %v4247 = vadd.f32 %v3004, %v4244
  %v4248 = vadd.f32 %v3007, %v4244
  %v4249 = vadd.f32 %v3045, %v4244
  %v4250 = vadd.f32 %v3048, %v4244
  %v4251 = vadd.f32 %v3086, %v4244
  %v4252 = vadd.f32 %v3089, %v4244
  %v4253 = vadd.f32 %v3127, %v4244
  %v4254 = vadd.f32 %v3130, %v4244
  %v4255 = vadd.f32 %v3168, %v4244
  %v4256 = vadd.f32 %v3171, %v4244
  %v4257 = vadd.f32 %v3209, %v4244
  %v4258 = vadd.f32 %v3212, %v4244
  %v4259 = vadd.f32 %v3250, %v4244
  %v4260 = vadd.f32 %v3253, %v4244
  %v4261 = vadd.f32 %v3291, %v4244
  %v4262 = vadd.f32 %v3294, %v4244
  %v4263 = vadd.f32 %v3332, %v4244
  %v4264 = vadd.f32 %v3335, %v4244
  %v4265 = vadd.f32 %v3373, %v4244
  %v4266 = vadd.f32 %v3376, %v4244
  %v4267 = vadd.f32 %v3414, %v4244
  %v4268 = vadd.f32 %v3417, %v4244
  %v4269 = vadd.f32 %v3455, %v4244
  %v4270 = vadd.f32 %v3458, %v4244
  %v4271 = vadd.f32 %v3496, %v4244
  %v4272 = vadd.f32 %v3499, %v4244
  %v4273 = vadd.f32 %v3537, %v4244
  %v4274 = vadd.f32 %v3540, %v4244
  %v4275 = vadd.f32 %v3578, %v4244
  %v4276 = vadd.f32 %v3581, %v4244
  %v4277 = vadd.f32 %v3619, %v4244
  %v4278 = vadd.f32 %v3622, %v4244
  %v4279 = vadd.f32 %v3660, %v4244
  %v4280 = vadd.f32 %v3663, %v4244
  %v4281 = vadd.f32 %v3701, %v4244
  %v4282 = vadd.f32 %v3704, %v4244
  %v4283 = vadd.f32 %v3742, %v4244
  %v4284 = vadd.f32 %v3745, %v4244
  %v4285 = vadd.f32 %v3783, %v4244
  %v4286 = vadd.f32 %v3786, %v4244
  %v4287 = vadd.f32 %v3824, %v4244
  %v4288 = vadd.f32 %v3827, %v4244
  %v4289 = vadd.f32 %v3865, %v4244
  %v4290 = vadd.f32 %v3868, %v4244
  %v4291 = vadd.f32 %v3906, %v4244
  %v4292 = vadd.f32 %v3909, %v4244
  %v4293 = vadd.f32 %v3947, %v4244
  %v4294 = vadd.f32 %v3950, %v4244
  %v4295 = vadd.f32 %v3988, %v4244
  %v4296 = vadd.f32 %v3991, %v4244
  %v4297 = vadd.f32 %v4029, %v4244
  %v4298 = vadd.f32 %v4032, %v4244
  %v4299 = vadd.f32 %v4070, %v4244
  %v4300 = vadd.f32 %v4073, %v4244
  %v4301 = vadd.f32 %v4111, %v4244
  %v4302 = vadd.f32 %v4114, %v4244
  %v4303 = vadd.f32 %v4152, %v4244
  %v4304 = vadd.f32 %v4155, %v4244
  %v4305 = vadd.f32 %v4193, %v4244
  %v4306 = vadd.f32 %v4196, %v4244
  %v4307 = vadd.f32 %v4234, %v4244
  %v4308 = vadd.f32 %v4237, %v4244
  %v4309 = vmax.f32 %v4245, 0.0
  %v4310 = vmax.f32 %v4246, 0.0
  %v4311 = vmax.f32 %v4247, 0.0
  %v4312 = vmax.f32 %v4248, 0.0
  %v4313 = vmax.f32 %v4249, 0.0
  %v4314 = vmax.f32 %v4250, 0.0
  %v4315 = vmax.f32 %v4251, 0.0
  %v4316 = vmax.f32 %v4252, 0.0
  %v4317 = vmax.f32 %v4253, 0.0
  %v4318 = vmax.f32 %v4254, 0.0
  %v4319 = vmax.f32 %v4255, 0.0
  %v4320 = vmax.f32 %v4256, 0.0
  %v4321 = vmax.f32 %v4257, 0.0
  %v4322 = vmax.f32 %v4258, 0.0
  %v4323 = vmax.f32 %v4259, 0.0
  %v4324 = vmax.f32 %v4260, 0.0
  %v4325 = vmax.f32 %v4261, 0.0
  %v4326 = vmax.f32 %v4262, 0.0
  %v4327 = vmax.f32 %v4263, 0.0
  %v4328 = vmax.f32 %v4264, 0.0
  %v4329 = vmax.f32 %v4265, 0.0
  %v4330 = vmax.f32 %v4266, 0.0
  %v4331 = vmax.f32 %v4267, 0.0
  %v4332 = vmax.f32 %v4268, 0.0
  %v4333 = vmax.f32 %v4269, 0.0
  %v4334 = vmax.f32 %v4270, 0.0
  %v4335 = vmax.f32 %v4271, 0.0
  %v4336 = vmax.f32 %v4272, 0.0
  %v4337 = vmax.f32 %v4273, 0.0
  %v4338 = vmax.f32 %v4274, 0.0
  %v4339 = vmax.f32 %v4275, 0.0
  %v4340 = vmax.f32 %v4276, 0.0
  %v4341 = vmax.f32 %v4277, 0.0
  %v4342 = vmax.f32 %v4278, 0.0
  %v4343 = vmax.f32 %v4279, 0.0
  %v4344 = vmax.f32 %v4280, 0.0
  %v4345 = vmax.f32 %v4281, 0.0
  %v4346 = vmax.f32 %v4282, 0.0
  %v4347 = vmax.f32 %v4283, 0.0
  %v4348 = vmax.f32 %v4284, 0.0
  %v4349 = vmax.f32 %v4285, 0.0
  %v4350 = vmax.f32 %v4286, 0.0
  %v4351 = vmax.f32 %v4287, 0.0
  %v4352 = vmax.f32 %v4288, 0.0
  %v4353 = vmax.f32 %v4289, 0.0
  %v4354 = vmax.f32 %v4290, 0.0
  %v4355 = vmax.f32 %v4291, 0.0
  %v4356 = vmax.f32 %v4292, 0.0
  %v4357 = vmax.f32 %v4293, 0.0
  %v4358 = vmax.f32 %v4294, 0.0
  %v4359 = vmax.f32 %v4295, 0.0
  %v4360 = vmax.f32 %v4296, 0.0
  %v4361 = vmax.f32 %v4297, 0.0
  %v4362 = vmax.f32 %v4298, 0.0
  %v4363 = vmax.f32 %v4299, 0.0
  %v4364 = vmax.f32 %v4300, 0.0
  %v4365 = vmax.f32 %v4301, 0.0
  %v4366 = vmax.f32 %v4302, 0.0
  %v4367 = vmax.f32 %v4303, 0.0
  %v4368 = vmax.f32 %v4304, 0.0
  %v4369 = vmax.f32 %v4305, 0.0
  %v4370 = vmax.f32 %v4306, 0.0
  %v4371 = vmax.f32 %v4307, 0.0
  %v4372 = vmax.f32 %v4308, 0.0
  %v4373 = vld [vmem:[%s2 + $0x48] sm:$0xf]
  %v4374 = vld [vmem:[%s2 + $0x4c] sm:$0xf]
  %v4375 = vld [vmem:[%s2 + $0x50] sm:$0xf]
  %v4376 = vld [vmem:[%s2 + $0x54] sm:$0xf]
  %v4377 = vld [vmem:[%s2 + $0x58] sm:$0xf]
  %v4378 = vld [vmem:[%s2 + $0x5c] sm:$0xf]
  %v4379 = vld [vmem:[%s2 + $0x60] sm:$0xf]
  %v4380 = vld [vmem:[%s2 + $0x64] sm:$0xf]
  %v4381 = vld [vmem:[%s2 + $0x68] sm:$0xf]
  %v4382 = vld [vmem:[%s2 + $0x6c] sm:$0xf]
  %v4383 = vld [vmem:[%s2 + $0x70] sm:$0xf]
  %v4384 = vld [vmem:[%s2 + $0x74] sm:$0xf]
  %v4385 = vld [vmem:[%s2 + $0x78] sm:$0xf]
  %v4386 = vld [vmem:[%s2 + $0x7c] sm:$0xf]
  %v4387 = vld [vmem:[%s2 + $0x80] sm:$0xf]
  %v4388 = vld [vmem:[%s2 + $0x84] sm:$0xf]
  %v4389 = vpack.c.bf16 %v4310, %v4309
  %v4390 = vpack.c.bf16 %v4312, %v4311
  %v4391 = vpack.c.bf16 %v4314, %v4313
  %v4392 = vpack.c.bf16 %v4316, %v4315
  %v4393 = vpack.c.bf16 %v4318, %v4317
  %v4394 = vpack.c.bf16 %v4320, %v4319
  %v4395 = vpack.c.bf16 %v4322, %v4321
  %v4396 = vpack.c.bf16 %v4324, %v4323
  %v4397 = vpack.c.bf16 %v4326, %v4325
  %v4398 = vpack.c.bf16 %v4328, %v4327
  %v4399 = vpack.c.bf16 %v4330, %v4329
  %v4400 = vpack.c.bf16 %v4332, %v4331
  %v4401 = vpack.c.bf16 %v4334, %v4333
  %v4402 = vpack.c.bf16 %v4336, %v4335
  %v4403 = vpack.c.bf16 %v4338, %v4337
  %v4404 = vpack.c.bf16 %v4340, %v4339
  %v4405 = vpack.c.bf16 %v4342, %v4341
  %v4406 = vpack.c.bf16 %v4344, %v4343
  %v4407 = vpack.c.bf16 %v4346, %v4345
  %v4408 = vpack.c.bf16 %v4348, %v4347
  %v4409 = vpack.c.bf16 %v4350, %v4349
  %v4410 = vpack.c.bf16 %v4352, %v4351
  %v4411 = vpack.c.bf16 %v4354, %v4353
  %v4412 = vpack.c.bf16 %v4356, %v4355
  %v4413 = vpack.c.bf16 %v4358, %v4357
  %v4414 = vpack.c.bf16 %v4360, %v4359
  %v4415 = vpack.c.bf16 %v4362, %v4361
  %v4416 = vpack.c.bf16 %v4364, %v4363
  %v4417 = vpack.c.bf16 %v4366, %v4365
  %v4418 = vpack.c.bf16 %v4368, %v4367
  %v4419 = vpack.c.bf16 %v4370, %v4369
  %v4420 = vpack.c.bf16 %v4372, %v4371
  %v4437 = vunpack.c.l.b16 %v4373
  %v4438 = vunpack.c.l.b16 %v4374
  %v4439 = vunpack.c.l.b16 %v4375
  %v4440 = vunpack.c.l.b16 %v4376
  %v4441 = vunpack.c.l.b16 %v4377
  %v4442 = vunpack.c.l.b16 %v4378
  %v4443 = vunpack.c.l.b16 %v4379
  %v4444 = vunpack.c.l.b16 %v4380
  %v4445 = vunpack.c.l.b16 %v4381
  %v4446 = vunpack.c.l.b16 %v4382
  %v4447 = vunpack.c.l.b16 %v4383
  %v4448 = vunpack.c.l.b16 %v4384
  %v4449 = vunpack.c.l.b16 %v4385
  %v4450 = vunpack.c.l.b16 %v4386
  %v4451 = vunpack.c.l.b16 %v4387
  %v4452 = vunpack.c.l.b16 %v4388
  %v4453 = vpack.c.b16 %v4438, %v4437
  %v4454 = vpack.c.b16 %v4440, %v4439
  %v4455 = vpack.c.b16 %v4442, %v4441
  %v4456 = vpack.c.b16 %v4444, %v4443
  %v4457 = vpack.c.b16 %v4446, %v4445
  %v4458 = vpack.c.b16 %v4448, %v4447
  %v4459 = vpack.c.b16 %v4450, %v4449
  %v4460 = vpack.c.b16 %v4452, %v4451
  %4469 = vmatprep.subr.bf16.mxu0 0
  %4470 = vmatpush1.bf16.msra.mxu0 %v4460
  %4471 = vmatprep.subr.bf16.mxu0 0
  %4472 = vmatpush1.bf16.msra.mxu0 %v4459
  %4473 = vmatprep.subr.bf16.mxu0 0
  %4474 = vmatpush1.bf16.msra.mxu0 %v4458
  %4475 = vmatprep.subr.bf16.mxu0 0
  %4476 = vmatpush1.bf16.msra.mxu0 %v4457
  %4477 = vmatprep.subr.bf16.mxu0 0
  %4478 = vmatpush1.bf16.msra.mxu0 %v4456
  %4479 = vmatprep.subr.bf16.mxu0 0
  %4480 = vmatpush1.bf16.msra.mxu0 %v4455
  %4481 = vmatprep.subr.bf16.mxu0 0
  %4482 = vmatpush1.bf16.msra.mxu0 %v4454
  %4483 = vmatprep.subr.bf16.mxu0 0
  %4484 = vmatpush1.bf16.msra.mxu0 %v4453
  %4485 = vmatprep.subr.bf16.mxu0 0
  %4486 = vmatpush2.bf16.msra.mxu0 0
  %4487 = vmatprep.subr.bf16.mxu0 0
  %4488 = vmatpush2.bf16.msra.mxu0 0
  %4489 = vmatprep.subr.bf16.mxu0 0
  %4490 = vmatpush2.bf16.msra.mxu0 0
  %4491 = vmatprep.subr.bf16.mxu0 0
  %4492 = vmatpush2.bf16.msra.mxu0 0
  %4493 = vmatprep.subr.bf16.mxu0 0
  %4494 = vmatpush2.bf16.msra.mxu0 0
  %4495 = vmatprep.subr.bf16.mxu0 0
  %4496 = vmatpush2.bf16.msra.mxu0 0
  %4497 = vmatprep.subr.bf16.mxu0 0
  %4498 = vmatpush2.bf16.msra.mxu0 0
  %4499 = vmatprep.subr.bf16.mxu0 0
  %4500 = vmatpush2.bf16.msra.mxu0 0
  %4501 = vmatprep.mubr.bf16.mxu0 0
  %4502 = vmatmul.mubr.bf16.gmra.mxu0 %v4389
  %v4503 = vpop.f32.mrf.mxu0
  %v4504 = vadd.f32 0.0, %v4503
  %v4505 = vpop.f32.mrf.mxu0
  %v4506 = vpop.f32.mrf.mxu0
  %v4507 = vadd.f32 0.0, %v4506
  %v4508 = vpop.f32.mrf.mxu0
  %4509 = vmatprep.mubr.bf16.mxu0 0
  %4510 = vmatmul.mubr.bf16.gmra.mxu0 %v4390
  %v4511 = vpop.f32.mrf.mxu0
  %v4512 = vadd.f32 0.0, %v4511
  %v4513 = vpop.f32.mrf.mxu0
  %v4514 = vpop.f32.mrf.mxu0
  %v4515 = vadd.f32 0.0, %v4514
  %v4516 = vpop.f32.mrf.mxu0
  %4517 = vmatprep.mubr.bf16.mxu0 0
  %4518 = vmatmul.mubr.bf16.gmra.mxu0 %v4391
  %v4519 = vpop.f32.mrf.mxu0
  %v4520 = vadd.f32 0.0, %v4519
  %v4521 = vpop.f32.mrf.mxu0
  %v4522 = vpop.f32.mrf.mxu0
  %v4523 = vadd.f32 0.0, %v4522
  %v4524 = vpop.f32.mrf.mxu0
  %4525 = vmatprep.mubr.bf16.mxu0 0
  %4526 = vmatmul.mubr.bf16.gmra.mxu0 %v4392
  %v4527 = vpop.f32.mrf.mxu0
  %v4528 = vadd.f32 0.0, %v4527
  %v4529 = vpop.f32.mrf.mxu0
  %v4530 = vpop.f32.mrf.mxu0
  %v4531 = vadd.f32 0.0, %v4530
  %v4532 = vpop.f32.mrf.mxu0
  %4533 = vmatprep.mubr.bf16.mxu0 0
  %4534 = vmatmul.mubr.bf16.gmra.mxu0 %v4393
  %v4535 = vpop.f32.mrf.mxu0
  %v4536 = vadd.f32 0.0, %v4535
  %v4537 = vpop.f32.mrf.mxu0
  %v4538 = vpop.f32.mrf.mxu0
  %v4539 = vadd.f32 0.0, %v4538
  %v4540 = vpop.f32.mrf.mxu0
  %4541 = vmatprep.mubr.bf16.mxu0 0
  %4542 = vmatmul.mubr.bf16.gmra.mxu0 %v4394
  %v4543 = vpop.f32.mrf.mxu0
  %v4544 = vadd.f32 0.0, %v4543
  %v4545 = vpop.f32.mrf.mxu0
  %v4546 = vpop.f32.mrf.mxu0
  %v4547 = vadd.f32 0.0, %v4546
  %v4548 = vpop.f32.mrf.mxu0
  %4549 = vmatprep.mubr.bf16.mxu0 0
  %4550 = vmatmul.mubr.bf16.gmra.mxu0 %v4395
  %v4551 = vpop.f32.mrf.mxu0
  %v4552 = vadd.f32 0.0, %v4551
  %v4553 = vpop.f32.mrf.mxu0
  %v4554 = vpop.f32.mrf.mxu0
  %v4555 = vadd.f32 0.0, %v4554
  %v4556 = vpop.f32.mrf.mxu0
  %4557 = vmatprep.mubr.bf16.mxu0 0
  %4558 = vmatmul.mubr.bf16.gmra.mxu0 %v4396
  %v4559 = vpop.f32.mrf.mxu0
  %v4560 = vadd.f32 0.0, %v4559
  %v4561 = vpop.f32.mrf.mxu0
  %v4562 = vpop.f32.mrf.mxu0
  %v4563 = vadd.f32 0.0, %v4562
  %v4564 = vpop.f32.mrf.mxu0
  %4565 = vmatprep.mubr.bf16.mxu0 0
  %4566 = vmatmul.mubr.bf16.gmra.mxu0 %v4397
  %v4567 = vpop.f32.mrf.mxu0
  %v4568 = vadd.f32 0.0, %v4567
  %v4569 = vpop.f32.mrf.mxu0
  %v4570 = vpop.f32.mrf.mxu0
  %v4571 = vadd.f32 0.0, %v4570
  %v4572 = vpop.f32.mrf.mxu0
  %4573 = vmatprep.mubr.bf16.mxu0 0
  %4574 = vmatmul.mubr.bf16.gmra.mxu0 %v4398
  %v4575 = vpop.f32.mrf.mxu0
  %v4576 = vadd.f32 0.0, %v4575
  %v4577 = vpop.f32.mrf.mxu0
  %v4578 = vpop.f32.mrf.mxu0
  %v4579 = vadd.f32 0.0, %v4578
  %v4580 = vpop.f32.mrf.mxu0
  %4581 = vmatprep.mubr.bf16.mxu0 0
  %4582 = vmatmul.mubr.bf16.gmra.mxu0 %v4399
  %v4583 = vpop.f32.mrf.mxu0
  %v4584 = vadd.f32 0.0, %v4583
  %v4585 = vpop.f32.mrf.mxu0
  %v4586 = vpop.f32.mrf.mxu0
  %v4587 = vadd.f32 0.0, %v4586
  %v4588 = vpop.f32.mrf.mxu0
  %4589 = vmatprep.mubr.bf16.mxu0 0
  %4590 = vmatmul.mubr.bf16.gmra.mxu0 %v4400
  %v4591 = vpop.f32.mrf.mxu0
  %v4592 = vadd.f32 0.0, %v4591
  %v4593 = vpop.f32.mrf.mxu0
  %v4594 = vpop.f32.mrf.mxu0
  %v4595 = vadd.f32 0.0, %v4594
  %v4596 = vpop.f32.mrf.mxu0
  %4597 = vmatprep.mubr.bf16.mxu0 0
  %4598 = vmatmul.mubr.bf16.gmra.mxu0 %v4401
  %v4599 = vpop.f32.mrf.mxu0
  %v4600 = vadd.f32 0.0, %v4599
  %v4601 = vpop.f32.mrf.mxu0
  %v4602 = vpop.f32.mrf.mxu0
  %v4603 = vadd.f32 0.0, %v4602
  %v4604 = vpop.f32.mrf.mxu0
  %4605 = vmatprep.mubr.bf16.mxu0 0
  %4606 = vmatmul.mubr.bf16.gmra.mxu0 %v4402
  %v4607 = vpop.f32.mrf.mxu0
  %v4608 = vadd.f32 0.0, %v4607
  %v4609 = vpop.f32.mrf.mxu0
  %v4610 = vpop.f32.mrf.mxu0
  %v4611 = vadd.f32 0.0, %v4610
  %v4612 = vpop.f32.mrf.mxu0
  %4613 = vmatprep.mubr.bf16.mxu0 0
  %4614 = vmatmul.mubr.bf16.gmra.mxu0 %v4403
  %v4615 = vpop.f32.mrf.mxu0
  %v4616 = vadd.f32 0.0, %v4615
  %v4617 = vpop.f32.mrf.mxu0
  %v4618 = vpop.f32.mrf.mxu0
  %v4619 = vadd.f32 0.0, %v4618
  %v4620 = vpop.f32.mrf.mxu0
  %4621 = vmatprep.mubr.bf16.mxu0 0
  %4622 = vmatmul.mubr.bf16.gmra.mxu0 %v4404
  %v4623 = vpop.f32.mrf.mxu0
  %v4624 = vadd.f32 0.0, %v4623
  %v4625 = vpop.f32.mrf.mxu0
  %v4626 = vpop.f32.mrf.mxu0
  %v4627 = vadd.f32 0.0, %v4626
  %v4628 = vpop.f32.mrf.mxu0
  %4629 = vmatprep.mubr.bf16.mxu0 0
  %4630 = vmatmul.mubr.bf16.gmra.mxu0 %v4405
  %v4631 = vpop.f32.mrf.mxu0
  %v4632 = vadd.f32 0.0, %v4631
  %v4633 = vpop.f32.mrf.mxu0
  %v4634 = vpop.f32.mrf.mxu0
  %v4635 = vadd.f32 0.0, %v4634
  %v4636 = vpop.f32.mrf.mxu0
  %4637 = vmatprep.mubr.bf16.mxu0 0
  %4638 = vmatmul.mubr.bf16.gmra.mxu0 %v4406
  %v4639 = vpop.f32.mrf.mxu0
  %v4640 = vadd.f32 0.0, %v4639
  %v4641 = vpop.f32.mrf.mxu0
  %v4642 = vpop.f32.mrf.mxu0
  %v4643 = vadd.f32 0.0, %v4642
  %v4644 = vpop.f32.mrf.mxu0
  %4645 = vmatprep.mubr.bf16.mxu0 0
  %4646 = vmatmul.mubr.bf16.gmra.mxu0 %v4407
  %v4647 = vpop.f32.mrf.mxu0
  %v4648 = vadd.f32 0.0, %v4647
  %v4649 = vpop.f32.mrf.mxu0
  %v4650 = vpop.f32.mrf.mxu0
  %v4651 = vadd.f32 0.0, %v4650
  %v4652 = vpop.f32.mrf.mxu0
  %4653 = vmatprep.mubr.bf16.mxu0 0
  %4654 = vmatmul.mubr.bf16.gmra.mxu0 %v4408
  %v4655 = vpop.f32.mrf.mxu0
  %v4656 = vadd.f32 0.0, %v4655
  %v4657 = vpop.f32.mrf.mxu0
  %v4658 = vpop.f32.mrf.mxu0
  %v4659 = vadd.f32 0.0, %v4658
  %v4660 = vpop.f32.mrf.mxu0
  %4661 = vmatprep.mubr.bf16.mxu0 0
  %4662 = vmatmul.mubr.bf16.gmra.mxu0 %v4409
  %v4663 = vpop.f32.mrf.mxu0
  %v4664 = vadd.f32 0.0, %v4663
  %v4665 = vpop.f32.mrf.mxu0
  %v4666 = vpop.f32.mrf.mxu0
  %v4667 = vadd.f32 0.0, %v4666
  %v4668 = vpop.f32.mrf.mxu0
  %4669 = vmatprep.mubr.bf16.mxu0 0
  %4670 = vmatmul.mubr.bf16.gmra.mxu0 %v4410
  %v4671 = vpop.f32.mrf.mxu0
  %v4672 = vadd.f32 0.0, %v4671
  %v4673 = vpop.f32.mrf.mxu0
  %v4674 = vpop.f32.mrf.mxu0
  %v4675 = vadd.f32 0.0, %v4674
  %v4676 = vpop.f32.mrf.mxu0
  %4677 = vmatprep.mubr.bf16.mxu0 0
  %4678 = vmatmul.mubr.bf16.gmra.mxu0 %v4411
  %v4679 = vpop.f32.mrf.mxu0
  %v4680 = vadd.f32 0.0, %v4679
  %v4681 = vpop.f32.mrf.mxu0
  %v4682 = vpop.f32.mrf.mxu0
  %v4683 = vadd.f32 0.0, %v4682
  %v4684 = vpop.f32.mrf.mxu0
  %4685 = vmatprep.mubr.bf16.mxu0 0
  %4686 = vmatmul.mubr.bf16.gmra.mxu0 %v4412
  %v4687 = vpop.f32.mrf.mxu0
  %v4688 = vadd.f32 0.0, %v4687
  %v4689 = vpop.f32.mrf.mxu0
  %v4690 = vpop.f32.mrf.mxu0
  %v4691 = vadd.f32 0.0, %v4690
  %v4692 = vpop.f32.mrf.mxu0
  %4693 = vmatprep.mubr.bf16.mxu0 0
  %4694 = vmatmul.mubr.bf16.gmra.mxu0 %v4413
  %v4695 = vpop.f32.mrf.mxu0
  %v4696 = vadd.f32 0.0, %v4695
  %v4697 = vpop.f32.mrf.mxu0
  %v4698 = vpop.f32.mrf.mxu0
  %v4699 = vadd.f32 0.0, %v4698
  %v4700 = vpop.f32.mrf.mxu0
  %4701 = vmatprep.mubr.bf16.mxu0 0
  %4702 = vmatmul.mubr.bf16.gmra.mxu0 %v4414
  %v4703 = vpop.f32.mrf.mxu0
  %v4704 = vadd.f32 0.0, %v4703
  %v4705 = vpop.f32.mrf.mxu0
  %v4706 = vpop.f32.mrf.mxu0
  %v4707 = vadd.f32 0.0, %v4706
  %v4708 = vpop.f32.mrf.mxu0
  %4709 = vmatprep.mubr.bf16.mxu0 0
  %4710 = vmatmul.mubr.bf16.gmra.mxu0 %v4415
  %v4711 = vpop.f32.mrf.mxu0
  %v4712 = vadd.f32 0.0, %v4711
  %v4713 = vpop.f32.mrf.mxu0
  %v4714 = vpop.f32.mrf.mxu0
  %v4715 = vadd.f32 0.0, %v4714
  %v4716 = vpop.f32.mrf.mxu0
  %4717 = vmatprep.mubr.bf16.mxu0 0
  %4718 = vmatmul.mubr.bf16.gmra.mxu0 %v4416
  %v4719 = vpop.f32.mrf.mxu0
  %v4720 = vadd.f32 0.0, %v4719
  %v4721 = vpop.f32.mrf.mxu0
  %v4722 = vpop.f32.mrf.mxu0
  %v4723 = vadd.f32 0.0, %v4722
  %v4724 = vpop.f32.mrf.mxu0
  %4725 = vmatprep.mubr.bf16.mxu0 0
  %4726 = vmatmul.mubr.bf16.gmra.mxu0 %v4417
  %v4727 = vpop.f32.mrf.mxu0
  %v4728 = vadd.f32 0.0, %v4727
  %v4729 = vpop.f32.mrf.mxu0
  %v4730 = vpop.f32.mrf.mxu0
  %v4731 = vadd.f32 0.0, %v4730
  %v4732 = vpop.f32.mrf.mxu0
  %4733 = vmatprep.mubr.bf16.mxu0 0
  %4734 = vmatmul.mubr.bf16.gmra.mxu0 %v4418
  %v4735 = vpop.f32.mrf.mxu0
  %v4736 = vadd.f32 0.0, %v4735
  %v4737 = vpop.f32.mrf.mxu0
  %v4738 = vpop.f32.mrf.mxu0
  %v4739 = vadd.f32 0.0, %v4738
  %v4740 = vpop.f32.mrf.mxu0
  %4741 = vmatprep.mubr.bf16.mxu0 0
  %4742 = vmatmul.mubr.bf16.gmra.mxu0 %v4419
  %v4743 = vpop.f32.mrf.mxu0
  %v4744 = vadd.f32 0.0, %v4743
  %v4745 = vpop.f32.mrf.mxu0
  %v4746 = vpop.f32.mrf.mxu0
  %v4747 = vadd.f32 0.0, %v4746
  %v4748 = vpop.f32.mrf.mxu0
  %4749 = vmatprep.mubr.bf16.mxu0 0
  %4750 = vmatmul.mubr.bf16.gmra.mxu0 %v4420
  %v4751 = vpop.f32.mrf.mxu0
  %v4752 = vadd.f32 0.0, %v4751
  %v4753 = vpop.f32.mrf.mxu0
  %v4754 = vpop.f32.mrf.mxu0
  %v4755 = vadd.f32 0.0, %v4754
  %v4756 = vpop.f32.mrf.mxu0
  %4757 = vdwg.mxu0
  %v4758 = vpack.c.bf16 %v4507, %v4504
  %v4759 = vpack.c.bf16 %v4515, %v4512
  %v4760 = vpack.c.bf16 %v4523, %v4520
  %v4761 = vpack.c.bf16 %v4531, %v4528
  %v4762 = vpack.c.bf16 %v4539, %v4536
  %v4763 = vpack.c.bf16 %v4547, %v4544
  %v4764 = vpack.c.bf16 %v4555, %v4552
  %v4765 = vpack.c.bf16 %v4563, %v4560
  %v4766 = vpack.c.bf16 %v4571, %v4568
  %v4767 = vpack.c.bf16 %v4579, %v4576
  %v4768 = vpack.c.bf16 %v4587, %v4584
  %v4769 = vpack.c.bf16 %v4595, %v4592
  %v4770 = vpack.c.bf16 %v4603, %v4600
  %v4771 = vpack.c.bf16 %v4611, %v4608
  %v4772 = vpack.c.bf16 %v4619, %v4616
  %v4773 = vpack.c.bf16 %v4627, %v4624
  %v4774 = vpack.c.bf16 %v4635, %v4632
  %v4775 = vpack.c.bf16 %v4643, %v4640
  %v4776 = vpack.c.bf16 %v4651, %v4648
  %v4777 = vpack.c.bf16 %v4659, %v4656
  %v4778 = vpack.c.bf16 %v4667, %v4664
  %v4779 = vpack.c.bf16 %v4675, %v4672
  %v4780 = vpack.c.bf16 %v4683, %v4680
  %v4781 = vpack.c.bf16 %v4691, %v4688
  %v4782 = vpack.c.bf16 %v4699, %v4696
  %v4783 = vpack.c.bf16 %v4707, %v4704
  %v4784 = vpack.c.bf16 %v4715, %v4712
  %v4785 = vpack.c.bf16 %v4723, %v4720
  %v4786 = vpack.c.bf16 %v4731, %v4728
  %v4787 = vpack.c.bf16 %v4739, %v4736
  %v4788 = vpack.c.bf16 %v4747, %v4744
  %v4789 = vpack.c.bf16 %v4755, %v4752
  %4790 = vmatprep.subr.bf16.mxu0 0
  %4791 = vmatpush1.bf16.msra.mxu0 0
  %4792 = vmatprep.subr.bf16.mxu0 0
  %4793 = vmatpush1.bf16.msra.mxu0 0
  %4794 = vmatprep.subr.bf16.mxu0 0
  %4795 = vmatpush1.bf16.msra.mxu0 0
  %4796 = vmatprep.subr.bf16.mxu0 0
  %4797 = vmatpush1.bf16.msra.mxu0 0
  %4798 = vmatprep.subr.bf16.mxu0 0
  %4799 = vmatpush1.bf16.msra.mxu0 0
  %4800 = vmatprep.subr.bf16.mxu0 0
  %4801 = vmatpush1.bf16.msra.mxu0 0
  %4802 = vmatprep.subr.bf16.mxu0 0
  %4803 = vmatpush1.bf16.msra.mxu0 0
  %4804 = vmatprep.subr.bf16.mxu0 0
  %4805 = vmatpush1.bf16.msra.mxu0 %v4758
  %4806 = vmatprep.subr.bf16.mxu0 0
  %4807 = vmatpush2.bf16.msra.mxu0 0
  %4808 = vmatprep.subr.bf16.mxu0 0
  %4809 = vmatpush2.bf16.msra.mxu0 0
  %4810 = vmatprep.subr.bf16.mxu0 0
  %4811 = vmatpush2.bf16.msra.mxu0 0
  %4812 = vmatprep.subr.bf16.mxu0 0
  %4813 = vmatpush2.bf16.msra.mxu0 0
  %4814 = vmatprep.subr.bf16.mxu0 0
  %4815 = vmatpush2.bf16.msra.mxu0 0
  %4816 = vmatprep.subr.bf16.mxu0 0
  %4817 = vmatpush2.bf16.msra.mxu0 0
  %4818 = vmatprep.subr.bf16.mxu0 0
  %4819 = vmatpush2.bf16.msra.mxu0 0
  %4820 = vmatprep.subr.bf16.mxu0 0
  %4821 = vmatpush2.bf16.msra.mxu0 0
  %4822 = vmatprep.mubr.bf16.mxu0 0
  %4823 = vmatmul.mubr.bf16.gmra.mxu0 %v816
  %v4824 = vpop.f32.mrf.mxu0
  %v4825 = vadd.f32 0.0, %v4824
  %v4826 = vpop.f32.mrf.mxu0
  %v4827 = vpop.f32.mrf.mxu0
  %v4828 = vadd.f32 0.0, %v4827
  %v4829 = vpop.f32.mrf.mxu0
  %4830 = vdwg.mxu0
  %4831 = vmatprep.subr.bf16.mxu0 0
  %4832 = vmatpush1.bf16.msra.mxu0 0
  %4833 = vmatprep.subr.bf16.mxu0 0
  %4834 = vmatpush1.bf16.msra.mxu0 0
  %4835 = vmatprep.subr.bf16.mxu0 0
  %4836 = vmatpush1.bf16.msra.mxu0 0
  %4837 = vmatprep.subr.bf16.mxu0 0
  %4838 = vmatpush1.bf16.msra.mxu0 0
  %4839 = vmatprep.subr.bf16.mxu0 0
  %4840 = vmatpush1.bf16.msra.mxu0 0
  %4841 = vmatprep.subr.bf16.mxu0 0
  %4842 = vmatpush1.bf16.msra.mxu0 0
  %4843 = vmatprep.subr.bf16.mxu0 0
  %4844 = vmatpush1.bf16.msra.mxu0 0
  %4845 = vmatprep.subr.bf16.mxu0 0
  %4846 = vmatpush1.bf16.msra.mxu0 %v4759
  %4847 = vmatprep.subr.bf16.mxu0 0
  %4848 = vmatpush2.bf16.msra.mxu0 0
  %4849 = vmatprep.subr.bf16.mxu0 0
  %4850 = vmatpush2.bf16.msra.mxu0 0
  %4851 = vmatprep.subr.bf16.mxu0 0
  %4852 = vmatpush2.bf16.msra.mxu0 0
  %4853 = vmatprep.subr.bf16.mxu0 0
  %4854 = vmatpush2.bf16.msra.mxu0 0
  %4855 = vmatprep.subr.bf16.mxu0 0
  %4856 = vmatpush2.bf16.msra.mxu0 0
  %4857 = vmatprep.subr.bf16.mxu0 0
  %4858 = vmatpush2.bf16.msra.mxu0 0
  %4859 = vmatprep.subr.bf16.mxu0 0
  %4860 = vmatpush2.bf16.msra.mxu0 0
  %4861 = vmatprep.subr.bf16.mxu0 0
  %4862 = vmatpush2.bf16.msra.mxu0 0
  %4863 = vmatprep.mubr.bf16.mxu0 0
  %4864 = vmatmul.mubr.bf16.gmra.mxu0 %v865
  %v4865 = vpop.f32.mrf.mxu0
  %v4866 = vadd.f32 0.0, %v4865
  %v4867 = vpop.f32.mrf.mxu0
  %v4868 = vpop.f32.mrf.mxu0
  %v4869 = vadd.f32 0.0, %v4868
  %v4870 = vpop.f32.mrf.mxu0
  %4871 = vdwg.mxu0
  %4872 = vmatprep.subr.bf16.mxu0 0
  %4873 = vmatpush1.bf16.msra.mxu0 0
  %4874 = vmatprep.subr.bf16.mxu0 0
  %4875 = vmatpush1.bf16.msra.mxu0 0
  %4876 = vmatprep.subr.bf16.mxu0 0
  %4877 = vmatpush1.bf16.msra.mxu0 0
  %4878 = vmatprep.subr.bf16.mxu0 0
  %4879 = vmatpush1.bf16.msra.mxu0 0
  %4880 = vmatprep.subr.bf16.mxu0 0
  %4881 = vmatpush1.bf16.msra.mxu0 0
  %4882 = vmatprep.subr.bf16.mxu0 0
  %4883 = vmatpush1.bf16.msra.mxu0 0
  %4884 = vmatprep.subr.bf16.mxu0 0
  %4885 = vmatpush1.bf16.msra.mxu0 0
  %4886 = vmatprep.subr.bf16.mxu0 0
  %4887 = vmatpush1.bf16.msra.mxu0 %v4760
  %4888 = vmatprep.subr.bf16.mxu0 0
  %4889 = vmatpush2.bf16.msra.mxu0 0
  %4890 = vmatprep.subr.bf16.mxu0 0
  %4891 = vmatpush2.bf16.msra.mxu0 0
  %4892 = vmatprep.subr.bf16.mxu0 0
  %4893 = vmatpush2.bf16.msra.mxu0 0
  %4894 = vmatprep.subr.bf16.mxu0 0
  %4895 = vmatpush2.bf16.msra.mxu0 0
  %4896 = vmatprep.subr.bf16.mxu0 0
  %4897 = vmatpush2.bf16.msra.mxu0 0
  %4898 = vmatprep.subr.bf16.mxu0 0
  %4899 = vmatpush2.bf16.msra.mxu0 0
  %4900 = vmatprep.subr.bf16.mxu0 0
  %4901 = vmatpush2.bf16.msra.mxu0 0
  %4902 = vmatprep.subr.bf16.mxu0 0
  %4903 = vmatpush2.bf16.msra.mxu0 0
  %4904 = vmatprep.mubr.bf16.mxu0 0
  %4905 = vmatmul.mubr.bf16.gmra.mxu0 %v914
  %v4906 = vpop.f32.mrf.mxu0
  %v4907 = vadd.f32 0.0, %v4906
  %v4908 = vpop.f32.mrf.mxu0
  %v4909 = vpop.f32.mrf.mxu0
  %v4910 = vadd.f32 0.0, %v4909
  %v4911 = vpop.f32.mrf.mxu0
  %4912 = vdwg.mxu0
  %4913 = vmatprep.subr.bf16.mxu0 0
  %4914 = vmatpush1.bf16.msra.mxu0 0
  %4915 = vmatprep.subr.bf16.mxu0 0
  %4916 = vmatpush1.bf16.msra.mxu0 0
  %4917 = vmatprep.subr.bf16.mxu0 0
  %4918 = vmatpush1.bf16.msra.mxu0 0
  %4919 = vmatprep.subr.bf16.mxu0 0
  %4920 = vmatpush1.bf16.msra.mxu0 0
  %4921 = vmatprep.subr.bf16.mxu0 0
  %4922 = vmatpush1.bf16.msra.mxu0 0
  %4923 = vmatprep.subr.bf16.mxu0 0
  %4924 = vmatpush1.bf16.msra.mxu0 0
  %4925 = vmatprep.subr.bf16.mxu0 0
  %4926 = vmatpush1.bf16.msra.mxu0 0
  %4927 = vmatprep.subr.bf16.mxu0 0
  %4928 = vmatpush1.bf16.msra.mxu0 %v4761
  %4929 = vmatprep.subr.bf16.mxu0 0
  %4930 = vmatpush2.bf16.msra.mxu0 0
  %4931 = vmatprep.subr.bf16.mxu0 0
  %4932 = vmatpush2.bf16.msra.mxu0 0
  %4933 = vmatprep.subr.bf16.mxu0 0
  %4934 = vmatpush2.bf16.msra.mxu0 0
  %4935 = vmatprep.subr.bf16.mxu0 0
  %4936 = vmatpush2.bf16.msra.mxu0 0
  %4937 = vmatprep.subr.bf16.mxu0 0
  %4938 = vmatpush2.bf16.msra.mxu0 0
  %4939 = vmatprep.subr.bf16.mxu0 0
  %4940 = vmatpush2.bf16.msra.mxu0 0
  %4941 = vmatprep.subr.bf16.mxu0 0
  %4942 = vmatpush2.bf16.msra.mxu0 0
  %4943 = vmatprep.subr.bf16.mxu0 0
  %4944 = vmatpush2.bf16.msra.mxu0 0
  %4945 = vmatprep.mubr.bf16.mxu0 0
  %4946 = vmatmul.mubr.bf16.gmra.mxu0 %v963
  %v4947 = vpop.f32.mrf.mxu0
  %v4948 = vadd.f32 0.0, %v4947
  %v4949 = vpop.f32.mrf.mxu0
  %v4950 = vpop.f32.mrf.mxu0
  %v4951 = vadd.f32 0.0, %v4950
  %v4952 = vpop.f32.mrf.mxu0
  %4953 = vdwg.mxu0
  %4954 = vmatprep.subr.bf16.mxu0 0
  %4955 = vmatpush1.bf16.msra.mxu0 0
  %4956 = vmatprep.subr.bf16.mxu0 0
  %4957 = vmatpush1.bf16.msra.mxu0 0
  %4958 = vmatprep.subr.bf16.mxu0 0
  %4959 = vmatpush1.bf16.msra.mxu0 0
  %4960 = vmatprep.subr.bf16.mxu0 0
  %4961 = vmatpush1.bf16.msra.mxu0 0
  %4962 = vmatprep.subr.bf16.mxu0 0
  %4963 = vmatpush1.bf16.msra.mxu0 0
  %4964 = vmatprep.subr.bf16.mxu0 0
  %4965 = vmatpush1.bf16.msra.mxu0 0
  %4966 = vmatprep.subr.bf16.mxu0 0
  %4967 = vmatpush1.bf16.msra.mxu0 0
  %4968 = vmatprep.subr.bf16.mxu0 0
  %4969 = vmatpush1.bf16.msra.mxu0 %v4762
  %4970 = vmatprep.subr.bf16.mxu0 0
  %4971 = vmatpush2.bf16.msra.mxu0 0
  %4972 = vmatprep.subr.bf16.mxu0 0
  %4973 = vmatpush2.bf16.msra.mxu0 0
  %4974 = vmatprep.subr.bf16.mxu0 0
  %4975 = vmatpush2.bf16.msra.mxu0 0
  %4976 = vmatprep.subr.bf16.mxu0 0
  %4977 = vmatpush2.bf16.msra.mxu0 0
  %4978 = vmatprep.subr.bf16.mxu0 0
  %4979 = vmatpush2.bf16.msra.mxu0 0
  %4980 = vmatprep.subr.bf16.mxu0 0
  %4981 = vmatpush2.bf16.msra.mxu0 0
  %4982 = vmatprep.subr.bf16.mxu0 0
  %4983 = vmatpush2.bf16.msra.mxu0 0
  %4984 = vmatprep.subr.bf16.mxu0 0
  %4985 = vmatpush2.bf16.msra.mxu0 0
  %4986 = vmatprep.mubr.bf16.mxu0 0
  %4987 = vmatmul.mubr.bf16.gmra.mxu0 %v1012
  %v4988 = vpop.f32.mrf.mxu0
  %v4989 = vadd.f32 0.0, %v4988
  %v4990 = vpop.f32.mrf.mxu0
  %v4991 = vpop.f32.mrf.mxu0
  %v4992 = vadd.f32 0.0, %v4991
  %v4993 = vpop.f32.mrf.mxu0
  %4994 = vdwg.mxu0
  %4995 = vmatprep.subr.bf16.mxu0 0
  %4996 = vmatpush1.bf16.msra.mxu0 0
  %4997 = vmatprep.subr.bf16.mxu0 0
  %4998 = vmatpush1.bf16.msra.mxu0 0
  %4999 = vmatprep.subr.bf16.mxu0 0
  %5000 = vmatpush1.bf16.msra.mxu0 0
  %5001 = vmatprep.subr.bf16.mxu0 0
  %5002 = vmatpush1.bf16.msra.mxu0 0
  %5003 = vmatprep.subr.bf16.mxu0 0
  %5004 = vmatpush1.bf16.msra.mxu0 0
  %5005 = vmatprep.subr.bf16.mxu0 0
  %5006 = vmatpush1.bf16.msra.mxu0 0
  %5007 = vmatprep.subr.bf16.mxu0 0
  %5008 = vmatpush1.bf16.msra.mxu0 0
  %5009 = vmatprep.subr.bf16.mxu0 0
  %5010 = vmatpush1.bf16.msra.mxu0 %v4763
  %5011 = vmatprep.subr.bf16.mxu0 0
  %5012 = vmatpush2.bf16.msra.mxu0 0
  %5013 = vmatprep.subr.bf16.mxu0 0
  %5014 = vmatpush2.bf16.msra.mxu0 0
  %5015 = vmatprep.subr.bf16.mxu0 0
  %5016 = vmatpush2.bf16.msra.mxu0 0
  %5017 = vmatprep.subr.bf16.mxu0 0
  %5018 = vmatpush2.bf16.msra.mxu0 0
  %5019 = vmatprep.subr.bf16.mxu0 0
  %5020 = vmatpush2.bf16.msra.mxu0 0
  %5021 = vmatprep.subr.bf16.mxu0 0
  %5022 = vmatpush2.bf16.msra.mxu0 0
  %5023 = vmatprep.subr.bf16.mxu0 0
  %5024 = vmatpush2.bf16.msra.mxu0 0
  %5025 = vmatprep.subr.bf16.mxu0 0
  %5026 = vmatpush2.bf16.msra.mxu0 0
  %5027 = vmatprep.mubr.bf16.mxu0 0
  %5028 = vmatmul.mubr.bf16.gmra.mxu0 %v1061
  %v5029 = vpop.f32.mrf.mxu0
  %v5030 = vadd.f32 0.0, %v5029
  %v5031 = vpop.f32.mrf.mxu0
  %v5032 = vpop.f32.mrf.mxu0
  %v5033 = vadd.f32 0.0, %v5032
  %v5034 = vpop.f32.mrf.mxu0
  %5035 = vdwg.mxu0
  %5036 = vmatprep.subr.bf16.mxu0 0
  %5037 = vmatpush1.bf16.msra.mxu0 0
  %5038 = vmatprep.subr.bf16.mxu0 0
  %5039 = vmatpush1.bf16.msra.mxu0 0
  %5040 = vmatprep.subr.bf16.mxu0 0
  %5041 = vmatpush1.bf16.msra.mxu0 0
  %5042 = vmatprep.subr.bf16.mxu0 0
  %5043 = vmatpush1.bf16.msra.mxu0 0
  %5044 = vmatprep.subr.bf16.mxu0 0
  %5045 = vmatpush1.bf16.msra.mxu0 0
  %5046 = vmatprep.subr.bf16.mxu0 0
  %5047 = vmatpush1.bf16.msra.mxu0 0
  %5048 = vmatprep.subr.bf16.mxu0 0
  %5049 = vmatpush1.bf16.msra.mxu0 0
  %5050 = vmatprep.subr.bf16.mxu0 0
  %5051 = vmatpush1.bf16.msra.mxu0 %v4764
  %5052 = vmatprep.subr.bf16.mxu0 0
  %5053 = vmatpush2.bf16.msra.mxu0 0
  %5054 = vmatprep.subr.bf16.mxu0 0
  %5055 = vmatpush2.bf16.msra.mxu0 0
  %5056 = vmatprep.subr.bf16.mxu0 0
  %5057 = vmatpush2.bf16.msra.mxu0 0
  %5058 = vmatprep.subr.bf16.mxu0 0
  %5059 = vmatpush2.bf16.msra.mxu0 0
  %5060 = vmatprep.subr.bf16.mxu0 0
  %5061 = vmatpush2.bf16.msra.mxu0 0
  %5062 = vmatprep.subr.bf16.mxu0 0
  %5063 = vmatpush2.bf16.msra.mxu0 0
  %5064 = vmatprep.subr.bf16.mxu0 0
  %5065 = vmatpush2.bf16.msra.mxu0 0
  %5066 = vmatprep.subr.bf16.mxu0 0
  %5067 = vmatpush2.bf16.msra.mxu0 0
  %5068 = vmatprep.mubr.bf16.mxu0 0
  %5069 = vmatmul.mubr.bf16.gmra.mxu0 %v1110
  %v5070 = vpop.f32.mrf.mxu0
  %v5071 = vadd.f32 0.0, %v5070
  %v5072 = vpop.f32.mrf.mxu0
  %v5073 = vpop.f32.mrf.mxu0
  %v5074 = vadd.f32 0.0, %v5073
  %v5075 = vpop.f32.mrf.mxu0
  %5076 = vdwg.mxu0
  %5077 = vmatprep.subr.bf16.mxu0 0
  %5078 = vmatpush1.bf16.msra.mxu0 0
  %5079 = vmatprep.subr.bf16.mxu0 0
  %5080 = vmatpush1.bf16.msra.mxu0 0
  %5081 = vmatprep.subr.bf16.mxu0 0
  %5082 = vmatpush1.bf16.msra.mxu0 0
  %5083 = vmatprep.subr.bf16.mxu0 0
  %5084 = vmatpush1.bf16.msra.mxu0 0
  %5085 = vmatprep.subr.bf16.mxu0 0
  %5086 = vmatpush1.bf16.msra.mxu0 0
  %5087 = vmatprep.subr.bf16.mxu0 0
  %5088 = vmatpush1.bf16.msra.mxu0 0
  %5089 = vmatprep.subr.bf16.mxu0 0
  %5090 = vmatpush1.bf16.msra.mxu0 0
  %5091 = vmatprep.subr.bf16.mxu0 0
  %5092 = vmatpush1.bf16.msra.mxu0 %v4765
  %5093 = vmatprep.subr.bf16.mxu0 0
  %5094 = vmatpush2.bf16.msra.mxu0 0
  %5095 = vmatprep.subr.bf16.mxu0 0
  %5096 = vmatpush2.bf16.msra.mxu0 0
  %5097 = vmatprep.subr.bf16.mxu0 0
  %5098 = vmatpush2.bf16.msra.mxu0 0
  %5099 = vmatprep.subr.bf16.mxu0 0
  %5100 = vmatpush2.bf16.msra.mxu0 0
  %5101 = vmatprep.subr.bf16.mxu0 0
  %5102 = vmatpush2.bf16.msra.mxu0 0
  %5103 = vmatprep.subr.bf16.mxu0 0
  %5104 = vmatpush2.bf16.msra.mxu0 0
  %5105 = vmatprep.subr.bf16.mxu0 0
  %5106 = vmatpush2.bf16.msra.mxu0 0
  %5107 = vmatprep.subr.bf16.mxu0 0
  %5108 = vmatpush2.bf16.msra.mxu0 0
  %5109 = vmatprep.mubr.bf16.mxu0 0
  %5110 = vmatmul.mubr.bf16.gmra.mxu0 %v1159
  %v5111 = vpop.f32.mrf.mxu0
  %v5112 = vadd.f32 0.0, %v5111
  %v5113 = vpop.f32.mrf.mxu0
  %v5114 = vpop.f32.mrf.mxu0
  %v5115 = vadd.f32 0.0, %v5114
  %v5116 = vpop.f32.mrf.mxu0
  %5117 = vdwg.mxu0
  %5118 = vmatprep.subr.bf16.mxu0 0
  %5119 = vmatpush1.bf16.msra.mxu0 0
  %5120 = vmatprep.subr.bf16.mxu0 0
  %5121 = vmatpush1.bf16.msra.mxu0 0
  %5122 = vmatprep.subr.bf16.mxu0 0
  %5123 = vmatpush1.bf16.msra.mxu0 0
  %5124 = vmatprep.subr.bf16.mxu0 0
  %5125 = vmatpush1.bf16.msra.mxu0 0
  %5126 = vmatprep.subr.bf16.mxu0 0
  %5127 = vmatpush1.bf16.msra.mxu0 0
  %5128 = vmatprep.subr.bf16.mxu0 0
  %5129 = vmatpush1.bf16.msra.mxu0 0
  %5130 = vmatprep.subr.bf16.mxu0 0
  %5131 = vmatpush1.bf16.msra.mxu0 0
  %5132 = vmatprep.subr.bf16.mxu0 0
  %5133 = vmatpush1.bf16.msra.mxu0 %v4766
  %5134 = vmatprep.subr.bf16.mxu0 0
  %5135 = vmatpush2.bf16.msra.mxu0 0
  %5136 = vmatprep.subr.bf16.mxu0 0
  %5137 = vmatpush2.bf16.msra.mxu0 0
  %5138 = vmatprep.subr.bf16.mxu0 0
  %5139 = vmatpush2.bf16.msra.mxu0 0
  %5140 = vmatprep.subr.bf16.mxu0 0
  %5141 = vmatpush2.bf16.msra.mxu0 0
  %5142 = vmatprep.subr.bf16.mxu0 0
  %5143 = vmatpush2.bf16.msra.mxu0 0
  %5144 = vmatprep.subr.bf16.mxu0 0
  %5145 = vmatpush2.bf16.msra.mxu0 0
  %5146 = vmatprep.subr.bf16.mxu0 0
  %5147 = vmatpush2.bf16.msra.mxu0 0
  %5148 = vmatprep.subr.bf16.mxu0 0
  %5149 = vmatpush2.bf16.msra.mxu0 0
  %5150 = vmatprep.mubr.bf16.mxu0 0
  %5151 = vmatmul.mubr.bf16.gmra.mxu0 %v1208
  %v5152 = vpop.f32.mrf.mxu0
  %v5153 = vadd.f32 0.0, %v5152
  %v5154 = vpop.f32.mrf.mxu0
  %v5155 = vpop.f32.mrf.mxu0
  %v5156 = vadd.f32 0.0, %v5155
  %v5157 = vpop.f32.mrf.mxu0
  %5158 = vdwg.mxu0
  %5159 = vmatprep.subr.bf16.mxu0 0
  %5160 = vmatpush1.bf16.msra.mxu0 0
  %5161 = vmatprep.subr.bf16.mxu0 0
  %5162 = vmatpush1.bf16.msra.mxu0 0
  %5163 = vmatprep.subr.bf16.mxu0 0
  %5164 = vmatpush1.bf16.msra.mxu0 0
  %5165 = vmatprep.subr.bf16.mxu0 0
  %5166 = vmatpush1.bf16.msra.mxu0 0
  %5167 = vmatprep.subr.bf16.mxu0 0
  %5168 = vmatpush1.bf16.msra.mxu0 0
  %5169 = vmatprep.subr.bf16.mxu0 0
  %5170 = vmatpush1.bf16.msra.mxu0 0
  %5171 = vmatprep.subr.bf16.mxu0 0
  %5172 = vmatpush1.bf16.msra.mxu0 0
  %5173 = vmatprep.subr.bf16.mxu0 0
  %5174 = vmatpush1.bf16.msra.mxu0 %v4767
  %5175 = vmatprep.subr.bf16.mxu0 0
  %5176 = vmatpush2.bf16.msra.mxu0 0
  %5177 = vmatprep.subr.bf16.mxu0 0
  %5178 = vmatpush2.bf16.msra.mxu0 0
  %5179 = vmatprep.subr.bf16.mxu0 0
  %5180 = vmatpush2.bf16.msra.mxu0 0
  %5181 = vmatprep.subr.bf16.mxu0 0
  %5182 = vmatpush2.bf16.msra.mxu0 0
  %5183 = vmatprep.subr.bf16.mxu0 0
  %5184 = vmatpush2.bf16.msra.mxu0 0
  %5185 = vmatprep.subr.bf16.mxu0 0
  %5186 = vmatpush2.bf16.msra.mxu0 0
  %5187 = vmatprep.subr.bf16.mxu0 0
  %5188 = vmatpush2.bf16.msra.mxu0 0
  %5189 = vmatprep.subr.bf16.mxu0 0
  %5190 = vmatpush2.bf16.msra.mxu0 0
  %5191 = vmatprep.mubr.bf16.mxu0 0
  %5192 = vmatmul.mubr.bf16.gmra.mxu0 %v1257
  %v5193 = vpop.f32.mrf.mxu0
  %v5194 = vadd.f32 0.0, %v5193
  %v5195 = vpop.f32.mrf.mxu0
  %v5196 = vpop.f32.mrf.mxu0
  %v5197 = vadd.f32 0.0, %v5196
  %v5198 = vpop.f32.mrf.mxu0
  %5199 = vdwg.mxu0
  %5200 = vmatprep.subr.bf16.mxu0 0
  %5201 = vmatpush1.bf16.msra.mxu0 0
  %5202 = vmatprep.subr.bf16.mxu0 0
  %5203 = vmatpush1.bf16.msra.mxu0 0
  %5204 = vmatprep.subr.bf16.mxu0 0
  %5205 = vmatpush1.bf16.msra.mxu0 0
  %5206 = vmatprep.subr.bf16.mxu0 0
  %5207 = vmatpush1.bf16.msra.mxu0 0
  %5208 = vmatprep.subr.bf16.mxu0 0
  %5209 = vmatpush1.bf16.msra.mxu0 0
  %5210 = vmatprep.subr.bf16.mxu0 0
  %5211 = vmatpush1.bf16.msra.mxu0 0
  %5212 = vmatprep.subr.bf16.mxu0 0
  %5213 = vmatpush1.bf16.msra.mxu0 0
  %5214 = vmatprep.subr.bf16.mxu0 0
  %5215 = vmatpush1.bf16.msra.mxu0 %v4768
  %5216 = vmatprep.subr.bf16.mxu0 0
  %5217 = vmatpush2.bf16.msra.mxu0 0
  %5218 = vmatprep.subr.bf16.mxu0 0
  %5219 = vmatpush2.bf16.msra.mxu0 0
  %5220 = vmatprep.subr.bf16.mxu0 0
  %5221 = vmatpush2.bf16.msra.mxu0 0
  %5222 = vmatprep.subr.bf16.mxu0 0
  %5223 = vmatpush2.bf16.msra.mxu0 0
  %5224 = vmatprep.subr.bf16.mxu0 0
  %5225 = vmatpush2.bf16.msra.mxu0 0
  %5226 = vmatprep.subr.bf16.mxu0 0
  %5227 = vmatpush2.bf16.msra.mxu0 0
  %5228 = vmatprep.subr.bf16.mxu0 0
  %5229 = vmatpush2.bf16.msra.mxu0 0
  %5230 = vmatprep.subr.bf16.mxu0 0
  %5231 = vmatpush2.bf16.msra.mxu0 0
  %5232 = vmatprep.mubr.bf16.mxu0 0
  %5233 = vmatmul.mubr.bf16.gmra.mxu0 %v1306
  %v5234 = vpop.f32.mrf.mxu0
  %v5235 = vadd.f32 0.0, %v5234
  %v5236 = vpop.f32.mrf.mxu0
  %v5237 = vpop.f32.mrf.mxu0
  %v5238 = vadd.f32 0.0, %v5237
  %v5239 = vpop.f32.mrf.mxu0
  %5240 = vdwg.mxu0
  %5241 = vmatprep.subr.bf16.mxu0 0
  %5242 = vmatpush1.bf16.msra.mxu0 0
  %5243 = vmatprep.subr.bf16.mxu0 0
  %5244 = vmatpush1.bf16.msra.mxu0 0
  %5245 = vmatprep.subr.bf16.mxu0 0
  %5246 = vmatpush1.bf16.msra.mxu0 0
  %5247 = vmatprep.subr.bf16.mxu0 0
  %5248 = vmatpush1.bf16.msra.mxu0 0
  %5249 = vmatprep.subr.bf16.mxu0 0
  %5250 = vmatpush1.bf16.msra.mxu0 0
  %5251 = vmatprep.subr.bf16.mxu0 0
  %5252 = vmatpush1.bf16.msra.mxu0 0
  %5253 = vmatprep.subr.bf16.mxu0 0
  %5254 = vmatpush1.bf16.msra.mxu0 0
  %5255 = vmatprep.subr.bf16.mxu0 0
  %5256 = vmatpush1.bf16.msra.mxu0 %v4769
  %5257 = vmatprep.subr.bf16.mxu0 0
  %5258 = vmatpush2.bf16.msra.mxu0 0
  %5259 = vmatprep.subr.bf16.mxu0 0
  %5260 = vmatpush2.bf16.msra.mxu0 0
  %5261 = vmatprep.subr.bf16.mxu0 0
  %5262 = vmatpush2.bf16.msra.mxu0 0
  %5263 = vmatprep.subr.bf16.mxu0 0
  %5264 = vmatpush2.bf16.msra.mxu0 0
  %5265 = vmatprep.subr.bf16.mxu0 0
  %5266 = vmatpush2.bf16.msra.mxu0 0
  %5267 = vmatprep.subr.bf16.mxu0 0
  %5268 = vmatpush2.bf16.msra.mxu0 0
  %5269 = vmatprep.subr.bf16.mxu0 0
  %5270 = vmatpush2.bf16.msra.mxu0 0
  %5271 = vmatprep.subr.bf16.mxu0 0
  %5272 = vmatpush2.bf16.msra.mxu0 0
  %5273 = vmatprep.mubr.bf16.mxu0 0
  %5274 = vmatmul.mubr.bf16.gmra.mxu0 %v1355
  %v5275 = vpop.f32.mrf.mxu0
  %v5276 = vadd.f32 0.0, %v5275
  %v5277 = vpop.f32.mrf.mxu0
  %v5278 = vpop.f32.mrf.mxu0
  %v5279 = vadd.f32 0.0, %v5278
  %v5280 = vpop.f32.mrf.mxu0
  %5281 = vdwg.mxu0
  %5282 = vmatprep.subr.bf16.mxu0 0
  %5283 = vmatpush1.bf16.msra.mxu0 0
  %5284 = vmatprep.subr.bf16.mxu0 0
  %5285 = vmatpush1.bf16.msra.mxu0 0
  %5286 = vmatprep.subr.bf16.mxu0 0
  %5287 = vmatpush1.bf16.msra.mxu0 0
  %5288 = vmatprep.subr.bf16.mxu0 0
  %5289 = vmatpush1.bf16.msra.mxu0 0
  %5290 = vmatprep.subr.bf16.mxu0 0
  %5291 = vmatpush1.bf16.msra.mxu0 0
  %5292 = vmatprep.subr.bf16.mxu0 0
  %5293 = vmatpush1.bf16.msra.mxu0 0
  %5294 = vmatprep.subr.bf16.mxu0 0
  %5295 = vmatpush1.bf16.msra.mxu0 0
  %5296 = vmatprep.subr.bf16.mxu0 0
  %5297 = vmatpush1.bf16.msra.mxu0 %v4770
  %5298 = vmatprep.subr.bf16.mxu0 0
  %5299 = vmatpush2.bf16.msra.mxu0 0
  %5300 = vmatprep.subr.bf16.mxu0 0
  %5301 = vmatpush2.bf16.msra.mxu0 0
  %5302 = vmatprep.subr.bf16.mxu0 0
  %5303 = vmatpush2.bf16.msra.mxu0 0
  %5304 = vmatprep.subr.bf16.mxu0 0
  %5305 = vmatpush2.bf16.msra.mxu0 0
  %5306 = vmatprep.subr.bf16.mxu0 0
  %5307 = vmatpush2.bf16.msra.mxu0 0
  %5308 = vmatprep.subr.bf16.mxu0 0
  %5309 = vmatpush2.bf16.msra.mxu0 0
  %5310 = vmatprep.subr.bf16.mxu0 0
  %5311 = vmatpush2.bf16.msra.mxu0 0
  %5312 = vmatprep.subr.bf16.mxu0 0
  %5313 = vmatpush2.bf16.msra.mxu0 0
  %5314 = vmatprep.mubr.bf16.mxu0 0
  %5315 = vmatmul.mubr.bf16.gmra.mxu0 %v1404
  %v5316 = vpop.f32.mrf.mxu0
  %v5317 = vadd.f32 0.0, %v5316
  %v5318 = vpop.f32.mrf.mxu0
  %v5319 = vpop.f32.mrf.mxu0
  %v5320 = vadd.f32 0.0, %v5319
  %v5321 = vpop.f32.mrf.mxu0
  %5322 = vdwg.mxu0
  %5323 = vmatprep.subr.bf16.mxu0 0
  %5324 = vmatpush1.bf16.msra.mxu0 0
  %5325 = vmatprep.subr.bf16.mxu0 0
  %5326 = vmatpush1.bf16.msra.mxu0 0
  %5327 = vmatprep.subr.bf16.mxu0 0
  %5328 = vmatpush1.bf16.msra.mxu0 0
  %5329 = vmatprep.subr.bf16.mxu0 0
  %5330 = vmatpush1.bf16.msra.mxu0 0
  %5331 = vmatprep.subr.bf16.mxu0 0
  %5332 = vmatpush1.bf16.msra.mxu0 0
  %5333 = vmatprep.subr.bf16.mxu0 0
  %5334 = vmatpush1.bf16.msra.mxu0 0
  %5335 = vmatprep.subr.bf16.mxu0 0
  %5336 = vmatpush1.bf16.msra.mxu0 0
  %5337 = vmatprep.subr.bf16.mxu0 0
  %5338 = vmatpush1.bf16.msra.mxu0 %v4771
  %5339 = vmatprep.subr.bf16.mxu0 0
  %5340 = vmatpush2.bf16.msra.mxu0 0
  %5341 = vmatprep.subr.bf16.mxu0 0
  %5342 = vmatpush2.bf16.msra.mxu0 0
  %5343 = vmatprep.subr.bf16.mxu0 0
  %5344 = vmatpush2.bf16.msra.mxu0 0
  %5345 = vmatprep.subr.bf16.mxu0 0
  %5346 = vmatpush2.bf16.msra.mxu0 0
  %5347 = vmatprep.subr.bf16.mxu0 0
  %5348 = vmatpush2.bf16.msra.mxu0 0
  %5349 = vmatprep.subr.bf16.mxu0 0
  %5350 = vmatpush2.bf16.msra.mxu0 0
  %5351 = vmatprep.subr.bf16.mxu0 0
  %5352 = vmatpush2.bf16.msra.mxu0 0
  %5353 = vmatprep.subr.bf16.mxu0 0
  %5354 = vmatpush2.bf16.msra.mxu0 0
  %5355 = vmatprep.mubr.bf16.mxu0 0
  %5356 = vmatmul.mubr.bf16.gmra.mxu0 %v1453
  %v5357 = vpop.f32.mrf.mxu0
  %v5358 = vadd.f32 0.0, %v5357
  %v5359 = vpop.f32.mrf.mxu0
  %v5360 = vpop.f32.mrf.mxu0
  %v5361 = vadd.f32 0.0, %v5360
  %v5362 = vpop.f32.mrf.mxu0
  %5363 = vdwg.mxu0
  %5364 = vmatprep.subr.bf16.mxu0 0
  %5365 = vmatpush1.bf16.msra.mxu0 0
  %5366 = vmatprep.subr.bf16.mxu0 0
  %5367 = vmatpush1.bf16.msra.mxu0 0
  %5368 = vmatprep.subr.bf16.mxu0 0
  %5369 = vmatpush1.bf16.msra.mxu0 0
  %5370 = vmatprep.subr.bf16.mxu0 0
  %5371 = vmatpush1.bf16.msra.mxu0 0
  %5372 = vmatprep.subr.bf16.mxu0 0
  %5373 = vmatpush1.bf16.msra.mxu0 0
  %5374 = vmatprep.subr.bf16.mxu0 0
  %5375 = vmatpush1.bf16.msra.mxu0 0
  %5376 = vmatprep.subr.bf16.mxu0 0
  %5377 = vmatpush1.bf16.msra.mxu0 0
  %5378 = vmatprep.subr.bf16.mxu0 0
  %5379 = vmatpush1.bf16.msra.mxu0 %v4772
  %5380 = vmatprep.subr.bf16.mxu0 0
  %5381 = vmatpush2.bf16.msra.mxu0 0
  %5382 = vmatprep.subr.bf16.mxu0 0
  %5383 = vmatpush2.bf16.msra.mxu0 0
  %5384 = vmatprep.subr.bf16.mxu0 0
  %5385 = vmatpush2.bf16.msra.mxu0 0
  %5386 = vmatprep.subr.bf16.mxu0 0
  %5387 = vmatpush2.bf16.msra.mxu0 0
  %5388 = vmatprep.subr.bf16.mxu0 0
  %5389 = vmatpush2.bf16.msra.mxu0 0
  %5390 = vmatprep.subr.bf16.mxu0 0
  %5391 = vmatpush2.bf16.msra.mxu0 0
  %5392 = vmatprep.subr.bf16.mxu0 0
  %5393 = vmatpush2.bf16.msra.mxu0 0
  %5394 = vmatprep.subr.bf16.mxu0 0
  %5395 = vmatpush2.bf16.msra.mxu0 0
  %5396 = vmatprep.mubr.bf16.mxu0 0
  %5397 = vmatmul.mubr.bf16.gmra.mxu0 %v1502
  %v5398 = vpop.f32.mrf.mxu0
  %v5399 = vadd.f32 0.0, %v5398
  %v5400 = vpop.f32.mrf.mxu0
  %v5401 = vpop.f32.mrf.mxu0
  %v5402 = vadd.f32 0.0, %v5401
  %v5403 = vpop.f32.mrf.mxu0
  %5404 = vdwg.mxu0
  %5405 = vmatprep.subr.bf16.mxu0 0
  %5406 = vmatpush1.bf16.msra.mxu0 0
  %5407 = vmatprep.subr.bf16.mxu0 0
  %5408 = vmatpush1.bf16.msra.mxu0 0
  %5409 = vmatprep.subr.bf16.mxu0 0
  %5410 = vmatpush1.bf16.msra.mxu0 0
  %5411 = vmatprep.subr.bf16.mxu0 0
  %5412 = vmatpush1.bf16.msra.mxu0 0
  %5413 = vmatprep.subr.bf16.mxu0 0
  %5414 = vmatpush1.bf16.msra.mxu0 0
  %5415 = vmatprep.subr.bf16.mxu0 0
  %5416 = vmatpush1.bf16.msra.mxu0 0
  %5417 = vmatprep.subr.bf16.mxu0 0
  %5418 = vmatpush1.bf16.msra.mxu0 0
  %5419 = vmatprep.subr.bf16.mxu0 0
  %5420 = vmatpush1.bf16.msra.mxu0 %v4773
  %5421 = vmatprep.subr.bf16.mxu0 0
  %5422 = vmatpush2.bf16.msra.mxu0 0
  %5423 = vmatprep.subr.bf16.mxu0 0
  %5424 = vmatpush2.bf16.msra.mxu0 0
  %5425 = vmatprep.subr.bf16.mxu0 0
  %5426 = vmatpush2.bf16.msra.mxu0 0
  %5427 = vmatprep.subr.bf16.mxu0 0
  %5428 = vmatpush2.bf16.msra.mxu0 0
  %5429 = vmatprep.subr.bf16.mxu0 0
  %5430 = vmatpush2.bf16.msra.mxu0 0
  %5431 = vmatprep.subr.bf16.mxu0 0
  %5432 = vmatpush2.bf16.msra.mxu0 0
  %5433 = vmatprep.subr.bf16.mxu0 0
  %5434 = vmatpush2.bf16.msra.mxu0 0
  %5435 = vmatprep.subr.bf16.mxu0 0
  %5436 = vmatpush2.bf16.msra.mxu0 0
  %5437 = vmatprep.mubr.bf16.mxu0 0
  %5438 = vmatmul.mubr.bf16.gmra.mxu0 %v1551
  %v5439 = vpop.f32.mrf.mxu0
  %v5440 = vadd.f32 0.0, %v5439
  %v5441 = vpop.f32.mrf.mxu0
  %v5442 = vpop.f32.mrf.mxu0
  %v5443 = vadd.f32 0.0, %v5442
  %v5444 = vpop.f32.mrf.mxu0
  %5445 = vdwg.mxu0
  %5446 = vmatprep.subr.bf16.mxu0 0
  %5447 = vmatpush1.bf16.msra.mxu0 0
  %5448 = vmatprep.subr.bf16.mxu0 0
  %5449 = vmatpush1.bf16.msra.mxu0 0
  %5450 = vmatprep.subr.bf16.mxu0 0
  %5451 = vmatpush1.bf16.msra.mxu0 0
  %5452 = vmatprep.subr.bf16.mxu0 0
  %5453 = vmatpush1.bf16.msra.mxu0 0
  %5454 = vmatprep.subr.bf16.mxu0 0
  %5455 = vmatpush1.bf16.msra.mxu0 0
  %5456 = vmatprep.subr.bf16.mxu0 0
  %5457 = vmatpush1.bf16.msra.mxu0 0
  %5458 = vmatprep.subr.bf16.mxu0 0
  %5459 = vmatpush1.bf16.msra.mxu0 0
  %5460 = vmatprep.subr.bf16.mxu0 0
  %5461 = vmatpush1.bf16.msra.mxu0 %v4774
  %5462 = vmatprep.subr.bf16.mxu0 0
  %5463 = vmatpush2.bf16.msra.mxu0 0
  %5464 = vmatprep.subr.bf16.mxu0 0
  %5465 = vmatpush2.bf16.msra.mxu0 0
  %5466 = vmatprep.subr.bf16.mxu0 0
  %5467 = vmatpush2.bf16.msra.mxu0 0
  %5468 = vmatprep.subr.bf16.mxu0 0
  %5469 = vmatpush2.bf16.msra.mxu0 0
  %5470 = vmatprep.subr.bf16.mxu0 0
  %5471 = vmatpush2.bf16.msra.mxu0 0
  %5472 = vmatprep.subr.bf16.mxu0 0
  %5473 = vmatpush2.bf16.msra.mxu0 0
  %5474 = vmatprep.subr.bf16.mxu0 0
  %5475 = vmatpush2.bf16.msra.mxu0 0
  %5476 = vmatprep.subr.bf16.mxu0 0
  %5477 = vmatpush2.bf16.msra.mxu0 0
  %5478 = vmatprep.mubr.bf16.mxu0 0
  %5479 = vmatmul.mubr.bf16.gmra.mxu0 %v1600
  %v5480 = vpop.f32.mrf.mxu0
  %v5481 = vadd.f32 0.0, %v5480
  %v5482 = vpop.f32.mrf.mxu0
  %v5483 = vpop.f32.mrf.mxu0
  %v5484 = vadd.f32 0.0, %v5483
  %v5485 = vpop.f32.mrf.mxu0
  %5486 = vdwg.mxu0
  %5487 = vmatprep.subr.bf16.mxu0 0
  %5488 = vmatpush1.bf16.msra.mxu0 0
  %5489 = vmatprep.subr.bf16.mxu0 0
  %5490 = vmatpush1.bf16.msra.mxu0 0
  %5491 = vmatprep.subr.bf16.mxu0 0
  %5492 = vmatpush1.bf16.msra.mxu0 0
  %5493 = vmatprep.subr.bf16.mxu0 0
  %5494 = vmatpush1.bf16.msra.mxu0 0
  %5495 = vmatprep.subr.bf16.mxu0 0
  %5496 = vmatpush1.bf16.msra.mxu0 0
  %5497 = vmatprep.subr.bf16.mxu0 0
  %5498 = vmatpush1.bf16.msra.mxu0 0
  %5499 = vmatprep.subr.bf16.mxu0 0
  %5500 = vmatpush1.bf16.msra.mxu0 0
  %5501 = vmatprep.subr.bf16.mxu0 0
  %5502 = vmatpush1.bf16.msra.mxu0 %v4775
  %5503 = vmatprep.subr.bf16.mxu0 0
  %5504 = vmatpush2.bf16.msra.mxu0 0
  %5505 = vmatprep.subr.bf16.mxu0 0
  %5506 = vmatpush2.bf16.msra.mxu0 0
  %5507 = vmatprep.subr.bf16.mxu0 0
  %5508 = vmatpush2.bf16.msra.mxu0 0
  %5509 = vmatprep.subr.bf16.mxu0 0
  %5510 = vmatpush2.bf16.msra.mxu0 0
  %5511 = vmatprep.subr.bf16.mxu0 0
  %5512 = vmatpush2.bf16.msra.mxu0 0
  %5513 = vmatprep.subr.bf16.mxu0 0
  %5514 = vmatpush2.bf16.msra.mxu0 0
  %5515 = vmatprep.subr.bf16.mxu0 0
  %5516 = vmatpush2.bf16.msra.mxu0 0
  %5517 = vmatprep.subr.bf16.mxu0 0
  %5518 = vmatpush2.bf16.msra.mxu0 0
  %5519 = vmatprep.mubr.bf16.mxu0 0
  %5520 = vmatmul.mubr.bf16.gmra.mxu0 %v1649
  %v5521 = vpop.f32.mrf.mxu0
  %v5522 = vadd.f32 0.0, %v5521
  %v5523 = vpop.f32.mrf.mxu0
  %v5524 = vpop.f32.mrf.mxu0
  %v5525 = vadd.f32 0.0, %v5524
  %v5526 = vpop.f32.mrf.mxu0
  %5527 = vdwg.mxu0
  %5528 = vmatprep.subr.bf16.mxu0 0
  %5529 = vmatpush1.bf16.msra.mxu0 0
  %5530 = vmatprep.subr.bf16.mxu0 0
  %5531 = vmatpush1.bf16.msra.mxu0 0
  %5532 = vmatprep.subr.bf16.mxu0 0
  %5533 = vmatpush1.bf16.msra.mxu0 0
  %5534 = vmatprep.subr.bf16.mxu0 0
  %5535 = vmatpush1.bf16.msra.mxu0 0
  %5536 = vmatprep.subr.bf16.mxu0 0
  %5537 = vmatpush1.bf16.msra.mxu0 0
  %5538 = vmatprep.subr.bf16.mxu0 0
  %5539 = vmatpush1.bf16.msra.mxu0 0
  %5540 = vmatprep.subr.bf16.mxu0 0
  %5541 = vmatpush1.bf16.msra.mxu0 0
  %5542 = vmatprep.subr.bf16.mxu0 0
  %5543 = vmatpush1.bf16.msra.mxu0 %v4776
  %5544 = vmatprep.subr.bf16.mxu0 0
  %5545 = vmatpush2.bf16.msra.mxu0 0
  %5546 = vmatprep.subr.bf16.mxu0 0
  %5547 = vmatpush2.bf16.msra.mxu0 0
  %5548 = vmatprep.subr.bf16.mxu0 0
  %5549 = vmatpush2.bf16.msra.mxu0 0
  %5550 = vmatprep.subr.bf16.mxu0 0
  %5551 = vmatpush2.bf16.msra.mxu0 0
  %5552 = vmatprep.subr.bf16.mxu0 0
  %5553 = vmatpush2.bf16.msra.mxu0 0
  %5554 = vmatprep.subr.bf16.mxu0 0
  %5555 = vmatpush2.bf16.msra.mxu0 0
  %5556 = vmatprep.subr.bf16.mxu0 0
  %5557 = vmatpush2.bf16.msra.mxu0 0
  %5558 = vmatprep.subr.bf16.mxu0 0
  %5559 = vmatpush2.bf16.msra.mxu0 0
  %5560 = vmatprep.mubr.bf16.mxu0 0
  %5561 = vmatmul.mubr.bf16.gmra.mxu0 %v1698
  %v5562 = vpop.f32.mrf.mxu0
  %v5563 = vadd.f32 0.0, %v5562
  %v5564 = vpop.f32.mrf.mxu0
  %v5565 = vpop.f32.mrf.mxu0
  %v5566 = vadd.f32 0.0, %v5565
  %v5567 = vpop.f32.mrf.mxu0
  %5568 = vdwg.mxu0
  %5569 = vmatprep.subr.bf16.mxu0 0
  %5570 = vmatpush1.bf16.msra.mxu0 0
  %5571 = vmatprep.subr.bf16.mxu0 0
  %5572 = vmatpush1.bf16.msra.mxu0 0
  %5573 = vmatprep.subr.bf16.mxu0 0
  %5574 = vmatpush1.bf16.msra.mxu0 0
  %5575 = vmatprep.subr.bf16.mxu0 0
  %5576 = vmatpush1.bf16.msra.mxu0 0
  %5577 = vmatprep.subr.bf16.mxu0 0
  %5578 = vmatpush1.bf16.msra.mxu0 0
  %5579 = vmatprep.subr.bf16.mxu0 0
  %5580 = vmatpush1.bf16.msra.mxu0 0
  %5581 = vmatprep.subr.bf16.mxu0 0
  %5582 = vmatpush1.bf16.msra.mxu0 0
  %5583 = vmatprep.subr.bf16.mxu0 0
  %5584 = vmatpush1.bf16.msra.mxu0 %v4777
  %5585 = vmatprep.subr.bf16.mxu0 0
  %5586 = vmatpush2.bf16.msra.mxu0 0
  %5587 = vmatprep.subr.bf16.mxu0 0
  %5588 = vmatpush2.bf16.msra.mxu0 0
  %5589 = vmatprep.subr.bf16.mxu0 0
  %5590 = vmatpush2.bf16.msra.mxu0 0
  %5591 = vmatprep.subr.bf16.mxu0 0
  %5592 = vmatpush2.bf16.msra.mxu0 0
  %5593 = vmatprep.subr.bf16.mxu0 0
  %5594 = vmatpush2.bf16.msra.mxu0 0
  %5595 = vmatprep.subr.bf16.mxu0 0
  %5596 = vmatpush2.bf16.msra.mxu0 0
  %5597 = vmatprep.subr.bf16.mxu0 0
  %5598 = vmatpush2.bf16.msra.mxu0 0
  %5599 = vmatprep.subr.bf16.mxu0 0
  %5600 = vmatpush2.bf16.msra.mxu0 0
  %5601 = vmatprep.mubr.bf16.mxu0 0
  %5602 = vmatmul.mubr.bf16.gmra.mxu0 %v1747
  %v5603 = vpop.f32.mrf.mxu0
  %v5604 = vadd.f32 0.0, %v5603
  %v5605 = vpop.f32.mrf.mxu0
  %v5606 = vpop.f32.mrf.mxu0
  %v5607 = vadd.f32 0.0, %v5606
  %v5608 = vpop.f32.mrf.mxu0
  %5609 = vdwg.mxu0
  %5610 = vmatprep.subr.bf16.mxu0 0
  %5611 = vmatpush1.bf16.msra.mxu0 0
  %5612 = vmatprep.subr.bf16.mxu0 0
  %5613 = vmatpush1.bf16.msra.mxu0 0
  %5614 = vmatprep.subr.bf16.mxu0 0
  %5615 = vmatpush1.bf16.msra.mxu0 0
  %5616 = vmatprep.subr.bf16.mxu0 0
  %5617 = vmatpush1.bf16.msra.mxu0 0
  %5618 = vmatprep.subr.bf16.mxu0 0
  %5619 = vmatpush1.bf16.msra.mxu0 0
  %5620 = vmatprep.subr.bf16.mxu0 0
  %5621 = vmatpush1.bf16.msra.mxu0 0
  %5622 = vmatprep.subr.bf16.mxu0 0
  %5623 = vmatpush1.bf16.msra.mxu0 0
  %5624 = vmatprep.subr.bf16.mxu0 0
  %5625 = vmatpush1.bf16.msra.mxu0 %v4778
  %5626 = vmatprep.subr.bf16.mxu0 0
  %5627 = vmatpush2.bf16.msra.mxu0 0
  %5628 = vmatprep.subr.bf16.mxu0 0
  %5629 = vmatpush2.bf16.msra.mxu0 0
  %5630 = vmatprep.subr.bf16.mxu0 0
  %5631 = vmatpush2.bf16.msra.mxu0 0
  %5632 = vmatprep.subr.bf16.mxu0 0
  %5633 = vmatpush2.bf16.msra.mxu0 0
  %5634 = vmatprep.subr.bf16.mxu0 0
  %5635 = vmatpush2.bf16.msra.mxu0 0
  %5636 = vmatprep.subr.bf16.mxu0 0
  %5637 = vmatpush2.bf16.msra.mxu0 0
  %5638 = vmatprep.subr.bf16.mxu0 0
  %5639 = vmatpush2.bf16.msra.mxu0 0
  %5640 = vmatprep.subr.bf16.mxu0 0
  %5641 = vmatpush2.bf16.msra.mxu0 0
  %5642 = vmatprep.mubr.bf16.mxu0 0
  %5643 = vmatmul.mubr.bf16.gmra.mxu0 %v1796
  %v5644 = vpop.f32.mrf.mxu0
  %v5645 = vadd.f32 0.0, %v5644
  %v5646 = vpop.f32.mrf.mxu0
  %v5647 = vpop.f32.mrf.mxu0
  %v5648 = vadd.f32 0.0, %v5647
  %v5649 = vpop.f32.mrf.mxu0
  %5650 = vdwg.mxu0
  %5651 = vmatprep.subr.bf16.mxu0 0
  %5652 = vmatpush1.bf16.msra.mxu0 0
  %5653 = vmatprep.subr.bf16.mxu0 0
  %5654 = vmatpush1.bf16.msra.mxu0 0
  %5655 = vmatprep.subr.bf16.mxu0 0
  %5656 = vmatpush1.bf16.msra.mxu0 0
  %5657 = vmatprep.subr.bf16.mxu0 0
  %5658 = vmatpush1.bf16.msra.mxu0 0
  %5659 = vmatprep.subr.bf16.mxu0 0
  %5660 = vmatpush1.bf16.msra.mxu0 0
  %5661 = vmatprep.subr.bf16.mxu0 0
  %5662 = vmatpush1.bf16.msra.mxu0 0
  %5663 = vmatprep.subr.bf16.mxu0 0
  %5664 = vmatpush1.bf16.msra.mxu0 0
  %5665 = vmatprep.subr.bf16.mxu0 0
  %5666 = vmatpush1.bf16.msra.mxu0 %v4779
  %5667 = vmatprep.subr.bf16.mxu0 0
  %5668 = vmatpush2.bf16.msra.mxu0 0
  %5669 = vmatprep.subr.bf16.mxu0 0
  %5670 = vmatpush2.bf16.msra.mxu0 0
  %5671 = vmatprep.subr.bf16.mxu0 0
  %5672 = vmatpush2.bf16.msra.mxu0 0
  %5673 = vmatprep.subr.bf16.mxu0 0
  %5674 = vmatpush2.bf16.msra.mxu0 0
  %5675 = vmatprep.subr.bf16.mxu0 0
  %5676 = vmatpush2.bf16.msra.mxu0 0
  %5677 = vmatprep.subr.bf16.mxu0 0
  %5678 = vmatpush2.bf16.msra.mxu0 0
  %5679 = vmatprep.subr.bf16.mxu0 0
  %5680 = vmatpush2.bf16.msra.mxu0 0
  %5681 = vmatprep.subr.bf16.mxu0 0
  %5682 = vmatpush2.bf16.msra.mxu0 0
  %5683 = vmatprep.mubr.bf16.mxu0 0
  %5684 = vmatmul.mubr.bf16.gmra.mxu0 %v1845
  %v5685 = vpop.f32.mrf.mxu0
  %v5686 = vadd.f32 0.0, %v5685
  %v5687 = vpop.f32.mrf.mxu0
  %v5688 = vpop.f32.mrf.mxu0
  %v5689 = vadd.f32 0.0, %v5688
  %v5690 = vpop.f32.mrf.mxu0
  %5691 = vdwg.mxu0
  %5692 = vmatprep.subr.bf16.mxu0 0
  %5693 = vmatpush1.bf16.msra.mxu0 0
  %5694 = vmatprep.subr.bf16.mxu0 0
  %5695 = vmatpush1.bf16.msra.mxu0 0
  %5696 = vmatprep.subr.bf16.mxu0 0
  %5697 = vmatpush1.bf16.msra.mxu0 0
  %5698 = vmatprep.subr.bf16.mxu0 0
  %5699 = vmatpush1.bf16.msra.mxu0 0
  %5700 = vmatprep.subr.bf16.mxu0 0
  %5701 = vmatpush1.bf16.msra.mxu0 0
  %5702 = vmatprep.subr.bf16.mxu0 0
  %5703 = vmatpush1.bf16.msra.mxu0 0
  %5704 = vmatprep.subr.bf16.mxu0 0
  %5705 = vmatpush1.bf16.msra.mxu0 0
  %5706 = vmatprep.subr.bf16.mxu0 0
  %5707 = vmatpush1.bf16.msra.mxu0 %v4780
  %5708 = vmatprep.subr.bf16.mxu0 0
  %5709 = vmatpush2.bf16.msra.mxu0 0
  %5710 = vmatprep.subr.bf16.mxu0 0
  %5711 = vmatpush2.bf16.msra.mxu0 0
  %5712 = vmatprep.subr.bf16.mxu0 0
  %5713 = vmatpush2.bf16.msra.mxu0 0
  %5714 = vmatprep.subr.bf16.mxu0 0
  %5715 = vmatpush2.bf16.msra.mxu0 0
  %5716 = vmatprep.subr.bf16.mxu0 0
  %5717 = vmatpush2.bf16.msra.mxu0 0
  %5718 = vmatprep.subr.bf16.mxu0 0
  %5719 = vmatpush2.bf16.msra.mxu0 0
  %5720 = vmatprep.subr.bf16.mxu0 0
  %5721 = vmatpush2.bf16.msra.mxu0 0
  %5722 = vmatprep.subr.bf16.mxu0 0
  %5723 = vmatpush2.bf16.msra.mxu0 0
  %5724 = vmatprep.mubr.bf16.mxu0 0
  %5725 = vmatmul.mubr.bf16.gmra.mxu0 %v1894
  %v5726 = vpop.f32.mrf.mxu0
  %v5727 = vadd.f32 0.0, %v5726
  %v5728 = vpop.f32.mrf.mxu0
  %v5729 = vpop.f32.mrf.mxu0
  %v5730 = vadd.f32 0.0, %v5729
  %v5731 = vpop.f32.mrf.mxu0
  %5732 = vdwg.mxu0
  %5733 = vmatprep.subr.bf16.mxu0 0
  %5734 = vmatpush1.bf16.msra.mxu0 0
  %5735 = vmatprep.subr.bf16.mxu0 0
  %5736 = vmatpush1.bf16.msra.mxu0 0
  %5737 = vmatprep.subr.bf16.mxu0 0
  %5738 = vmatpush1.bf16.msra.mxu0 0
  %5739 = vmatprep.subr.bf16.mxu0 0
  %5740 = vmatpush1.bf16.msra.mxu0 0
  %5741 = vmatprep.subr.bf16.mxu0 0
  %5742 = vmatpush1.bf16.msra.mxu0 0
  %5743 = vmatprep.subr.bf16.mxu0 0
  %5744 = vmatpush1.bf16.msra.mxu0 0
  %5745 = vmatprep.subr.bf16.mxu0 0
  %5746 = vmatpush1.bf16.msra.mxu0 0
  %5747 = vmatprep.subr.bf16.mxu0 0
  %5748 = vmatpush1.bf16.msra.mxu0 %v4781
  %5749 = vmatprep.subr.bf16.mxu0 0
  %5750 = vmatpush2.bf16.msra.mxu0 0
  %5751 = vmatprep.subr.bf16.mxu0 0
  %5752 = vmatpush2.bf16.msra.mxu0 0
  %5753 = vmatprep.subr.bf16.mxu0 0
  %5754 = vmatpush2.bf16.msra.mxu0 0
  %5755 = vmatprep.subr.bf16.mxu0 0
  %5756 = vmatpush2.bf16.msra.mxu0 0
  %5757 = vmatprep.subr.bf16.mxu0 0
  %5758 = vmatpush2.bf16.msra.mxu0 0
  %5759 = vmatprep.subr.bf16.mxu0 0
  %5760 = vmatpush2.bf16.msra.mxu0 0
  %5761 = vmatprep.subr.bf16.mxu0 0
  %5762 = vmatpush2.bf16.msra.mxu0 0
  %5763 = vmatprep.subr.bf16.mxu0 0
  %5764 = vmatpush2.bf16.msra.mxu0 0
  %5765 = vmatprep.mubr.bf16.mxu0 0
  %5766 = vmatmul.mubr.bf16.gmra.mxu0 %v1943
  %v5767 = vpop.f32.mrf.mxu0
  %v5768 = vadd.f32 0.0, %v5767
  %v5769 = vpop.f32.mrf.mxu0
  %v5770 = vpop.f32.mrf.mxu0
  %v5771 = vadd.f32 0.0, %v5770
  %v5772 = vpop.f32.mrf.mxu0
  %5773 = vdwg.mxu0
  %5774 = vmatprep.subr.bf16.mxu0 0
  %5775 = vmatpush1.bf16.msra.mxu0 0
  %5776 = vmatprep.subr.bf16.mxu0 0
  %5777 = vmatpush1.bf16.msra.mxu0 0
  %5778 = vmatprep.subr.bf16.mxu0 0
  %5779 = vmatpush1.bf16.msra.mxu0 0
  %5780 = vmatprep.subr.bf16.mxu0 0
  %5781 = vmatpush1.bf16.msra.mxu0 0
  %5782 = vmatprep.subr.bf16.mxu0 0
  %5783 = vmatpush1.bf16.msra.mxu0 0
  %5784 = vmatprep.subr.bf16.mxu0 0
  %5785 = vmatpush1.bf16.msra.mxu0 0
  %5786 = vmatprep.subr.bf16.mxu0 0
  %5787 = vmatpush1.bf16.msra.mxu0 0
  %5788 = vmatprep.subr.bf16.mxu0 0
  %5789 = vmatpush1.bf16.msra.mxu0 %v4782
  %5790 = vmatprep.subr.bf16.mxu0 0
  %5791 = vmatpush2.bf16.msra.mxu0 0
  %5792 = vmatprep.subr.bf16.mxu0 0
  %5793 = vmatpush2.bf16.msra.mxu0 0
  %5794 = vmatprep.subr.bf16.mxu0 0
  %5795 = vmatpush2.bf16.msra.mxu0 0
  %5796 = vmatprep.subr.bf16.mxu0 0
  %5797 = vmatpush2.bf16.msra.mxu0 0
  %5798 = vmatprep.subr.bf16.mxu0 0
  %5799 = vmatpush2.bf16.msra.mxu0 0
  %5800 = vmatprep.subr.bf16.mxu0 0
  %5801 = vmatpush2.bf16.msra.mxu0 0
  %5802 = vmatprep.subr.bf16.mxu0 0
  %5803 = vmatpush2.bf16.msra.mxu0 0
  %5804 = vmatprep.subr.bf16.mxu0 0
  %5805 = vmatpush2.bf16.msra.mxu0 0
  %5806 = vmatprep.mubr.bf16.mxu0 0
  %5807 = vmatmul.mubr.bf16.gmra.mxu0 %v1992
  %v5808 = vpop.f32.mrf.mxu0
  %v5809 = vadd.f32 0.0, %v5808
  %v5810 = vpop.f32.mrf.mxu0
  %v5811 = vpop.f32.mrf.mxu0
  %v5812 = vadd.f32 0.0, %v5811
  %v5813 = vpop.f32.mrf.mxu0
  %5814 = vdwg.mxu0
  %5815 = vmatprep.subr.bf16.mxu0 0
  %5816 = vmatpush1.bf16.msra.mxu0 0
  %5817 = vmatprep.subr.bf16.mxu0 0
  %5818 = vmatpush1.bf16.msra.mxu0 0
  %5819 = vmatprep.subr.bf16.mxu0 0
  %5820 = vmatpush1.bf16.msra.mxu0 0
  %5821 = vmatprep.subr.bf16.mxu0 0
  %5822 = vmatpush1.bf16.msra.mxu0 0
  %5823 = vmatprep.subr.bf16.mxu0 0
  %5824 = vmatpush1.bf16.msra.mxu0 0
  %5825 = vmatprep.subr.bf16.mxu0 0
  %5826 = vmatpush1.bf16.msra.mxu0 0
  %5827 = vmatprep.subr.bf16.mxu0 0
  %5828 = vmatpush1.bf16.msra.mxu0 0
  %5829 = vmatprep.subr.bf16.mxu0 0
  %5830 = vmatpush1.bf16.msra.mxu0 %v4783
  %5831 = vmatprep.subr.bf16.mxu0 0
  %5832 = vmatpush2.bf16.msra.mxu0 0
  %5833 = vmatprep.subr.bf16.mxu0 0
  %5834 = vmatpush2.bf16.msra.mxu0 0
  %5835 = vmatprep.subr.bf16.mxu0 0
  %5836 = vmatpush2.bf16.msra.mxu0 0
  %5837 = vmatprep.subr.bf16.mxu0 0
  %5838 = vmatpush2.bf16.msra.mxu0 0
  %5839 = vmatprep.subr.bf16.mxu0 0
  %5840 = vmatpush2.bf16.msra.mxu0 0
  %5841 = vmatprep.subr.bf16.mxu0 0
  %5842 = vmatpush2.bf16.msra.mxu0 0
  %5843 = vmatprep.subr.bf16.mxu0 0
  %5844 = vmatpush2.bf16.msra.mxu0 0
  %5845 = vmatprep.subr.bf16.mxu0 0
  %5846 = vmatpush2.bf16.msra.mxu0 0
  %5847 = vmatprep.mubr.bf16.mxu0 0
  %5848 = vmatmul.mubr.bf16.gmra.mxu0 %v2041
  %v5849 = vpop.f32.mrf.mxu0
  %v5850 = vadd.f32 0.0, %v5849
  %v5851 = vpop.f32.mrf.mxu0
  %v5852 = vpop.f32.mrf.mxu0
  %v5853 = vadd.f32 0.0, %v5852
  %v5854 = vpop.f32.mrf.mxu0
  %5855 = vdwg.mxu0
  %5856 = vmatprep.subr.bf16.mxu0 0
  %5857 = vmatpush1.bf16.msra.mxu0 0
  %5858 = vmatprep.subr.bf16.mxu0 0
  %5859 = vmatpush1.bf16.msra.mxu0 0
  %5860 = vmatprep.subr.bf16.mxu0 0
  %5861 = vmatpush1.bf16.msra.mxu0 0
  %5862 = vmatprep.subr.bf16.mxu0 0
  %5863 = vmatpush1.bf16.msra.mxu0 0
  %5864 = vmatprep.subr.bf16.mxu0 0
  %5865 = vmatpush1.bf16.msra.mxu0 0
  %5866 = vmatprep.subr.bf16.mxu0 0
  %5867 = vmatpush1.bf16.msra.mxu0 0
  %5868 = vmatprep.subr.bf16.mxu0 0
  %5869 = vmatpush1.bf16.msra.mxu0 0
  %5870 = vmatprep.subr.bf16.mxu0 0
  %5871 = vmatpush1.bf16.msra.mxu0 %v4784
  %5872 = vmatprep.subr.bf16.mxu0 0
  %5873 = vmatpush2.bf16.msra.mxu0 0
  %5874 = vmatprep.subr.bf16.mxu0 0
  %5875 = vmatpush2.bf16.msra.mxu0 0
  %5876 = vmatprep.subr.bf16.mxu0 0
  %5877 = vmatpush2.bf16.msra.mxu0 0
  %5878 = vmatprep.subr.bf16.mxu0 0
  %5879 = vmatpush2.bf16.msra.mxu0 0
  %5880 = vmatprep.subr.bf16.mxu0 0
  %5881 = vmatpush2.bf16.msra.mxu0 0
  %5882 = vmatprep.subr.bf16.mxu0 0
  %5883 = vmatpush2.bf16.msra.mxu0 0
  %5884 = vmatprep.subr.bf16.mxu0 0
  %5885 = vmatpush2.bf16.msra.mxu0 0
  %5886 = vmatprep.subr.bf16.mxu0 0
  %5887 = vmatpush2.bf16.msra.mxu0 0
  %5888 = vmatprep.mubr.bf16.mxu0 0
  %5889 = vmatmul.mubr.bf16.gmra.mxu0 %v2090
  %v5890 = vpop.f32.mrf.mxu0
  %v5891 = vadd.f32 0.0, %v5890
  %v5892 = vpop.f32.mrf.mxu0
  %v5893 = vpop.f32.mrf.mxu0
  %v5894 = vadd.f32 0.0, %v5893
  %v5895 = vpop.f32.mrf.mxu0
  %5896 = vdwg.mxu0
  %5897 = vmatprep.subr.bf16.mxu0 0
  %5898 = vmatpush1.bf16.msra.mxu0 0
  %5899 = vmatprep.subr.bf16.mxu0 0
  %5900 = vmatpush1.bf16.msra.mxu0 0
  %5901 = vmatprep.subr.bf16.mxu0 0
  %5902 = vmatpush1.bf16.msra.mxu0 0
  %5903 = vmatprep.subr.bf16.mxu0 0
  %5904 = vmatpush1.bf16.msra.mxu0 0
  %5905 = vmatprep.subr.bf16.mxu0 0
  %5906 = vmatpush1.bf16.msra.mxu0 0
  %5907 = vmatprep.subr.bf16.mxu0 0
  %5908 = vmatpush1.bf16.msra.mxu0 0
  %5909 = vmatprep.subr.bf16.mxu0 0
  %5910 = vmatpush1.bf16.msra.mxu0 0
  %5911 = vmatprep.subr.bf16.mxu0 0
  %5912 = vmatpush1.bf16.msra.mxu0 %v4785
  %5913 = vmatprep.subr.bf16.mxu0 0
  %5914 = vmatpush2.bf16.msra.mxu0 0
  %5915 = vmatprep.subr.bf16.mxu0 0
  %5916 = vmatpush2.bf16.msra.mxu0 0
  %5917 = vmatprep.subr.bf16.mxu0 0
  %5918 = vmatpush2.bf16.msra.mxu0 0
  %5919 = vmatprep.subr.bf16.mxu0 0
  %5920 = vmatpush2.bf16.msra.mxu0 0
  %5921 = vmatprep.subr.bf16.mxu0 0
  %5922 = vmatpush2.bf16.msra.mxu0 0
  %5923 = vmatprep.subr.bf16.mxu0 0
  %5924 = vmatpush2.bf16.msra.mxu0 0
  %5925 = vmatprep.subr.bf16.mxu0 0
  %5926 = vmatpush2.bf16.msra.mxu0 0
  %5927 = vmatprep.subr.bf16.mxu0 0
  %5928 = vmatpush2.bf16.msra.mxu0 0
  %5929 = vmatprep.mubr.bf16.mxu0 0
  %5930 = vmatmul.mubr.bf16.gmra.mxu0 %v2139
  %v5931 = vpop.f32.mrf.mxu0
  %v5932 = vadd.f32 0.0, %v5931
  %v5933 = vpop.f32.mrf.mxu0
  %v5934 = vpop.f32.mrf.mxu0
  %v5935 = vadd.f32 0.0, %v5934
  %v5936 = vpop.f32.mrf.mxu0
  %5937 = vdwg.mxu0
  %5938 = vmatprep.subr.bf16.mxu0 0
  %5939 = vmatpush1.bf16.msra.mxu0 0
  %5940 = vmatprep.subr.bf16.mxu0 0
  %5941 = vmatpush1.bf16.msra.mxu0 0
  %5942 = vmatprep.subr.bf16.mxu0 0
  %5943 = vmatpush1.bf16.msra.mxu0 0
  %5944 = vmatprep.subr.bf16.mxu0 0
  %5945 = vmatpush1.bf16.msra.mxu0 0
  %5946 = vmatprep.subr.bf16.mxu0 0
  %5947 = vmatpush1.bf16.msra.mxu0 0
  %5948 = vmatprep.subr.bf16.mxu0 0
  %5949 = vmatpush1.bf16.msra.mxu0 0
  %5950 = vmatprep.subr.bf16.mxu0 0
  %5951 = vmatpush1.bf16.msra.mxu0 0
  %5952 = vmatprep.subr.bf16.mxu0 0
  %5953 = vmatpush1.bf16.msra.mxu0 %v4786
  %5954 = vmatprep.subr.bf16.mxu0 0
  %5955 = vmatpush2.bf16.msra.mxu0 0
  %5956 = vmatprep.subr.bf16.mxu0 0
  %5957 = vmatpush2.bf16.msra.mxu0 0
  %5958 = vmatprep.subr.bf16.mxu0 0
  %5959 = vmatpush2.bf16.msra.mxu0 0
  %5960 = vmatprep.subr.bf16.mxu0 0
  %5961 = vmatpush2.bf16.msra.mxu0 0
  %5962 = vmatprep.subr.bf16.mxu0 0
  %5963 = vmatpush2.bf16.msra.mxu0 0
  %5964 = vmatprep.subr.bf16.mxu0 0
  %5965 = vmatpush2.bf16.msra.mxu0 0
  %5966 = vmatprep.subr.bf16.mxu0 0
  %5967 = vmatpush2.bf16.msra.mxu0 0
  %5968 = vmatprep.subr.bf16.mxu0 0
  %5969 = vmatpush2.bf16.msra.mxu0 0
  %5970 = vmatprep.mubr.bf16.mxu0 0
  %5971 = vmatmul.mubr.bf16.gmra.mxu0 %v2188
  %v5972 = vpop.f32.mrf.mxu0
  %v5973 = vadd.f32 0.0, %v5972
  %v5974 = vpop.f32.mrf.mxu0
  %v5975 = vpop.f32.mrf.mxu0
  %v5976 = vadd.f32 0.0, %v5975
  %v5977 = vpop.f32.mrf.mxu0
  %5978 = vdwg.mxu0
  %5979 = vmatprep.subr.bf16.mxu0 0
  %5980 = vmatpush1.bf16.msra.mxu0 0
  %5981 = vmatprep.subr.bf16.mxu0 0
  %5982 = vmatpush1.bf16.msra.mxu0 0
  %5983 = vmatprep.subr.bf16.mxu0 0
  %5984 = vmatpush1.bf16.msra.mxu0 0
  %5985 = vmatprep.subr.bf16.mxu0 0
  %5986 = vmatpush1.bf16.msra.mxu0 0
  %5987 = vmatprep.subr.bf16.mxu0 0
  %5988 = vmatpush1.bf16.msra.mxu0 0
  %5989 = vmatprep.subr.bf16.mxu0 0
  %5990 = vmatpush1.bf16.msra.mxu0 0
  %5991 = vmatprep.subr.bf16.mxu0 0
  %5992 = vmatpush1.bf16.msra.mxu0 0
  %5993 = vmatprep.subr.bf16.mxu0 0
  %5994 = vmatpush1.bf16.msra.mxu0 %v4787
  %5995 = vmatprep.subr.bf16.mxu0 0
  %5996 = vmatpush2.bf16.msra.mxu0 0
  %5997 = vmatprep.subr.bf16.mxu0 0
  %5998 = vmatpush2.bf16.msra.mxu0 0
  %5999 = vmatprep.subr.bf16.mxu0 0
  %6000 = vmatpush2.bf16.msra.mxu0 0
  %6001 = vmatprep.subr.bf16.mxu0 0
  %6002 = vmatpush2.bf16.msra.mxu0 0
  %6003 = vmatprep.subr.bf16.mxu0 0
  %6004 = vmatpush2.bf16.msra.mxu0 0
  %6005 = vmatprep.subr.bf16.mxu0 0
  %6006 = vmatpush2.bf16.msra.mxu0 0
  %6007 = vmatprep.subr.bf16.mxu0 0
  %6008 = vmatpush2.bf16.msra.mxu0 0
  %6009 = vmatprep.subr.bf16.mxu0 0
  %6010 = vmatpush2.bf16.msra.mxu0 0
  %6011 = vmatprep.mubr.bf16.mxu0 0
  %6012 = vmatmul.mubr.bf16.gmra.mxu0 %v2237
  %v6013 = vpop.f32.mrf.mxu0
  %v6014 = vadd.f32 0.0, %v6013
  %v6015 = vpop.f32.mrf.mxu0
  %v6016 = vpop.f32.mrf.mxu0
  %v6017 = vadd.f32 0.0, %v6016
  %v6018 = vpop.f32.mrf.mxu0
  %6019 = vdwg.mxu0
  %6020 = vmatprep.subr.bf16.mxu0 0
  %6021 = vmatpush1.bf16.msra.mxu0 0
  %6022 = vmatprep.subr.bf16.mxu0 0
  %6023 = vmatpush1.bf16.msra.mxu0 0
  %6024 = vmatprep.subr.bf16.mxu0 0
  %6025 = vmatpush1.bf16.msra.mxu0 0
  %6026 = vmatprep.subr.bf16.mxu0 0
  %6027 = vmatpush1.bf16.msra.mxu0 0
  %6028 = vmatprep.subr.bf16.mxu0 0
  %6029 = vmatpush1.bf16.msra.mxu0 0
  %6030 = vmatprep.subr.bf16.mxu0 0
  %6031 = vmatpush1.bf16.msra.mxu0 0
  %6032 = vmatprep.subr.bf16.mxu0 0
  %6033 = vmatpush1.bf16.msra.mxu0 0
  %6034 = vmatprep.subr.bf16.mxu0 0
  %6035 = vmatpush1.bf16.msra.mxu0 %v4788
  %6036 = vmatprep.subr.bf16.mxu0 0
  %6037 = vmatpush2.bf16.msra.mxu0 0
  %6038 = vmatprep.subr.bf16.mxu0 0
  %6039 = vmatpush2.bf16.msra.mxu0 0
  %6040 = vmatprep.subr.bf16.mxu0 0
  %6041 = vmatpush2.bf16.msra.mxu0 0
  %6042 = vmatprep.subr.bf16.mxu0 0
  %6043 = vmatpush2.bf16.msra.mxu0 0
  %6044 = vmatprep.subr.bf16.mxu0 0
  %6045 = vmatpush2.bf16.msra.mxu0 0
  %6046 = vmatprep.subr.bf16.mxu0 0
  %6047 = vmatpush2.bf16.msra.mxu0 0
  %6048 = vmatprep.subr.bf16.mxu0 0
  %6049 = vmatpush2.bf16.msra.mxu0 0
  %6050 = vmatprep.subr.bf16.mxu0 0
  %6051 = vmatpush2.bf16.msra.mxu0 0
  %6052 = vmatprep.mubr.bf16.mxu0 0
  %6053 = vmatmul.mubr.bf16.gmra.mxu0 %v2286
  %v6054 = vpop.f32.mrf.mxu0
  %v6055 = vadd.f32 0.0, %v6054
  %v6056 = vpop.f32.mrf.mxu0
  %v6057 = vpop.f32.mrf.mxu0
  %v6058 = vadd.f32 0.0, %v6057
  %v6059 = vpop.f32.mrf.mxu0
  %6060 = vdwg.mxu0
  %6061 = vmatprep.subr.bf16.mxu0 0
  %6062 = vmatpush1.bf16.msra.mxu0 0
  %6063 = vmatprep.subr.bf16.mxu0 0
  %6064 = vmatpush1.bf16.msra.mxu0 0
  %6065 = vmatprep.subr.bf16.mxu0 0
  %6066 = vmatpush1.bf16.msra.mxu0 0
  %6067 = vmatprep.subr.bf16.mxu0 0
  %6068 = vmatpush1.bf16.msra.mxu0 0
  %6069 = vmatprep.subr.bf16.mxu0 0
  %6070 = vmatpush1.bf16.msra.mxu0 0
  %6071 = vmatprep.subr.bf16.mxu0 0
  %6072 = vmatpush1.bf16.msra.mxu0 0
  %6073 = vmatprep.subr.bf16.mxu0 0
  %6074 = vmatpush1.bf16.msra.mxu0 0
  %6075 = vmatprep.subr.bf16.mxu0 0
  %6076 = vmatpush1.bf16.msra.mxu0 %v4789
  %6077 = vmatprep.subr.bf16.mxu0 0
  %6078 = vmatpush2.bf16.msra.mxu0 0
  %6079 = vmatprep.subr.bf16.mxu0 0
  %6080 = vmatpush2.bf16.msra.mxu0 0
  %6081 = vmatprep.subr.bf16.mxu0 0
  %6082 = vmatpush2.bf16.msra.mxu0 0
  %6083 = vmatprep.subr.bf16.mxu0 0
  %6084 = vmatpush2.bf16.msra.mxu0 0
  %6085 = vmatprep.subr.bf16.mxu0 0
  %6086 = vmatpush2.bf16.msra.mxu0 0
  %6087 = vmatprep.subr.bf16.mxu0 0
  %6088 = vmatpush2.bf16.msra.mxu0 0
  %6089 = vmatprep.subr.bf16.mxu0 0
  %6090 = vmatpush2.bf16.msra.mxu0 0
  %6091 = vmatprep.subr.bf16.mxu0 0
  %6092 = vmatpush2.bf16.msra.mxu0 0
  %6093 = vmatprep.mubr.bf16.mxu0 0
  %6094 = vmatmul.mubr.bf16.gmra.mxu0 %v2335
  %v6095 = vpop.f32.mrf.mxu0
  %v6096 = vadd.f32 0.0, %v6095
  %v6097 = vpop.f32.mrf.mxu0
  %v6098 = vpop.f32.mrf.mxu0
  %v6099 = vadd.f32 0.0, %v6098
  %v6100 = vpop.f32.mrf.mxu0
  %6101 = vdwg.mxu0
  %v6102 = vld [vmem:[%s3 + $0x10] sm:$0x1]
  %v6103 = vlaneseq
  %v6104 = vshrl.u32 %v6103, 7
  %v6105 = vsub.s32 0, %v6104
  %v6106 = vrot.slane %v6102, %v6105
  %v6107 = vadd.f32 %v4825, %v6106
  %v6108 = vadd.f32 %v4828, %v6106
  %v6109 = vadd.f32 %v4866, %v6106
  %v6110 = vadd.f32 %v4869, %v6106
  %v6111 = vadd.f32 %v4907, %v6106
  %v6112 = vadd.f32 %v4910, %v6106
  %v6113 = vadd.f32 %v4948, %v6106
  %v6114 = vadd.f32 %v4951, %v6106
  %v6115 = vadd.f32 %v4989, %v6106
  %v6116 = vadd.f32 %v4992, %v6106
  %v6117 = vadd.f32 %v5030, %v6106
  %v6118 = vadd.f32 %v5033, %v6106
  %v6119 = vadd.f32 %v5071, %v6106
  %v6120 = vadd.f32 %v5074, %v6106
  %v6121 = vadd.f32 %v5112, %v6106
  %v6122 = vadd.f32 %v5115, %v6106
  %v6123 = vadd.f32 %v5153, %v6106
  %v6124 = vadd.f32 %v5156, %v6106
  %v6125 = vadd.f32 %v5194, %v6106
  %v6126 = vadd.f32 %v5197, %v6106
  %v6127 = vadd.f32 %v5235, %v6106
  %v6128 = vadd.f32 %v5238, %v6106
  %v6129 = vadd.f32 %v5276, %v6106
  %v6130 = vadd.f32 %v5279, %v6106
  %v6131 = vadd.f32 %v5317, %v6106
  %v6132 = vadd.f32 %v5320, %v6106
  %v6133 = vadd.f32 %v5358, %v6106
  %v6134 = vadd.f32 %v5361, %v6106
  %v6135 = vadd.f32 %v5399, %v6106
  %v6136 = vadd.f32 %v5402, %v6106
  %v6137 = vadd.f32 %v5440, %v6106
  %v6138 = vadd.f32 %v5443, %v6106
  %v6139 = vadd.f32 %v5481, %v6106
  %v6140 = vadd.f32 %v5484, %v6106
  %v6141 = vadd.f32 %v5522, %v6106
  %v6142 = vadd.f32 %v5525, %v6106
  %v6143 = vadd.f32 %v5563, %v6106
  %v6144 = vadd.f32 %v5566, %v6106
  %v6145 = vadd.f32 %v5604, %v6106
  %v6146 = vadd.f32 %v5607, %v6106
  %v6147 = vadd.f32 %v5645, %v6106
  %v6148 = vadd.f32 %v5648, %v6106
  %v6149 = vadd.f32 %v5686, %v6106
  %v6150 = vadd.f32 %v5689, %v6106
  %v6151 = vadd.f32 %v5727, %v6106
  %v6152 = vadd.f32 %v5730, %v6106
  %v6153 = vadd.f32 %v5768, %v6106
  %v6154 = vadd.f32 %v5771, %v6106
  %v6155 = vadd.f32 %v5809, %v6106
  %v6156 = vadd.f32 %v5812, %v6106
  %v6157 = vadd.f32 %v5850, %v6106
  %v6158 = vadd.f32 %v5853, %v6106
  %v6159 = vadd.f32 %v5891, %v6106
  %v6160 = vadd.f32 %v5894, %v6106
  %v6161 = vadd.f32 %v5932, %v6106
  %v6162 = vadd.f32 %v5935, %v6106
  %v6163 = vadd.f32 %v5973, %v6106
  %v6164 = vadd.f32 %v5976, %v6106
  %v6165 = vadd.f32 %v6014, %v6106
  %v6166 = vadd.f32 %v6017, %v6106
  %v6167 = vadd.f32 %v6055, %v6106
  %v6168 = vadd.f32 %v6058, %v6106
  %v6169 = vadd.f32 %v6096, %v6106
  %v6170 = vadd.f32 %v6099, %v6106
  %v6171 = vpack.c.bf16 %v6108, %v6107
  %v6172 = vpack.c.bf16 %v6110, %v6109
  %v6173 = vpack.c.bf16 %v6112, %v6111
  %v6174 = vpack.c.bf16 %v6114, %v6113
  %v6175 = vpack.c.bf16 %v6116, %v6115
  %v6176 = vpack.c.bf16 %v6118, %v6117
  %v6177 = vpack.c.bf16 %v6120, %v6119
  %v6178 = vpack.c.bf16 %v6122, %v6121
  %v6179 = vpack.c.bf16 %v6124, %v6123
  %v6180 = vpack.c.bf16 %v6126, %v6125
  %v6181 = vpack.c.bf16 %v6128, %v6127
  %v6182 = vpack.c.bf16 %v6130, %v6129
  %v6183 = vpack.c.bf16 %v6132, %v6131
  %v6184 = vpack.c.bf16 %v6134, %v6133
  %v6185 = vpack.c.bf16 %v6136, %v6135
  %v6186 = vpack.c.bf16 %v6138, %v6137
  %v6187 = vpack.c.bf16 %v6140, %v6139
  %v6188 = vpack.c.bf16 %v6142, %v6141
  %v6189 = vpack.c.bf16 %v6144, %v6143
  %v6190 = vpack.c.bf16 %v6146, %v6145
  %v6191 = vpack.c.bf16 %v6148, %v6147
  %v6192 = vpack.c.bf16 %v6150, %v6149
  %v6193 = vpack.c.bf16 %v6152, %v6151
  %v6194 = vpack.c.bf16 %v6154, %v6153
  %v6195 = vpack.c.bf16 %v6156, %v6155
  %v6196 = vpack.c.bf16 %v6158, %v6157
  %v6197 = vpack.c.bf16 %v6160, %v6159
  %v6198 = vpack.c.bf16 %v6162, %v6161
  %v6199 = vpack.c.bf16 %v6164, %v6163
  %v6200 = vpack.c.bf16 %v6166, %v6165
  %v6201 = vpack.c.bf16 %v6168, %v6167
  %v6202 = vpack.c.bf16 %v6170, %v6169
  %v6211 = vunpack.c.l.b16 %v88
  %v6212 = vunpack.c.h.b16 %v88
  %v6213 = vunpack.c.l.b16 %v89
  %v6214 = vunpack.c.h.b16 %v89
  %v6215 = vunpack.c.l.b16 %v90
  %v6216 = vunpack.c.h.b16 %v90
  %v6217 = vunpack.c.l.b16 %v91
  %v6218 = vunpack.c.h.b16 %v91
  %v6219 = vunpack.c.l.b16 %v92
  %v6220 = vunpack.c.h.b16 %v92
  %v6221 = vunpack.c.l.b16 %v93
  %v6222 = vunpack.c.h.b16 %v93
  %v6223 = vunpack.c.l.b16 %v94
  %v6224 = vunpack.c.h.b16 %v94
  %v6225 = vunpack.c.l.b16 %v95
  %v6226 = vunpack.c.h.b16 %v95
  %v6227 = vpack.c.b16 %v6215, %v6211
  %v6228 = vpack.c.b16 %v6216, %v6212
  %v6229 = vpack.c.b16 %v6217, %v6213
  %v6230 = vpack.c.b16 %v6218, %v6214
  %v6231 = vpack.c.b16 %v6223, %v6219
  %v6232 = vpack.c.b16 %v6224, %v6220
  %v6233 = vpack.c.b16 %v6225, %v6221
  %v6234 = vpack.c.b16 %v6226, %v6222
  %6243 = vmatprep.subr.bf16.mxu0 0
  %6244 = vmatpush1.bf16.msra.mxu0 %v6178
  %6245 = vmatprep.subr.bf16.mxu0 0
  %6246 = vmatpush1.bf16.msra.mxu0 %v6177
  %6247 = vmatprep.subr.bf16.mxu0 0
  %6248 = vmatpush1.bf16.msra.mxu0 %v6176
  %6249 = vmatprep.subr.bf16.mxu0 0
  %6250 = vmatpush1.bf16.msra.mxu0 %v6175
  %6251 = vmatprep.subr.bf16.mxu0 0
  %6252 = vmatpush1.bf16.msra.mxu0 %v6174
  %6253 = vmatprep.subr.bf16.mxu0 0
  %6254 = vmatpush1.bf16.msra.mxu0 %v6173
  %6255 = vmatprep.subr.bf16.mxu0 0
  %6256 = vmatpush1.bf16.msra.mxu0 %v6172
  %6257 = vmatprep.subr.bf16.mxu0 0
  %6258 = vmatpush1.bf16.msra.mxu0 %v6171
  %6259 = vmatprep.subr.bf16.mxu0 0
  %6260 = vmatpush2.bf16.msra.mxu0 %v6186
  %6261 = vmatprep.subr.bf16.mxu0 0
  %6262 = vmatpush2.bf16.msra.mxu0 %v6185
  %6263 = vmatprep.subr.bf16.mxu0 0
  %6264 = vmatpush2.bf16.msra.mxu0 %v6184
  %6265 = vmatprep.subr.bf16.mxu0 0
  %6266 = vmatpush2.bf16.msra.mxu0 %v6183
  %6267 = vmatprep.subr.bf16.mxu0 0
  %6268 = vmatpush2.bf16.msra.mxu0 %v6182
  %6269 = vmatprep.subr.bf16.mxu0 0
  %6270 = vmatpush2.bf16.msra.mxu0 %v6181
  %6271 = vmatprep.subr.bf16.mxu0 0
  %6272 = vmatpush2.bf16.msra.mxu0 %v6180
  %6273 = vmatprep.subr.bf16.mxu0 0
  %6274 = vmatpush2.bf16.msra.mxu0 %v6179
  %6275 = vmatprep.mubr.bf16.mxu0 %v6228
  %6276 = vmatmul.mubr.bf16.gmra.mxu0 %v6227
  %v6277 = vpop.f32.mrf.mxu0
  %v6278 = vadd.f32 0.0, %v6277
  %v6279 = vpop.f32.mrf.mxu0
  %v6280 = vpop.f32.mrf.mxu0
  %v6281 = vadd.f32 0.0, %v6280
  %v6282 = vpop.f32.mrf.mxu0
  %6283 = vmatprep.mubr.bf16.mxu0 %v6232
  %6284 = vmatmul.mubr.bf16.gmra.mxu0 %v6231
  %v6285 = vpop.f32.mrf.mxu0
  %v6286 = vadd.f32 0.0, %v6285
  %v6287 = vpop.f32.mrf.mxu0
  %v6288 = vpop.f32.mrf.mxu0
  %v6289 = vadd.f32 0.0, %v6288
  %v6290 = vpop.f32.mrf.mxu0
  %6291 = vdwg.mxu0
  %6292 = vmatprep.subr.bf16.mxu0 0
  %6293 = vmatpush1.bf16.msra.mxu0 %v6194
  %6294 = vmatprep.subr.bf16.mxu0 0
  %6295 = vmatpush1.bf16.msra.mxu0 %v6193
  %6296 = vmatprep.subr.bf16.mxu0 0
  %6297 = vmatpush1.bf16.msra.mxu0 %v6192
  %6298 = vmatprep.subr.bf16.mxu0 0
  %6299 = vmatpush1.bf16.msra.mxu0 %v6191
  %6300 = vmatprep.subr.bf16.mxu0 0
  %6301 = vmatpush1.bf16.msra.mxu0 %v6190
  %6302 = vmatprep.subr.bf16.mxu0 0
  %6303 = vmatpush1.bf16.msra.mxu0 %v6189
  %6304 = vmatprep.subr.bf16.mxu0 0
  %6305 = vmatpush1.bf16.msra.mxu0 %v6188
  %6306 = vmatprep.subr.bf16.mxu0 0
  %6307 = vmatpush1.bf16.msra.mxu0 %v6187
  %6308 = vmatprep.subr.bf16.mxu0 0
  %6309 = vmatpush2.bf16.msra.mxu0 %v6202
  %6310 = vmatprep.subr.bf16.mxu0 0
  %6311 = vmatpush2.bf16.msra.mxu0 %v6201
  %6312 = vmatprep.subr.bf16.mxu0 0
  %6313 = vmatpush2.bf16.msra.mxu0 %v6200
  %6314 = vmatprep.subr.bf16.mxu0 0
  %6315 = vmatpush2.bf16.msra.mxu0 %v6199
  %6316 = vmatprep.subr.bf16.mxu0 0
  %6317 = vmatpush2.bf16.msra.mxu0 %v6198
  %6318 = vmatprep.subr.bf16.mxu0 0
  %6319 = vmatpush2.bf16.msra.mxu0 %v6197
  %6320 = vmatprep.subr.bf16.mxu0 0
  %6321 = vmatpush2.bf16.msra.mxu0 %v6196
  %6322 = vmatprep.subr.bf16.mxu0 0
  %6323 = vmatpush2.bf16.msra.mxu0 %v6195
  %6324 = vmatprep.mubr.bf16.mxu0 %v6230
  %6325 = vmatmul.mubr.bf16.gmra.mxu0 %v6229
  %v6326 = vpop.f32.mrf.mxu0
  %v6327 = vadd.f32 %v6278, %v6326
  %v6328 = vpop.f32.mrf.mxu0
  %v6329 = vpop.f32.mrf.mxu0
  %v6330 = vadd.f32 %v6281, %v6329
  %v6331 = vpop.f32.mrf.mxu0
  %6332 = vmatprep.mubr.bf16.mxu0 %v6234
  %6333 = vmatmul.mubr.bf16.gmra.mxu0 %v6233
  %v6334 = vpop.f32.mrf.mxu0
  %v6335 = vadd.f32 %v6286, %v6334
  %v6336 = vpop.f32.mrf.mxu0
  %v6337 = vpop.f32.mrf.mxu0
  %v6338 = vadd.f32 %v6289, %v6337
  %v6339 = vpop.f32.mrf.mxu0
  %6340 = vdwg.mxu0
  %v6341 = vmul.f32 %v6327, 0.0625
  %v6342 = vmul.f32 %v6330, 0.0625
  %v6343 = vmul.f32 %v6335, 0.0625
  %v6344 = vmul.f32 %v6338, 0.0625
  %v6345 = vld [vmem:[%s2 + $0x88] sm:$0xf]
  %v6346 = vld [vmem:[%s2 + $0x8c] sm:$0xf]
  %v6347 = vld [vmem:[%s2 + $0x90] sm:$0xf]
  %v6348 = vld [vmem:[%s2 + $0x94] sm:$0xf]
  %v6349 = vld [vmem:[%s2 + $0x98] sm:$0xf]
  %v6350 = vld [vmem:[%s2 + $0x9c] sm:$0xf]
  %v6351 = vld [vmem:[%s2 + $0xa0] sm:$0xf]
  %v6352 = vld [vmem:[%s2 + $0xa4] sm:$0xf]
  %v6353 = vld [vmem:[%s2 + $0xa8] sm:$0xf]
  %v6354 = vld [vmem:[%s2 + $0xac] sm:$0xf]
  %v6355 = vld [vmem:[%s2 + $0xb0] sm:$0xf]
  %v6356 = vld [vmem:[%s2 + $0xb4] sm:$0xf]
  %v6357 = vld [vmem:[%s2 + $0xb8] sm:$0xf]
  %v6358 = vld [vmem:[%s2 + $0xbc] sm:$0xf]
  %v6359 = vld [vmem:[%s2 + $0xc0] sm:$0xf]
  %v6360 = vld [vmem:[%s2 + $0xc4] sm:$0xf]
  %v6361 = vpack.c.bf16 %v6342, %v6341
  %v6362 = vpack.c.bf16 %v6344, %v6343
  %v6379 = vunpack.c.l.b16 %v6345
  %v6380 = vunpack.c.l.b16 %v6346
  %v6381 = vunpack.c.l.b16 %v6347
  %v6382 = vunpack.c.l.b16 %v6348
  %v6383 = vunpack.c.l.b16 %v6349
  %v6384 = vunpack.c.l.b16 %v6350
  %v6385 = vunpack.c.l.b16 %v6351
  %v6386 = vunpack.c.l.b16 %v6352
  %v6387 = vunpack.c.l.b16 %v6353
  %v6388 = vunpack.c.l.b16 %v6354
  %v6389 = vunpack.c.l.b16 %v6355
  %v6390 = vunpack.c.l.b16 %v6356
  %v6391 = vunpack.c.l.b16 %v6357
  %v6392 = vunpack.c.l.b16 %v6358
  %v6393 = vunpack.c.l.b16 %v6359
  %v6394 = vunpack.c.l.b16 %v6360
  %v6395 = vpack.c.b16 %v6380, %v6379
  %v6396 = vpack.c.b16 %v6382, %v6381
  %v6397 = vpack.c.b16 %v6384, %v6383
  %v6398 = vpack.c.b16 %v6386, %v6385
  %v6399 = vpack.c.b16 %v6388, %v6387
  %v6400 = vpack.c.b16 %v6390, %v6389
  %v6401 = vpack.c.b16 %v6392, %v6391
  %v6402 = vpack.c.b16 %v6394, %v6393
  %6411 = vmatprep.subr.bf16.mxu0 0
  %6412 = vmatpush1.bf16.msra.mxu0 %v6402
  %6413 = vmatprep.subr.bf16.mxu0 0
  %6414 = vmatpush1.bf16.msra.mxu0 %v6401
  %6415 = vmatprep.subr.bf16.mxu0 0
  %6416 = vmatpush1.bf16.msra.mxu0 %v6400
  %6417 = vmatprep.subr.bf16.mxu0 0
  %6418 = vmatpush1.bf16.msra.mxu0 %v6399
  %6419 = vmatprep.subr.bf16.mxu0 0
  %6420 = vmatpush1.bf16.msra.mxu0 %v6398
  %6421 = vmatprep.subr.bf16.mxu0 0
  %6422 = vmatpush1.bf16.msra.mxu0 %v6397
  %6423 = vmatprep.subr.bf16.mxu0 0
  %6424 = vmatpush1.bf16.msra.mxu0 %v6396
  %6425 = vmatprep.subr.bf16.mxu0 0
  %6426 = vmatpush1.bf16.msra.mxu0 %v6395
  %6427 = vmatprep.subr.bf16.mxu0 0
  %6428 = vmatpush2.bf16.msra.mxu0 0
  %6429 = vmatprep.subr.bf16.mxu0 0
  %6430 = vmatpush2.bf16.msra.mxu0 0
  %6431 = vmatprep.subr.bf16.mxu0 0
  %6432 = vmatpush2.bf16.msra.mxu0 0
  %6433 = vmatprep.subr.bf16.mxu0 0
  %6434 = vmatpush2.bf16.msra.mxu0 0
  %6435 = vmatprep.subr.bf16.mxu0 0
  %6436 = vmatpush2.bf16.msra.mxu0 0
  %6437 = vmatprep.subr.bf16.mxu0 0
  %6438 = vmatpush2.bf16.msra.mxu0 0
  %6439 = vmatprep.subr.bf16.mxu0 0
  %6440 = vmatpush2.bf16.msra.mxu0 0
  %6441 = vmatprep.subr.bf16.mxu0 0
  %6442 = vmatpush2.bf16.msra.mxu0 0
  %6443 = vmatprep.mubr.bf16.mxu0 0
  %6444 = vmatmul.mubr.bf16.gmra.mxu0 %v6361
  %v6445 = vpop.f32.mrf.mxu0
  %v6446 = vadd.f32 0.0, %v6445
  %v6447 = vpop.f32.mrf.mxu0
  %v6448 = vpop.f32.mrf.mxu0
  %v6449 = vadd.f32 0.0, %v6448
  %v6450 = vpop.f32.mrf.mxu0
  %6451 = vmatprep.mubr.bf16.mxu0 0
  %6452 = vmatmul.mubr.bf16.gmra.mxu0 %v6362
  %v6453 = vpop.f32.mrf.mxu0
  %v6454 = vadd.f32 0.0, %v6453
  %v6455 = vpop.f32.mrf.mxu0
  %v6456 = vpop.f32.mrf.mxu0
  %v6457 = vadd.f32 0.0, %v6456
  %v6458 = vpop.f32.mrf.mxu0
  %6459 = vdwg.mxu0
  %v6460 = vtanh.pop %v6446
  %v6461 = vtanh.pop %v6449
  %v6462 = vtanh.pop %v6454
  %v6463 = vtanh.pop %v6457
  %v6464 = vpack.c.bf16 %v6461, %v6460
  %v6465 = vpack.c.bf16 %v6463, %v6462
  %v6530 = vunpack.c.l.b16 %v96
  %v6531 = vunpack.c.l.b16 %v97
  %v6532 = vunpack.c.l.b16 %v98
  %v6533 = vunpack.c.l.b16 %v99
  %v6534 = vunpack.c.l.b16 %v100
  %v6535 = vunpack.c.l.b16 %v101
  %v6536 = vunpack.c.l.b16 %v102
  %v6537 = vunpack.c.l.b16 %v103
  %v6538 = vunpack.c.l.b16 %v104
  %v6539 = vunpack.c.l.b16 %v105
  %v6540 = vunpack.c.l.b16 %v106
  %v6541 = vunpack.c.l.b16 %v107
  %v6542 = vunpack.c.l.b16 %v108
  %v6543 = vunpack.c.l.b16 %v109
  %v6544 = vunpack.c.l.b16 %v110
  %v6545 = vunpack.c.l.b16 %v111
  %v6546 = vunpack.c.l.b16 %v112
  %v6547 = vunpack.c.l.b16 %v113
  %v6548 = vunpack.c.l.b16 %v114
  %v6549 = vunpack.c.l.b16 %v115
  %v6550 = vunpack.c.l.b16 %v116
  %v6551 = vunpack.c.l.b16 %v117
  %v6552 = vunpack.c.l.b16 %v118
  %v6553 = vunpack.c.l.b16 %v119
  %v6554 = vunpack.c.l.b16 %v120
  %v6555 = vunpack.c.l.b16 %v121
  %v6556 = vunpack.c.l.b16 %v122
  %v6557 = vunpack.c.l.b16 %v123
  %v6558 = vunpack.c.l.b16 %v124
  %v6559 = vunpack.c.l.b16 %v125
  %v6560 = vunpack.c.l.b16 %v126
  %v6561 = vunpack.c.l.b16 %v127
  %v6562 = vunpack.c.l.b16 %v128
  %v6563 = vunpack.c.l.b16 %v129
  %v6564 = vunpack.c.l.b16 %v130
  %v6565 = vunpack.c.l.b16 %v131
  %v6566 = vunpack.c.l.b16 %v132
  %v6567 = vunpack.c.l.b16 %v133
  %v6568 = vunpack.c.l.b16 %v134
  %v6569 = vunpack.c.l.b16 %v135
  %v6570 = vunpack.c.l.b16 %v136
  %v6571 = vunpack.c.l.b16 %v137
  %v6572 = vunpack.c.l.b16 %v138
  %v6573 = vunpack.c.l.b16 %v139
  %v6574 = vunpack.c.l.b16 %v140
  %v6575 = vunpack.c.l.b16 %v141
  %v6576 = vunpack.c.l.b16 %v142
  %v6577 = vunpack.c.l.b16 %v143
  %v6578 = vunpack.c.l.b16 %v144
  %v6579 = vunpack.c.l.b16 %v145
  %v6580 = vunpack.c.l.b16 %v146
  %v6581 = vunpack.c.l.b16 %v147
  %v6582 = vunpack.c.l.b16 %v148
  %v6583 = vunpack.c.l.b16 %v149
  %v6584 = vunpack.c.l.b16 %v150
  %v6585 = vunpack.c.l.b16 %v151
  %v6586 = vunpack.c.l.b16 %v152
  %v6587 = vunpack.c.l.b16 %v153
  %v6588 = vunpack.c.l.b16 %v154
  %v6589 = vunpack.c.l.b16 %v155
  %v6590 = vunpack.c.l.b16 %v156
  %v6591 = vunpack.c.l.b16 %v157
  %v6592 = vunpack.c.l.b16 %v158
  %v6593 = vunpack.c.l.b16 %v159
  %v6594 = vpack.c.b16 %v6531, %v6530
  %v6595 = vpack.c.b16 %v6533, %v6532
  %v6596 = vpack.c.b16 %v6535, %v6534
  %v6597 = vpack.c.b16 %v6537, %v6536
  %v6598 = vpack.c.b16 %v6539, %v6538
  %v6599 = vpack.c.b16 %v6541, %v6540
  %v6600 = vpack.c.b16 %v6543, %v6542
  %v6601 = vpack.c.b16 %v6545, %v6544
  %v6602 = vpack.c.b16 %v6547, %v6546
  %v6603 = vpack.c.b16 %v6549, %v6548
  %v6604 = vpack.c.b16 %v6551, %v6550
  %v6605 = vpack.c.b16 %v6553, %v6552
  %v6606 = vpack.c.b16 %v6555, %v6554
  %v6607 = vpack.c.b16 %v6557, %v6556
  %v6608 = vpack.c.b16 %v6559, %v6558
  %v6609 = vpack.c.b16 %v6561, %v6560
  %v6610 = vpack.c.b16 %v6563, %v6562
  %v6611 = vpack.c.b16 %v6565, %v6564
  %v6612 = vpack.c.b16 %v6567, %v6566
  %v6613 = vpack.c.b16 %v6569, %v6568
  %v6614 = vpack.c.b16 %v6571, %v6570
  %v6615 = vpack.c.b16 %v6573, %v6572
  %v6616 = vpack.c.b16 %v6575, %v6574
  %v6617 = vpack.c.b16 %v6577, %v6576
  %v6618 = vpack.c.b16 %v6579, %v6578
  %v6619 = vpack.c.b16 %v6581, %v6580
  %v6620 = vpack.c.b16 %v6583, %v6582
  %v6621 = vpack.c.b16 %v6585, %v6584
  %v6622 = vpack.c.b16 %v6587, %v6586
  %v6623 = vpack.c.b16 %v6589, %v6588
  %v6624 = vpack.c.b16 %v6591, %v6590
  %v6625 = vpack.c.b16 %v6593, %v6592
  %vm6626 = vcmask 261120
  %v6628 = vsel %vm6626, %v6594, 0
  %v6631 = vsel %vm6626, %v6595, 0
  %v6634 = vsel %vm6626, %v6596, 0
  %v6637 = vsel %vm6626, %v6597, 0
  %v6640 = vsel %vm6626, %v6598, 0
  %v6643 = vsel %vm6626, %v6599, 0
  %v6646 = vsel %vm6626, %v6600, 0
  %v6649 = vsel %vm6626, %v6601, 0
  %v6652 = vsel %vm6626, %v6602, 0
  %v6655 = vsel %vm6626, %v6603, 0
  %v6658 = vsel %vm6626, %v6604, 0
  %v6661 = vsel %vm6626, %v6605, 0
  %v6664 = vsel %vm6626, %v6606, 0
  %v6667 = vsel %vm6626, %v6607, 0
  %v6670 = vsel %vm6626, %v6608, 0
  %v6673 = vsel %vm6626, %v6609, 0
  %v6676 = vsel %vm6626, %v6610, 0
  %v6679 = vsel %vm6626, %v6611, 0
  %v6682 = vsel %vm6626, %v6612, 0
  %v6685 = vsel %vm6626, %v6613, 0
  %v6688 = vsel %vm6626, %v6614, 0
  %v6691 = vsel %vm6626, %v6615, 0
  %v6694 = vsel %vm6626, %v6616, 0
  %v6697 = vsel %vm6626, %v6617, 0
  %v6700 = vsel %vm6626, %v6618, 0
  %v6703 = vsel %vm6626, %v6619, 0
  %v6706 = vsel %vm6626, %v6620, 0
  %v6709 = vsel %vm6626, %v6621, 0
  %v6712 = vsel %vm6626, %v6622, 0
  %v6715 = vsel %vm6626, %v6623, 0
  %v6718 = vsel %vm6626, %v6624, 0
  %v6721 = vsel %vm6626, %v6625, 0
  %6723 = vmatprep.subr.bf16.mxu0 0
  %6724 = vmatpush1.bf16.msra.mxu0 0
  %6725 = vmatprep.subr.bf16.mxu0 0
  %6726 = vmatpush1.bf16.msra.mxu0 0
  %6727 = vmatprep.subr.bf16.mxu0 0
  %6728 = vmatpush1.bf16.msra.mxu0 0
  %6729 = vmatprep.subr.bf16.mxu0 0
  %6730 = vmatpush1.bf16.msra.mxu0 0
  %6731 = vmatprep.subr.bf16.mxu0 0
  %6732 = vmatpush1.bf16.msra.mxu0 0
  %6733 = vmatprep.subr.bf16.mxu0 0
  %6734 = vmatpush1.bf16.msra.mxu0 0
  %6735 = vmatprep.subr.bf16.mxu0 0
  %6736 = vmatpush1.bf16.msra.mxu0 %v6465
  %6737 = vmatprep.subr.bf16.mxu0 0
  %6738 = vmatpush1.bf16.msra.mxu0 %v6464
  %6739 = vmatprep.subr.bf16.mxu0 0
  %6740 = vmatpush2.bf16.msra.mxu0 0
  %6741 = vmatprep.subr.bf16.mxu0 0
  %6742 = vmatpush2.bf16.msra.mxu0 0
  %6743 = vmatprep.subr.bf16.mxu0 0
  %6744 = vmatpush2.bf16.msra.mxu0 0
  %6745 = vmatprep.subr.bf16.mxu0 0
  %6746 = vmatpush2.bf16.msra.mxu0 0
  %6747 = vmatprep.subr.bf16.mxu0 0
  %6748 = vmatpush2.bf16.msra.mxu0 0
  %6749 = vmatprep.subr.bf16.mxu0 0
  %6750 = vmatpush2.bf16.msra.mxu0 0
  %6751 = vmatprep.subr.bf16.mxu0 0
  %6752 = vmatpush2.bf16.msra.mxu0 0
  %6753 = vmatprep.subr.bf16.mxu0 0
  %6754 = vmatpush2.bf16.msra.mxu0 0
  %6755 = vmatprep.mubr.bf16.mxu0 0
  %6756 = vmatmul.mubr.bf16.gmra.mxu0 %v6628
  %v6757 = vpop.f32.mrf.mxu0
  %v6758 = vadd.f32 0.0, %v6757
  %v6759 = vpop.f32.mrf.mxu0
  %v6760 = vpop.f32.mrf.mxu0
  %v6761 = vadd.f32 0.0, %v6760
  %v6762 = vpop.f32.mrf.mxu0
  %6763 = vmatprep.mubr.bf16.mxu0 0
  %6764 = vmatmul.mubr.bf16.gmra.mxu0 %v6631
  %v6765 = vpop.f32.mrf.mxu0
  %v6766 = vadd.f32 0.0, %v6765
  %v6767 = vpop.f32.mrf.mxu0
  %v6768 = vpop.f32.mrf.mxu0
  %v6769 = vadd.f32 0.0, %v6768
  %v6770 = vpop.f32.mrf.mxu0
  %6771 = vmatprep.mubr.bf16.mxu0 0
  %6772 = vmatmul.mubr.bf16.gmra.mxu0 %v6634
  %v6773 = vpop.f32.mrf.mxu0
  %v6774 = vadd.f32 0.0, %v6773
  %v6775 = vpop.f32.mrf.mxu0
  %v6776 = vpop.f32.mrf.mxu0
  %v6777 = vadd.f32 0.0, %v6776
  %v6778 = vpop.f32.mrf.mxu0
  %6779 = vmatprep.mubr.bf16.mxu0 0
  %6780 = vmatmul.mubr.bf16.gmra.mxu0 %v6637
  %v6781 = vpop.f32.mrf.mxu0
  %v6782 = vadd.f32 0.0, %v6781
  %v6783 = vpop.f32.mrf.mxu0
  %v6784 = vpop.f32.mrf.mxu0
  %v6785 = vadd.f32 0.0, %v6784
  %v6786 = vpop.f32.mrf.mxu0
  %6787 = vmatprep.mubr.bf16.mxu0 0
  %6788 = vmatmul.mubr.bf16.gmra.mxu0 %v6640
  %v6789 = vpop.f32.mrf.mxu0
  %v6790 = vadd.f32 0.0, %v6789
  %v6791 = vpop.f32.mrf.mxu0
  %v6792 = vpop.f32.mrf.mxu0
  %v6793 = vadd.f32 0.0, %v6792
  %v6794 = vpop.f32.mrf.mxu0
  %6795 = vmatprep.mubr.bf16.mxu0 0
  %6796 = vmatmul.mubr.bf16.gmra.mxu0 %v6643
  %v6797 = vpop.f32.mrf.mxu0
  %v6798 = vadd.f32 0.0, %v6797
  %v6799 = vpop.f32.mrf.mxu0
  %v6800 = vpop.f32.mrf.mxu0
  %v6801 = vadd.f32 0.0, %v6800
  %v6802 = vpop.f32.mrf.mxu0
  %6803 = vmatprep.mubr.bf16.mxu0 0
  %6804 = vmatmul.mubr.bf16.gmra.mxu0 %v6646
  %v6805 = vpop.f32.mrf.mxu0
  %v6806 = vadd.f32 0.0, %v6805
  %v6807 = vpop.f32.mrf.mxu0
  %v6808 = vpop.f32.mrf.mxu0
  %v6809 = vadd.f32 0.0, %v6808
  %v6810 = vpop.f32.mrf.mxu0
  %6811 = vmatprep.mubr.bf16.mxu0 0
  %6812 = vmatmul.mubr.bf16.gmra.mxu0 %v6649
  %v6813 = vpop.f32.mrf.mxu0
  %v6814 = vadd.f32 0.0, %v6813
  %v6815 = vpop.f32.mrf.mxu0
  %v6816 = vpop.f32.mrf.mxu0
  %v6817 = vadd.f32 0.0, %v6816
  %v6818 = vpop.f32.mrf.mxu0
  %6819 = vmatprep.mubr.bf16.mxu0 0
  %6820 = vmatmul.mubr.bf16.gmra.mxu0 %v6652
  %v6821 = vpop.f32.mrf.mxu0
  %v6822 = vadd.f32 0.0, %v6821
  %v6823 = vpop.f32.mrf.mxu0
  %v6824 = vpop.f32.mrf.mxu0
  %v6825 = vadd.f32 0.0, %v6824
  %v6826 = vpop.f32.mrf.mxu0
  %6827 = vmatprep.mubr.bf16.mxu0 0
  %6828 = vmatmul.mubr.bf16.gmra.mxu0 %v6655
  %v6829 = vpop.f32.mrf.mxu0
  %v6830 = vadd.f32 0.0, %v6829
  %v6831 = vpop.f32.mrf.mxu0
  %v6832 = vpop.f32.mrf.mxu0
  %v6833 = vadd.f32 0.0, %v6832
  %v6834 = vpop.f32.mrf.mxu0
  %6835 = vmatprep.mubr.bf16.mxu0 0
  %6836 = vmatmul.mubr.bf16.gmra.mxu0 %v6658
  %v6837 = vpop.f32.mrf.mxu0
  %v6838 = vadd.f32 0.0, %v6837
  %v6839 = vpop.f32.mrf.mxu0
  %v6840 = vpop.f32.mrf.mxu0
  %v6841 = vadd.f32 0.0, %v6840
  %v6842 = vpop.f32.mrf.mxu0
  %6843 = vmatprep.mubr.bf16.mxu0 0
  %6844 = vmatmul.mubr.bf16.gmra.mxu0 %v6661
  %v6845 = vpop.f32.mrf.mxu0
  %v6846 = vadd.f32 0.0, %v6845
  %v6847 = vpop.f32.mrf.mxu0
  %v6848 = vpop.f32.mrf.mxu0
  %v6849 = vadd.f32 0.0, %v6848
  %v6850 = vpop.f32.mrf.mxu0
  %6851 = vmatprep.mubr.bf16.mxu0 0
  %6852 = vmatmul.mubr.bf16.gmra.mxu0 %v6664
  %v6853 = vpop.f32.mrf.mxu0
  %v6854 = vadd.f32 0.0, %v6853
  %v6855 = vpop.f32.mrf.mxu0
  %v6856 = vpop.f32.mrf.mxu0
  %v6857 = vadd.f32 0.0, %v6856
  %v6858 = vpop.f32.mrf.mxu0
  %6859 = vmatprep.mubr.bf16.mxu0 0
  %6860 = vmatmul.mubr.bf16.gmra.mxu0 %v6667
  %v6861 = vpop.f32.mrf.mxu0
  %v6862 = vadd.f32 0.0, %v6861
  %v6863 = vpop.f32.mrf.mxu0
  %v6864 = vpop.f32.mrf.mxu0
  %v6865 = vadd.f32 0.0, %v6864
  %v6866 = vpop.f32.mrf.mxu0
  %6867 = vmatprep.mubr.bf16.mxu0 0
  %6868 = vmatmul.mubr.bf16.gmra.mxu0 %v6670
  %v6869 = vpop.f32.mrf.mxu0
  %v6870 = vadd.f32 0.0, %v6869
  %v6871 = vpop.f32.mrf.mxu0
  %v6872 = vpop.f32.mrf.mxu0
  %v6873 = vadd.f32 0.0, %v6872
  %v6874 = vpop.f32.mrf.mxu0
  %6875 = vmatprep.mubr.bf16.mxu0 0
  %6876 = vmatmul.mubr.bf16.gmra.mxu0 %v6673
  %v6877 = vpop.f32.mrf.mxu0
  %v6878 = vadd.f32 0.0, %v6877
  %v6879 = vpop.f32.mrf.mxu0
  %v6880 = vpop.f32.mrf.mxu0
  %v6881 = vadd.f32 0.0, %v6880
  %v6882 = vpop.f32.mrf.mxu0
  %6883 = vmatprep.mubr.bf16.mxu0 0
  %6884 = vmatmul.mubr.bf16.gmra.mxu0 %v6676
  %v6885 = vpop.f32.mrf.mxu0
  %v6886 = vadd.f32 0.0, %v6885
  %v6887 = vpop.f32.mrf.mxu0
  %v6888 = vpop.f32.mrf.mxu0
  %v6889 = vadd.f32 0.0, %v6888
  %v6890 = vpop.f32.mrf.mxu0
  %6891 = vmatprep.mubr.bf16.mxu0 0
  %6892 = vmatmul.mubr.bf16.gmra.mxu0 %v6679
  %v6893 = vpop.f32.mrf.mxu0
  %v6894 = vadd.f32 0.0, %v6893
  %v6895 = vpop.f32.mrf.mxu0
  %v6896 = vpop.f32.mrf.mxu0
  %v6897 = vadd.f32 0.0, %v6896
  %v6898 = vpop.f32.mrf.mxu0
  %6899 = vmatprep.mubr.bf16.mxu0 0
  %6900 = vmatmul.mubr.bf16.gmra.mxu0 %v6682
  %v6901 = vpop.f32.mrf.mxu0
  %v6902 = vadd.f32 0.0, %v6901
  %v6903 = vpop.f32.mrf.mxu0
  %v6904 = vpop.f32.mrf.mxu0
  %v6905 = vadd.f32 0.0, %v6904
  %v6906 = vpop.f32.mrf.mxu0
  %6907 = vmatprep.mubr.bf16.mxu0 0
  %6908 = vmatmul.mubr.bf16.gmra.mxu0 %v6685
  %v6909 = vpop.f32.mrf.mxu0
  %v6910 = vadd.f32 0.0, %v6909
  %v6911 = vpop.f32.mrf.mxu0
  %v6912 = vpop.f32.mrf.mxu0
  %v6913 = vadd.f32 0.0, %v6912
  %v6914 = vpop.f32.mrf.mxu0
  %6915 = vmatprep.mubr.bf16.mxu0 0
  %6916 = vmatmul.mubr.bf16.gmra.mxu0 %v6688
  %v6917 = vpop.f32.mrf.mxu0
  %v6918 = vadd.f32 0.0, %v6917
  %v6919 = vpop.f32.mrf.mxu0
  %v6920 = vpop.f32.mrf.mxu0
  %v6921 = vadd.f32 0.0, %v6920
  %v6922 = vpop.f32.mrf.mxu0
  %6923 = vmatprep.mubr.bf16.mxu0 0
  %6924 = vmatmul.mubr.bf16.gmra.mxu0 %v6691
  %v6925 = vpop.f32.mrf.mxu0
  %v6926 = vadd.f32 0.0, %v6925
  %v6927 = vpop.f32.mrf.mxu0
  %v6928 = vpop.f32.mrf.mxu0
  %v6929 = vadd.f32 0.0, %v6928
  %v6930 = vpop.f32.mrf.mxu0
  %6931 = vmatprep.mubr.bf16.mxu0 0
  %6932 = vmatmul.mubr.bf16.gmra.mxu0 %v6694
  %v6933 = vpop.f32.mrf.mxu0
  %v6934 = vadd.f32 0.0, %v6933
  %v6935 = vpop.f32.mrf.mxu0
  %v6936 = vpop.f32.mrf.mxu0
  %v6937 = vadd.f32 0.0, %v6936
  %v6938 = vpop.f32.mrf.mxu0
  %6939 = vmatprep.mubr.bf16.mxu0 0
  %6940 = vmatmul.mubr.bf16.gmra.mxu0 %v6697
  %v6941 = vpop.f32.mrf.mxu0
  %v6942 = vadd.f32 0.0, %v6941
  %v6943 = vpop.f32.mrf.mxu0
  %v6944 = vpop.f32.mrf.mxu0
  %v6945 = vadd.f32 0.0, %v6944
  %v6946 = vpop.f32.mrf.mxu0
  %6947 = vmatprep.mubr.bf16.mxu0 0
  %6948 = vmatmul.mubr.bf16.gmra.mxu0 %v6700
  %v6949 = vpop.f32.mrf.mxu0
  %v6950 = vadd.f32 0.0, %v6949
  %v6951 = vpop.f32.mrf.mxu0
  %v6952 = vpop.f32.mrf.mxu0
  %v6953 = vadd.f32 0.0, %v6952
  %v6954 = vpop.f32.mrf.mxu0
  %6955 = vmatprep.mubr.bf16.mxu0 0
  %6956 = vmatmul.mubr.bf16.gmra.mxu0 %v6703
  %v6957 = vpop.f32.mrf.mxu0
  %v6958 = vadd.f32 0.0, %v6957
  %v6959 = vpop.f32.mrf.mxu0
  %v6960 = vpop.f32.mrf.mxu0
  %v6961 = vadd.f32 0.0, %v6960
  %v6962 = vpop.f32.mrf.mxu0
  %6963 = vmatprep.mubr.bf16.mxu0 0
  %6964 = vmatmul.mubr.bf16.gmra.mxu0 %v6706
  %v6965 = vpop.f32.mrf.mxu0
  %v6966 = vadd.f32 0.0, %v6965
  %v6967 = vpop.f32.mrf.mxu0
  %v6968 = vpop.f32.mrf.mxu0
  %v6969 = vadd.f32 0.0, %v6968
  %v6970 = vpop.f32.mrf.mxu0
  %6971 = vmatprep.mubr.bf16.mxu0 0
  %6972 = vmatmul.mubr.bf16.gmra.mxu0 %v6709
  %v6973 = vpop.f32.mrf.mxu0
  %v6974 = vadd.f32 0.0, %v6973
  %v6975 = vpop.f32.mrf.mxu0
  %v6976 = vpop.f32.mrf.mxu0
  %v6977 = vadd.f32 0.0, %v6976
  %v6978 = vpop.f32.mrf.mxu0
  %6979 = vmatprep.mubr.bf16.mxu0 0
  %6980 = vmatmul.mubr.bf16.gmra.mxu0 %v6712
  %v6981 = vpop.f32.mrf.mxu0
  %v6982 = vadd.f32 0.0, %v6981
  %v6983 = vpop.f32.mrf.mxu0
  %v6984 = vpop.f32.mrf.mxu0
  %v6985 = vadd.f32 0.0, %v6984
  %v6986 = vpop.f32.mrf.mxu0
  %6987 = vmatprep.mubr.bf16.mxu0 0
  %6988 = vmatmul.mubr.bf16.gmra.mxu0 %v6715
  %v6989 = vpop.f32.mrf.mxu0
  %v6990 = vadd.f32 0.0, %v6989
  %v6991 = vpop.f32.mrf.mxu0
  %v6992 = vpop.f32.mrf.mxu0
  %v6993 = vadd.f32 0.0, %v6992
  %v6994 = vpop.f32.mrf.mxu0
  %6995 = vmatprep.mubr.bf16.mxu0 0
  %6996 = vmatmul.mubr.bf16.gmra.mxu0 %v6718
  %v6997 = vpop.f32.mrf.mxu0
  %v6998 = vadd.f32 0.0, %v6997
  %v6999 = vpop.f32.mrf.mxu0
  %v7000 = vpop.f32.mrf.mxu0
  %v7001 = vadd.f32 0.0, %v7000
  %v7002 = vpop.f32.mrf.mxu0
  %7003 = vmatprep.mubr.bf16.mxu0 0
  %7004 = vmatmul.mubr.bf16.gmra.mxu0 %v6721
  %v7005 = vpop.f32.mrf.mxu0
  %v7006 = vadd.f32 0.0, %v7005
  %v7007 = vpop.f32.mrf.mxu0
  %v7008 = vpop.f32.mrf.mxu0
  %v7009 = vadd.f32 0.0, %v7008
  %v7010 = vpop.f32.mrf.mxu0
  %7011 = vdwg.mxu0
  %v7012 = vmul.f32 %v6107, %v6758
  %v7013 = vmul.f32 %v6108, %v6761
  %v7014 = vmul.f32 %v6109, %v6766
  %v7015 = vmul.f32 %v6110, %v6769
  %v7016 = vmul.f32 %v6111, %v6774
  %v7017 = vmul.f32 %v6112, %v6777
  %v7018 = vmul.f32 %v6113, %v6782
  %v7019 = vmul.f32 %v6114, %v6785
  %v7020 = vmul.f32 %v6115, %v6790
  %v7021 = vmul.f32 %v6116, %v6793
  %v7022 = vmul.f32 %v6117, %v6798
  %v7023 = vmul.f32 %v6118, %v6801
  %v7024 = vmul.f32 %v6119, %v6806
  %v7025 = vmul.f32 %v6120, %v6809
  %v7026 = vmul.f32 %v6121, %v6814
  %v7027 = vmul.f32 %v6122, %v6817
  %v7028 = vmul.f32 %v6123, %v6822
  %v7029 = vmul.f32 %v6124, %v6825
  %v7030 = vmul.f32 %v6125, %v6830
  %v7031 = vmul.f32 %v6126, %v6833
  %v7032 = vmul.f32 %v6127, %v6838
  %v7033 = vmul.f32 %v6128, %v6841
  %v7034 = vmul.f32 %v6129, %v6846
  %v7035 = vmul.f32 %v6130, %v6849
  %v7036 = vmul.f32 %v6131, %v6854
  %v7037 = vmul.f32 %v6132, %v6857
  %v7038 = vmul.f32 %v6133, %v6862
  %v7039 = vmul.f32 %v6134, %v6865
  %v7040 = vmul.f32 %v6135, %v6870
  %v7041 = vmul.f32 %v6136, %v6873
  %v7042 = vmul.f32 %v6137, %v6878
  %v7043 = vmul.f32 %v6138, %v6881
  %v7044 = vmul.f32 %v6139, %v6886
  %v7045 = vmul.f32 %v6140, %v6889
  %v7046 = vmul.f32 %v6141, %v6894
  %v7047 = vmul.f32 %v6142, %v6897
  %v7048 = vmul.f32 %v6143, %v6902
  %v7049 = vmul.f32 %v6144, %v6905
  %v7050 = vmul.f32 %v6145, %v6910
  %v7051 = vmul.f32 %v6146, %v6913
  %v7052 = vmul.f32 %v6147, %v6918
  %v7053 = vmul.f32 %v6148, %v6921
  %v7054 = vmul.f32 %v6149, %v6926
  %v7055 = vmul.f32 %v6150, %v6929
  %v7056 = vmul.f32 %v6151, %v6934
  %v7057 = vmul.f32 %v6152, %v6937
  %v7058 = vmul.f32 %v6153, %v6942
  %v7059 = vmul.f32 %v6154, %v6945
  %v7060 = vmul.f32 %v6155, %v6950
  %v7061 = vmul.f32 %v6156, %v6953
  %v7062 = vmul.f32 %v6157, %v6958
  %v7063 = vmul.f32 %v6158, %v6961
  %v7064 = vmul.f32 %v6159, %v6966
  %v7065 = vmul.f32 %v6160, %v6969
  %v7066 = vmul.f32 %v6161, %v6974
  %v7067 = vmul.f32 %v6162, %v6977
  %v7068 = vmul.f32 %v6163, %v6982
  %v7069 = vmul.f32 %v6164, %v6985
  %v7070 = vmul.f32 %v6165, %v6990
  %v7071 = vmul.f32 %v6166, %v6993
  %v7072 = vmul.f32 %v6167, %v6998
  %v7073 = vmul.f32 %v6168, %v7001
  %v7074 = vmul.f32 %v6169, %v7006
  %v7075 = vmul.f32 %v6170, %v7009
  %7076 = vadd.xlane.f32.xlu0 %v7012
  %v7077 = vpop.xlane.xlu0 %7076
  %7078 = vadd.xlane.f32.xlu0 %v7013
  %v7079 = vpop.xlane.xlu0 %7078
  %7080 = vadd.xlane.f32.xlu0 %v7014
  %v7081 = vpop.xlane.xlu0 %7080
  %7082 = vadd.xlane.f32.xlu0 %v7015
  %v7083 = vpop.xlane.xlu0 %7082
  %7084 = vadd.xlane.f32.xlu0 %v7016
  %v7085 = vpop.xlane.xlu0 %7084
  %7086 = vadd.xlane.f32.xlu0 %v7017
  %v7087 = vpop.xlane.xlu0 %7086
  %7088 = vadd.xlane.f32.xlu0 %v7018
  %v7089 = vpop.xlane.xlu0 %7088
  %7090 = vadd.xlane.f32.xlu0 %v7019
  %v7091 = vpop.xlane.xlu0 %7090
  %7092 = vadd.xlane.f32.xlu0 %v7020
  %v7093 = vpop.xlane.xlu0 %7092
  %7094 = vadd.xlane.f32.xlu0 %v7021
  %v7095 = vpop.xlane.xlu0 %7094
  %7096 = vadd.xlane.f32.xlu0 %v7022
  %v7097 = vpop.xlane.xlu0 %7096
  %7098 = vadd.xlane.f32.xlu0 %v7023
  %v7099 = vpop.xlane.xlu0 %7098
  %7100 = vadd.xlane.f32.xlu0 %v7024
  %v7101 = vpop.xlane.xlu0 %7100
  %7102 = vadd.xlane.f32.xlu0 %v7025
  %v7103 = vpop.xlane.xlu0 %7102
  %7104 = vadd.xlane.f32.xlu0 %v7026
  %v7105 = vpop.xlane.xlu0 %7104
  %7106 = vadd.xlane.f32.xlu0 %v7027
  %v7107 = vpop.xlane.xlu0 %7106
  %7108 = vadd.xlane.f32.xlu0 %v7028
  %v7109 = vpop.xlane.xlu0 %7108
  %7110 = vadd.xlane.f32.xlu0 %v7029
  %v7111 = vpop.xlane.xlu0 %7110
  %7112 = vadd.xlane.f32.xlu0 %v7030
  %v7113 = vpop.xlane.xlu0 %7112
  %7114 = vadd.xlane.f32.xlu0 %v7031
  %v7115 = vpop.xlane.xlu0 %7114
  %7116 = vadd.xlane.f32.xlu0 %v7032
  %v7117 = vpop.xlane.xlu0 %7116
  %7118 = vadd.xlane.f32.xlu0 %v7033
  %v7119 = vpop.xlane.xlu0 %7118
  %7120 = vadd.xlane.f32.xlu0 %v7034
  %v7121 = vpop.xlane.xlu0 %7120
  %7122 = vadd.xlane.f32.xlu0 %v7035
  %v7123 = vpop.xlane.xlu0 %7122
  %7124 = vadd.xlane.f32.xlu0 %v7036
  %v7125 = vpop.xlane.xlu0 %7124
  %7126 = vadd.xlane.f32.xlu0 %v7037
  %v7127 = vpop.xlane.xlu0 %7126
  %7128 = vadd.xlane.f32.xlu0 %v7038
  %v7129 = vpop.xlane.xlu0 %7128
  %7130 = vadd.xlane.f32.xlu0 %v7039
  %v7131 = vpop.xlane.xlu0 %7130
  %7132 = vadd.xlane.f32.xlu0 %v7040
  %v7133 = vpop.xlane.xlu0 %7132
  %7134 = vadd.xlane.f32.xlu0 %v7041
  %v7135 = vpop.xlane.xlu0 %7134
  %7136 = vadd.xlane.f32.xlu0 %v7042
  %v7137 = vpop.xlane.xlu0 %7136
  %7138 = vadd.xlane.f32.xlu0 %v7043
  %v7139 = vpop.xlane.xlu0 %7138
  %7140 = vadd.xlane.f32.xlu0 %v7044
  %v7141 = vpop.xlane.xlu0 %7140
  %7142 = vadd.xlane.f32.xlu0 %v7045
  %v7143 = vpop.xlane.xlu0 %7142
  %7144 = vadd.xlane.f32.xlu0 %v7046
  %v7145 = vpop.xlane.xlu0 %7144
  %7146 = vadd.xlane.f32.xlu0 %v7047
  %v7147 = vpop.xlane.xlu0 %7146
  %7148 = vadd.xlane.f32.xlu0 %v7048
  %v7149 = vpop.xlane.xlu0 %7148
  %7150 = vadd.xlane.f32.xlu0 %v7049
  %v7151 = vpop.xlane.xlu0 %7150
  %7152 = vadd.xlane.f32.xlu0 %v7050
  %v7153 = vpop.xlane.xlu0 %7152
  %7154 = vadd.xlane.f32.xlu0 %v7051
  %v7155 = vpop.xlane.xlu0 %7154
  %7156 = vadd.xlane.f32.xlu0 %v7052
  %v7157 = vpop.xlane.xlu0 %7156
  %7158 = vadd.xlane.f32.xlu0 %v7053
  %v7159 = vpop.xlane.xlu0 %7158
  %7160 = vadd.xlane.f32.xlu0 %v7054
  %v7161 = vpop.xlane.xlu0 %7160
  %7162 = vadd.xlane.f32.xlu0 %v7055
  %v7163 = vpop.xlane.xlu0 %7162
  %7164 = vadd.xlane.f32.xlu0 %v7056
  %v7165 = vpop.xlane.xlu0 %7164
  %7166 = vadd.xlane.f32.xlu0 %v7057
  %v7167 = vpop.xlane.xlu0 %7166
  %7168 = vadd.xlane.f32.xlu0 %v7058
  %v7169 = vpop.xlane.xlu0 %7168
  %7170 = vadd.xlane.f32.xlu0 %v7059
  %v7171 = vpop.xlane.xlu0 %7170
  %7172 = vadd.xlane.f32.xlu0 %v7060
  %v7173 = vpop.xlane.xlu0 %7172
  %7174 = vadd.xlane.f32.xlu0 %v7061
  %v7175 = vpop.xlane.xlu0 %7174
  %7176 = vadd.xlane.f32.xlu0 %v7062
  %v7177 = vpop.xlane.xlu0 %7176
  %7178 = vadd.xlane.f32.xlu0 %v7063
  %v7179 = vpop.xlane.xlu0 %7178
  %7180 = vadd.xlane.f32.xlu0 %v7064
  %v7181 = vpop.xlane.xlu0 %7180
  %7182 = vadd.xlane.f32.xlu0 %v7065
  %v7183 = vpop.xlane.xlu0 %7182
  %7184 = vadd.xlane.f32.xlu0 %v7066
  %v7185 = vpop.xlane.xlu0 %7184
  %7186 = vadd.xlane.f32.xlu0 %v7067
  %v7187 = vpop.xlane.xlu0 %7186
  %7188 = vadd.xlane.f32.xlu0 %v7068
  %v7189 = vpop.xlane.xlu0 %7188
  %7190 = vadd.xlane.f32.xlu0 %v7069
  %v7191 = vpop.xlane.xlu0 %7190
  %7192 = vadd.xlane.f32.xlu0 %v7070
  %v7193 = vpop.xlane.xlu0 %7192
  %7194 = vadd.xlane.f32.xlu0 %v7071
  %v7195 = vpop.xlane.xlu0 %7194
  %7196 = vadd.xlane.f32.xlu0 %v7072
  %v7197 = vpop.xlane.xlu0 %7196
  %7198 = vadd.xlane.f32.xlu0 %v7073
  %v7199 = vpop.xlane.xlu0 %7198
  %7200 = vadd.xlane.f32.xlu0 %v7074
  %v7201 = vpop.xlane.xlu0 %7200
  %7202 = vadd.xlane.f32.xlu0 %v7075
  %v7203 = vpop.xlane.xlu0 %7202
  %v7204 = vxor.u32 %v7077, 2147483648
  %v7205 = vxor.u32 %v7079, 2147483648
  %v7206 = vxor.u32 %v7081, 2147483648
  %v7207 = vxor.u32 %v7083, 2147483648
  %v7208 = vxor.u32 %v7085, 2147483648
  %v7209 = vxor.u32 %v7087, 2147483648
  %v7210 = vxor.u32 %v7089, 2147483648
  %v7211 = vxor.u32 %v7091, 2147483648
  %v7212 = vxor.u32 %v7093, 2147483648
  %v7213 = vxor.u32 %v7095, 2147483648
  %v7214 = vxor.u32 %v7097, 2147483648
  %v7215 = vxor.u32 %v7099, 2147483648
  %v7216 = vxor.u32 %v7101, 2147483648
  %v7217 = vxor.u32 %v7103, 2147483648
  %v7218 = vxor.u32 %v7105, 2147483648
  %v7219 = vxor.u32 %v7107, 2147483648
  %v7220 = vxor.u32 %v7109, 2147483648
  %v7221 = vxor.u32 %v7111, 2147483648
  %v7222 = vxor.u32 %v7113, 2147483648
  %v7223 = vxor.u32 %v7115, 2147483648
  %v7224 = vxor.u32 %v7117, 2147483648
  %v7225 = vxor.u32 %v7119, 2147483648
  %v7226 = vxor.u32 %v7121, 2147483648
  %v7227 = vxor.u32 %v7123, 2147483648
  %v7228 = vxor.u32 %v7125, 2147483648
  %v7229 = vxor.u32 %v7127, 2147483648
  %v7230 = vxor.u32 %v7129, 2147483648
  %v7231 = vxor.u32 %v7131, 2147483648
  %v7232 = vxor.u32 %v7133, 2147483648
  %v7233 = vxor.u32 %v7135, 2147483648
  %v7234 = vxor.u32 %v7137, 2147483648
  %v7235 = vxor.u32 %v7139, 2147483648
  %v7236 = vxor.u32 %v7141, 2147483648
  %v7237 = vxor.u32 %v7143, 2147483648
  %v7238 = vxor.u32 %v7145, 2147483648
  %v7239 = vxor.u32 %v7147, 2147483648
  %v7240 = vxor.u32 %v7149, 2147483648
  %v7241 = vxor.u32 %v7151, 2147483648
  %v7242 = vxor.u32 %v7153, 2147483648
  %v7243 = vxor.u32 %v7155, 2147483648
  %v7244 = vxor.u32 %v7157, 2147483648
  %v7245 = vxor.u32 %v7159, 2147483648
  %v7246 = vxor.u32 %v7161, 2147483648
  %v7247 = vxor.u32 %v7163, 2147483648
  %v7248 = vxor.u32 %v7165, 2147483648
  %v7249 = vxor.u32 %v7167, 2147483648
  %v7250 = vxor.u32 %v7169, 2147483648
  %v7251 = vxor.u32 %v7171, 2147483648
  %v7252 = vxor.u32 %v7173, 2147483648
  %v7253 = vxor.u32 %v7175, 2147483648
  %v7254 = vxor.u32 %v7177, 2147483648
  %v7255 = vxor.u32 %v7179, 2147483648
  %v7256 = vxor.u32 %v7181, 2147483648
  %v7257 = vxor.u32 %v7183, 2147483648
  %v7258 = vxor.u32 %v7185, 2147483648
  %v7259 = vxor.u32 %v7187, 2147483648
  %v7260 = vxor.u32 %v7189, 2147483648
  %v7261 = vxor.u32 %v7191, 2147483648
  %v7262 = vxor.u32 %v7193, 2147483648
  %v7263 = vxor.u32 %v7195, 2147483648
  %v7264 = vxor.u32 %v7197, 2147483648
  %v7265 = vxor.u32 %v7199, 2147483648
  %v7266 = vxor.u32 %v7201, 2147483648
  %v7267 = vxor.u32 %v7203, 2147483648
  %v7268 = vmul.f32 %v7204, 1.442695
  %v7269 = vpow.pop %v7268
  %v7270 = vmul.f32 %v7205, 1.442695
  %v7271 = vpow.pop %v7270
  %v7272 = vmul.f32 %v7206, 1.442695
  %v7273 = vpow.pop %v7272
  %v7274 = vmul.f32 %v7207, 1.442695
  %v7275 = vpow.pop %v7274
  %v7276 = vmul.f32 %v7208, 1.442695
  %v7277 = vpow.pop %v7276
  %v7278 = vmul.f32 %v7209, 1.442695
  %v7279 = vpow.pop %v7278
  %v7280 = vmul.f32 %v7210, 1.442695
  %v7281 = vpow.pop %v7280
  %v7282 = vmul.f32 %v7211, 1.442695
  %v7283 = vpow.pop %v7282
  %v7284 = vmul.f32 %v7212, 1.442695
  %v7285 = vpow.pop %v7284
  %v7286 = vmul.f32 %v7213, 1.442695
  %v7287 = vpow.pop %v7286
  %v7288 = vmul.f32 %v7214, 1.442695
  %v7289 = vpow.pop %v7288
  %v7290 = vmul.f32 %v7215, 1.442695
  %v7291 = vpow.pop %v7290
  %v7292 = vmul.f32 %v7216, 1.442695
  %v7293 = vpow.pop %v7292
  %v7294 = vmul.f32 %v7217, 1.442695
  %v7295 = vpow.pop %v7294
  %v7296 = vmul.f32 %v7218, 1.442695
  %v7297 = vpow.pop %v7296
  %v7298 = vmul.f32 %v7219, 1.442695
  %v7299 = vpow.pop %v7298
  %v7300 = vmul.f32 %v7220, 1.442695
  %v7301 = vpow.pop %v7300
  %v7302 = vmul.f32 %v7221, 1.442695
  %v7303 = vpow.pop %v7302
  %v7304 = vmul.f32 %v7222, 1.442695
  %v7305 = vpow.pop %v7304
  %v7306 = vmul.f32 %v7223, 1.442695
  %v7307 = vpow.pop %v7306
  %v7308 = vmul.f32 %v7224, 1.442695
  %v7309 = vpow.pop %v7308
  %v7310 = vmul.f32 %v7225, 1.442695
  %v7311 = vpow.pop %v7310
  %v7312 = vmul.f32 %v7226, 1.442695
  %v7313 = vpow.pop %v7312
  %v7314 = vmul.f32 %v7227, 1.442695
  %v7315 = vpow.pop %v7314
  %v7316 = vmul.f32 %v7228, 1.442695
  %v7317 = vpow.pop %v7316
  %v7318 = vmul.f32 %v7229, 1.442695
  %v7319 = vpow.pop %v7318
  %v7320 = vmul.f32 %v7230, 1.442695
  %v7321 = vpow.pop %v7320
  %v7322 = vmul.f32 %v7231, 1.442695
  %v7323 = vpow.pop %v7322
  %v7324 = vmul.f32 %v7232, 1.442695
  %v7325 = vpow.pop %v7324
  %v7326 = vmul.f32 %v7233, 1.442695
  %v7327 = vpow.pop %v7326
  %v7328 = vmul.f32 %v7234, 1.442695
  %v7329 = vpow.pop %v7328
  %v7330 = vmul.f32 %v7235, 1.442695
  %v7331 = vpow.pop %v7330
  %v7332 = vmul.f32 %v7236, 1.442695
  %v7333 = vpow.pop %v7332
  %v7334 = vmul.f32 %v7237, 1.442695
  %v7335 = vpow.pop %v7334
  %v7336 = vmul.f32 %v7238, 1.442695
  %v7337 = vpow.pop %v7336
  %v7338 = vmul.f32 %v7239, 1.442695
  %v7339 = vpow.pop %v7338
  %v7340 = vmul.f32 %v7240, 1.442695
  %v7341 = vpow.pop %v7340
  %v7342 = vmul.f32 %v7241, 1.442695
  %v7343 = vpow.pop %v7342
  %v7344 = vmul.f32 %v7242, 1.442695
  %v7345 = vpow.pop %v7344
  %v7346 = vmul.f32 %v7243, 1.442695
  %v7347 = vpow.pop %v7346
  %v7348 = vmul.f32 %v7244, 1.442695
  %v7349 = vpow.pop %v7348
  %v7350 = vmul.f32 %v7245, 1.442695
  %v7351 = vpow.pop %v7350
  %v7352 = vmul.f32 %v7246, 1.442695
  %v7353 = vpow.pop %v7352
  %v7354 = vmul.f32 %v7247, 1.442695
  %v7355 = vpow.pop %v7354
  %v7356 = vmul.f32 %v7248, 1.442695
  %v7357 = vpow.pop %v7356
  %v7358 = vmul.f32 %v7249, 1.442695
  %v7359 = vpow.pop %v7358
  %v7360 = vmul.f32 %v7250, 1.442695
  %v7361 = vpow.pop %v7360
  %v7362 = vmul.f32 %v7251, 1.442695
  %v7363 = vpow.pop %v7362
  %v7364 = vmul.f32 %v7252, 1.442695
  %v7365 = vpow.pop %v7364
  %v7366 = vmul.f32 %v7253, 1.442695
  %v7367 = vpow.pop %v7366
  %v7368 = vmul.f32 %v7254, 1.442695
  %v7369 = vpow.pop %v7368
  %v7370 = vmul.f32 %v7255, 1.442695
  %v7371 = vpow.pop %v7370
  %v7372 = vmul.f32 %v7256, 1.442695
  %v7373 = vpow.pop %v7372
  %v7374 = vmul.f32 %v7257, 1.442695
  %v7375 = vpow.pop %v7374
  %v7376 = vmul.f32 %v7258, 1.442695
  %v7377 = vpow.pop %v7376
  %v7378 = vmul.f32 %v7259, 1.442695
  %v7379 = vpow.pop %v7378
  %v7380 = vmul.f32 %v7260, 1.442695
  %v7381 = vpow.pop %v7380
  %v7382 = vmul.f32 %v7261, 1.442695
  %v7383 = vpow.pop %v7382
  %v7384 = vmul.f32 %v7262, 1.442695
  %v7385 = vpow.pop %v7384
  %v7386 = vmul.f32 %v7263, 1.442695
  %v7387 = vpow.pop %v7386
  %v7388 = vmul.f32 %v7264, 1.442695
  %v7389 = vpow.pop %v7388
  %v7390 = vmul.f32 %v7265, 1.442695
  %v7391 = vpow.pop %v7390
  %v7392 = vmul.f32 %v7266, 1.442695
  %v7393 = vpow.pop %v7392
  %v7394 = vmul.f32 %v7267, 1.442695
  %v7395 = vpow.pop %v7394
  %v7396 = vadd.f32 %v7269, 1.0
  %v7397 = vadd.f32 %v7271, 1.0
  %v7398 = vadd.f32 %v7273, 1.0
  %v7399 = vadd.f32 %v7275, 1.0
  %v7400 = vadd.f32 %v7277, 1.0
  %v7401 = vadd.f32 %v7279, 1.0
  %v7402 = vadd.f32 %v7281, 1.0
  %v7403 = vadd.f32 %v7283, 1.0
  %v7404 = vadd.f32 %v7285, 1.0
  %v7405 = vadd.f32 %v7287, 1.0
  %v7406 = vadd.f32 %v7289, 1.0
  %v7407 = vadd.f32 %v7291, 1.0
  %v7408 = vadd.f32 %v7293, 1.0
  %v7409 = vadd.f32 %v7295, 1.0
  %v7410 = vadd.f32 %v7297, 1.0
  %v7411 = vadd.f32 %v7299, 1.0
  %v7412 = vadd.f32 %v7301, 1.0
  %v7413 = vadd.f32 %v7303, 1.0
  %v7414 = vadd.f32 %v7305, 1.0
  %v7415 = vadd.f32 %v7307, 1.0
  %v7416 = vadd.f32 %v7309, 1.0
  %v7417 = vadd.f32 %v7311, 1.0
  %v7418 = vadd.f32 %v7313, 1.0
  %v7419 = vadd.f32 %v7315, 1.0
  %v7420 = vadd.f32 %v7317, 1.0
  %v7421 = vadd.f32 %v7319, 1.0
  %v7422 = vadd.f32 %v7321, 1.0
  %v7423 = vadd.f32 %v7323, 1.0
  %v7424 = vadd.f32 %v7325, 1.0
  %v7425 = vadd.f32 %v7327, 1.0
  %v7426 = vadd.f32 %v7329, 1.0
  %v7427 = vadd.f32 %v7331, 1.0
  %v7428 = vadd.f32 %v7333, 1.0
  %v7429 = vadd.f32 %v7335, 1.0
  %v7430 = vadd.f32 %v7337, 1.0
  %v7431 = vadd.f32 %v7339, 1.0
  %v7432 = vadd.f32 %v7341, 1.0
  %v7433 = vadd.f32 %v7343, 1.0
  %v7434 = vadd.f32 %v7345, 1.0
  %v7435 = vadd.f32 %v7347, 1.0
  %v7436 = vadd.f32 %v7349, 1.0
  %v7437 = vadd.f32 %v7351, 1.0
  %v7438 = vadd.f32 %v7353, 1.0
  %v7439 = vadd.f32 %v7355, 1.0
  %v7440 = vadd.f32 %v7357, 1.0
  %v7441 = vadd.f32 %v7359, 1.0
  %v7442 = vadd.f32 %v7361, 1.0
  %v7443 = vadd.f32 %v7363, 1.0
  %v7444 = vadd.f32 %v7365, 1.0
  %v7445 = vadd.f32 %v7367, 1.0
  %v7446 = vadd.f32 %v7369, 1.0
  %v7447 = vadd.f32 %v7371, 1.0
  %v7448 = vadd.f32 %v7373, 1.0
  %v7449 = vadd.f32 %v7375, 1.0
  %v7450 = vadd.f32 %v7377, 1.0
  %v7451 = vadd.f32 %v7379, 1.0
  %v7452 = vadd.f32 %v7381, 1.0
  %v7453 = vadd.f32 %v7383, 1.0
  %v7454 = vadd.f32 %v7385, 1.0
  %v7455 = vadd.f32 %v7387, 1.0
  %v7456 = vadd.f32 %v7389, 1.0
  %v7457 = vadd.f32 %v7391, 1.0
  %v7458 = vadd.f32 %v7393, 1.0
  %v7459 = vadd.f32 %v7395, 1.0
  %v7460 = vrcp.pop %v7396
  %v7461 = vmul.f32 1.0, %v7460
  %v7462 = vrcp.pop %v7397
  %v7463 = vmul.f32 1.0, %v7462
  %v7464 = vrcp.pop %v7398
  %v7465 = vmul.f32 1.0, %v7464
  %v7466 = vrcp.pop %v7399
  %v7467 = vmul.f32 1.0, %v7466
  %v7468 = vrcp.pop %v7400
  %v7469 = vmul.f32 1.0, %v7468
  %v7470 = vrcp.pop %v7401
  %v7471 = vmul.f32 1.0, %v7470
  %v7472 = vrcp.pop %v7402
  %v7473 = vmul.f32 1.0, %v7472
  %v7474 = vrcp.pop %v7403
  %v7475 = vmul.f32 1.0, %v7474
  %v7476 = vrcp.pop %v7404
  %v7477 = vmul.f32 1.0, %v7476
  %v7478 = vrcp.pop %v7405
  %v7479 = vmul.f32 1.0, %v7478
  %v7480 = vrcp.pop %v7406
  %v7481 = vmul.f32 1.0, %v7480
  %v7482 = vrcp.pop %v7407
  %v7483 = vmul.f32 1.0, %v7482
  %v7484 = vrcp.pop %v7408
  %v7485 = vmul.f32 1.0, %v7484
  %v7486 = vrcp.pop %v7409
  %v7487 = vmul.f32 1.0, %v7486
  %v7488 = vrcp.pop %v7410
  %v7489 = vmul.f32 1.0, %v7488
  %v7490 = vrcp.pop %v7411
  %v7491 = vmul.f32 1.0, %v7490
  %v7492 = vrcp.pop %v7412
  %v7493 = vmul.f32 1.0, %v7492
  %v7494 = vrcp.pop %v7413
  %v7495 = vmul.f32 1.0, %v7494
  %v7496 = vrcp.pop %v7414
  %v7497 = vmul.f32 1.0, %v7496
  %v7498 = vrcp.pop %v7415
  %v7499 = vmul.f32 1.0, %v7498
  %v7500 = vrcp.pop %v7416
  %v7501 = vmul.f32 1.0, %v7500
  %v7502 = vrcp.pop %v7417
  %v7503 = vmul.f32 1.0, %v7502
  %v7504 = vrcp.pop %v7418
  %v7505 = vmul.f32 1.0, %v7504
  %v7506 = vrcp.pop %v7419
  %v7507 = vmul.f32 1.0, %v7506
  %v7508 = vrcp.pop %v7420
  %v7509 = vmul.f32 1.0, %v7508
  %v7510 = vrcp.pop %v7421
  %v7511 = vmul.f32 1.0, %v7510
  %v7512 = vrcp.pop %v7422
  %v7513 = vmul.f32 1.0, %v7512
  %v7514 = vrcp.pop %v7423
  %v7515 = vmul.f32 1.0, %v7514
  %v7516 = vrcp.pop %v7424
  %v7517 = vmul.f32 1.0, %v7516
  %v7518 = vrcp.pop %v7425
  %v7519 = vmul.f32 1.0, %v7518
  %v7520 = vrcp.pop %v7426
  %v7521 = vmul.f32 1.0, %v7520
  %v7522 = vrcp.pop %v7427
  %v7523 = vmul.f32 1.0, %v7522
  %v7524 = vrcp.pop %v7428
  %v7525 = vmul.f32 1.0, %v7524
  %v7526 = vrcp.pop %v7429
  %v7527 = vmul.f32 1.0, %v7526
  %v7528 = vrcp.pop %v7430
  %v7529 = vmul.f32 1.0, %v7528
  %v7530 = vrcp.pop %v7431
  %v7531 = vmul.f32 1.0, %v7530
  %v7532 = vrcp.pop %v7432
  %v7533 = vmul.f32 1.0, %v7532
  %v7534 = vrcp.pop %v7433
  %v7535 = vmul.f32 1.0, %v7534
  %v7536 = vrcp.pop %v7434
  %v7537 = vmul.f32 1.0, %v7536
  %v7538 = vrcp.pop %v7435
  %v7539 = vmul.f32 1.0, %v7538
  %v7540 = vrcp.pop %v7436
  %v7541 = vmul.f32 1.0, %v7540
  %v7542 = vrcp.pop %v7437
  %v7543 = vmul.f32 1.0, %v7542
  %v7544 = vrcp.pop %v7438
  %v7545 = vmul.f32 1.0, %v7544
  %v7546 = vrcp.pop %v7439
  %v7547 = vmul.f32 1.0, %v7546
  %v7548 = vrcp.pop %v7440
  %v7549 = vmul.f32 1.0, %v7548
  %v7550 = vrcp.pop %v7441
  %v7551 = vmul.f32 1.0, %v7550
  %v7552 = vrcp.pop %v7442
  %v7553 = vmul.f32 1.0, %v7552
  %v7554 = vrcp.pop %v7443
  %v7555 = vmul.f32 1.0, %v7554
  %v7556 = vrcp.pop %v7444
  %v7557 = vmul.f32 1.0, %v7556
  %v7558 = vrcp.pop %v7445
  %v7559 = vmul.f32 1.0, %v7558
  %v7560 = vrcp.pop %v7446
  %v7561 = vmul.f32 1.0, %v7560
  %v7562 = vrcp.pop %v7447
  %v7563 = vmul.f32 1.0, %v7562
  %v7564 = vrcp.pop %v7448
  %v7565 = vmul.f32 1.0, %v7564
  %v7566 = vrcp.pop %v7449
  %v7567 = vmul.f32 1.0, %v7566
  %v7568 = vrcp.pop %v7450
  %v7569 = vmul.f32 1.0, %v7568
  %v7570 = vrcp.pop %v7451
  %v7571 = vmul.f32 1.0, %v7570
  %v7572 = vrcp.pop %v7452
  %v7573 = vmul.f32 1.0, %v7572
  %v7574 = vrcp.pop %v7453
  %v7575 = vmul.f32 1.0, %v7574
  %v7576 = vrcp.pop %v7454
  %v7577 = vmul.f32 1.0, %v7576
  %v7578 = vrcp.pop %v7455
  %v7579 = vmul.f32 1.0, %v7578
  %v7580 = vrcp.pop %v7456
  %v7581 = vmul.f32 1.0, %v7580
  %v7582 = vrcp.pop %v7457
  %v7583 = vmul.f32 1.0, %v7582
  %v7584 = vrcp.pop %v7458
  %v7585 = vmul.f32 1.0, %v7584
  %v7586 = vrcp.pop %v7459
  %v7587 = vmul.f32 1.0, %v7586
  %v7588 = vmul.f32 %v7461, %v6107
  %v7589 = vmul.f32 %v7463, %v6108
  %v7590 = vmul.f32 %v7465, %v6109
  %v7591 = vmul.f32 %v7467, %v6110
  %v7592 = vmul.f32 %v7469, %v6111
  %v7593 = vmul.f32 %v7471, %v6112
  %v7594 = vmul.f32 %v7473, %v6113
  %v7595 = vmul.f32 %v7475, %v6114
  %v7596 = vmul.f32 %v7477, %v6115
  %v7597 = vmul.f32 %v7479, %v6116
  %v7598 = vmul.f32 %v7481, %v6117
  %v7599 = vmul.f32 %v7483, %v6118
  %v7600 = vmul.f32 %v7485, %v6119
  %v7601 = vmul.f32 %v7487, %v6120
  %v7602 = vmul.f32 %v7489, %v6121
  %v7603 = vmul.f32 %v7491, %v6122
  %v7604 = vmul.f32 %v7493, %v6123
  %v7605 = vmul.f32 %v7495, %v6124
  %v7606 = vmul.f32 %v7497, %v6125
  %v7607 = vmul.f32 %v7499, %v6126
  %v7608 = vmul.f32 %v7501, %v6127
  %v7609 = vmul.f32 %v7503, %v6128
  %v7610 = vmul.f32 %v7505, %v6129
  %v7611 = vmul.f32 %v7507, %v6130
  %v7612 = vmul.f32 %v7509, %v6131
  %v7613 = vmul.f32 %v7511, %v6132
  %v7614 = vmul.f32 %v7513, %v6133
  %v7615 = vmul.f32 %v7515, %v6134
  %v7616 = vmul.f32 %v7517, %v6135
  %v7617 = vmul.f32 %v7519, %v6136
  %v7618 = vmul.f32 %v7521, %v6137
  %v7619 = vmul.f32 %v7523, %v6138
  %v7620 = vmul.f32 %v7525, %v6139
  %v7621 = vmul.f32 %v7527, %v6140
  %v7622 = vmul.f32 %v7529, %v6141
  %v7623 = vmul.f32 %v7531, %v6142
  %v7624 = vmul.f32 %v7533, %v6143
  %v7625 = vmul.f32 %v7535, %v6144
  %v7626 = vmul.f32 %v7537, %v6145
  %v7627 = vmul.f32 %v7539, %v6146
  %v7628 = vmul.f32 %v7541, %v6147
  %v7629 = vmul.f32 %v7543, %v6148
  %v7630 = vmul.f32 %v7545, %v6149
  %v7631 = vmul.f32 %v7547, %v6150
  %v7632 = vmul.f32 %v7549, %v6151
  %v7633 = vmul.f32 %v7551, %v6152
  %v7634 = vmul.f32 %v7553, %v6153
  %v7635 = vmul.f32 %v7555, %v6154
  %v7636 = vmul.f32 %v7557, %v6155
  %v7637 = vmul.f32 %v7559, %v6156
  %v7638 = vmul.f32 %v7561, %v6157
  %v7639 = vmul.f32 %v7563, %v6158
  %v7640 = vmul.f32 %v7565, %v6159
  %v7641 = vmul.f32 %v7567, %v6160
  %v7642 = vmul.f32 %v7569, %v6161
  %v7643 = vmul.f32 %v7571, %v6162
  %v7644 = vmul.f32 %v7573, %v6163
  %v7645 = vmul.f32 %v7575, %v6164
  %v7646 = vmul.f32 %v7577, %v6165
  %v7647 = vmul.f32 %v7579, %v6166
  %v7648 = vmul.f32 %v7581, %v6167
  %v7649 = vmul.f32 %v7583, %v6168
  %v7650 = vmul.f32 %v7585, %v6169
  %v7651 = vmul.f32 %v7587, %v6170
  %v7652 = vpack.c.bf16 %v7589, %v7588
  %v7653 = vpack.c.bf16 %v7591, %v7590
  %v7654 = vpack.c.bf16 %v7593, %v7592
  %v7655 = vpack.c.bf16 %v7595, %v7594
  %v7656 = vpack.c.bf16 %v7597, %v7596
  %v7657 = vpack.c.bf16 %v7599, %v7598
  %v7658 = vpack.c.bf16 %v7601, %v7600
  %v7659 = vpack.c.bf16 %v7603, %v7602
  %v7660 = vpack.c.bf16 %v7605, %v7604
  %v7661 = vpack.c.bf16 %v7607, %v7606
  %v7662 = vpack.c.bf16 %v7609, %v7608
  %v7663 = vpack.c.bf16 %v7611, %v7610
  %v7664 = vpack.c.bf16 %v7613, %v7612
  %v7665 = vpack.c.bf16 %v7615, %v7614
  %v7666 = vpack.c.bf16 %v7617, %v7616
  %v7667 = vpack.c.bf16 %v7619, %v7618
  %v7668 = vpack.c.bf16 %v7621, %v7620
  %v7669 = vpack.c.bf16 %v7623, %v7622
  %v7670 = vpack.c.bf16 %v7625, %v7624
  %v7671 = vpack.c.bf16 %v7627, %v7626
  %v7672 = vpack.c.bf16 %v7629, %v7628
  %v7673 = vpack.c.bf16 %v7631, %v7630
  %v7674 = vpack.c.bf16 %v7633, %v7632
  %v7675 = vpack.c.bf16 %v7635, %v7634
  %v7676 = vpack.c.bf16 %v7637, %v7636
  %v7677 = vpack.c.bf16 %v7639, %v7638
  %v7678 = vpack.c.bf16 %v7641, %v7640
  %v7679 = vpack.c.bf16 %v7643, %v7642
  %v7680 = vpack.c.bf16 %v7645, %v7644
  %v7681 = vpack.c.bf16 %v7647, %v7646
  %v7682 = vpack.c.bf16 %v7649, %v7648
  %v7683 = vpack.c.bf16 %v7651, %v7650
  %7684 = vmatprep.subr.bf16.mxu0 0
  %7685 = vmatpush1.bf16.msra.mxu0 %v7659
  %7686 = vmatprep.subr.bf16.mxu0 0
  %7687 = vmatpush1.bf16.msra.mxu0 %v7658
  %7688 = vmatprep.subr.bf16.mxu0 0
  %7689 = vmatpush1.bf16.msra.mxu0 %v7657
  %7690 = vmatprep.subr.bf16.mxu0 0
  %7691 = vmatpush1.bf16.msra.mxu0 %v7656
  %7692 = vmatprep.subr.bf16.mxu0 0
  %7693 = vmatpush1.bf16.msra.mxu0 %v7655
  %7694 = vmatprep.subr.bf16.mxu0 0
  %7695 = vmatpush1.bf16.msra.mxu0 %v7654
  %7696 = vmatprep.subr.bf16.mxu0 0
  %7697 = vmatpush1.bf16.msra.mxu0 %v7653
  %7698 = vmatprep.subr.bf16.mxu0 0
  %7699 = vmatpush1.bf16.msra.mxu0 %v7652
  %7700 = vmatprep.subr.bf16.mxu0 0
  %7701 = vmatpush2.bf16.msra.mxu0 %v7667
  %7702 = vmatprep.subr.bf16.mxu0 0
  %7703 = vmatpush2.bf16.msra.mxu0 %v7666
  %7704 = vmatprep.subr.bf16.mxu0 0
  %7705 = vmatpush2.bf16.msra.mxu0 %v7665
  %7706 = vmatprep.subr.bf16.mxu0 0
  %7707 = vmatpush2.bf16.msra.mxu0 %v7664
  %7708 = vmatprep.subr.bf16.mxu0 0
  %7709 = vmatpush2.bf16.msra.mxu0 %v7663
  %7710 = vmatprep.subr.bf16.mxu0 0
  %7711 = vmatpush2.bf16.msra.mxu0 %v7662
  %7712 = vmatprep.subr.bf16.mxu0 0
  %7713 = vmatpush2.bf16.msra.mxu0 %v7661
  %7714 = vmatprep.subr.bf16.mxu0 0
  %7715 = vmatpush2.bf16.msra.mxu0 %v7660
  %7716 = vmatprep.mubr.bf16.mxu0 %v6228
  %7717 = vmatmul.mubr.bf16.gmra.mxu0 %v6227
  %v7718 = vpop.f32.mrf.mxu0
  %v7719 = vadd.f32 0.0, %v7718
  %v7720 = vpop.f32.mrf.mxu0
  %v7721 = vpop.f32.mrf.mxu0
  %v7722 = vadd.f32 0.0, %v7721
  %v7723 = vpop.f32.mrf.mxu0
  %7724 = vmatprep.mubr.bf16.mxu0 %v6232
  %7725 = vmatmul.mubr.bf16.gmra.mxu0 %v6231
  %v7726 = vpop.f32.mrf.mxu0
  %v7727 = vadd.f32 0.0, %v7726
  %v7728 = vpop.f32.mrf.mxu0
  %v7729 = vpop.f32.mrf.mxu0
  %v7730 = vadd.f32 0.0, %v7729
  %v7731 = vpop.f32.mrf.mxu0
  %7732 = vdwg.mxu0
  %7733 = vmatprep.subr.bf16.mxu0 0
  %7734 = vmatpush1.bf16.msra.mxu0 %v7675
  %7735 = vmatprep.subr.bf16.mxu0 0
  %7736 = vmatpush1.bf16.msra.mxu0 %v7674
  %7737 = vmatprep.subr.bf16.mxu0 0
  %7738 = vmatpush1.bf16.msra.mxu0 %v7673
  %7739 = vmatprep.subr.bf16.mxu0 0
  %7740 = vmatpush1.bf16.msra.mxu0 %v7672
  %7741 = vmatprep.subr.bf16.mxu0 0
  %7742 = vmatpush1.bf16.msra.mxu0 %v7671
  %7743 = vmatprep.subr.bf16.mxu0 0
  %7744 = vmatpush1.bf16.msra.mxu0 %v7670
  %7745 = vmatprep.subr.bf16.mxu0 0
  %7746 = vmatpush1.bf16.msra.mxu0 %v7669
  %7747 = vmatprep.subr.bf16.mxu0 0
  %7748 = vmatpush1.bf16.msra.mxu0 %v7668
  %7749 = vmatprep.subr.bf16.mxu0 0
  %7750 = vmatpush2.bf16.msra.mxu0 %v7683
  %7751 = vmatprep.subr.bf16.mxu0 0
  %7752 = vmatpush2.bf16.msra.mxu0 %v7682
  %7753 = vmatprep.subr.bf16.mxu0 0
  %7754 = vmatpush2.bf16.msra.mxu0 %v7681
  %7755 = vmatprep.subr.bf16.mxu0 0
  %7756 = vmatpush2.bf16.msra.mxu0 %v7680
  %7757 = vmatprep.subr.bf16.mxu0 0
  %7758 = vmatpush2.bf16.msra.mxu0 %v7679
  %7759 = vmatprep.subr.bf16.mxu0 0
  %7760 = vmatpush2.bf16.msra.mxu0 %v7678
  %7761 = vmatprep.subr.bf16.mxu0 0
  %7762 = vmatpush2.bf16.msra.mxu0 %v7677
  %7763 = vmatprep.subr.bf16.mxu0 0
  %7764 = vmatpush2.bf16.msra.mxu0 %v7676
  %7765 = vmatprep.mubr.bf16.mxu0 %v6230
  %7766 = vmatmul.mubr.bf16.gmra.mxu0 %v6229
  %v7767 = vpop.f32.mrf.mxu0
  %v7768 = vadd.f32 %v7719, %v7767
  %v7769 = vpop.f32.mrf.mxu0
  %v7770 = vpop.f32.mrf.mxu0
  %v7771 = vadd.f32 %v7722, %v7770
  %v7772 = vpop.f32.mrf.mxu0
  %7773 = vmatprep.mubr.bf16.mxu0 %v6234
  %7774 = vmatmul.mubr.bf16.gmra.mxu0 %v6233
  %v7775 = vpop.f32.mrf.mxu0
  %v7776 = vadd.f32 %v7727, %v7775
  %v7777 = vpop.f32.mrf.mxu0
  %v7778 = vpop.f32.mrf.mxu0
  %v7779 = vadd.f32 %v7730, %v7778
  %v7780 = vpop.f32.mrf.mxu0
  %7781 = vdwg.mxu0
  %v7782 = vld [vmem:[%s2 + $0xc8] sm:$0xf]
  %v7783 = vld [vmem:[%s2 + $0xcc] sm:$0xf]
  %v7784 = vld [vmem:[%s2 + $0xd0] sm:$0xf]
  %v7785 = vld [vmem:[%s2 + $0xd4] sm:$0xf]
  %v7786 = vld [vmem:[%s2 + $0xd8] sm:$0xf]
  %v7787 = vld [vmem:[%s2 + $0xdc] sm:$0xf]
  %v7788 = vld [vmem:[%s2 + $0xe0] sm:$0xf]
  %v7789 = vld [vmem:[%s2 + $0xe4] sm:$0xf]
  %v7790 = vld [vmem:[%s2 + $0xe8] sm:$0xf]
  %v7791 = vld [vmem:[%s2 + $0xec] sm:$0xf]
  %v7792 = vld [vmem:[%s2 + $0xf0] sm:$0xf]
  %v7793 = vld [vmem:[%s2 + $0xf4] sm:$0xf]
  %v7794 = vld [vmem:[%s2 + $0xf8] sm:$0xf]
  %v7795 = vld [vmem:[%s2 + $0xfc] sm:$0xf]
  %v7796 = vld [vmem:[%s2 + $0x100] sm:$0xf]
  %v7797 = vld [vmem:[%s2 + $0x104] sm:$0xf]
  %v7798 = vpack.c.bf16 %v7771, %v7768
  %v7815 = vunpack.c.l.b16 %v7782
  %v7816 = vunpack.c.l.b16 %v7783
  %v7817 = vunpack.c.l.b16 %v7784
  %v7818 = vunpack.c.l.b16 %v7785
  %v7819 = vunpack.c.l.b16 %v7786
  %v7820 = vunpack.c.l.b16 %v7787
  %v7821 = vunpack.c.l.b16 %v7788
  %v7822 = vunpack.c.l.b16 %v7789
  %v7823 = vunpack.c.l.b16 %v7790
  %v7824 = vunpack.c.l.b16 %v7791
  %v7825 = vunpack.c.l.b16 %v7792
  %v7826 = vunpack.c.l.b16 %v7793
  %v7827 = vunpack.c.l.b16 %v7794
  %v7828 = vunpack.c.l.b16 %v7795
  %v7829 = vunpack.c.l.b16 %v7796
  %v7830 = vunpack.c.l.b16 %v7797
  %v7831 = vpack.c.b16 %v7816, %v7815
  %v7832 = vpack.c.b16 %v7818, %v7817
  %v7833 = vpack.c.b16 %v7820, %v7819
  %v7834 = vpack.c.b16 %v7822, %v7821
  %v7835 = vpack.c.b16 %v7824, %v7823
  %v7836 = vpack.c.b16 %v7826, %v7825
  %v7837 = vpack.c.b16 %v7828, %v7827
  %v7838 = vpack.c.b16 %v7830, %v7829
  %7847 = vmatprep.subr.bf16.mxu0 0
  %7848 = vmatpush1.bf16.msra.mxu0 %v7838
  %7849 = vmatprep.subr.bf16.mxu0 0
  %7850 = vmatpush1.bf16.msra.mxu0 %v7837
  %7851 = vmatprep.subr.bf16.mxu0 0
  %7852 = vmatpush1.bf16.msra.mxu0 %v7836
  %7853 = vmatprep.subr.bf16.mxu0 0
  %7854 = vmatpush1.bf16.msra.mxu0 %v7835
  %7855 = vmatprep.subr.bf16.mxu0 0
  %7856 = vmatpush1.bf16.msra.mxu0 %v7834
  %7857 = vmatprep.subr.bf16.mxu0 0
  %7858 = vmatpush1.bf16.msra.mxu0 %v7833
  %7859 = vmatprep.subr.bf16.mxu0 0
  %7860 = vmatpush1.bf16.msra.mxu0 %v7832
  %7861 = vmatprep.subr.bf16.mxu0 0
  %7862 = vmatpush1.bf16.msra.mxu0 %v7831
  %7863 = vmatprep.subr.bf16.mxu0 0
  %7864 = vmatpush2.bf16.msra.mxu0 0
  %7865 = vmatprep.subr.bf16.mxu0 0
  %7866 = vmatpush2.bf16.msra.mxu0 0
  %7867 = vmatprep.subr.bf16.mxu0 0
  %7868 = vmatpush2.bf16.msra.mxu0 0
  %7869 = vmatprep.subr.bf16.mxu0 0
  %7870 = vmatpush2.bf16.msra.mxu0 0
  %7871 = vmatprep.subr.bf16.mxu0 0
  %7872 = vmatpush2.bf16.msra.mxu0 0
  %7873 = vmatprep.subr.bf16.mxu0 0
  %7874 = vmatpush2.bf16.msra.mxu0 0
  %7875 = vmatprep.subr.bf16.mxu0 0
  %7876 = vmatpush2.bf16.msra.mxu0 0
  %7877 = vmatprep.subr.bf16.mxu0 0
  %7878 = vmatpush2.bf16.msra.mxu0 0
  %7879 = vmatprep.mubr.bf16.mxu0 0
  %7880 = vmatmul.mubr.bf16.gmra.mxu0 %v7798
  %v7881 = vpop.f32.mrf.mxu0
  %v7882 = vadd.f32 0.0, %v7881
  %v7883 = vpop.f32.mrf.mxu0
  %v7884 = vpop.f32.mrf.mxu0
  %v7885 = vadd.f32 0.0, %v7884
  %v7886 = vpop.f32.mrf.mxu0
  %7887 = vdwg.mxu0
  %v7888 = vld [vmem:[%s2 + $0x108] sm:$0xf]
  %v7889 = vld [vmem:[%s2 + $0x10c] sm:$0xf]
  %v7890 = vld [vmem:[%s2 + $0x110] sm:$0xf]
  %v7891 = vld [vmem:[%s2 + $0x114] sm:$0xf]
  %v7892 = vld [vmem:[%s2 + $0x118] sm:$0xf]
  %v7893 = vld [vmem:[%s2 + $0x11c] sm:$0xf]
  %v7894 = vld [vmem:[%s2 + $0x120] sm:$0xf]
  %v7895 = vld [vmem:[%s2 + $0x124] sm:$0xf]
  %v7896 = vld [vmem:[%s2 + $0x128] sm:$0xf]
  %v7897 = vld [vmem:[%s2 + $0x12c] sm:$0xf]
  %v7898 = vld [vmem:[%s2 + $0x130] sm:$0xf]
  %v7899 = vld [vmem:[%s2 + $0x134] sm:$0xf]
  %v7900 = vld [vmem:[%s2 + $0x138] sm:$0xf]
  %v7901 = vld [vmem:[%s2 + $0x13c] sm:$0xf]
  %v7902 = vld [vmem:[%s2 + $0x140] sm:$0xf]
  %v7903 = vld [vmem:[%s2 + $0x144] sm:$0xf]
  %v7904 = vpack.c.bf16 %v7779, %v7776
  %v7921 = vunpack.c.l.b16 %v7888
  %v7922 = vunpack.c.l.b16 %v7889
  %v7923 = vunpack.c.l.b16 %v7890
  %v7924 = vunpack.c.l.b16 %v7891
  %v7925 = vunpack.c.l.b16 %v7892
  %v7926 = vunpack.c.l.b16 %v7893
  %v7927 = vunpack.c.l.b16 %v7894
  %v7928 = vunpack.c.l.b16 %v7895
  %v7929 = vunpack.c.l.b16 %v7896
  %v7930 = vunpack.c.l.b16 %v7897
  %v7931 = vunpack.c.l.b16 %v7898
  %v7932 = vunpack.c.l.b16 %v7899
  %v7933 = vunpack.c.l.b16 %v7900
  %v7934 = vunpack.c.l.b16 %v7901
  %v7935 = vunpack.c.l.b16 %v7902
  %v7936 = vunpack.c.l.b16 %v7903
  %v7937 = vpack.c.b16 %v7922, %v7921
  %v7938 = vpack.c.b16 %v7924, %v7923
  %v7939 = vpack.c.b16 %v7926, %v7925
  %v7940 = vpack.c.b16 %v7928, %v7927
  %v7941 = vpack.c.b16 %v7930, %v7929
  %v7942 = vpack.c.b16 %v7932, %v7931
  %v7943 = vpack.c.b16 %v7934, %v7933
  %v7944 = vpack.c.b16 %v7936, %v7935
  %7953 = vmatprep.subr.bf16.mxu0 0
  %7954 = vmatpush1.bf16.msra.mxu0 %v7944
  %7955 = vmatprep.subr.bf16.mxu0 0
  %7956 = vmatpush1.bf16.msra.mxu0 %v7943
  %7957 = vmatprep.subr.bf16.mxu0 0
  %7958 = vmatpush1.bf16.msra.mxu0 %v7942
  %7959 = vmatprep.subr.bf16.mxu0 0
  %7960 = vmatpush1.bf16.msra.mxu0 %v7941
  %7961 = vmatprep.subr.bf16.mxu0 0
  %7962 = vmatpush1.bf16.msra.mxu0 %v7940
  %7963 = vmatprep.subr.bf16.mxu0 0
  %7964 = vmatpush1.bf16.msra.mxu0 %v7939
  %7965 = vmatprep.subr.bf16.mxu0 0
  %7966 = vmatpush1.bf16.msra.mxu0 %v7938
  %7967 = vmatprep.subr.bf16.mxu0 0
  %7968 = vmatpush1.bf16.msra.mxu0 %v7937
  %7969 = vmatprep.subr.bf16.mxu0 0
  %7970 = vmatpush2.bf16.msra.mxu0 0
  %7971 = vmatprep.subr.bf16.mxu0 0
  %7972 = vmatpush2.bf16.msra.mxu0 0
  %7973 = vmatprep.subr.bf16.mxu0 0
  %7974 = vmatpush2.bf16.msra.mxu0 0
  %7975 = vmatprep.subr.bf16.mxu0 0
  %7976 = vmatpush2.bf16.msra.mxu0 0
  %7977 = vmatprep.subr.bf16.mxu0 0
  %7978 = vmatpush2.bf16.msra.mxu0 0
  %7979 = vmatprep.subr.bf16.mxu0 0
  %7980 = vmatpush2.bf16.msra.mxu0 0
  %7981 = vmatprep.subr.bf16.mxu0 0
  %7982 = vmatpush2.bf16.msra.mxu0 0
  %7983 = vmatprep.subr.bf16.mxu0 0
  %7984 = vmatpush2.bf16.msra.mxu0 0
  %7985 = vmatprep.mubr.bf16.mxu0 0
  %7986 = vmatmul.mubr.bf16.gmra.mxu0 %v7904
  %v7987 = vpop.f32.mrf.mxu0
  %v7988 = vadd.f32 0.0, %v7987
  %v7989 = vpop.f32.mrf.mxu0
  %v7990 = vpop.f32.mrf.mxu0
  %v7991 = vadd.f32 0.0, %v7990
  %v7992 = vpop.f32.mrf.mxu0
  %7993 = vdwg.mxu0
  %v7994 = vmul.f32 %v7882, %v7988
  %v7995 = vmul.f32 %v7885, %v7991
  %v7996 = vld [vmem:[%s2 + $0x148] sm:$0xf]
  %v7997 = vld [vmem:[%s2 + $0x14c] sm:$0xf]
  %v7998 = vld [vmem:[%s2 + $0x150] sm:$0xf]
  %v7999 = vld [vmem:[%s2 + $0x154] sm:$0xf]
  %v8000 = vld [vmem:[%s2 + $0x158] sm:$0xf]
  %v8001 = vld [vmem:[%s2 + $0x15c] sm:$0xf]
  %v8002 = vld [vmem:[%s2 + $0x160] sm:$0xf]
  %v8003 = vld [vmem:[%s2 + $0x164] sm:$0xf]
  %v8004 = vld [vmem:[%s2 + $0x168] sm:$0xf]
  %v8005 = vld [vmem:[%s2 + $0x16c] sm:$0xf]
  %v8006 = vld [vmem:[%s2 + $0x170] sm:$0xf]
  %v8007 = vld [vmem:[%s2 + $0x174] sm:$0xf]
  %v8008 = vld [vmem:[%s2 + $0x178] sm:$0xf]
  %v8009 = vld [vmem:[%s2 + $0x17c] sm:$0xf]
  %v8010 = vld [vmem:[%s2 + $0x180] sm:$0xf]
  %v8011 = vld [vmem:[%s2 + $0x184] sm:$0xf]
  %v8012 = vpack.c.bf16 %v7995, %v7994
  %v8013 = vld [vmem:[%s2 + $0x188] sm:$0xf]
  %v8014 = vld [vmem:[%s2 + $0x18c] sm:$0xf]
  %v8015 = vld [vmem:[%s2 + $0x190] sm:$0xf]
  %v8016 = vld [vmem:[%s2 + $0x194] sm:$0xf]
  %v8017 = vld [vmem:[%s2 + $0x198] sm:$0xf]
  %v8018 = vld [vmem:[%s2 + $0x19c] sm:$0xf]
  %v8019 = vld [vmem:[%s2 + $0x1a0] sm:$0xf]
  %v8020 = vld [vmem:[%s2 + $0x1a4] sm:$0xf]
  %v8021 = vld [vmem:[%s2 + $0x1a8] sm:$0xf]
  %v8022 = vld [vmem:[%s2 + $0x1ac] sm:$0xf]
  %v8023 = vld [vmem:[%s2 + $0x1b0] sm:$0xf]
  %v8024 = vld [vmem:[%s2 + $0x1b4] sm:$0xf]
  %v8025 = vld [vmem:[%s2 + $0x1b8] sm:$0xf]
  %v8026 = vld [vmem:[%s2 + $0x1bc] sm:$0xf]
  %v8027 = vld [vmem:[%s2 + $0x1c0] sm:$0xf]
  %v8028 = vld [vmem:[%s2 + $0x1c4] sm:$0xf]
  %v8029 = vld [vmem:[%s2 + $0x1c8] sm:$0xf]
  %v8030 = vld [vmem:[%s2 + $0x1cc] sm:$0xf]
  %v8031 = vld [vmem:[%s2 + $0x1d0] sm:$0xf]
  %v8032 = vld [vmem:[%s2 + $0x1d4] sm:$0xf]
  %v8033 = vld [vmem:[%s2 + $0x1d8] sm:$0xf]
  %v8034 = vld [vmem:[%s2 + $0x1dc] sm:$0xf]
  %v8035 = vld [vmem:[%s2 + $0x1e0] sm:$0xf]
  %v8036 = vld [vmem:[%s2 + $0x1e4] sm:$0xf]
  %v8037 = vld [vmem:[%s2 + $0x1e8] sm:$0xf]
  %v8038 = vld [vmem:[%s2 + $0x1ec] sm:$0xf]
  %v8039 = vld [vmem:[%s2 + $0x1f0] sm:$0xf]
  %v8040 = vld [vmem:[%s2 + $0x1f4] sm:$0xf]
  %v8041 = vld [vmem:[%s2 + $0x1f8] sm:$0xf]
  %v8042 = vld [vmem:[%s2 + $0x1fc] sm:$0xf]
  %v8043 = vld [vmem:[%s2 + $0x200] sm:$0xf]
  %v8044 = vld [vmem:[%s2 + $0x204] sm:$0xf]
  %v8061 = vunpack.c.l.b16 %v8029
  %v8062 = vunpack.c.l.b16 %v8030
  %v8063 = vunpack.c.l.b16 %v8031
  %v8064 = vunpack.c.l.b16 %v8032
  %v8065 = vunpack.c.l.b16 %v8033
  %v8066 = vunpack.c.l.b16 %v8034
  %v8067 = vunpack.c.l.b16 %v8035
  %v8068 = vunpack.c.l.b16 %v8036
  %v8069 = vunpack.c.l.b16 %v8037
  %v8070 = vunpack.c.l.b16 %v8038
  %v8071 = vunpack.c.l.b16 %v8039
  %v8072 = vunpack.c.l.b16 %v8040
  %v8073 = vunpack.c.l.b16 %v8041
  %v8074 = vunpack.c.l.b16 %v8042
  %v8075 = vunpack.c.l.b16 %v8043
  %v8076 = vunpack.c.l.b16 %v8044
  %v8077 = vpack.c.b16 %v8062, %v8061
  %v8078 = vpack.c.b16 %v8064, %v8063
  %v8079 = vpack.c.b16 %v8066, %v8065
  %v8080 = vpack.c.b16 %v8068, %v8067
  %v8081 = vpack.c.b16 %v8070, %v8069
  %v8082 = vpack.c.b16 %v8072, %v8071
  %v8083 = vpack.c.b16 %v8074, %v8073
  %v8084 = vpack.c.b16 %v8076, %v8075
  %8093 = vmatprep.subr.bf16.mxu0 0
  %8094 = vmatpush1.bf16.msra.mxu0 %v8084
  %8095 = vmatprep.subr.bf16.mxu0 0
  %8096 = vmatpush1.bf16.msra.mxu0 %v8083
  %8097 = vmatprep.subr.bf16.mxu0 0
  %8098 = vmatpush1.bf16.msra.mxu0 %v8082
  %8099 = vmatprep.subr.bf16.mxu0 0
  %8100 = vmatpush1.bf16.msra.mxu0 %v8081
  %8101 = vmatprep.subr.bf16.mxu0 0
  %8102 = vmatpush1.bf16.msra.mxu0 %v8080
  %8103 = vmatprep.subr.bf16.mxu0 0
  %8104 = vmatpush1.bf16.msra.mxu0 %v8079
  %8105 = vmatprep.subr.bf16.mxu0 0
  %8106 = vmatpush1.bf16.msra.mxu0 %v8078
  %8107 = vmatprep.subr.bf16.mxu0 0
  %8108 = vmatpush1.bf16.msra.mxu0 %v8077
  %8109 = vmatprep.subr.bf16.mxu0 0
  %8110 = vmatpush2.bf16.msra.mxu0 0
  %8111 = vmatprep.subr.bf16.mxu0 0
  %8112 = vmatpush2.bf16.msra.mxu0 0
  %8113 = vmatprep.subr.bf16.mxu0 0
  %8114 = vmatpush2.bf16.msra.mxu0 0
  %8115 = vmatprep.subr.bf16.mxu0 0
  %8116 = vmatpush2.bf16.msra.mxu0 0
  %8117 = vmatprep.subr.bf16.mxu0 0
  %8118 = vmatpush2.bf16.msra.mxu0 0
  %8119 = vmatprep.subr.bf16.mxu0 0
  %8120 = vmatpush2.bf16.msra.mxu0 0
  %8121 = vmatprep.subr.bf16.mxu0 0
  %8122 = vmatpush2.bf16.msra.mxu0 0
  %8123 = vmatprep.subr.bf16.mxu0 0
  %8124 = vmatpush2.bf16.msra.mxu0 0
  %8125 = vmatprep.mubr.bf16.mxu0 0
  %8126 = vmatmul.mubr.bf16.gmra.mxu0 %v7904
  %v8127 = vpop.f32.mrf.mxu0
  %v8128 = vadd.f32 0.0, %v8127
  %v8129 = vpop.f32.mrf.mxu0
  %v8130 = vpop.f32.mrf.mxu0
  %v8131 = vadd.f32 0.0, %v8130
  %v8132 = vpop.f32.mrf.mxu0
  %8133 = vdwg.mxu0
  %v8150 = vunpack.c.l.b16 %v8013
  %v8151 = vunpack.c.l.b16 %v8014
  %v8152 = vunpack.c.l.b16 %v8015
  %v8153 = vunpack.c.l.b16 %v8016
  %v8154 = vunpack.c.l.b16 %v8017
  %v8155 = vunpack.c.l.b16 %v8018
  %v8156 = vunpack.c.l.b16 %v8019
  %v8157 = vunpack.c.l.b16 %v8020
  %v8158 = vunpack.c.l.b16 %v8021
  %v8159 = vunpack.c.l.b16 %v8022
  %v8160 = vunpack.c.l.b16 %v8023
  %v8161 = vunpack.c.l.b16 %v8024
  %v8162 = vunpack.c.l.b16 %v8025
  %v8163 = vunpack.c.l.b16 %v8026
  %v8164 = vunpack.c.l.b16 %v8027
  %v8165 = vunpack.c.l.b16 %v8028
  %v8166 = vpack.c.b16 %v8151, %v8150
  %v8167 = vpack.c.b16 %v8153, %v8152
  %v8168 = vpack.c.b16 %v8155, %v8154
  %v8169 = vpack.c.b16 %v8157, %v8156
  %v8170 = vpack.c.b16 %v8159, %v8158
  %v8171 = vpack.c.b16 %v8161, %v8160
  %v8172 = vpack.c.b16 %v8163, %v8162
  %v8173 = vpack.c.b16 %v8165, %v8164
  %8182 = vmatprep.subr.bf16.mxu0 0
  %8183 = vmatpush1.bf16.msra.mxu0 %v8173
  %8184 = vmatprep.subr.bf16.mxu0 0
  %8185 = vmatpush1.bf16.msra.mxu0 %v8172
  %8186 = vmatprep.subr.bf16.mxu0 0
  %8187 = vmatpush1.bf16.msra.mxu0 %v8171
  %8188 = vmatprep.subr.bf16.mxu0 0
  %8189 = vmatpush1.bf16.msra.mxu0 %v8170
  %8190 = vmatprep.subr.bf16.mxu0 0
  %8191 = vmatpush1.bf16.msra.mxu0 %v8169
  %8192 = vmatprep.subr.bf16.mxu0 0
  %8193 = vmatpush1.bf16.msra.mxu0 %v8168
  %8194 = vmatprep.subr.bf16.mxu0 0
  %8195 = vmatpush1.bf16.msra.mxu0 %v8167
  %8196 = vmatprep.subr.bf16.mxu0 0
  %8197 = vmatpush1.bf16.msra.mxu0 %v8166
  %8198 = vmatprep.subr.bf16.mxu0 0
  %8199 = vmatpush2.bf16.msra.mxu0 0
  %8200 = vmatprep.subr.bf16.mxu0 0
  %8201 = vmatpush2.bf16.msra.mxu0 0
  %8202 = vmatprep.subr.bf16.mxu0 0
  %8203 = vmatpush2.bf16.msra.mxu0 0
  %8204 = vmatprep.subr.bf16.mxu0 0
  %8205 = vmatpush2.bf16.msra.mxu0 0
  %8206 = vmatprep.subr.bf16.mxu0 0
  %8207 = vmatpush2.bf16.msra.mxu0 0
  %8208 = vmatprep.subr.bf16.mxu0 0
  %8209 = vmatpush2.bf16.msra.mxu0 0
  %8210 = vmatprep.subr.bf16.mxu0 0
  %8211 = vmatpush2.bf16.msra.mxu0 0
  %8212 = vmatprep.subr.bf16.mxu0 0
  %8213 = vmatpush2.bf16.msra.mxu0 0
  %8214 = vmatprep.mubr.bf16.mxu0 0
  %8215 = vmatmul.mubr.bf16.gmra.mxu0 %v7798
  %v8216 = vpop.f32.mrf.mxu0
  %v8217 = vadd.f32 %v8128, %v8216
  %v8218 = vpop.f32.mrf.mxu0
  %v8219 = vpop.f32.mrf.mxu0
  %v8220 = vadd.f32 %v8131, %v8219
  %v8221 = vpop.f32.mrf.mxu0
  %8222 = vdwg.mxu0
  %v8239 = vunpack.c.l.b16 %v7996
  %v8240 = vunpack.c.l.b16 %v7997
  %v8241 = vunpack.c.l.b16 %v7998
  %v8242 = vunpack.c.l.b16 %v7999
  %v8243 = vunpack.c.l.b16 %v8000
  %v8244 = vunpack.c.l.b16 %v8001
  %v8245 = vunpack.c.l.b16 %v8002
  %v8246 = vunpack.c.l.b16 %v8003
  %v8247 = vunpack.c.l.b16 %v8004
  %v8248 = vunpack.c.l.b16 %v8005
  %v8249 = vunpack.c.l.b16 %v8006
  %v8250 = vunpack.c.l.b16 %v8007
  %v8251 = vunpack.c.l.b16 %v8008
  %v8252 = vunpack.c.l.b16 %v8009
  %v8253 = vunpack.c.l.b16 %v8010
  %v8254 = vunpack.c.l.b16 %v8011
  %v8255 = vpack.c.b16 %v8240, %v8239
  %v8256 = vpack.c.b16 %v8242, %v8241
  %v8257 = vpack.c.b16 %v8244, %v8243
  %v8258 = vpack.c.b16 %v8246, %v8245
  %v8259 = vpack.c.b16 %v8248, %v8247
  %v8260 = vpack.c.b16 %v8250, %v8249
  %v8261 = vpack.c.b16 %v8252, %v8251
  %v8262 = vpack.c.b16 %v8254, %v8253
  %8271 = vmatprep.subr.bf16.mxu0 0
  %8272 = vmatpush1.bf16.msra.mxu0 %v8262
  %8273 = vmatprep.subr.bf16.mxu0 0
  %8274 = vmatpush1.bf16.msra.mxu0 %v8261
  %8275 = vmatprep.subr.bf16.mxu0 0
  %8276 = vmatpush1.bf16.msra.mxu0 %v8260
  %8277 = vmatprep.subr.bf16.mxu0 0
  %8278 = vmatpush1.bf16.msra.mxu0 %v8259
  %8279 = vmatprep.subr.bf16.mxu0 0
  %8280 = vmatpush1.bf16.msra.mxu0 %v8258
  %8281 = vmatprep.subr.bf16.mxu0 0
  %8282 = vmatpush1.bf16.msra.mxu0 %v8257
  %8283 = vmatprep.subr.bf16.mxu0 0
  %8284 = vmatpush1.bf16.msra.mxu0 %v8256
  %8285 = vmatprep.subr.bf16.mxu0 0
  %8286 = vmatpush1.bf16.msra.mxu0 %v8255
  %8287 = vmatprep.subr.bf16.mxu0 0
  %8288 = vmatpush2.bf16.msra.mxu0 0
  %8289 = vmatprep.subr.bf16.mxu0 0
  %8290 = vmatpush2.bf16.msra.mxu0 0
  %8291 = vmatprep.subr.bf16.mxu0 0
  %8292 = vmatpush2.bf16.msra.mxu0 0
  %8293 = vmatprep.subr.bf16.mxu0 0
  %8294 = vmatpush2.bf16.msra.mxu0 0
  %8295 = vmatprep.subr.bf16.mxu0 0
  %8296 = vmatpush2.bf16.msra.mxu0 0
  %8297 = vmatprep.subr.bf16.mxu0 0
  %8298 = vmatpush2.bf16.msra.mxu0 0
  %8299 = vmatprep.subr.bf16.mxu0 0
  %8300 = vmatpush2.bf16.msra.mxu0 0
  %8301 = vmatprep.subr.bf16.mxu0 0
  %8302 = vmatpush2.bf16.msra.mxu0 0
  %8303 = vmatprep.mubr.bf16.mxu0 0
  %8304 = vmatmul.mubr.bf16.gmra.mxu0 %v8012
  %v8305 = vpop.f32.mrf.mxu0
  %v8306 = vadd.f32 %v8217, %v8305
  %v8307 = vpop.f32.mrf.mxu0
  %v8308 = vpop.f32.mrf.mxu0
  %v8309 = vadd.f32 %v8220, %v8308
  %v8310 = vpop.f32.mrf.mxu0
  %8311 = vdwg.mxu0
  %v8312 = vld [vmem:[%s3 + $0x18] sm:$0x1]
  %v8313 = vlaneseq
  %v8314 = vshrl.u32 %v8313, 7
  %v8315 = vsub.s32 0, %v8314
  %v8316 = vrot.slane %v8312, %v8315
  %v8317 = vadd.f32 %v8306, %v8316
  %v8318 = vadd.f32 %v8309, %v8316
  %v8319 = vmax.f32 %v8317, 0.0
  %v8320 = vmax.f32 %v8318, 0.0
  %v8321 = vld [vmem:[%s2 + $0x208] sm:$0xf]
  %v8322 = vld [vmem:[%s2 + $0x20c] sm:$0xf]
  %v8323 = vld [vmem:[%s2 + $0x210] sm:$0xf]
  %v8324 = vld [vmem:[%s2 + $0x214] sm:$0xf]
  %v8325 = vld [vmem:[%s2 + $0x218] sm:$0xf]
  %v8326 = vld [vmem:[%s2 + $0x21c] sm:$0xf]
  %v8327 = vld [vmem:[%s2 + $0x220] sm:$0xf]
  %v8328 = vld [vmem:[%s2 + $0x224] sm:$0xf]
  %v8329 = vld [vmem:[%s2 + $0x228] sm:$0xf]
  %v8330 = vld [vmem:[%s2 + $0x22c] sm:$0xf]
  %v8331 = vld [vmem:[%s2 + $0x230] sm:$0xf]
  %v8332 = vld [vmem:[%s2 + $0x234] sm:$0xf]
  %v8333 = vld [vmem:[%s2 + $0x238] sm:$0xf]
  %v8334 = vld [vmem:[%s2 + $0x23c] sm:$0xf]
  %v8335 = vld [vmem:[%s2 + $0x240] sm:$0xf]
  %v8336 = vld [vmem:[%s2 + $0x244] sm:$0xf]
  %v8337 = vpack.c.bf16 %v8320, %v8319
  %v8338 = vld [vmem:[%s3 + $0x20] sm:$0x1]
  %v8339 = vlaneseq
  %v8340 = vshrl.u32 %v8339, 7
  %v8341 = vsub.s32 0, %v8340
  %v8342 = vrot.slane %v8338, %v8341
  %v8359 = vunpack.c.l.b16 %v8321
  %v8360 = vunpack.c.l.b16 %v8322
  %v8361 = vunpack.c.l.b16 %v8323
  %v8362 = vunpack.c.l.b16 %v8324
  %v8363 = vunpack.c.l.b16 %v8325
  %v8364 = vunpack.c.l.b16 %v8326
  %v8365 = vunpack.c.l.b16 %v8327
  %v8366 = vunpack.c.l.b16 %v8328
  %v8367 = vunpack.c.l.b16 %v8329
  %v8368 = vunpack.c.l.b16 %v8330
  %v8369 = vunpack.c.l.b16 %v8331
  %v8370 = vunpack.c.l.b16 %v8332
  %v8371 = vunpack.c.l.b16 %v8333
  %v8372 = vunpack.c.l.b16 %v8334
  %v8373 = vunpack.c.l.b16 %v8335
  %v8374 = vunpack.c.l.b16 %v8336
  %v8375 = vpack.c.b16 %v8360, %v8359
  %v8376 = vpack.c.b16 %v8362, %v8361
  %v8377 = vpack.c.b16 %v8364, %v8363
  %v8378 = vpack.c.b16 %v8366, %v8365
  %v8379 = vpack.c.b16 %v8368, %v8367
  %v8380 = vpack.c.b16 %v8370, %v8369
  %v8381 = vpack.c.b16 %v8372, %v8371
  %v8382 = vpack.c.b16 %v8374, %v8373
  %8391 = vmatprep.subr.bf16.mxu0 0
  %8392 = vmatpush1.bf16.msra.mxu0 %v8382
  %8393 = vmatprep.subr.bf16.mxu0 0
  %8394 = vmatpush1.bf16.msra.mxu0 %v8381
  %8395 = vmatprep.subr.bf16.mxu0 0
  %8396 = vmatpush1.bf16.msra.mxu0 %v8380
  %8397 = vmatprep.subr.bf16.mxu0 0
  %8398 = vmatpush1.bf16.msra.mxu0 %v8379
  %8399 = vmatprep.subr.bf16.mxu0 0
  %8400 = vmatpush1.bf16.msra.mxu0 %v8378
  %8401 = vmatprep.subr.bf16.mxu0 0
  %8402 = vmatpush1.bf16.msra.mxu0 %v8377
  %8403 = vmatprep.subr.bf16.mxu0 0
  %8404 = vmatpush1.bf16.msra.mxu0 %v8376
  %8405 = vmatprep.subr.bf16.mxu0 0
  %8406 = vmatpush1.bf16.msra.mxu0 %v8375
  %8407 = vmatprep.subr.bf16.mxu0 0
  %8408 = vmatpush2.bf16.msra.mxu0 0
  %8409 = vmatprep.subr.bf16.mxu0 0
  %8410 = vmatpush2.bf16.msra.mxu0 0
  %8411 = vmatprep.subr.bf16.mxu0 0
  %8412 = vmatpush2.bf16.msra.mxu0 0
  %8413 = vmatprep.subr.bf16.mxu0 0
  %8414 = vmatpush2.bf16.msra.mxu0 0
  %8415 = vmatprep.subr.bf16.mxu0 0
  %8416 = vmatpush2.bf16.msra.mxu0 0
  %8417 = vmatprep.subr.bf16.mxu0 0
  %8418 = vmatpush2.bf16.msra.mxu0 0
  %8419 = vmatprep.subr.bf16.mxu0 0
  %8420 = vmatpush2.bf16.msra.mxu0 0
  %8421 = vmatprep.subr.bf16.mxu0 0
  %8422 = vmatpush2.bf16.msra.mxu0 0
  %8423 = vmatprep.mubr.bf16.mxu0 0
  %8424 = vmatmul.mubr.bf16.gmra.mxu0 %v8337
  %v8425 = vpop.f32.mrf.mxu0
  %v8426 = vadd.f32 %v8342, %v8425
  %v8427 = vpop.f32.mrf.mxu0
  %v8428 = vpop.f32.mrf.mxu0
  %v8429 = vadd.f32 %v8342, %v8428
  %v8430 = vpop.f32.mrf.mxu0
  %8431 = vdwg.mxu0
  %v8432 = vmax.f32 %v8426, 0.0
  %v8433 = vmax.f32 %v8429, 0.0
  %v8434 = vld [vmem:[%s3 + $0x30] sm:$0x1]
  %v8435 = vlaneseq
  %v8436 = vshrl.u32 %v8435, 7
  %v8437 = vsub.s32 0, %v8436
  %v8438 = vrot.slane %v8434, %v8437
  %v8439 = vmul.f32 %v8432, %v8438
  %v8440 = vmul.f32 %v8433, %v8438
  %8441 = vadd.xlane.f32.xlu0 %v8439
  %v8442 = vpop.xlane.xlu0 %8441
  %8443 = vadd.xlane.f32.xlu0 %v8440
  %v8444 = vpop.xlane.xlu0 %8443
  %v8445 = vld [vmem:[%s3 + $0x28] sm:$0x1]
  %v8446 = vlaneseq
  %v8447 = vshrl.u32 %v8446, 7
  %v8448 = vsub.s32 0, %v8447
  %v8449 = vrot.slane %v8445, %v8448
  %v8450 = vadd.f32 %v8442, %v8449
  %v8451 = vadd.f32 %v8444, %v8449
  %v8452 = vxor.u32 %v8450, 2147483648
  %v8453 = vxor.u32 %v8451, 2147483648
  %v8454 = vmul.f32 %v8452, 1.442695
  %v8455 = vpow.pop %v8454
  %v8456 = vmul.f32 %v8453, 1.442695
  %v8457 = vpow.pop %v8456
  %v8458 = vadd.f32 %v8455, 1.0
  %v8459 = vadd.f32 %v8457, 1.0
  %v8460 = vrcp.pop %v8458
  %v8461 = vmul.f32 1.0, %v8460
  %v8462 = vrcp.pop %v8459
  %v8463 = vmul.f32 1.0, %v8462
  %v8464 = vlaneseq
  %v8465 = vshrl.u32 %v8464, 7
  %v8466 = vadd.s32 %v8465, 8
  %v8467 = vlaneseq
  %v8468 = vand.u32 %v8467, 127
  %vm8469 = vcmp.eq.s32.totalorder %v8465, %v8468
  %vm8470 = vcmp.eq.s32.totalorder %v8466, %v8468
  %v8471 = vsel %vm8469, 1, 0
  %v8472 = vsel %vm8470, 1, 0
  %v8473 = vcvt.s32.f32 %v8471
  %v8474 = vcvt.s32.f32 %v8472
  %8476 = vset.pattern.permute.xlu0 0
  %8477 = vperm.xlu0 %8476, %v8461
  %v8478 = vpop.permute.xlu0 %8477
  %8481 = vset.pattern.permute.xlu0 0
  %8482 = vperm.xlu0 %8481, %v8463
  %v8483 = vpop.permute.xlu0 %8482
  %v8485 = vmul.f32 %v8478, %v8473
  %v8486 = vmul.f32 %v8483, %v8474
  %v8487 = vadd.f32 %v8485, %v8486
  %v8488 = vrot.slane %v8487, 4
  %v8489 = vadd.f32 %v8487, %v8488
  %v8490 = vrot.slane %v8489, 2
  %v8491 = vadd.f32 %v8489, %v8490
  %v8492 = vrot.slane %v8491, 1
  %v8493 = vadd.f32 %v8491, %v8492
  %8494 = vst [vmem:[%s6] sm:$0xff] %v8493
  // Predicated region
  $region26: #{forward.1} parent=0 // pred_check
    _
  $region27: #{forward.1} parent=0 // pred_check_branch
    %8496 = sbr.rel (0) target = $region29
  $region28: #{forward.1} parent=0 // pred_region
    _
  $region29: #{forward.1} parent=0 // pred_fallthru
    _
  // Predicated region
  $region30: #{forward.1} parent=0 // pred_check
    _
  $region31: #{forward.1} parent=0 // pred_check_branch
    %8498 = sbr.rel (0) target = $region33
  $region32: #{forward.1} parent=0 // pred_region
    _
  $region33: #{forward.1} parent=0 // pred_fallthru
    _

</llo_original>
